<compile_context>
chip_gen: v5e
topology: v5e:2x2
jax: 0.10.0
libtpu: 0.0.40
codegen_flags: <defaults>
</compile_context>

<pallas_src>
import functools

import jax
import jax.numpy as jnp
from jax.experimental import pallas as pl
from jax.experimental.pallas import tpu as pltpu


def _round_up(v, m):
    return ((v + m - 1) // m) * m


# ----------------------------------------------------------------------------
# Fused conv + bias + BatchNorm(batch statistics) + ReLU Pallas kernel
# ----------------------------------------------------------------------------

@functools.lru_cache(maxsize=None)
def _make_conv_bn_relu_kernel(K, tm_h):
    """Grid: (b: branch [parallel], j: Cout 128-tile [parallel],
              i: row tile [arbitrary, innermost]).

    Refs seen by the kernel (branch dim squeezed away by the BlockSpecs):
      p_ref    : [Hp, N, Wp, Cin]  bf16  zero-padded input, resident per branch
      w_ref    : [K, K*Cin, 128]   bf16  weights for this (branch, Cout tile)
      b_ref    : [1, 128]          f32   bias
      o_ref    : [n_m, tm, 128]    bf16  output, resident (revisited) across i
      stat_ref : [2, 1, 128]       f32   running per-channel sum / sum-of-sq
    """

    def kernel(p_ref, w_ref, b_ref, o_ref, stat_ref):
        i = pl.program_id(2)
        _hp, _n, wp, cin = p_ref.shape
        wdim = wp - (K - 1)
        kd = K * cin
        n_m, tm, _ = o_ref.shape

        # tm_h output rows need tm_h + K - 1 padded input rows (dynamic
        # leading-dim slice of the VMEM-resident input: pure address offset).
        slab = p_ref[pl.ds(i * tm_h, tm_h + K - 1)]       # [tm_h+K-1, N, Wp, C]

        if K > 1:
            # Gather the K column taps in-register (review: no HBM im2col).
            # Slice in f32 (plain 32-bit sublane shifts), then pack back to
            # bf16 so each row tap is one matmul of contraction depth K*Cin.
            s32 = slab.astype(jnp.float32)
            cols = jnp.concatenate(
                [s32[:, :, kx:kx + wdim, :] for kx in range(K)],
                axis=-1).astype(jnp.bfloat16)             # [tm_h+K-1, N, W, K*C]
        else:
            cols = slab                                   # [tm_h, N, W, C]

        acc = jnp.dot(cols[0:tm_h].reshape(tm, kd), w_ref[0],
                      preferred_element_type=jnp.float32)
        for ty in range(1, K):
            acc = acc + jnp.dot(cols[ty:ty + tm_h].reshape(tm, kd), w_ref[ty],
                                preferred_element_type=jnp.float32)
        acc = acc + b_ref[...]                            # pre-BN, f32 [tm, 128]

        # Running BN statistics, accumulated under the MXU work (review: no
        # 3-pass BN tail).  Reset at i == 0 of every (branch, Cout-tile).
        @pl.when(i == 0)
        def _():
            stat_ref[...] = jnp.zeros_like(stat_ref)

        stat_ref[0] += jnp.sum(acc, axis=0, keepdims=True)
        stat_ref[1] += jnp.sum(acc * acc, axis=0, keepdims=True)

        # Stash pre-BN activations in bf16 directly in the resident output.
        o_ref[i] = acc.astype(o_ref.dtype)

        # Single normalize+ReLU pass once the last row tile is done.  Relies
        # on `i` being the innermost sequential ("arbitrary") grid axis.
        # (Padded Cout lanes have zero weights/bias -> mean=var=0 -> output 0.)
        @pl.when(i == n_m - 1)
        def _():
            inv_m = 1.0 / float(n_m * tm)
            mean = stat_ref[0] * inv_m                    # [1, 128]
            var = stat_ref[1] * inv_m - mean * mean
            scale = jax.lax.rsqrt(var + 1e-5)
            for i2 in range(n_m):
                y = o_ref[i2].astype(jnp.float32)
                o_ref[i2] = jnp.maximum((y - mean) * scale,
                                        0.0).astype(o_ref.dtype)

    return kernel


def _fused_conv_bn_relu(x5, w4, b3, K):
    """x5: [B, Hp, N, Wp, Cin] bf16, zero-padded by (K-1)//2 in H and W.
    w4: [B, K, K*Cin, Cp] bf16; b3: [B, 1, Cp] f32 (Cp = multiple of 128).
    Returns relu(batchnorm(conv(x)+bias)) as [B, H, N, W, Cp] bf16 with
    per-(branch, channel) batch statistics."""
    B, Hp, N, Wp, Cin = x5.shape
    H, W = Hp - (K - 1), Wp - (K - 1)
    Kd = K * Cin
    Cp = int(w4.shape[-1])
    TN = 128
    assert w4.shape == (B, K, Kd, Cp) and b3.shape == (B, 1, Cp)
    assert Cp % TN == 0
    n_j = Cp // TN

    # Row-tile height: aim for ~512 output rows per weight push (keeps the
    # MXU fed, fewer grid steps) while bounding the in-register tap buffer.
    nw = N * W
    tm_h = max(1, min(H, 512 // max(nw, 1)))
    while H % tm_h:
        tm_h -= 1
    while tm_h > 1 and (tm_h + K - 1) * nw * Kd * 4 > (8 << 20):
        tm_h = tm_h // 2
        while H % tm_h:
            tm_h -= 1
    n_m = H // tm_h
    tm = tm_h * nw

    out = pl.pallas_call(
        _make_conv_bn_relu_kernel(K, tm_h),
        out_shape=jax.ShapeDtypeStruct((B, n_m, tm, Cp), jnp.bfloat16),
        grid_spec=pltpu.PrefetchScalarGridSpec(
            num_scalar_prefetch=0,
            grid=(B, n_j, n_m),
            in_specs=[
                # Raw padded input, resident across (j, i) for each branch.
                pl.BlockSpec((None, Hp, N, Wp, Cin),
                             lambda b, j, i: (b, 0, 0, 0, 0)),
                pl.BlockSpec((None, K, Kd, TN),
                             lambda b, j, i: (b, 0, 0, j)),
                pl.BlockSpec((None, 1, TN),
                             lambda b, j, i: (b, 0, j)),
            ],
            out_specs=pl.BlockSpec((None, n_m, tm, TN),
                                   lambda b, j, i: (b, 0, 0, j)),
            scratch_shapes=[pltpu.VMEM((2, 1, TN), jnp.float32)],
        ),
        compiler_params=pltpu.CompilerParams(
            dimension_semantics=("parallel", "parallel", "arbitrary"),
            vmem_limit_bytes=32 * 1024 * 1024,
        ),
    )(x5, w4, b3)
    # Row order inside tm is (h_local, n, w)  =>  plain reshape, no transpose.
    return out.reshape(B, H, N, W, Cp)


# ----------------------------------------------------------------------------
# Parameter init (PyTorch layouts) and one-time weight preparation
# ----------------------------------------------------------------------------

def init_conv(key, cout, cin, k):
    kw, kb = jax.random.split(key)
    fan_in = cin * k * k
    w = jax.random.normal(kw, (cout, cin, k, k), jnp.float32) / jnp.sqrt(fan_in)
    b = 0.01 * jax.random.normal(kb, (cout,), jnp.float32)
    return {'w': w, 'b': b}


def init_inception(key, input_size, config):
    keys = jax.random.split(key, 2 * len(config))
    params = [init_conv(keys[0], config[0][0], input_size, 1)]
    for i in range(1, len(config)):
        filt, out_a, out_b = config[i]
        p1 = init_conv(keys[2 * i], out_a, input_size, 1)
        p2 = init_conv(keys[2 * i + 1], out_b, out_a, filt)
        params.append({'w1': p1['w'], 'b1': p1['b'],
                       'w2': p2['w'], 'b2': p2['b']})
    return params


def prepare_inception_params(params, config):
    """One-time weight preprocessing, hoisted out of the jitted forward:
    kernel-layout transpose, zero padding of K / Cin / Cout (Cout to a
    multiple of 128 lanes), bf16 cast, bias padding."""
    # Stage 1: every branch's first 1x1 conv, fused along Cout.
    w1 = jnp.concatenate([params[0]['w']] + [p['w1'] for p in params[1:]], axis=0)
    b1 = jnp.concatenate([params[0]['b']] + [p['b1'] for p in params[1:]], axis=0)
    csum = int(w1.shape[0])
    cp1 = _round_up(csum, 128)
    w1m = jnp.pad(jnp.transpose(w1[:, :, 0, 0], (1, 0)),
                  ((0, 0), (0, cp1 - csum))).astype(jnp.bfloat16)
    prep = {
        'w1': w1m[None, None],                                  # [1, 1, Cin, Cp1]
        'b1': jnp.pad(b1.astype(jnp.float32), (0, cp1 - csum))[None, None],
    }
    if len(config) > 1:
        ks = [int(c[0]) for c in config[1:]]
        cas = [int(c[1]) for c in config[1:]]
        cbs = [int(c[2]) for c in config[1:]]
        kmax, ca_max = max(ks), max(cas)
        cp2 = _round_up(max(cbs), 128)
        w_list, b_list = [], []
        for p, kf, ca, cb in zip(params[1:], ks, cas, cbs):
            wt = jnp.transpose(p['w2'], (2, 3, 1, 0))           # [K, K, Cin, Cout]
            off = (kmax - kf) // 2                              # center in Kmax grid
            wf = jnp.zeros((kmax, kmax, ca_max, cp2), jnp.float32)
            wf = wf.at[off:off + kf, off:off + kf, :ca, :cb].set(wt)
            w_list.append(
                wf.reshape(kmax, kmax * ca_max, cp2).astype(jnp.bfloat16))
            b_list.append(jnp.pad(p['b2'].astype(jnp.float32), (0, cp2 - cb)))
        prep['w2'] = jnp.stack(w_list, axis=0)                  # [B, Kmax, Kmax*Ca, Cp2]
        prep['b2'] = jnp.stack(b_list, axis=0)[:, None, :]      # [B, 1, Cp2]
    return prep


# ----------------------------------------------------------------------------
# Inception forward (NCHW public interface, (H, N, W, C) internally)
# ----------------------------------------------------------------------------

def build_inception_apply(config):
    c0 = int(config[0][0])
    ks = tuple(int(c[0]) for c in config[1:])
    cas = tuple(int(c[1]) for c in config[1:])
    cbs = tuple(int(c[2]) for c in config[1:])
    kmax = max(ks) if ks else 1
    ca_max = max(cas) if cas else 0
    pad = (kmax - 1) // 2

    def forward_hnw(prep, x):                         # x: [H, N, W, Cin] bf16
        # Stage 1: the 1x1 convs of every branch fused into ONE kernel call
        # (per-channel BN over concatenated channels == per-branch BN).
        y = _fused_conv_bn_relu(x[None], prep['w1'], prep['b1'], K=1)[0]
        outs = [y[..., :c0]]
        if ks:
            # Stage 2: all KxK branch convs batched into ONE kernel call;
            # the branch axis is a "parallel" grid dim (2nd TC on v7x) and
            # the launch count drops by the number of branches.
            off = c0
            pieces = []
            for ca in cas:
                t = y[..., off:off + ca]
                off += ca
                pieces.append(jnp.pad(
                    t, ((pad, pad), (0, 0), (pad, pad), (0, ca_max - ca))))
            xb = jnp.stack(pieces, axis=0)            # [B, Hp, N, Wp, Ca_max]
            z = _fused_conv_bn_relu(xb, prep['w2'], prep['b2'], K=kmax)
            for bi, cb in enumerate(cbs):
                outs.append(z[bi, ..., :cb])
        return jnp.concatenate(outs, axis=-1)         # [H, N, W, sum(Cout)]

    @jax.jit
    def apply(prep, x_nchw):
        # Single layout change at entry/exit; everything in between stays in
        # the (H, N, W, C) activation layout.
        xh = jnp.transpose(x_nchw, (2, 0, 3, 1)).astype(jnp.bfloat16)
        yh = forward_hnw(prep, xh)
        return jnp.transpose(yh, (1, 3, 0, 2)).astype(jnp.float32)

    return apply


# ----------------------------------------------------------------------------
# Pure-JAX f32 reference (matches the PyTorch module, train-mode BN)
# ----------------------------------------------------------------------------

def reference_forward(params, x_nchw):
    def cbr(x, w, b):
        y = jax.lax.conv_general_dilated(
            x, w, window_strides=(1, 1), padding='SAME',
            dimension_numbers=('NCHW', 'OIHW', 'NCHW')) + b[None, :, None, None]
        m = jnp.mean(y, axis=(0, 2, 3), keepdims=True)
        v = jnp.mean(jnp.square(y - m), axis=(0, 2, 3), keepdims=True)
        return jnp.maximum((y - m) * jax.lax.rsqrt(v + 1e-5), 0.0)

    outs = [cbr(x_nchw, params[0]['w'], params[0]['b'])]
    for p in params[1:]:
        h = cbr(x_nchw, p['w1'], p['b1'])
        outs.append(cbr(h, p['w2'], p['b2']))
    return jnp.concatenate(outs, axis=1)


# ----------------------------------------------------------------------------

if __name__ == "__main__":
    key = jax.random.PRNGKey(0)
    pkey, xkey = jax.random.split(key)

    input_size = 64
    config = [[64], [3, 32, 64], [5, 32, 64], [7, 32, 64]]   # Inception 'A'-style
    params = init_inception(pkey, input_size, config)
    prep = prepare_inception_params(params, config)          # one-time weight prep

    x = jax.random.normal(xkey, (2, input_size, 16, 16), jnp.float32)  # NCHW

    apply_fn = build_inception_apply(config)
    out = jax.block_until_ready(apply_fn(prep, x))

    cout_total = config[0][0] + sum(c[2] for c in config[1:])
    assert out.shape == (2, cout_total, 16, 16), out.shape
    assert bool(jnp.all(jnp.isfinite(out)))

    # Loose-tolerance check against a pure-JAX f32 reference (the kernel runs
    # bf16 matmuls with f32 accumulation, so bit-exactness is not expected).
    ref = jax.block_until_ready(jax.jit(reference_forward)(params, x))
    max_err = float(jnp.max(jnp.abs(out - ref)))
    assert max_err < 0.15, max_err

    print("KERNEL_OK")
</pallas_src>

<mosaic_0001>
module attributes {stable_mosaic.version = 11 : i64} {
  func.func @kernel(%arg0: i32, %arg1: i32, %arg2: i32, %arg3: memref<1x16x2x16x64xbf16, #tpu.memory_space<vmem>>, %arg4: memref<1x1x64x128xbf16, #tpu.memory_space<vmem>>, %arg5: memref<1x1x128xf32, #tpu.memory_space<vmem>>, %arg6: memref<1x1x512x128xbf16, #tpu.memory_space<vmem>>, %arg7: memref<2x1x128xf32, #tpu.memory_space<vmem>>) attributes {dimension_semantics = [#tpu.dimension_semantics<parallel>, #tpu.dimension_semantics<parallel>, #tpu.dimension_semantics<arbitrary>], iteration_bounds = array<i64: 1, 2, 1>, scalar_prefetch = 0 : i64, scratch_operands = 1 : i64, tpu.core_type = #tpu.core_type<tc>, window_params = [{transform_indices = @transform_0, window_bounds = array<i64: 1, 16, 2, 16, 64>}, {transform_indices = @transform_1, window_bounds = array<i64: 1, 1, 64, 128>}, {transform_indices = @transform_2, window_bounds = array<i64: 1, 1, 128>}, {transform_indices = @transform_3, window_bounds = array<i64: 1, 1, 512, 128>}]} {
    %c16_i32 = arith.constant 16 : i32
    %0 = arith.muli %arg2, %c16_i32 : i32
    %c0 = arith.constant 0 : index
    %1 = arith.index_cast %0 : i32 to index
    %c0_0 = arith.constant 0 : index
    %c0_1 = arith.constant 0 : index
    %c0_2 = arith.constant 0 : index
    %2 = vector.load %arg3[%c0, %1, %c0_0, %c0_1, %c0_2] : memref<1x16x2x16x64xbf16, #tpu.memory_space<vmem>>, vector<1x16x2x16x64xbf16>
    %3 = vector.shape_cast %2 : vector<1x16x2x16x64xbf16> to vector<16x2x16x64xbf16>
    %4 = vector.shape_cast %3 : vector<16x2x16x64xbf16> to vector<512x64xbf16>
    %c0_3 = arith.constant 0 : index
    %c0_4 = arith.constant 0 : index
    %c0_5 = arith.constant 0 : index
    %c0_6 = arith.constant 0 : index
    %5 = vector.load %arg4[%c0_3, %c0_4, %c0_5, %c0_6] : memref<1x1x64x128xbf16, #tpu.memory_space<vmem>>, vector<1x1x64x128xbf16>
    %6 = vector.shape_cast %5 : vector<1x1x64x128xbf16> to vector<64x128xbf16>
    %cst = arith.constant dense<0.000000e+00> : vector<512x128xf32>
    %7 = tpu.matmul %4, %6, %cst {dimension_numbers = #tpu.dot_dimension_numbers<[1], [0], [0], [1], [0, 0, 1, 1], [], []>} : vector<512x64xbf16>, vector<64x128xbf16>, vector<512x128xf32> -> vector<512x128xf32>
    %c0_7 = arith.constant 0 : index
    %c0_8 = arith.constant 0 : index
    %c0_9 = arith.constant 0 : index
    %8 = vector.load %arg5[%c0_7, %c0_8, %c0_9] : memref<1x1x128xf32, #tpu.memory_space<vmem>>, vector<1x1x128xf32>
    %9 = vector.shape_cast %8 : vector<1x1x128xf32> to vector<1x128xf32>
    %10 = vector.broadcast %9 : vector<1x128xf32> to vector<512x128xf32>
    %11 = arith.addf %7, %10 : vector<512x128xf32>
    %c0_i32 = arith.constant 0 : i32
    %12 = arith.cmpi eq, %arg2, %c0_i32 : i32
    %13 = arith.extui %12 : i1 to i32
    %c0_i32_10 = arith.constant 0 : i32
    %14 = arith.cmpi ne, %13, %c0_i32_10 : i32
    scf.if %14 {
      %cst_29 = arith.constant 0.000000e+00 : f32
      %40 = vector.broadcast %cst_29 : f32 to vector<2x1x128xf32>
      %c0_30 = arith.constant 0 : index
      %c0_31 = arith.constant 0 : index
      %c0_32 = arith.constant 0 : index
      %41 = vector.load %arg7[%c0_30, %c0_31, %c0_32] : memref<2x1x128xf32, #tpu.memory_space<vmem>>, vector<2x1x128xf32>
      tpu.vector_store %arg7[%c0_30, %c0_31, %c0_32], %40 {strides = array<i32>} : memref<2x1x128xf32, #tpu.memory_space<vmem>>, vector<2x1x128xf32>,
    } else {
    }
    %c0_11 = arith.constant 0 : index
    %c0_12 = arith.constant 0 : index
    %c0_13 = arith.constant 0 : index
    %15 = vector.load %arg7[%c0_11, %c0_12, %c0_13] : memref<2x1x128xf32, #tpu.memory_space<vmem>>, vector<1x1x128xf32>
    %16 = vector.shape_cast %15 : vector<1x1x128xf32> to vector<1x128xf32>
    %cst_14 = arith.constant dense<0.000000e+00> : vector<128xf32>
    %17 = vector.multi_reduction <add>, %11, %cst_14 [0] : vector<512x128xf32> to vector<128xf32>
    %18 = vector.shape_cast %17 : vector<128xf32> to vector<1x128xf32>
    %19 = arith.addf %16, %18 : vector<1x128xf32>
    %c0_15 = arith.constant 0 : index
    %c0_16 = arith.constant 0 : index
    %c0_17 = arith.constant 0 : index
    %20 = vector.load %arg7[%c0_15, %c0_16, %c0_17] : memref<2x1x128xf32, #tpu.memory_space<vmem>>, vector<1x1x128xf32>
    %21 = vector.shape_cast %20 : vector<1x1x128xf32> to vector<1x128xf32>
    %22 = vector.shape_cast %19 : vector<1x128xf32> to vector<1x1x128xf32>
    tpu.vector_store %arg7[%c0_15, %c0_16, %c0_17], %22 {strides = array<i32>} : memref<2x1x128xf32, #tpu.memory_space<vmem>>, vector<1x1x128xf32>,
    %c1 = arith.constant 1 : index
    %c0_18 = arith.constant 0 : index
    %c0_19 = arith.constant 0 : index
    %23 = vector.load %arg7[%c1, %c0_18, %c0_19] : memref<2x1x128xf32, #tpu.memory_space<vmem>>, vector<1x1x128xf32>
    %24 = vector.shape_cast %23 : vector<1x1x128xf32> to vector<1x128xf32>
    %25 = arith.mulf %11, %11 : vector<512x128xf32>
    %cst_20 = arith.constant dense<0.000000e+00> : vector<128xf32>
    %26 = vector.multi_reduction <add>, %25, %cst_20 [0] : vector<512x128xf32> to vector<128xf32>
    %27 = vector.shape_cast %26 : vector<128xf32> to vector<1x128xf32>
    %28 = arith.addf %24, %27 : vector<1x128xf32>
    %c1_21 = arith.constant 1 : index
    %c0_22 = arith.constant 0 : index
    %c0_23 = arith.constant 0 : index
    %29 = vector.load %arg7[%c1_21, %c0_22, %c0_23] : memref<2x1x128xf32, #tpu.memory_space<vmem>>, vector<1x1x128xf32>
    %30 = vector.shape_cast %29 : vector<1x1x128xf32> to vector<1x128xf32>
    %31 = vector.shape_cast %28 : vector<1x128xf32> to vector<1x1x128xf32>
    tpu.vector_store %arg7[%c1_21, %c0_22, %c0_23], %31 {strides = array<i32>} : memref<2x1x128xf32, #tpu.memory_space<vmem>>, vector<1x1x128xf32>,
    %32 = arith.truncf %11 : vector<512x128xf32> to vector<512x128xbf16>
    %c0_24 = arith.constant 0 : index
    %33 = arith.index_cast %arg2 : i32 to index
    %c0_25 = arith.constant 0 : index
    %c0_26 = arith.constant 0 : index
    %34 = vector.load %arg6[%c0_24, %33, %c0_25, %c0_26] : memref<1x1x512x128xbf16, #tpu.memory_space<vmem>>, vector<1x1x512x128xbf16>
    %35 = vector.shape_cast %34 : vector<1x1x512x128xbf16> to vector<512x128xbf16>
    %36 = vector.shape_cast %32 : vector<512x128xbf16> to vector<1x1x512x128xbf16>
    tpu.vector_store %arg6[%c0_24, %33, %c0_25, %c0_26], %36 {strides = array<i32>} : memref<1x1x512x128xbf16, #tpu.memory_space<vmem>>, vector<1x1x512x128xbf16>,
    %c0_i32_27 = arith.constant 0 : i32
    %37 = arith.cmpi eq, %arg2, %c0_i32_27 : i32
    %38 = arith.extui %37 : i1 to i32
    %c0_i32_28 = arith.constant 0 : i32
    %39 = arith.cmpi ne, %38, %c0_i32_28 : i32
    scf.if %39 {
      %c0_29 = arith.constant 0 : index
      %c0_30 = arith.constant 0 : index
      %c0_31 = arith.constant 0 : index
      %40 = vector.load %arg7[%c0_29, %c0_30, %c0_31] : memref<2x1x128xf32, #tpu.memory_space<vmem>>, vector<1x1x128xf32>
      %41 = vector.shape_cast %40 : vector<1x1x128xf32> to vector<1x128xf32>
      %cst_32 = arith.constant 0.001953125 : f32
      %42 = vector.broadcast %cst_32 : f32 to vector<1x128xf32>
      %43 = arith.mulf %41, %42 : vector<1x128xf32>
      %c1_33 = arith.constant 1 : index
      %c0_34 = arith.constant 0 : index
      %c0_35 = arith.constant 0 : index
      %44 = vector.load %arg7[%c1_33, %c0_34, %c0_35] : memref<2x1x128xf32, #tpu.memory_space<vmem>>, vector<1x1x128xf32>
      %45 = vector.shape_cast %44 : vector<1x1x128xf32> to vector<1x128xf32>
      %cst_36 = arith.constant 0.001953125 : f32
      %46 = vector.broadcast %cst_36 : f32 to vector<1x128xf32>
      %47 = arith.mulf %45, %46 : vector<1x128xf32>
      %48 = arith.mulf %43, %43 : vector<1x128xf32>
      %49 = arith.subf %47, %48 : vector<1x128xf32>
      %cst_37 = arith.constant 9.99999974E-6 : f32
      %50 = vector.broadcast %cst_37 : f32 to vector<1x128xf32>
      %51 = arith.addf %49, %50 : vector<1x128xf32>
      %52 = math.rsqrt %51 : vector<1x128xf32>
      %c0_38 = arith.constant 0 : index
      %c0_39 = arith.constant 0 : index
      %c0_40 = arith.constant 0 : index
      %c0_41 = arith.constant 0 : index
      %53 = vector.load %arg6[%c0_38, %c0_39, %c0_40, %c0_41] : memref<1x1x512x128xbf16, #tpu.memory_space<vmem>>, vector<1x1x512x128xbf16>
      %54 = vector.shape_cast %53 : vector<1x1x512x128xbf16> to vector<512x128xbf16>
      %55 = arith.extf %54 : vector<512x128xbf16> to vector<512x128xf32>
      %56 = vector.broadcast %43 : vector<1x128xf32> to vector<512x128xf32>
      %57 = arith.subf %55, %56 : vector<512x128xf32>
      %58 = vector.broadcast %52 : vector<1x128xf32> to vector<512x128xf32>
      %59 = arith.mulf %57, %58 : vector<512x128xf32>
      %cst_42 = arith.constant 0.000000e+00 : f32
      %60 = vector.broadcast %cst_42 : f32 to vector<512x128xf32>
      %61 = arith.maximumf %59, %60 : vector<512x128xf32>
      %62 = arith.truncf %61 : vector<512x128xf32> to vector<512x128xbf16>
      %c0_43 = arith.constant 0 : index
      %c0_44 = arith.constant 0 : index
      %c0_45 = arith.constant 0 : index
      %c0_46 = arith.constant 0 : index
      %63 = vector.load %arg6[%c0_43, %c0_44, %c0_45, %c0_46] : memref<1x1x512x128xbf16, #tpu.memory_space<vmem>>, vector<1x1x512x128xbf16>
      %64 = vector.shape_cast %63 : vector<1x1x512x128xbf16> to vector<512x128xbf16>
      %65 = vector.shape_cast %62 : vector<512x128xbf16> to vector<1x1x512x128xbf16>
      tpu.vector_store %arg6[%c0_43, %c0_44, %c0_45, %c0_46], %65 {strides = array<i32>} : memref<1x1x512x128xbf16, #tpu.memory_space<vmem>>, vector<1x1x512x128xbf16>,
    } else {
    }
    return
  }
  func.func @transform_0(%arg0: i32, %arg1: i32, %arg2: i32) -> (i32, i32, i32, i32, i32) {
    %c0_i32 = arith.constant 0 : i32
    %c0_i32_0 = arith.constant 0 : i32
    %c0_i32_1 = arith.constant 0 : i32
    %c0_i32_2 = arith.constant 0 : i32
    %c0_i32_3 = arith.constant 0 : i32
    return %arg0, %c0_i32, %c0_i32_0, %c0_i32_1, %c0_i32_2 : i32, i32, i32, i32, i32
  }
  func.func @transform_1(%arg0: i32, %arg1: i32, %arg2: i32) -> (i32, i32, i32, i32) {
    %c0_i32 = arith.constant 0 : i32
    %c0_i32_0 = arith.constant 0 : i32
    %c0_i32_1 = arith.constant 0 : i32
    return %arg0, %c0_i32, %c0_i32_0, %arg1 : i32, i32, i32, i32
  }
  func.func @transform_2(%arg0: i32, %arg1: i32, %arg2: i32) -> (i32, i32, i32) {
    %c0_i32 = arith.constant 0 : i32
    %c0_i32_0 = arith.constant 0 : i32
    return %arg0, %c0_i32, %arg1 : i32, i32, i32
  }
  func.func @transform_3(%arg0: i32, %arg1: i32, %arg2: i32) -> (i32, i32, i32, i32) {
    %c0_i32 = arith.constant 0 : i32
    %c0_i32_0 = arith.constant 0 : i32
    %c0_i32_1 = arith.constant 0 : i32
    return %arg0, %c0_i32, %c0_i32_0, %arg1 : i32, i32, i32, i32
  }
}

module attributes {stable_mosaic.version = 11 : i64} {
  func.func @kernel(%arg0: i32, %arg1: i32, %arg2: i32, %arg3: memref<1x22x2x22x32xbf16, #tpu.memory_space<vmem>>, %arg4: memref<1x7x224x128xbf16, #tpu.memory_space<vmem>>, %arg5: memref<1x1x128xf32, #tpu.memory_space<vmem>>, %arg6: memref<1x1x512x128xbf16, #tpu.memory_space<vmem>>, %arg7: memref<2x1x128xf32, #tpu.memory_space<vmem>>) attributes {dimension_semantics = [#tpu.dimension_semantics<parallel>, #tpu.dimension_semantics<parallel>, #tpu.dimension_semantics<arbitrary>], iteration_bounds = array<i64: 3, 1, 1>, scalar_prefetch = 0 : i64, scratch_operands = 1 : i64, tpu.core_type = #tpu.core_type<tc>, window_params = [{transform_indices = @transform_0, window_bounds = array<i64: 1, 22, 2, 22, 32>}, {transform_indices = @transform_1, window_bounds = array<i64: 1, 7, 224, 128>}, {transform_indices = @transform_2, window_bounds = array<i64: 1, 1, 128>}, {transform_indices = @transform_3, window_bounds = array<i64: 1, 1, 512, 128>}]} {
    %c16_i32 = arith.constant 16 : i32
    %0 = arith.muli %arg2, %c16_i32 : i32
    %c0 = arith.constant 0 : index
    %1 = arith.index_cast %0 : i32 to index
    %c0_0 = arith.constant 0 : index
    %c0_1 = arith.constant 0 : index
    %c0_2 = arith.constant 0 : index
    %2 = vector.load %arg3[%c0, %1, %c0_0, %c0_1, %c0_2] : memref<1x22x2x22x32xbf16, #tpu.memory_space<vmem>>, vector<1x22x2x22x32xbf16>
    %3 = vector.shape_cast %2 : vector<1x22x2x22x32xbf16> to vector<22x2x22x32xbf16>
    %4 = arith.extf %3 : vector<22x2x22x32xbf16> to vector<22x2x22x32xf32>
    %5 = vector.extract_strided_slice %4 {offsets = [0, 0, 0, 0], sizes = [22, 2, 16, 32], strides = [1, 1, 1, 1]} : vector<22x2x22x32xf32> to vector<22x2x16x32xf32>
    %6 = vector.extract_strided_slice %4 {offsets = [0, 0, 1, 0], sizes = [22, 2, 16, 32], strides = [1, 1, 1, 1]} : vector<22x2x22x32xf32> to vector<22x2x16x32xf32>
    %7 = vector.extract_strided_slice %4 {offsets = [0, 0, 2, 0], sizes = [22, 2, 16, 32], strides = [1, 1, 1, 1]} : vector<22x2x22x32xf32> to vector<22x2x16x32xf32>
    %8 = vector.extract_strided_slice %4 {offsets = [0, 0, 3, 0], sizes = [22, 2, 16, 32], strides = [1, 1, 1, 1]} : vector<22x2x22x32xf32> to vector<22x2x16x32xf32>
    %9 = vector.extract_strided_slice %4 {offsets = [0, 0, 4, 0], sizes = [22, 2, 16, 32], strides = [1, 1, 1, 1]} : vector<22x2x22x32xf32> to vector<22x2x16x32xf32>
    %10 = vector.extract_strided_slice %4 {offsets = [0, 0, 5, 0], sizes = [22, 2, 16, 32], strides = [1, 1, 1, 1]} : vector<22x2x22x32xf32> to vector<22x2x16x32xf32>
    %11 = vector.extract_strided_slice %4 {offsets = [0, 0, 6, 0], sizes = [22, 2, 16, 32], strides = [1, 1, 1, 1]} : vector<22x2x22x32xf32> to vector<22x2x16x32xf32>
    %12 = tpu.concatenate %5, %6, %7, %8, %9, %10, %11 in 3 : vector<22x2x16x32xf32>, vector<22x2x16x32xf32>, vector<22x2x16x32xf32>, vector<22x2x16x32xf32>, vector<22x2x16x32xf32>, vector<22x2x16x32xf32>, vector<22x2x16x32xf32> -> vector<22x2x16x224xf32>
    %13 = arith.truncf %12 : vector<22x2x16x224xf32> to vector<22x2x16x224xbf16>
    %14 = vector.extract_strided_slice %13 {offsets = [0, 0, 0, 0], sizes = [16, 2, 16, 224], strides = [1, 1, 1, 1]} : vector<22x2x16x224xbf16> to vector<16x2x16x224xbf16>
    %15 = vector.shape_cast %14 : vector<16x2x16x224xbf16> to vector<512x224xbf16>
    %c0_3 = arith.constant 0 : index
    %c0_4 = arith.constant 0 : index
    %c0_5 = arith.constant 0 : index
    %c0_6 = arith.constant 0 : index
    %16 = vector.load %arg4[%c0_3, %c0_4, %c0_5, %c0_6] : memref<1x7x224x128xbf16, #tpu.memory_space<vmem>>, vector<1x1x224x128xbf16>
    %17 = vector.shape_cast %16 : vector<1x1x224x128xbf16> to vector<224x128xbf16>
    %cst = arith.constant dense<0.000000e+00> : vector<512x128xf32>
    %18 = tpu.matmul %15, %17, %cst {dimension_numbers = #tpu.dot_dimension_numbers<[1], [0], [0], [1], [0, 0, 1, 1], [], []>} : vector<512x224xbf16>, vector<224x128xbf16>, vector<512x128xf32> -> vector<512x128xf32>
    %19 = vector.extract_strided_slice %13 {offsets = [1, 0, 0, 0], sizes = [16, 2, 16, 224], strides = [1, 1, 1, 1]} : vector<22x2x16x224xbf16> to vector<16x2x16x224xbf16>
    %20 = vector.shape_cast %19 : vector<16x2x16x224xbf16> to vector<512x224xbf16>
    %c0_7 = arith.constant 0 : index
    %c1 = arith.constant 1 : index
    %c0_8 = arith.constant 0 : index
    %c0_9 = arith.constant 0 : index
    %21 = vector.load %arg4[%c0_7, %c1, %c0_8, %c0_9] : memref<1x7x224x128xbf16, #tpu.memory_space<vmem>>, vector<1x1x224x128xbf16>
    %22 = vector.shape_cast %21 : vector<1x1x224x128xbf16> to vector<224x128xbf16>
    %cst_10 = arith.constant dense<0.000000e+00> : vector<512x128xf32>
    %23 = tpu.matmul %20, %22, %cst_10 {dimension_numbers = #tpu.dot_dimension_numbers<[1], [0], [0], [1], [0, 0, 1, 1], [], []>} : vector<512x224xbf16>, vector<224x128xbf16>, vector<512x128xf32> -> vector<512x128xf32>
    %24 = arith.addf %18, %23 : vector<512x128xf32>
    %25 = vector.extract_strided_slice %13 {offsets = [2, 0, 0, 0], sizes = [16, 2, 16, 224], strides = [1, 1, 1, 1]} : vector<22x2x16x224xbf16> to vector<16x2x16x224xbf16>
    %26 = vector.shape_cast %25 : vector<16x2x16x224xbf16> to vector<512x224xbf16>
    %c0_11 = arith.constant 0 : index
    %c2 = arith.constant 2 : index
    %c0_12 = arith.constant 0 : index
    %c0_13 = arith.constant 0 : index
    %27 = vector.load %arg4[%c0_11, %c2, %c0_12, %c0_13] : memref<1x7x224x128xbf16, #tpu.memory_space<vmem>>, vector<1x1x224x128xbf16>
    %28 = vector.shape_cast %27 : vector<1x1x224x128xbf16> to vector<224x128xbf16>
    %cst_14 = arith.constant dense<0.000000e+00> : vector<512x128xf32>
    %29 = tpu.matmul %26, %28, %cst_14 {dimension_numbers = #tpu.dot_dimension_numbers<[1], [0], [0], [1], [0, 0, 1, 1], [], []>} : vector<512x224xbf16>, vector<224x128xbf16>, vector<512x128xf32> -> vector<512x128xf32>
    %30 = arith.addf %24, %29 : vector<512x128xf32>
    %31 = vector.extract_strided_slice %13 {offsets = [3, 0, 0, 0], sizes = [16, 2, 16, 224], strides = [1, 1, 1, 1]} : vector<22x2x16x224xbf16> to vector<16x2x16x224xbf16>
    %32 = vector.shape_cast %31 : vector<16x2x16x224xbf16> to vector<512x224xbf16>
    %c0_15 = arith.constant 0 : index
    %c3 = arith.constant 3 : index
    %c0_16 = arith.constant 0 : index
    %c0_17 = arith.constant 0 : index
    %33 = vector.load %arg4[%c0_15, %c3, %c0_16, %c0_17] : memref<1x7x224x128xbf16, #tpu.memory_space<vmem>>, vector<1x1x224x128xbf16>
    %34 = vector.shape_cast %33 : vector<1x1x224x128xbf16> to vector<224x128xbf16>
    %cst_18 = arith.constant dense<0.000000e+00> : vector<512x128xf32>
    %35 = tpu.matmul %32, %34, %cst_18 {dimension_numbers = #tpu.dot_dimension_numbers<[1], [0], [0], [1], [0, 0, 1, 1], [], []>} : vector<512x224xbf16>, vector<224x128xbf16>, vector<512x128xf32> -> vector<512x128xf32>
    %36 = arith.addf %30, %35 : vector<512x128xf32>
    %37 = vector.extract_strided_slice %13 {offsets = [4, 0, 0, 0], sizes = [16, 2, 16, 224], strides = [1, 1, 1, 1]} : vector<22x2x16x224xbf16> to vector<16x2x16x224xbf16>
    %38 = vector.shape_cast %37 : vector<16x2x16x224xbf16> to vector<512x224xbf16>
    %c0_19 = arith.constant 0 : index
    %c4 = arith.constant 4 : index
    %c0_20 = arith.constant 0 : index
    %c0_21 = arith.constant 0 : index
    %39 = vector.load %arg4[%c0_19, %c4, %c0_20, %c0_21] : memref<1x7x224x128xbf16, #tpu.memory_space<vmem>>, vector<1x1x224x128xbf16>
    %40 = vector.shape_cast %39 : vector<1x1x224x128xbf16> to vector<224x128xbf16>
    %cst_22 = arith.constant dense<0.000000e+00> : vector<512x128xf32>
    %41 = tpu.matmul %38, %40, %cst_22 {dimension_numbers = #tpu.dot_dimension_numbers<[1], [0], [0], [1], [0, 0, 1, 1], [], []>} : vector<512x224xbf16>, vector<224x128xbf16>, vector<512x128xf32> -> vector<512x128xf32>
    %42 = arith.addf %36, %41 : vector<512x128xf32>
    %43 = vector.extract_strided_slice %13 {offsets = [5, 0, 0, 0], sizes = [16, 2, 16, 224], strides = [1, 1, 1, 1]} : vector<22x2x16x224xbf16> to vector<16x2x16x224xbf16>
    %44 = vector.shape_cast %43 : vector<16x2x16x224xbf16> to vector<512x224xbf16>
    %c0_23 = arith.constant 0 : index
    %c5 = arith.constant 5 : index
    %c0_24 = arith.constant 0 : index
    %c0_25 = arith.constant 0 : index
    %45 = vector.load %arg4[%c0_23, %c5, %c0_24, %c0_25] : memref<1x7x224x128xbf16, #tpu.memory_space<vmem>>, vector<1x1x224x128xbf16>
    %46 = vector.shape_cast %45 : vector<1x1x224x128xbf16> to vector<224x128xbf16>
    %cst_26 = arith.constant dense<0.000000e+00> : vector<512x128xf32>
    %47 = tpu.matmul %44, %46, %cst_26 {dimension_numbers = #tpu.dot_dimension_numbers<[1], [0], [0], [1], [0, 0, 1, 1], [], []>} : vector<512x224xbf16>, vector<224x128xbf16>, vector<512x128xf32> -> vector<512x128xf32>
    %48 = arith.addf %42, %47 : vector<512x128xf32>
    %49 = vector.extract_strided_slice %13 {offsets = [6, 0, 0, 0], sizes = [16, 2, 16, 224], strides = [1, 1, 1, 1]} : vector<22x2x16x224xbf16> to vector<16x2x16x224xbf16>
    %50 = vector.shape_cast %49 : vector<16x2x16x224xbf16> to vector<512x224xbf16>
    %c0_27 = arith.constant 0 : index
    %c6 = arith.constant 6 : index
    %c0_28 = arith.constant 0 : index
    %c0_29 = arith.constant 0 : index
    %51 = vector.load %arg4[%c0_27, %c6, %c0_28, %c0_29] : memref<1x7x224x128xbf16, #tpu.memory_space<vmem>>, vector<1x1x224x128xbf16>
    %52 = vector.shape_cast %51 : vector<1x1x224x128xbf16> to vector<224x128xbf16>
    %cst_30 = arith.constant dense<0.000000e+00> : vector<512x128xf32>
    %53 = tpu.matmul %50, %52, %cst_30 {dimension_numbers = #tpu.dot_dimension_numbers<[1], [0], [0], [1], [0, 0, 1, 1], [], []>} : vector<512x224xbf16>, vector<224x128xbf16>, vector<512x128xf32> -> vector<512x128xf32>
    %54 = arith.addf %48, %53 : vector<512x128xf32>
    %c0_31 = arith.constant 0 : index
    %c0_32 = arith.constant 0 : index
    %c0_33 = arith.constant 0 : index
    %55 = vector.load %arg5[%c0_31, %c0_32, %c0_33] : memref<1x1x128xf32, #tpu.memory_space<vmem>>, vector<1x1x128xf32>
    %56 = vector.shape_cast %55 : vector<1x1x128xf32> to vector<1x128xf32>
    %57 = vector.broadcast %56 : vector<1x128xf32> to vector<512x128xf32>
    %58 = arith.addf %54, %57 : vector<512x128xf32>
    %c0_i32 = arith.constant 0 : i32
    %59 = arith.cmpi eq, %arg2, %c0_i32 : i32
    %60 = arith.extui %59 : i1 to i32
    %c0_i32_34 = arith.constant 0 : i32
    %61 = arith.cmpi ne, %60, %c0_i32_34 : i32
    scf.if %61 {
      %cst_54 = arith.constant 0.000000e+00 : f32
      %87 = vector.broadcast %cst_54 : f32 to vector<2x1x128xf32>
      %c0_55 = arith.constant 0 : index
      %c0_56 = arith.constant 0 : index
      %c0_57 = arith.constant 0 : index
      %88 = vector.load %arg7[%c0_55, %c0_56, %c0_57] : memref<2x1x128xf32, #tpu.memory_space<vmem>>, vector<2x1x128xf32>
      tpu.vector_store %arg7[%c0_55, %c0_56, %c0_57], %87 {strides = array<i32>} : memref<2x1x128xf32, #tpu.memory_space<vmem>>, vector<2x1x128xf32>,
    } else {
    }
    %c0_35 = arith.constant 0 : index
    %c0_36 = arith.constant 0 : index
    %c0_37 = arith.constant 0 : index
    %62 = vector.load %arg7[%c0_35, %c0_36, %c0_37] : memref<2x1x128xf32, #tpu.memory_space<vmem>>, vector<1x1x128xf32>
    %63 = vector.shape_cast %62 : vector<1x1x128xf32> to vector<1x128xf32>
    %cst_38 = arith.constant dense<0.000000e+00> : vector<128xf32>
    %64 = vector.multi_reduction <add>, %58, %cst_38 [0] : vector<512x128xf32> to vector<128xf32>
    %65 = vector.shape_cast %64 : vector<128xf32> to vector<1x128xf32>
    %66 = arith.addf %63, %65 : vector<1x128xf32>
    %c0_39 = arith.constant 0 : index
    %c0_40 = arith.constant 0 : index
    %c0_41 = arith.constant 0 : index
    %67 = vector.load %arg7[%c0_39, %c0_40, %c0_41] : memref<2x1x128xf32, #tpu.memory_space<vmem>>, vector<1x1x128xf32>
    %68 = vector.shape_cast %67 : vector<1x1x128xf32> to vector<1x128xf32>
    %69 = vector.shape_cast %66 : vector<1x128xf32> to vector<1x1x128xf32>
    tpu.vector_store %arg7[%c0_39, %c0_40, %c0_41], %69 {strides = array<i32>} : memref<2x1x128xf32, #tpu.memory_space<vmem>>, vector<1x1x128xf32>,
    %c1_42 = arith.constant 1 : index
    %c0_43 = arith.constant 0 : index
    %c0_44 = arith.constant 0 : index
    %70 = vector.load %arg7[%c1_42, %c0_43, %c0_44] : memref<2x1x128xf32, #tpu.memory_space<vmem>>, vector<1x1x128xf32>
    %71 = vector.shape_cast %70 : vector<1x1x128xf32> to vector<1x128xf32>
    %72 = arith.mulf %58, %58 : vector<512x128xf32>
    %cst_45 = arith.constant dense<0.000000e+00> : vector<128xf32>
    %73 = vector.multi_reduction <add>, %72, %cst_45 [0] : vector<512x128xf32> to vector<128xf32>
    %74 = vector.shape_cast %73 : vector<128xf32> to vector<1x128xf32>
    %75 = arith.addf %71, %74 : vector<1x128xf32>
    %c1_46 = arith.constant 1 : index
    %c0_47 = arith.constant 0 : index
    %c0_48 = arith.constant 0 : index
    %76 = vector.load %arg7[%c1_46, %c0_47, %c0_48] : memref<2x1x128xf32, #tpu.memory_space<vmem>>, vector<1x1x128xf32>
    %77 = vector.shape_cast %76 : vector<1x1x128xf32> to vector<1x128xf32>
    %78 = vector.shape_cast %75 : vector<1x128xf32> to vector<1x1x128xf32>
    tpu.vector_store %arg7[%c1_46, %c0_47, %c0_48], %78 {strides = array<i32>} : memref<2x1x128xf32, #tpu.memory_space<vmem>>, vector<1x1x128xf32>,
    %79 = arith.truncf %58 : vector<512x128xf32> to vector<512x128xbf16>
    %c0_49 = arith.constant 0 : index
    %80 = arith.index_cast %arg2 : i32 to index
    %c0_50 = arith.constant 0 : index
    %c0_51 = arith.constant 0 : index
    %81 = vector.load %arg6[%c0_49, %80, %c0_50, %c0_51] : memref<1x1x512x128xbf16, #tpu.memory_space<vmem>>, vector<1x1x512x128xbf16>
    %82 = vector.shape_cast %81 : vector<1x1x512x128xbf16> to vector<512x128xbf16>
    %83 = vector.shape_cast %79 : vector<512x128xbf16> to vector<1x1x512x128xbf16>
    tpu.vector_store %arg6[%c0_49, %80, %c0_50, %c0_51], %83 {strides = array<i32>} : memref<1x1x512x128xbf16, #tpu.memory_space<vmem>>, vector<1x1x512x128xbf16>,
    %c0_i32_52 = arith.constant 0 : i32
    %84 = arith.cmpi eq, %arg2, %c0_i32_52 : i32
    %85 = arith.extui %84 : i1 to i32
    %c0_i32_53 = arith.constant 0 : i32
    %86 = arith.cmpi ne, %85, %c0_i32_53 : i32
    scf.if %86 {
      %c0_54 = arith.constant 0 : index
      %c0_55 = arith.constant 0 : index
      %c0_56 = arith.constant 0 : index
      %87 = vector.load %arg7[%c0_54, %c0_55, %c0_56] : memref<2x1x128xf32, #tpu.memory_space<vmem>>, vector<1x1x128xf32>
      %88 = vector.shape_cast %87 : vector<1x1x128xf32> to vector<1x128xf32>
      %cst_57 = arith.constant 0.001953125 : f32
      %89 = vector.broadcast %cst_57 : f32 to vector<1x128xf32>
      %90 = arith.mulf %88, %89 : vector<1x128xf32>
      %c1_58 = arith.constant 1 : index
      %c0_59 = arith.constant 0 : index
      %c0_60 = arith.constant 0 : index
      %91 = vector.load %arg7[%c1_58, %c0_59, %c0_60] : memref<2x1x128xf32, #tpu.memory_space<vmem>>, vector<1x1x128xf32>
      %92 = vector.shape_cast %91 : vector<1x1x128xf32> to vector<1x128xf32>
      %cst_61 = arith.constant 0.001953125 : f32
      %93 = vector.broadcast %cst_61 : f32 to vector<1x128xf32>
      %94 = arith.mulf %92, %93 : vector<1x128xf32>
      %95 = arith.mulf %90, %90 : vector<1x128xf32>
      %96 = arith.subf %94, %95 : vector<1x128xf32>
      %cst_62 = arith.constant 9.99999974E-6 : f32
      %97 = vector.broadcast %cst_62 : f32 to vector<1x128xf32>
      %98 = arith.addf %96, %97 : vector<1x128xf32>
      %99 = math.rsqrt %98 : vector<1x128xf32>
      %c0_63 = arith.constant 0 : index
      %c0_64 = arith.constant 0 : index
      %c0_65 = arith.constant 0 : index
      %c0_66 = arith.constant 0 : index
      %100 = vector.load %arg6[%c0_63, %c0_64, %c0_65, %c0_66] : memref<1x1x512x128xbf16, #tpu.memory_space<vmem>>, vector<1x1x512x128xbf16>
      %101 = vector.shape_cast %100 : vector<1x1x512x128xbf16> to vector<512x128xbf16>
      %102 = arith.extf %101 : vector<512x128xbf16> to vector<512x128xf32>
      %103 = vector.broadcast %90 : vector<1x128xf32> to vector<512x128xf32>
      %104 = arith.subf %102, %103 : vector<512x128xf32>
      %105 = vector.broadcast %99 : vector<1x128xf32> to vector<512x128xf32>
      %106 = arith.mulf %104, %105 : vector<512x128xf32>
      %cst_67 = arith.constant 0.000000e+00 : f32
      %107 = vector.broadcast %cst_67 : f32 to vector<512x128xf32>
      %108 = arith.maximumf %106, %107 : vector<512x128xf32>
      %109 = arith.truncf %108 : vector<512x128xf32> to vector<512x128xbf16>
      %c0_68 = arith.constant 0 : index
      %c0_69 = arith.constant 0 : index
      %c0_70 = arith.constant 0 : index
      %c0_71 = arith.constant 0 : index
      %110 = vector.load %arg6[%c0_68, %c0_69, %c0_70, %c0_71] : memref<1x1x512x128xbf16, #tpu.memory_space<vmem>>, vector<1x1x512x128xbf16>
      %111 = vector.shape_cast %110 : vector<1x1x512x128xbf16> to vector<512x128xbf16>
      %112 = vector.shape_cast %109 : vector<512x128xbf16> to vector<1x1x512x128xbf16>
      tpu.vector_store %arg6[%c0_68, %c0_69, %c0_70, %c0_71], %112 {strides = array<i32>} : memref<1x1x512x128xbf16, #tpu.memory_space<vmem>>, vector<1x1x512x128xbf16>,
    } else {
    }
    return
  }
  func.func @transform_0(%arg0: i32, %arg1: i32, %arg2: i32) -> (i32, i32, i32, i32, i32) {
    %c0_i32 = arith.constant 0 : i32
    %c0_i32_0 = arith.constant 0 : i32
    %c0_i32_1 = arith.constant 0 : i32
    %c0_i32_2 = arith.constant 0 : i32
    %c0_i32_3 = arith.constant 0 : i32
    return %arg0, %c0_i32, %c0_i32_0, %c0_i32_1, %c0_i32_2 : i32, i32, i32, i32, i32
  }
  func.func @transform_1(%arg0: i32, %arg1: i32, %arg2: i32) -> (i32, i32, i32, i32) {
    %c0_i32 = arith.constant 0 : i32
    %c0_i32_0 = arith.constant 0 : i32
    %c0_i32_1 = arith.constant 0 : i32
    return %arg0, %c0_i32, %c0_i32_0, %arg1 : i32, i32, i32, i32
  }
  func.func @transform_2(%arg0: i32, %arg1: i32, %arg2: i32) -> (i32, i32, i32) {
    %c0_i32 = arith.constant 0 : i32
    %c0_i32_0 = arith.constant 0 : i32
    return %arg0, %c0_i32, %arg1 : i32, i32, i32
  }
  func.func @transform_3(%arg0: i32, %arg1: i32, %arg2: i32) -> (i32, i32, i32, i32) {
    %c0_i32 = arith.constant 0 : i32
    %c0_i32_0 = arith.constant 0 : i32
    %c0_i32_1 = arith.constant 0 : i32
    return %arg0, %c0_i32, %c0_i32_0, %arg1 : i32, i32, i32, i32
  }
}

</mosaic_0001>

<llo_original>
// kernel: apply.2
$region0: #{apply.2}
  #allocation0 [shape = 'u32[]', space=smem, size = 0x4, offset = 0x4, fixed_abs, tag = 'smem constant byte address 0x4 - core index']
  #allocation1 [shape = 'u32[72,128]{1,0:T(1,128)}', space=vmem, size = 0x9000, scoped, tag = 'internal scratch']
  #allocation2 [shape = 'f32[2,1,128]{2,1,0:T(1,128)}', space=vmem, size = 0x400, scoped, tag = 'scratch operand']
  %s0 = inlined_call_operand.vmem [shape: bf16[1,16,2,16,64], index: 0, kind: input, shape index: {}]
  %s1 = inlined_call_operand.hbm [shape: bf16[1,1,64,256], index: 1, kind: input, shape index: {}]
  %s2 = inlined_call_operand.hbm [shape: f32[1,1,256], index: 2, kind: input, shape index: {}]
  %s3 = inlined_call_operand.vmem [shape: bf16[1,1,512,256], index: 3, kind: output, shape index: {}]
  %s4 = sld [smem:[#allocation0]]
  $region98: #{apply.2} parent=0
    _
  %s6 = ssub.s32 1, %s4
  %s7 = scalar_select 0, %s6, %s4
  $region1: #{apply.2} parent=0
    #allocation3 [shape = 'u8[32768]{0}', space=vmem, size = 0x8000, scoped, tag = 'input window, operand 1']
    #allocation4 [shape = 's32[2]{0}', space=sflag, size = 0x8, scoped, tag = 'scoped memory for apply.2']
    #allocation5 [shape = 'u8[1024]{0}', space=vmem, size = 0x400, scoped, tag = 'input window, operand 2']
    #allocation6 [shape = 's32[2]{0}', space=sflag, size = 0x8, scoped, tag = 'scoped memory for apply.2']
    #allocation7 [shape = 'u8[262144]{0}', space=vmem, size = 0x40000, scoped, tag = 'output window, operand 0']
    %8 = vsyncpa [#allocation4], 0
    %s9 = scalar_lea.sflag [#allocation4], 1
    %10 = vsyncpa %s9, 0
    %11 = vsyncpa [#allocation6], 0
    %s12 = scalar_lea.sflag [#allocation6], 1
    %13 = vsyncpa %s12, 0
    loop: start=0, step=1, limit=4
    $region2: #{apply.2} parent=1 // loop_pre_header
      _
    $region3: #{apply.2} parent=1 // loop_header
      %s15 = sphi 0, %s19
      %p16 = scmp.ge.s32.totalorder %s15, 4
      %s22 = sphi 0, %s41
      %s23 = sphi 0, %s37
      %s24 = sphi 0, %s33
      %s25 = sphi 0, %s22
      %s26 = sphi 0, %s23
      %s27 = sphi 0, %s24
      %s28 = sphi 0, %s25
      %s29 = sphi 0, %s26
      %s30 = sphi 0, %s27
      %s44 = sphi 0, %s46
      %s47 = sphi 0, %s44
      %s48 = sphi 0, %s47
      %s64 = sphi 0, %s48
      %s72 = sphi 0, %s74
      %s75 = sphi 0, %s72
      %s76 = sphi 0, %s75
      %s92 = sphi 0, %s76
      %s100 = sphi 0, %s102
      %s103 = sphi 0, %s100
      %s104 = sphi 0, %s103
      %s120 = sphi 0, %s104
      %s128 = sphi 0, %s130
      %s131 = sphi 0, %s128
      %s132 = sphi 0, %s131
      %s148 = sphi 0, %s132
    $region4: #{apply.2} parent=1 // loop_header_branch
      %18 = sbr.rel (%p16) target = $region8
    $region5: #{apply.2} parent=1 // loop_body
      %s20 = ssub.s32 %s15, 1
      %s21 = ssub.s32 %s15, 2
      %s31 = sadd.s32 1, %s24
      %p32 = scmp.ge.s32.totalorder %s31, 1
      %s33 = scalar_select %p32, 0, %s31
      %s34 = sadd.s32 1, %s23
      %s35 = scalar_select %p32, %s34, %s23
      %p36 = scmp.ge.s32.totalorder %s35, 2
      %s37 = scalar_select %p36, 0, %s35
      %s38 = sadd.s32 1, %s22
      %s39 = scalar_select %p36, %s38, %s22
      %p40 = scmp.ge.s32.totalorder %s39, 1
      %s41 = scalar_select %p40, 0, %s39
      %s42 = ssub.s32 %s22, %s41
      %p43 = scmp.eq.s32.totalorder %s42, 0
      %s45 = sadd.s32 %s44, 1
      %s46 = scalar_select %p43, %s44, %s45
      %p49 = pneg %p43
      %p50 = scmp.eq.s32.totalorder %s15, 1
      %p51 = por %p49, %p50
      %p52 = scmp.ne.s32.totalorder %s44, %s47
      %p53 = scmp.eq.s32.totalorder %s15, 0
      %p54 = por %p52, %p53
      %p55 = scmp.ne.s32.totalorder %s44, %s47
      %p56 = scmp.eq.s32.totalorder %s20, 1
      %p57 = por %p55, %p56
      %p58 = scmp.ne.s32.totalorder %s47, %s48
      %p59 = scmp.eq.s32.totalorder %s20, 0
      %p60 = por %p58, %p59
      %p61 = scmp.ne.s32.totalorder %s47, %s48
      %p62 = scmp.eq.s32.totalorder %s21, 1
      %p63 = por %p61, %p62
      %p65 = scmp.ne.s32.totalorder %s48, %s64
      %p66 = scmp.eq.s32.totalorder %s21, 0
      %p67 = por %p65, %p66
      %s68 = ssub.s32 %s22, %s41
      %s69 = ssub.s32 %s23, %s37
      %s70 = sor.u32 %s68, %s69
      %p71 = scmp.eq.s32.totalorder %s70, 0
      %s73 = sadd.s32 %s72, 1
      %s74 = scalar_select %p71, %s72, %s73
      %p77 = pneg %p71
      %p78 = scmp.eq.s32.totalorder %s15, 1
      %p79 = por %p77, %p78
      %p80 = scmp.ne.s32.totalorder %s72, %s75
      %p81 = scmp.eq.s32.totalorder %s15, 0
      %p82 = por %p80, %p81
      %p83 = scmp.ne.s32.totalorder %s72, %s75
      %p84 = scmp.eq.s32.totalorder %s20, 1
      %p85 = por %p83, %p84
      %p86 = scmp.ne.s32.totalorder %s75, %s76
      %p87 = scmp.eq.s32.totalorder %s20, 0
      %p88 = por %p86, %p87
      %p89 = scmp.ne.s32.totalorder %s75, %s76
      %p90 = scmp.eq.s32.totalorder %s21, 1
      %p91 = por %p89, %p90
      %p93 = scmp.ne.s32.totalorder %s76, %s92
      %p94 = scmp.eq.s32.totalorder %s21, 0
      %p95 = por %p93, %p94
      %s96 = ssub.s32 %s22, %s41
      %s97 = ssub.s32 %s23, %s37
      %s98 = sor.u32 %s96, %s97
      %p99 = scmp.eq.s32.totalorder %s98, 0
      %s101 = sadd.s32 %s100, 1
      %s102 = scalar_select %p99, %s100, %s101
      %p105 = pneg %p99
      %p106 = scmp.eq.s32.totalorder %s15, 1
      %p107 = por %p105, %p106
      %p108 = scmp.ne.s32.totalorder %s100, %s103
      %p109 = scmp.eq.s32.totalorder %s15, 0
      %p110 = por %p108, %p109
      %p111 = scmp.ne.s32.totalorder %s100, %s103
      %p112 = scmp.eq.s32.totalorder %s20, 1
      %p113 = por %p111, %p112
      %p114 = scmp.ne.s32.totalorder %s103, %s104
      %p115 = scmp.eq.s32.totalorder %s20, 0
      %p116 = por %p114, %p115
      %p117 = scmp.ne.s32.totalorder %s103, %s104
      %p118 = scmp.eq.s32.totalorder %s21, 1
      %p119 = por %p117, %p118
      %p121 = scmp.ne.s32.totalorder %s104, %s120
      %p122 = scmp.eq.s32.totalorder %s21, 0
      %p123 = por %p121, %p122
      %s124 = ssub.s32 %s22, %s41
      %s125 = ssub.s32 %s23, %s37
      %s126 = sor.u32 %s124, %s125
      %p127 = scmp.eq.s32.totalorder %s126, 0
      %s129 = sadd.s32 %s128, 1
      %s130 = scalar_select %p127, %s128, %s129
      %p133 = pneg %p127
      %p134 = scmp.eq.s32.totalorder %s15, 1
      %p135 = por %p133, %p134
      %p136 = scmp.ne.s32.totalorder %s128, %s131
      %p137 = scmp.eq.s32.totalorder %s15, 0
      %p138 = por %p136, %p137
      %p139 = scmp.ne.s32.totalorder %s128, %s131
      %p140 = scmp.eq.s32.totalorder %s20, 1
      %p141 = por %p139, %p140
      %p142 = scmp.ne.s32.totalorder %s131, %s132
      %p143 = scmp.eq.s32.totalorder %s20, 0
      %p144 = por %p142, %p143
      %p145 = scmp.ne.s32.totalorder %s131, %s132
      %p146 = scmp.eq.s32.totalorder %s21, 1
      %p147 = por %p145, %p146
      %p149 = scmp.ne.s32.totalorder %s132, %s148
      %p150 = scmp.eq.s32.totalorder %s21, 0
      %p151 = por %p149, %p150
      %p152 = scmp.le.s32.totalorder 1, %s15
      %p153 = scmp.lt.s32.totalorder %s15, 3
      %p154 = pnand %p152, %p153
      %p155 = pneg %p154
      // Predicated region
      $region9: #{apply.2} parent=5 // pred_check
        _
      $region10: #{apply.2} parent=5 // pred_check_branch
        %157 = sbr.rel (%p154) target = $region12
      $region11: #{apply.2} parent=5 // pred_region
        %s158 = ssub.s32 %s15, 1
        // Predicated region
        $region13: #{apply.2} parent=11 // pred_check
          %p159 = pneg %p60
        $region14: #{apply.2} parent=11 // pred_check_branch
          %161 = sbr.rel (%p159) target = $region16
        $region15: #{apply.2} parent=11 // pred_region
          %p162 = scmp.lt.s32.totalorder %s25, 0
          %s163 = scalar_select %p162, %s25, 0
          %s164 = smul.addr %s163, 64
          %s165 = smul.addr %s164, 4
          %s166 = scalar_lea.vmem %s0, %s165
        $region16: #{apply.2} parent=11 // pred_fallthru
          _
      $region12: #{apply.2} parent=5 // pred_fallthru
        _
      %p167 = scmp.lt.s32.totalorder %s15, 2
      // Predicated region
      $region17: #{apply.2} parent=5 // pred_check
        %p168 = pneg %p167
      $region18: #{apply.2} parent=5 // pred_check_branch
        %170 = sbr.rel (%p168) target = $region20
      $region19: #{apply.2} parent=5 // pred_region
        // Predicated region
        $region21: #{apply.2} parent=19 // pred_check
          %p171 = pneg %p82
        $region22: #{apply.2} parent=19 // pred_check_branch
          %173 = sbr.rel (%p171) target = $region24
        $region23: #{apply.2} parent=19 // pred_region
          %s174 = sand.u32 %s72, 1
          %s175 = scalar_lea.sflag [#allocation4], %s174
          %s176 = sand.u32 %s72, 1
          %s177 = smul.addr %s176, 32
          %s178 = scalar_lea.vmem [#allocation3], %s177
          %180 = vsyncadd %s175, 0
          %s181 = smul.addr %s22, 16
          %s182 = sadd.s32 %s23, %s181
          %s183 = smul.addr %s182, 4
          %s184 = scalar_lea.hbm %s1, %s183
          %s185 = sshll.u32 %s184, 4
          %s186 = int_to_ptr.hbm [resolvable:$true] %s185
          %s187 = sshll.u32 %s178, 4
          %s188 = int_to_ptr.vmem [resolvable:$true] %s187
          %193 = dma.hbm_to_vmem [thread:$0]  %s186, 512, %s188, %s175, 128, 64, 4
        $region24: #{apply.2} parent=19 // pred_fallthru
          _
        // Predicated region
        $region25: #{apply.2} parent=19 // pred_check
          %p194 = pneg %p110
        $region26: #{apply.2} parent=19 // pred_check_branch
          %196 = sbr.rel (%p194) target = $region28
        $region27: #{apply.2} parent=19 // pred_region
          %s197 = sand.u32 %s100, 1
          %s198 = scalar_lea.sflag [#allocation6], %s197
          %s199 = sand.u32 %s100, 1
          %s200 = scalar_lea.vmem [#allocation5], %s199
          %202 = vsyncadd %s198, 0
          %s203 = smul.addr %s22, 2
          %s204 = sadd.s32 %s23, %s203
          %s205 = scalar_lea.hbm %s2, %s204
          %s207 = sshll.u32 %s205, 4
          %s208 = int_to_ptr.hbm [resolvable:$true] %s207
          %s209 = sshll.u32 %s200, 4
          %s210 = int_to_ptr.vmem [resolvable:$true] %s209
          %212 = dma.hbm_to_vmem [thread:$0]  %s208, 16, %s210, %s198
        $region28: #{apply.2} parent=19 // pred_fallthru
          _
      $region20: #{apply.2} parent=5 // pred_fallthru
        _
      %p213 = scmp.le.s32.totalorder 1, %s15
      %p214 = scmp.lt.s32.totalorder %s15, 3
      %p215 = pnand %p213, %p214
      %p216 = pneg %p215
      // Predicated region
      $region29: #{apply.2} parent=5 // pred_check
        _
      $region30: #{apply.2} parent=5 // pred_check_branch
        %218 = sbr.rel (%p215) target = $region32
      $region31: #{apply.2} parent=5 // pred_region
        %s219 = ssub.s32 %s15, 1
        %s220 = sand.u32 %s75, 1
        %s221 = scalar_lea.sflag [#allocation4], %s220
        %s222 = sand.u32 %s75, 1
        %s223 = smul.addr %s222, 32
        %s224 = scalar_lea.vmem [#allocation3], %s223
        // Predicated region
        $region33: #{apply.2} parent=31 // pred_check
          %p225 = pneg %p88
        $region34: #{apply.2} parent=31 // pred_check_branch
          %227 = sbr.rel (%p225) target = $region36
        $region35: #{apply.2} parent=31 // pred_region
          %229 = dma.done %s221, 512
        $region36: #{apply.2} parent=31 // pred_fallthru
          _
        %s230 = sand.u32 %s103, 1
        %s231 = scalar_lea.sflag [#allocation6], %s230
        %s232 = sand.u32 %s103, 1
        %s233 = scalar_lea.vmem [#allocation5], %s232
        // Predicated region
        $region37: #{apply.2} parent=31 // pred_check
          %p234 = pneg %p116
        $region38: #{apply.2} parent=31 // pred_check_branch
          %236 = sbr.rel (%p234) target = $region40
        $region39: #{apply.2} parent=31 // pred_region
          %238 = dma.done %s231, 16
        $region40: #{apply.2} parent=31 // pred_fallthru
          _
        %p239 = scmp.lt.s32.totalorder %s25, 0
        %s240 = scalar_select %p239, %s25, 0
        %s241 = smul.addr %s240, 64
        %s242 = smul.addr %s241, 4
        %s243 = scalar_lea.vmem %s0, %s242
        %p244 = pneg %p60
        %p245 = pneg %p57
        %s246 = sand.u32 %s75, 1
        %s247 = scalar_lea.sflag [#allocation4], %s246
        %s248 = sand.u32 %s75, 1
        %s249 = smul.addr %s248, 32
        %s250 = scalar_lea.vmem [#allocation3], %s249
        %p251 = pneg %p88
        %p252 = pneg %p85
        %s253 = sand.u32 %s103, 1
        %s254 = scalar_lea.sflag [#allocation6], %s253
        %s255 = sand.u32 %s103, 1
        %s256 = scalar_lea.vmem [#allocation5], %s255
        %p257 = pneg %p116
        %p258 = pneg %p113
        %p259 = pneg %p144
        %p260 = pneg %p141
        %s261 = sand.u32 %s131, 1
        %s262 = sand.u32 %s131, 1
        %s263 = smul.addr %s262, 256
        %s264 = scalar_lea.vmem [#allocation7], %s263
        %p265 = scmp.lt.s32.totalorder %s25, 0
        %s266 = scalar_select %p265, %s25, 0
        %s267 = smul.addr %s266, 64
        %s268 = smul.addr %s267, 4
        %s269 = scalar_lea.vmem %s0, %s268
        %s271 = smul.u32 %s27, 16
        %s272 = smul.u32 %s271, 4
        %s273 = smul.addr %s272, 4
        %s274 = scalar_lea.vmem %s269, %s273
        %v275 = vld [vmem:[%s274] sm:$0xf]
        %v276 = vld [vmem:[%s274 + $0x4] sm:$0xf]
        %v277 = vld [vmem:[%s274 + $0x8] sm:$0xf]
        %v278 = vld [vmem:[%s274 + $0xc] sm:$0xf]
        %v279 = vld [vmem:[%s274 + $0x10] sm:$0xf]
        %v280 = vld [vmem:[%s274 + $0x14] sm:$0xf]
        %v281 = vld [vmem:[%s274 + $0x18] sm:$0xf]
        %v282 = vld [vmem:[%s274 + $0x1c] sm:$0xf]
        %v283 = vld [vmem:[%s274 + $0x20] sm:$0xf]
        %v284 = vld [vmem:[%s274 + $0x24] sm:$0xf]
        %v285 = vld [vmem:[%s274 + $0x28] sm:$0xf]
        %v286 = vld [vmem:[%s274 + $0x2c] sm:$0xf]
        %v287 = vld [vmem:[%s274 + $0x30] sm:$0xf]
        %v288 = vld [vmem:[%s274 + $0x34] sm:$0xf]
        %v289 = vld [vmem:[%s274 + $0x38] sm:$0xf]
        %v290 = vld [vmem:[%s274 + $0x3c] sm:$0xf]
        %v291 = vld [vmem:[%s274 + $0x40] sm:$0xf]
        %v292 = vld [vmem:[%s274 + $0x44] sm:$0xf]
        %v293 = vld [vmem:[%s274 + $0x48] sm:$0xf]
        %v294 = vld [vmem:[%s274 + $0x4c] sm:$0xf]
        %v295 = vld [vmem:[%s274 + $0x50] sm:$0xf]
        %v296 = vld [vmem:[%s274 + $0x54] sm:$0xf]
        %v297 = vld [vmem:[%s274 + $0x58] sm:$0xf]
        %v298 = vld [vmem:[%s274 + $0x5c] sm:$0xf]
        %v299 = vld [vmem:[%s274 + $0x60] sm:$0xf]
        %v300 = vld [vmem:[%s274 + $0x64] sm:$0xf]
        %v301 = vld [vmem:[%s274 + $0x68] sm:$0xf]
        %v302 = vld [vmem:[%s274 + $0x6c] sm:$0xf]
        %v303 = vld [vmem:[%s274 + $0x70] sm:$0xf]
        %v304 = vld [vmem:[%s274 + $0x74] sm:$0xf]
        %v305 = vld [vmem:[%s274 + $0x78] sm:$0xf]
        %v306 = vld [vmem:[%s274 + $0x7c] sm:$0xf]
        %v307 = vld [vmem:[%s274 + $0x80] sm:$0xf]
        %v308 = vld [vmem:[%s274 + $0x84] sm:$0xf]
        %v309 = vld [vmem:[%s274 + $0x88] sm:$0xf]
        %v310 = vld [vmem:[%s274 + $0x8c] sm:$0xf]
        %v311 = vld [vmem:[%s274 + $0x90] sm:$0xf]
        %v312 = vld [vmem:[%s274 + $0x94] sm:$0xf]
        %v313 = vld [vmem:[%s274 + $0x98] sm:$0xf]
        %v314 = vld [vmem:[%s274 + $0x9c] sm:$0xf]
        %v315 = vld [vmem:[%s274 + $0xa0] sm:$0xf]
        %v316 = vld [vmem:[%s274 + $0xa4] sm:$0xf]
        %v317 = vld [vmem:[%s274 + $0xa8] sm:$0xf]
        %v318 = vld [vmem:[%s274 + $0xac] sm:$0xf]
        %v319 = vld [vmem:[%s274 + $0xb0] sm:$0xf]
        %v320 = vld [vmem:[%s274 + $0xb4] sm:$0xf]
        %v321 = vld [vmem:[%s274 + $0xb8] sm:$0xf]
        %v322 = vld [vmem:[%s274 + $0xbc] sm:$0xf]
        %v323 = vld [vmem:[%s274 + $0xc0] sm:$0xf]
        %v324 = vld [vmem:[%s274 + $0xc4] sm:$0xf]
        %v325 = vld [vmem:[%s274 + $0xc8] sm:$0xf]
        %v326 = vld [vmem:[%s274 + $0xcc] sm:$0xf]
        %v327 = vld [vmem:[%s274 + $0xd0] sm:$0xf]
        %v328 = vld [vmem:[%s274 + $0xd4] sm:$0xf]
        %v329 = vld [vmem:[%s274 + $0xd8] sm:$0xf]
        %v330 = vld [vmem:[%s274 + $0xdc] sm:$0xf]
        %v331 = vld [vmem:[%s274 + $0xe0] sm:$0xf]
        %v332 = vld [vmem:[%s274 + $0xe4] sm:$0xf]
        %v333 = vld [vmem:[%s274 + $0xe8] sm:$0xf]
        %v334 = vld [vmem:[%s274 + $0xec] sm:$0xf]
        %v335 = vld [vmem:[%s274 + $0xf0] sm:$0xf]
        %v336 = vld [vmem:[%s274 + $0xf4] sm:$0xf]
        %v337 = vld [vmem:[%s274 + $0xf8] sm:$0xf]
        %v338 = vld [vmem:[%s274 + $0xfc] sm:$0xf]
        %v339 = vld [vmem:[%s224] sm:$0xf]
        %v340 = vld [vmem:[%s224 + $0x4] sm:$0xf]
        %v341 = vld [vmem:[%s224 + $0x8] sm:$0xf]
        %v342 = vld [vmem:[%s224 + $0xc] sm:$0xf]
        %v343 = vld [vmem:[%s224 + $0x10] sm:$0xf]
        %v344 = vld [vmem:[%s224 + $0x14] sm:$0xf]
        %v345 = vld [vmem:[%s224 + $0x18] sm:$0xf]
        %v346 = vld [vmem:[%s224 + $0x1c] sm:$0xf]
        %v347 = vld [vmem:[%s233] sm:$0x1]
        %v349 = vperm.slane %v347, 0
        %v415 = vunpack.c.l.b16 %v275
        %v416 = vunpack.c.l.b16 %v276
        %v417 = vunpack.c.l.b16 %v277
        %v418 = vunpack.c.l.b16 %v278
        %v419 = vunpack.c.l.b16 %v279
        %v420 = vunpack.c.l.b16 %v280
        %v421 = vunpack.c.l.b16 %v281
        %v422 = vunpack.c.l.b16 %v282
        %v423 = vunpack.c.l.b16 %v283
        %v424 = vunpack.c.l.b16 %v284
        %v425 = vunpack.c.l.b16 %v285
        %v426 = vunpack.c.l.b16 %v286
        %v427 = vunpack.c.l.b16 %v287
        %v428 = vunpack.c.l.b16 %v288
        %v429 = vunpack.c.l.b16 %v289
        %v430 = vunpack.c.l.b16 %v290
        %v431 = vunpack.c.l.b16 %v291
        %v432 = vunpack.c.l.b16 %v292
        %v433 = vunpack.c.l.b16 %v293
        %v434 = vunpack.c.l.b16 %v294
        %v435 = vunpack.c.l.b16 %v295
        %v436 = vunpack.c.l.b16 %v296
        %v437 = vunpack.c.l.b16 %v297
        %v438 = vunpack.c.l.b16 %v298
        %v439 = vunpack.c.l.b16 %v299
        %v440 = vunpack.c.l.b16 %v300
        %v441 = vunpack.c.l.b16 %v301
        %v442 = vunpack.c.l.b16 %v302
        %v443 = vunpack.c.l.b16 %v303
        %v444 = vunpack.c.l.b16 %v304
        %v445 = vunpack.c.l.b16 %v305
        %v446 = vunpack.c.l.b16 %v306
        %v447 = vunpack.c.l.b16 %v307
        %v448 = vunpack.c.l.b16 %v308
        %v449 = vunpack.c.l.b16 %v309
        %v450 = vunpack.c.l.b16 %v310
        %v451 = vunpack.c.l.b16 %v311
        %v452 = vunpack.c.l.b16 %v312
        %v453 = vunpack.c.l.b16 %v313
        %v454 = vunpack.c.l.b16 %v314
        %v455 = vunpack.c.l.b16 %v315
        %v456 = vunpack.c.l.b16 %v316
        %v457 = vunpack.c.l.b16 %v317
        %v458 = vunpack.c.l.b16 %v318
        %v459 = vunpack.c.l.b16 %v319
        %v460 = vunpack.c.l.b16 %v320
        %v461 = vunpack.c.l.b16 %v321
        %v462 = vunpack.c.l.b16 %v322
        %v463 = vunpack.c.l.b16 %v323
        %v464 = vunpack.c.l.b16 %v324
        %v465 = vunpack.c.l.b16 %v325
        %v466 = vunpack.c.l.b16 %v326
        %v467 = vunpack.c.l.b16 %v327
        %v468 = vunpack.c.l.b16 %v328
        %v469 = vunpack.c.l.b16 %v329
        %v470 = vunpack.c.l.b16 %v330
        %v471 = vunpack.c.l.b16 %v331
        %v472 = vunpack.c.l.b16 %v332
        %v473 = vunpack.c.l.b16 %v333
        %v474 = vunpack.c.l.b16 %v334
        %v475 = vunpack.c.l.b16 %v335
        %v476 = vunpack.c.l.b16 %v336
        %v477 = vunpack.c.l.b16 %v337
        %v478 = vunpack.c.l.b16 %v338
        %v479 = vpack.c.b16 %v416, %v415
        %v480 = vpack.c.b16 %v418, %v417
        %v481 = vpack.c.b16 %v420, %v419
        %v482 = vpack.c.b16 %v422, %v421
        %v483 = vpack.c.b16 %v424, %v423
        %v484 = vpack.c.b16 %v426, %v425
        %v485 = vpack.c.b16 %v428, %v427
        %v486 = vpack.c.b16 %v430, %v429
        %v487 = vpack.c.b16 %v432, %v431
        %v488 = vpack.c.b16 %v434, %v433
        %v489 = vpack.c.b16 %v436, %v435
        %v490 = vpack.c.b16 %v438, %v437
        %v491 = vpack.c.b16 %v440, %v439
        %v492 = vpack.c.b16 %v442, %v441
        %v493 = vpack.c.b16 %v444, %v443
        %v494 = vpack.c.b16 %v446, %v445
        %v495 = vpack.c.b16 %v448, %v447
        %v496 = vpack.c.b16 %v450, %v449
        %v497 = vpack.c.b16 %v452, %v451
        %v498 = vpack.c.b16 %v454, %v453
        %v499 = vpack.c.b16 %v456, %v455
        %v500 = vpack.c.b16 %v458, %v457
        %v501 = vpack.c.b16 %v460, %v459
        %v502 = vpack.c.b16 %v462, %v461
        %v503 = vpack.c.b16 %v464, %v463
        %v504 = vpack.c.b16 %v466, %v465
        %v505 = vpack.c.b16 %v468, %v467
        %v506 = vpack.c.b16 %v470, %v469
        %v507 = vpack.c.b16 %v472, %v471
        %v508 = vpack.c.b16 %v474, %v473
        %v509 = vpack.c.b16 %v476, %v475
        %v510 = vpack.c.b16 %v478, %v477
        %v519 = vunpack.c.l.b16 %v339
        %v520 = vunpack.c.l.b16 %v340
        %v521 = vunpack.c.l.b16 %v341
        %v522 = vunpack.c.l.b16 %v342
        %v523 = vunpack.c.l.b16 %v343
        %v524 = vunpack.c.l.b16 %v344
        %v525 = vunpack.c.l.b16 %v345
        %v526 = vunpack.c.l.b16 %v346
        %v527 = vpack.c.b16 %v520, %v519
        %v528 = vpack.c.b16 %v522, %v521
        %v529 = vpack.c.b16 %v524, %v523
        %v530 = vpack.c.b16 %v526, %v525
        %vm535 = vcmask 523264
        %v537 = vsel %vm535, %v479, 0
        %v540 = vsel %vm535, %v480, 0
        %v543 = vsel %vm535, %v481, 0
        %v546 = vsel %vm535, %v482, 0
        %v549 = vsel %vm535, %v483, 0
        %v552 = vsel %vm535, %v484, 0
        %v555 = vsel %vm535, %v485, 0
        %v558 = vsel %vm535, %v486, 0
        %v561 = vsel %vm535, %v487, 0
        %v564 = vsel %vm535, %v488, 0
        %v567 = vsel %vm535, %v489, 0
        %v570 = vsel %vm535, %v490, 0
        %v573 = vsel %vm535, %v491, 0
        %v576 = vsel %vm535, %v492, 0
        %v579 = vsel %vm535, %v493, 0
        %v582 = vsel %vm535, %v494, 0
        %v585 = vsel %vm535, %v495, 0
        %v588 = vsel %vm535, %v496, 0
        %v591 = vsel %vm535, %v497, 0
        %v594 = vsel %vm535, %v498, 0
        %v597 = vsel %vm535, %v499, 0
        %v600 = vsel %vm535, %v500, 0
        %v603 = vsel %vm535, %v501, 0
        %v606 = vsel %vm535, %v502, 0
        %v609 = vsel %vm535, %v503, 0
        %v612 = vsel %vm535, %v504, 0
        %v615 = vsel %vm535, %v505, 0
        %v618 = vsel %vm535, %v506, 0
        %v621 = vsel %vm535, %v507, 0
        %v624 = vsel %vm535, %v508, 0
        %v627 = vsel %vm535, %v509, 0
        %v630 = vsel %vm535, %v510, 0
        %632 = vmatpush.bf16.msra.mxu0 0
        %633 = vmatpush.bf16.msra.mxu0 0
        %634 = vmatpush.bf16.msra.mxu0 0
        %635 = vmatpush.bf16.msra.mxu0 0
        %636 = vmatpush.bf16.msra.mxu0 %v530
        %637 = vmatpush.bf16.msra.mxu0 %v529
        %638 = vmatpush.bf16.msra.mxu0 %v528
        %639 = vmatpush.bf16.msra.mxu0 %v527
        %640 = vmatmul.bf16.gmra.mxu0 %v537
        %v641 = vpop.f32.mrf.mxu0
        %v642 = vadd.f32 %v349, %v641
        %v643 = vpop.f32.mrf.mxu0
        %v644 = vadd.f32 %v349, %v643
        %645 = vmatmul.bf16.gmra.mxu0 %v540
        %v646 = vpop.f32.mrf.mxu0
        %v647 = vadd.f32 %v349, %v646
        %v648 = vpop.f32.mrf.mxu0
        %v649 = vadd.f32 %v349, %v648
        %650 = vmatmul.bf16.gmra.mxu0 %v543
        %v651 = vpop.f32.mrf.mxu0
        %v652 = vadd.f32 %v349, %v651
        %v653 = vpop.f32.mrf.mxu0
        %v654 = vadd.f32 %v349, %v653
        %655 = vmatmul.bf16.gmra.mxu0 %v546
        %v656 = vpop.f32.mrf.mxu0
        %v657 = vadd.f32 %v349, %v656
        %v658 = vpop.f32.mrf.mxu0
        %v659 = vadd.f32 %v349, %v658
        %660 = vmatmul.bf16.gmra.mxu0 %v549
        %v661 = vpop.f32.mrf.mxu0
        %v662 = vadd.f32 %v349, %v661
        %v663 = vpop.f32.mrf.mxu0
        %v664 = vadd.f32 %v349, %v663
        %665 = vmatmul.bf16.gmra.mxu0 %v552
        %v666 = vpop.f32.mrf.mxu0
        %v667 = vadd.f32 %v349, %v666
        %v668 = vpop.f32.mrf.mxu0
        %v669 = vadd.f32 %v349, %v668
        %670 = vmatmul.bf16.gmra.mxu0 %v555
        %v671 = vpop.f32.mrf.mxu0
        %v672 = vadd.f32 %v349, %v671
        %v673 = vpop.f32.mrf.mxu0
        %v674 = vadd.f32 %v349, %v673
        %675 = vmatmul.bf16.gmra.mxu0 %v558
        %v676 = vpop.f32.mrf.mxu0
        %v677 = vadd.f32 %v349, %v676
        %v678 = vpop.f32.mrf.mxu0
        %v679 = vadd.f32 %v349, %v678
        %680 = vmatmul.bf16.gmra.mxu0 %v561
        %v681 = vpop.f32.mrf.mxu0
        %v682 = vadd.f32 %v349, %v681
        %v683 = vpop.f32.mrf.mxu0
        %v684 = vadd.f32 %v349, %v683
        %685 = vmatmul.bf16.gmra.mxu0 %v564
        %v686 = vpop.f32.mrf.mxu0
        %v687 = vadd.f32 %v349, %v686
        %v688 = vpop.f32.mrf.mxu0
        %v689 = vadd.f32 %v349, %v688
        %690 = vmatmul.bf16.gmra.mxu0 %v567
        %v691 = vpop.f32.mrf.mxu0
        %v692 = vadd.f32 %v349, %v691
        %v693 = vpop.f32.mrf.mxu0
        %v694 = vadd.f32 %v349, %v693
        %695 = vmatmul.bf16.gmra.mxu0 %v570
        %v696 = vpop.f32.mrf.mxu0
        %v697 = vadd.f32 %v349, %v696
        %v698 = vpop.f32.mrf.mxu0
        %v699 = vadd.f32 %v349, %v698
        %700 = vmatmul.bf16.gmra.mxu0 %v573
        %v701 = vpop.f32.mrf.mxu0
        %v702 = vadd.f32 %v349, %v701
        %v703 = vpop.f32.mrf.mxu0
        %v704 = vadd.f32 %v349, %v703
        %705 = vmatmul.bf16.gmra.mxu0 %v576
        %v706 = vpop.f32.mrf.mxu0
        %v707 = vadd.f32 %v349, %v706
        %v708 = vpop.f32.mrf.mxu0
        %v709 = vadd.f32 %v349, %v708
        %710 = vmatmul.bf16.gmra.mxu0 %v579
        %v711 = vpop.f32.mrf.mxu0
        %v712 = vadd.f32 %v349, %v711
        %v713 = vpop.f32.mrf.mxu0
        %v714 = vadd.f32 %v349, %v713
        %715 = vmatmul.bf16.gmra.mxu0 %v582
        %v716 = vpop.f32.mrf.mxu0
        %v717 = vadd.f32 %v349, %v716
        %v718 = vpop.f32.mrf.mxu0
        %v719 = vadd.f32 %v349, %v718
        %720 = vmatmul.bf16.gmra.mxu0 %v585
        %v721 = vpop.f32.mrf.mxu0
        %v722 = vadd.f32 %v349, %v721
        %v723 = vpop.f32.mrf.mxu0
        %v724 = vadd.f32 %v349, %v723
        %725 = vmatmul.bf16.gmra.mxu0 %v588
        %v726 = vpop.f32.mrf.mxu0
        %v727 = vadd.f32 %v349, %v726
        %v728 = vpop.f32.mrf.mxu0
        %v729 = vadd.f32 %v349, %v728
        %730 = vmatmul.bf16.gmra.mxu0 %v591
        %v731 = vpop.f32.mrf.mxu0
        %v732 = vadd.f32 %v349, %v731
        %v733 = vpop.f32.mrf.mxu0
        %v734 = vadd.f32 %v349, %v733
        %735 = vmatmul.bf16.gmra.mxu0 %v594
        %v736 = vpop.f32.mrf.mxu0
        %v737 = vadd.f32 %v349, %v736
        %v738 = vpop.f32.mrf.mxu0
        %v739 = vadd.f32 %v349, %v738
        %740 = vmatmul.bf16.gmra.mxu0 %v597
        %v741 = vpop.f32.mrf.mxu0
        %v742 = vadd.f32 %v349, %v741
        %v743 = vpop.f32.mrf.mxu0
        %v744 = vadd.f32 %v349, %v743
        %745 = vmatmul.bf16.gmra.mxu0 %v600
        %v746 = vpop.f32.mrf.mxu0
        %v747 = vadd.f32 %v349, %v746
        %v748 = vpop.f32.mrf.mxu0
        %v749 = vadd.f32 %v349, %v748
        %750 = vmatmul.bf16.gmra.mxu0 %v603
        %v751 = vpop.f32.mrf.mxu0
        %v752 = vadd.f32 %v349, %v751
        %v753 = vpop.f32.mrf.mxu0
        %v754 = vadd.f32 %v349, %v753
        %755 = vmatmul.bf16.gmra.mxu0 %v606
        %v756 = vpop.f32.mrf.mxu0
        %v757 = vadd.f32 %v349, %v756
        %v758 = vpop.f32.mrf.mxu0
        %v759 = vadd.f32 %v349, %v758
        %760 = vmatmul.bf16.gmra.mxu0 %v609
        %v761 = vpop.f32.mrf.mxu0
        %v762 = vadd.f32 %v349, %v761
        %v763 = vpop.f32.mrf.mxu0
        %v764 = vadd.f32 %v349, %v763
        %765 = vmatmul.bf16.gmra.mxu0 %v612
        %v766 = vpop.f32.mrf.mxu0
        %v767 = vadd.f32 %v349, %v766
        %v768 = vpop.f32.mrf.mxu0
        %v769 = vadd.f32 %v349, %v768
        %770 = vmatmul.bf16.gmra.mxu0 %v615
        %v771 = vpop.f32.mrf.mxu0
        %v772 = vadd.f32 %v349, %v771
        %v773 = vpop.f32.mrf.mxu0
        %v774 = vadd.f32 %v349, %v773
        %775 = vmatmul.bf16.gmra.mxu0 %v618
        %v776 = vpop.f32.mrf.mxu0
        %v777 = vadd.f32 %v349, %v776
        %v778 = vpop.f32.mrf.mxu0
        %v779 = vadd.f32 %v349, %v778
        %780 = vmatmul.bf16.gmra.mxu0 %v621
        %v781 = vpop.f32.mrf.mxu0
        %v782 = vadd.f32 %v349, %v781
        %v783 = vpop.f32.mrf.mxu0
        %v784 = vadd.f32 %v349, %v783
        %785 = vmatmul.bf16.gmra.mxu0 %v624
        %v786 = vpop.f32.mrf.mxu0
        %v787 = vadd.f32 %v349, %v786
        %v788 = vpop.f32.mrf.mxu0
        %v789 = vadd.f32 %v349, %v788
        %790 = vmatmul.bf16.gmra.mxu0 %v627
        %v791 = vpop.f32.mrf.mxu0
        %v792 = vadd.f32 %v349, %v791
        %v793 = vpop.f32.mrf.mxu0
        %v794 = vadd.f32 %v349, %v793
        %795 = vmatmul.bf16.gmra.mxu0 %v630
        %v796 = vpop.f32.mrf.mxu0
        %v797 = vadd.f32 %v349, %v796
        %v798 = vpop.f32.mrf.mxu0
        %v799 = vadd.f32 %v349, %v798
        %800 = vdwg.mxu0
        %p801 = scmp.eq.s32.totalorder %s27, 0
        // Predicated region
        $region41: #{apply.2} parent=31 // pred_check
          %p802 = pneg %p801
        $region42: #{apply.2} parent=31 // pred_check_branch
          %804 = sbr.rel (%p802) target = $region44
        $region43: #{apply.2} parent=31 // pred_region
          %805 = vst [vmem:[#allocation2] sm:$0x1] 0.0
          %806 = vst [vmem:[#allocation2 + $0x1] sm:$0x1] 0.0
        $region44: #{apply.2} parent=31 // pred_fallthru
          _
        %v807 = vld [vmem:[#allocation2] sm:$0x1]
        %v808 = vadd.f32 %v642, %v644
        %v809 = vadd.f32 %v808, %v647
        %v810 = vadd.f32 %v809, %v649
        %v811 = vadd.f32 %v810, %v652
        %v812 = vadd.f32 %v811, %v654
        %v813 = vadd.f32 %v812, %v657
        %v814 = vadd.f32 %v813, %v659
        %v815 = vadd.f32 %v814, %v662
        %v816 = vadd.f32 %v815, %v664
        %v817 = vadd.f32 %v816, %v667
        %v818 = vadd.f32 %v817, %v669
        %v819 = vadd.f32 %v818, %v672
        %v820 = vadd.f32 %v819, %v674
        %v821 = vadd.f32 %v820, %v677
        %v822 = vadd.f32 %v821, %v679
        %v823 = vadd.f32 %v822, %v682
        %v824 = vadd.f32 %v823, %v684
        %v825 = vadd.f32 %v824, %v687
        %v826 = vadd.f32 %v825, %v689
        %v827 = vadd.f32 %v826, %v692
        %v828 = vadd.f32 %v827, %v694
        %v829 = vadd.f32 %v828, %v697
        %v830 = vadd.f32 %v829, %v699
        %v831 = vadd.f32 %v830, %v702
        %v832 = vadd.f32 %v831, %v704
        %v833 = vadd.f32 %v832, %v707
        %v834 = vadd.f32 %v833, %v709
        %v835 = vadd.f32 %v834, %v712
        %v836 = vadd.f32 %v835, %v714
        %v837 = vadd.f32 %v836, %v717
        %v838 = vadd.f32 %v837, %v719
        %v839 = vadd.f32 %v838, %v722
        %v840 = vadd.f32 %v839, %v724
        %v841 = vadd.f32 %v840, %v727
        %v842 = vadd.f32 %v841, %v729
        %v843 = vadd.f32 %v842, %v732
        %v844 = vadd.f32 %v843, %v734
        %v845 = vadd.f32 %v844, %v737
        %v846 = vadd.f32 %v845, %v739
        %v847 = vadd.f32 %v846, %v742
        %v848 = vadd.f32 %v847, %v744
        %v849 = vadd.f32 %v848, %v747
        %v850 = vadd.f32 %v849, %v749
        %v851 = vadd.f32 %v850, %v752
        %v852 = vadd.f32 %v851, %v754
        %v853 = vadd.f32 %v852, %v757
        %v854 = vadd.f32 %v853, %v759
        %v855 = vadd.f32 %v854, %v762
        %v856 = vadd.f32 %v855, %v764
        %v857 = vadd.f32 %v856, %v767
        %v858 = vadd.f32 %v857, %v769
        %v859 = vadd.f32 %v858, %v772
        %v860 = vadd.f32 %v859, %v774
        %v861 = vadd.f32 %v860, %v777
        %v862 = vadd.f32 %v861, %v779
        %v863 = vadd.f32 %v862, %v782
        %v864 = vadd.f32 %v863, %v784
        %v865 = vadd.f32 %v864, %v787
        %v866 = vadd.f32 %v865, %v789
        %v867 = vadd.f32 %v866, %v792
        %v868 = vadd.f32 %v867, %v794
        %v869 = vadd.f32 %v868, %v797
        %v870 = vadd.f32 %v869, %v799
        %v871 = vrot.slane %v870, 4
        %v872 = vadd.f32 %v870, %v871
        %v873 = vrot.slane %v872, 2
        %v874 = vadd.f32 %v872, %v873
        %v875 = vrot.slane %v874, 1
        %v876 = vadd.f32 %v874, %v875
        %v877 = vadd.f32 %v807, %v876
        %878 = vst [vmem:[#allocation2] sm:$0x1] %v877
        %s879 = scalar_lea.vmem [#allocation2], 1
        %v880 = vld [vmem:[%s879] sm:$0x1]
        %v881 = vmul.f32 %v642, %v642
        %v882 = vmul.f32 %v644, %v644
        %v883 = vmul.f32 %v647, %v647
        %v884 = vmul.f32 %v649, %v649
        %v885 = vmul.f32 %v652, %v652
        %v886 = vmul.f32 %v654, %v654
        %v887 = vmul.f32 %v657, %v657
        %v888 = vmul.f32 %v659, %v659
        %v889 = vmul.f32 %v662, %v662
        %v890 = vmul.f32 %v664, %v664
        %v891 = vmul.f32 %v667, %v667
        %v892 = vmul.f32 %v669, %v669
        %v893 = vmul.f32 %v672, %v672
        %v894 = vmul.f32 %v674, %v674
        %v895 = vmul.f32 %v677, %v677
        %v896 = vmul.f32 %v679, %v679
        %v897 = vmul.f32 %v682, %v682
        %v898 = vmul.f32 %v684, %v684
        %v899 = vmul.f32 %v687, %v687
        %v900 = vmul.f32 %v689, %v689
        %v901 = vmul.f32 %v692, %v692
        %v902 = vmul.f32 %v694, %v694
        %v903 = vmul.f32 %v697, %v697
        %v904 = vmul.f32 %v699, %v699
        %v905 = vmul.f32 %v702, %v702
        %v906 = vmul.f32 %v704, %v704
        %v907 = vmul.f32 %v707, %v707
        %v908 = vmul.f32 %v709, %v709
        %v909 = vmul.f32 %v712, %v712
        %v910 = vmul.f32 %v714, %v714
        %v911 = vmul.f32 %v717, %v717
        %v912 = vmul.f32 %v719, %v719
        %v913 = vmul.f32 %v722, %v722
        %v914 = vmul.f32 %v724, %v724
        %v915 = vmul.f32 %v727, %v727
        %v916 = vmul.f32 %v729, %v729
        %v917 = vmul.f32 %v732, %v732
        %v918 = vmul.f32 %v734, %v734
        %v919 = vmul.f32 %v737, %v737
        %v920 = vmul.f32 %v739, %v739
        %v921 = vmul.f32 %v742, %v742
        %v922 = vmul.f32 %v744, %v744
        %v923 = vmul.f32 %v747, %v747
        %v924 = vmul.f32 %v749, %v749
        %v925 = vmul.f32 %v752, %v752
        %v926 = vmul.f32 %v754, %v754
        %v927 = vmul.f32 %v757, %v757
        %v928 = vmul.f32 %v759, %v759
        %v929 = vmul.f32 %v762, %v762
        %v930 = vmul.f32 %v764, %v764
        %v931 = vmul.f32 %v767, %v767
        %v932 = vmul.f32 %v769, %v769
        %v933 = vmul.f32 %v772, %v772
        %v934 = vmul.f32 %v774, %v774
        %v935 = vmul.f32 %v777, %v777
        %v936 = vmul.f32 %v779, %v779
        %v937 = vmul.f32 %v782, %v782
        %v938 = vmul.f32 %v784, %v784
        %v939 = vmul.f32 %v787, %v787
        %v940 = vmul.f32 %v789, %v789
        %v941 = vmul.f32 %v792, %v792
        %v942 = vmul.f32 %v794, %v794
        %v943 = vmul.f32 %v797, %v797
        %v944 = vmul.f32 %v799, %v799
        %v945 = vadd.f32 %v881, %v882
        %v946 = vadd.f32 %v945, %v883
        %v947 = vadd.f32 %v946, %v884
        %v948 = vadd.f32 %v947, %v885
        %v949 = vadd.f32 %v948, %v886
        %v950 = vadd.f32 %v949, %v887
        %v951 = vadd.f32 %v950, %v888
        %v952 = vadd.f32 %v951, %v889
        %v953 = vadd.f32 %v952, %v890
        %v954 = vadd.f32 %v953, %v891
        %v955 = vadd.f32 %v954, %v892
        %v956 = vadd.f32 %v955, %v893
        %v957 = vadd.f32 %v956, %v894
        %v958 = vadd.f32 %v957, %v895
        %v959 = vadd.f32 %v958, %v896
        %v960 = vadd.f32 %v959, %v897
        %v961 = vadd.f32 %v960, %v898
        %v962 = vadd.f32 %v961, %v899
        %v963 = vadd.f32 %v962, %v900
        %v964 = vadd.f32 %v963, %v901
        %v965 = vadd.f32 %v964, %v902
        %v966 = vadd.f32 %v965, %v903
        %v967 = vadd.f32 %v966, %v904
        %v968 = vadd.f32 %v967, %v905
        %v969 = vadd.f32 %v968, %v906
        %v970 = vadd.f32 %v969, %v907
        %v971 = vadd.f32 %v970, %v908
        %v972 = vadd.f32 %v971, %v909
        %v973 = vadd.f32 %v972, %v910
        %v974 = vadd.f32 %v973, %v911
        %v975 = vadd.f32 %v974, %v912
        %v976 = vadd.f32 %v975, %v913
        %v977 = vadd.f32 %v976, %v914
        %v978 = vadd.f32 %v977, %v915
        %v979 = vadd.f32 %v978, %v916
        %v980 = vadd.f32 %v979, %v917
        %v981 = vadd.f32 %v980, %v918
        %v982 = vadd.f32 %v981, %v919
        %v983 = vadd.f32 %v982, %v920
        %v984 = vadd.f32 %v983, %v921
        %v985 = vadd.f32 %v984, %v922
        %v986 = vadd.f32 %v985, %v923
        %v987 = vadd.f32 %v986, %v924
        %v988 = vadd.f32 %v987, %v925
        %v989 = vadd.f32 %v988, %v926
        %v990 = vadd.f32 %v989, %v927
        %v991 = vadd.f32 %v990, %v928
        %v992 = vadd.f32 %v991, %v929
        %v993 = vadd.f32 %v992, %v930
        %v994 = vadd.f32 %v993, %v931
        %v995 = vadd.f32 %v994, %v932
        %v996 = vadd.f32 %v995, %v933
        %v997 = vadd.f32 %v996, %v934
        %v998 = vadd.f32 %v997, %v935
        %v999 = vadd.f32 %v998, %v936
        %v1000 = vadd.f32 %v999, %v937
        %v1001 = vadd.f32 %v1000, %v938
        %v1002 = vadd.f32 %v1001, %v939
        %v1003 = vadd.f32 %v1002, %v940
        %v1004 = vadd.f32 %v1003, %v941
        %v1005 = vadd.f32 %v1004, %v942
        %v1006 = vadd.f32 %v1005, %v943
        %v1007 = vadd.f32 %v1006, %v944
        %v1008 = vrot.slane %v1007, 4
        %v1009 = vadd.f32 %v1007, %v1008
        %v1010 = vrot.slane %v1009, 2
        %v1011 = vadd.f32 %v1009, %v1010
        %v1012 = vrot.slane %v1011, 1
        %v1013 = vadd.f32 %v1011, %v1012
        %v1014 = vadd.f32 %v880, %v1013
        %1015 = vst [vmem:[%s879] sm:$0x1] %v1014
        %v1016 = vpack.c.bf16 %v642, %v642
        %v1017 = vpack.c.bf16 %v644, %v644
        %v1018 = vpack.c.bf16 %v647, %v647
        %v1019 = vpack.c.bf16 %v649, %v649
        %v1020 = vpack.c.bf16 %v652, %v652
        %v1021 = vpack.c.bf16 %v654, %v654
        %v1022 = vpack.c.bf16 %v657, %v657
        %v1023 = vpack.c.bf16 %v659, %v659
        %v1024 = vpack.c.bf16 %v662, %v662
        %v1025 = vpack.c.bf16 %v664, %v664
        %v1026 = vpack.c.bf16 %v667, %v667
        %v1027 = vpack.c.bf16 %v669, %v669
        %v1028 = vpack.c.bf16 %v672, %v672
        %v1029 = vpack.c.bf16 %v674, %v674
        %v1030 = vpack.c.bf16 %v677, %v677
        %v1031 = vpack.c.bf16 %v679, %v679
        %v1032 = vpack.c.bf16 %v682, %v682
        %v1033 = vpack.c.bf16 %v684, %v684
        %v1034 = vpack.c.bf16 %v687, %v687
        %v1035 = vpack.c.bf16 %v689, %v689
        %v1036 = vpack.c.bf16 %v692, %v692
        %v1037 = vpack.c.bf16 %v694, %v694
        %v1038 = vpack.c.bf16 %v697, %v697
        %v1039 = vpack.c.bf16 %v699, %v699
        %v1040 = vpack.c.bf16 %v702, %v702
        %v1041 = vpack.c.bf16 %v704, %v704
        %v1042 = vpack.c.bf16 %v707, %v707
        %v1043 = vpack.c.bf16 %v709, %v709
        %v1044 = vpack.c.bf16 %v712, %v712
        %v1045 = vpack.c.bf16 %v714, %v714
        %v1046 = vpack.c.bf16 %v717, %v717
        %v1047 = vpack.c.bf16 %v719, %v719
        %v1048 = vpack.c.bf16 %v722, %v722
        %v1049 = vpack.c.bf16 %v724, %v724
        %v1050 = vpack.c.bf16 %v727, %v727
        %v1051 = vpack.c.bf16 %v729, %v729
        %v1052 = vpack.c.bf16 %v732, %v732
        %v1053 = vpack.c.bf16 %v734, %v734
        %v1054 = vpack.c.bf16 %v737, %v737
        %v1055 = vpack.c.bf16 %v739, %v739
        %v1056 = vpack.c.bf16 %v742, %v742
        %v1057 = vpack.c.bf16 %v744, %v744
        %v1058 = vpack.c.bf16 %v747, %v747
        %v1059 = vpack.c.bf16 %v749, %v749
        %v1060 = vpack.c.bf16 %v752, %v752
        %v1061 = vpack.c.bf16 %v754, %v754
        %v1062 = vpack.c.bf16 %v757, %v757
        %v1063 = vpack.c.bf16 %v759, %v759
        %v1064 = vpack.c.bf16 %v762, %v762
        %v1065 = vpack.c.bf16 %v764, %v764
        %v1066 = vpack.c.bf16 %v767, %v767
        %v1067 = vpack.c.bf16 %v769, %v769
        %v1068 = vpack.c.bf16 %v772, %v772
        %v1069 = vpack.c.bf16 %v774, %v774
        %v1070 = vpack.c.bf16 %v777, %v777
        %v1071 = vpack.c.bf16 %v779, %v779
        %v1072 = vpack.c.bf16 %v782, %v782
        %v1073 = vpack.c.bf16 %v784, %v784
        %v1074 = vpack.c.bf16 %v787, %v787
        %v1075 = vpack.c.bf16 %v789, %v789
        %v1076 = vpack.c.bf16 %v792, %v792
        %v1077 = vpack.c.bf16 %v794, %v794
        %v1078 = vpack.c.bf16 %v797, %v797
        %v1079 = vpack.c.bf16 %v799, %v799
        %s1080 = smul.u32 %s27, 64
        %s1081 = smul.addr %s1080, 4
        %s1082 = scalar_lea.vmem %s264, %s1081 [#allocation7]
        %1083 = vst [vmem:[%s1082] sm:$0xf] %v1016
        %1084 = vst [vmem:[%s1082 + $0x4] sm:$0xf] %v1017
        %1085 = vst [vmem:[%s1082 + $0x8] sm:$0xf] %v1018
        %1086 = vst [vmem:[%s1082 + $0xc] sm:$0xf] %v1019
        %1087 = vst [vmem:[%s1082 + $0x10] sm:$0xf] %v1020
        %1088 = vst [vmem:[%s1082 + $0x14] sm:$0xf] %v1021
        %1089 = vst [vmem:[%s1082 + $0x18] sm:$0xf] %v1022
        %1090 = vst [vmem:[%s1082 + $0x1c] sm:$0xf] %v1023
        %1091 = vst [vmem:[%s1082 + $0x20] sm:$0xf] %v1024
        %1092 = vst [vmem:[%s1082 + $0x24] sm:$0xf] %v1025
        %1093 = vst [vmem:[%s1082 + $0x28] sm:$0xf] %v1026
        %1094 = vst [vmem:[%s1082 + $0x2c] sm:$0xf] %v1027
        %1095 = vst [vmem:[%s1082 + $0x30] sm:$0xf] %v1028
        %1096 = vst [vmem:[%s1082 + $0x34] sm:$0xf] %v1029
        %1097 = vst [vmem:[%s1082 + $0x38] sm:$0xf] %v1030
        %1098 = vst [vmem:[%s1082 + $0x3c] sm:$0xf] %v1031
        %1099 = vst [vmem:[%s1082 + $0x40] sm:$0xf] %v1032
        %1100 = vst [vmem:[%s1082 + $0x44] sm:$0xf] %v1033
        %1101 = vst [vmem:[%s1082 + $0x48] sm:$0xf] %v1034
        %1102 = vst [vmem:[%s1082 + $0x4c] sm:$0xf] %v1035
        %1103 = vst [vmem:[%s1082 + $0x50] sm:$0xf] %v1036
        %1104 = vst [vmem:[%s1082 + $0x54] sm:$0xf] %v1037
        %1105 = vst [vmem:[%s1082 + $0x58] sm:$0xf] %v1038
        %1106 = vst [vmem:[%s1082 + $0x5c] sm:$0xf] %v1039
        %1107 = vst [vmem:[%s1082 + $0x60] sm:$0xf] %v1040
        %1108 = vst [vmem:[%s1082 + $0x64] sm:$0xf] %v1041
        %1109 = vst [vmem:[%s1082 + $0x68] sm:$0xf] %v1042
        %1110 = vst [vmem:[%s1082 + $0x6c] sm:$0xf] %v1043
        %1111 = vst [vmem:[%s1082 + $0x70] sm:$0xf] %v1044
        %1112 = vst [vmem:[%s1082 + $0x74] sm:$0xf] %v1045
        %1113 = vst [vmem:[%s1082 + $0x78] sm:$0xf] %v1046
        %1114 = vst [vmem:[%s1082 + $0x7c] sm:$0xf] %v1047
        %1115 = vst [vmem:[%s1082 + $0x80] sm:$0xf] %v1048
        %1116 = vst [vmem:[%s1082 + $0x84] sm:$0xf] %v1049
        %1117 = vst [vmem:[%s1082 + $0x88] sm:$0xf] %v1050
        %1118 = vst [vmem:[%s1082 + $0x8c] sm:$0xf] %v1051
        %1119 = vst [vmem:[%s1082 + $0x90] sm:$0xf] %v1052
        %1120 = vst [vmem:[%s1082 + $0x94] sm:$0xf] %v1053
        %1121 = vst [vmem:[%s1082 + $0x98] sm:$0xf] %v1054
        %1122 = vst [vmem:[%s1082 + $0x9c] sm:$0xf] %v1055
        %1123 = vst [vmem:[%s1082 + $0xa0] sm:$0xf] %v1056
        %1124 = vst [vmem:[%s1082 + $0xa4] sm:$0xf] %v1057
        %1125 = vst [vmem:[%s1082 + $0xa8] sm:$0xf] %v1058
        %1126 = vst [vmem:[%s1082 + $0xac] sm:$0xf] %v1059
        %1127 = vst [vmem:[%s1082 + $0xb0] sm:$0xf] %v1060
        %1128 = vst [vmem:[%s1082 + $0xb4] sm:$0xf] %v1061
        %1129 = vst [vmem:[%s1082 + $0xb8] sm:$0xf] %v1062
        %1130 = vst [vmem:[%s1082 + $0xbc] sm:$0xf] %v1063
        %1131 = vst [vmem:[%s1082 + $0xc0] sm:$0xf] %v1064
        %1132 = vst [vmem:[%s1082 + $0xc4] sm:$0xf] %v1065
        %1133 = vst [vmem:[%s1082 + $0xc8] sm:$0xf] %v1066
        %1134 = vst [vmem:[%s1082 + $0xcc] sm:$0xf] %v1067
        %1135 = vst [vmem:[%s1082 + $0xd0] sm:$0xf] %v1068
        %1136 = vst [vmem:[%s1082 + $0xd4] sm:$0xf] %v1069
        %1137 = vst [vmem:[%s1082 + $0xd8] sm:$0xf] %v1070
        %1138 = vst [vmem:[%s1082 + $0xdc] sm:$0xf] %v1071
        %1139 = vst [vmem:[%s1082 + $0xe0] sm:$0xf] %v1072
        %1140 = vst [vmem:[%s1082 + $0xe4] sm:$0xf] %v1073
        %1141 = vst [vmem:[%s1082 + $0xe8] sm:$0xf] %v1074
        %1142 = vst [vmem:[%s1082 + $0xec] sm:$0xf] %v1075
        %1143 = vst [vmem:[%s1082 + $0xf0] sm:$0xf] %v1076
        %1144 = vst [vmem:[%s1082 + $0xf4] sm:$0xf] %v1077
        %1145 = vst [vmem:[%s1082 + $0xf8] sm:$0xf] %v1078
        %1146 = vst [vmem:[%s1082 + $0xfc] sm:$0xf] %v1079
        // Predicated region
        $region45: #{apply.2} parent=31 // pred_check
          %p1147 = pneg %p801
        $region46: #{apply.2} parent=31 // pred_check_branch
          %1149 = sbr.rel (%p1147) target = $region48
        $region47: #{apply.2} parent=31 // pred_region
          %v1150 = vld [vmem:[#allocation2] sm:$0x1]
          %v1151 = vmul.f32 %v1150, 0.001953125
          %v1152 = vld [vmem:[%s879] sm:$0x1]
          %v1153 = vmul.f32 %v1152, 0.001953125
          %v1154 = vmul.f32 %v1151, %v1151
          %v1155 = vsub.f32 %v1153, %v1154
          %v1156 = vadd.f32 %v1155, 1e-05
          %v1157 = vrsqrt.pop %v1156
          %v1158 = vmul.f32 %v1157, %v1156
          %v1159 = vmul.f32 %v1158, %v1157
          %v1160 = vmul.f32 0.5, %v1159
          %v1161 = vsub.f32 1.5, %v1160
          %v1162 = vmul.f32 %v1157, %v1161
          %vm1163 = vweird.f32 %v1156
          %vm1164 = vweird.f32 %v1157
          %vm1165 = vmor %vm1163, %vm1164
          %v1166 = vsel %vm1165, %v1157, %v1162
          %v1167 = vld [vmem:[%s264] sm:$0xf]
          %v1168 = vld [vmem:[%s264 + $0x4] sm:$0xf]
          %v1169 = vld [vmem:[%s264 + $0x8] sm:$0xf]
          %v1170 = vld [vmem:[%s264 + $0xc] sm:$0xf]
          %v1171 = vld [vmem:[%s264 + $0x10] sm:$0xf]
          %v1172 = vld [vmem:[%s264 + $0x14] sm:$0xf]
          %v1173 = vld [vmem:[%s264 + $0x18] sm:$0xf]
          %v1174 = vld [vmem:[%s264 + $0x1c] sm:$0xf]
          %v1175 = vld [vmem:[%s264 + $0x20] sm:$0xf]
          %v1176 = vld [vmem:[%s264 + $0x24] sm:$0xf]
          %v1177 = vld [vmem:[%s264 + $0x28] sm:$0xf]
          %v1178 = vld [vmem:[%s264 + $0x2c] sm:$0xf]
          %v1179 = vld [vmem:[%s264 + $0x30] sm:$0xf]
          %v1180 = vld [vmem:[%s264 + $0x34] sm:$0xf]
          %v1181 = vld [vmem:[%s264 + $0x38] sm:$0xf]
          %v1182 = vld [vmem:[%s264 + $0x3c] sm:$0xf]
          %v1183 = vld [vmem:[%s264 + $0x40] sm:$0xf]
          %v1184 = vld [vmem:[%s264 + $0x44] sm:$0xf]
          %v1185 = vld [vmem:[%s264 + $0x48] sm:$0xf]
          %v1186 = vld [vmem:[%s264 + $0x4c] sm:$0xf]
          %v1187 = vld [vmem:[%s264 + $0x50] sm:$0xf]
          %v1188 = vld [vmem:[%s264 + $0x54] sm:$0xf]
          %v1189 = vld [vmem:[%s264 + $0x58] sm:$0xf]
          %v1190 = vld [vmem:[%s264 + $0x5c] sm:$0xf]
          %v1191 = vld [vmem:[%s264 + $0x60] sm:$0xf]
          %v1192 = vld [vmem:[%s264 + $0x64] sm:$0xf]
          %v1193 = vld [vmem:[%s264 + $0x68] sm:$0xf]
          %v1194 = vld [vmem:[%s264 + $0x6c] sm:$0xf]
          %v1195 = vld [vmem:[%s264 + $0x70] sm:$0xf]
          %v1196 = vld [vmem:[%s264 + $0x74] sm:$0xf]
          %v1197 = vld [vmem:[%s264 + $0x78] sm:$0xf]
          %v1198 = vld [vmem:[%s264 + $0x7c] sm:$0xf]
          %v1199 = vld [vmem:[%s264 + $0x80] sm:$0xf]
          %v1200 = vld [vmem:[%s264 + $0x84] sm:$0xf]
          %v1201 = vld [vmem:[%s264 + $0x88] sm:$0xf]
          %v1202 = vld [vmem:[%s264 + $0x8c] sm:$0xf]
          %v1203 = vld [vmem:[%s264 + $0x90] sm:$0xf]
          %v1204 = vld [vmem:[%s264 + $0x94] sm:$0xf]
          %v1205 = vld [vmem:[%s264 + $0x98] sm:$0xf]
          %v1206 = vld [vmem:[%s264 + $0x9c] sm:$0xf]
          %v1207 = vld [vmem:[%s264 + $0xa0] sm:$0xf]
          %v1208 = vld [vmem:[%s264 + $0xa4] sm:$0xf]
          %v1209 = vld [vmem:[%s264 + $0xa8] sm:$0xf]
          %v1210 = vld [vmem:[%s264 + $0xac] sm:$0xf]
          %v1211 = vld [vmem:[%s264 + $0xb0] sm:$0xf]
          %v1212 = vld [vmem:[%s264 + $0xb4] sm:$0xf]
          %v1213 = vld [vmem:[%s264 + $0xb8] sm:$0xf]
          %v1214 = vld [vmem:[%s264 + $0xbc] sm:$0xf]
          %v1215 = vld [vmem:[%s264 + $0xc0] sm:$0xf]
          %v1216 = vld [vmem:[%s264 + $0xc4] sm:$0xf]
          %v1217 = vld [vmem:[%s264 + $0xc8] sm:$0xf]
          %v1218 = vld [vmem:[%s264 + $0xcc] sm:$0xf]
          %v1219 = vld [vmem:[%s264 + $0xd0] sm:$0xf]
          %v1220 = vld [vmem:[%s264 + $0xd4] sm:$0xf]
          %v1221 = vld [vmem:[%s264 + $0xd8] sm:$0xf]
          %v1222 = vld [vmem:[%s264 + $0xdc] sm:$0xf]
          %v1223 = vld [vmem:[%s264 + $0xe0] sm:$0xf]
          %v1224 = vld [vmem:[%s264 + $0xe4] sm:$0xf]
          %v1225 = vld [vmem:[%s264 + $0xe8] sm:$0xf]
          %v1226 = vld [vmem:[%s264 + $0xec] sm:$0xf]
          %v1227 = vld [vmem:[%s264 + $0xf0] sm:$0xf]
          %v1228 = vld [vmem:[%s264 + $0xf4] sm:$0xf]
          %v1229 = vld [vmem:[%s264 + $0xf8] sm:$0xf]
          %v1230 = vld [vmem:[%s264 + $0xfc] sm:$0xf]
          %v1231 = vunpack.c.l.bf16 %v1167
          %v1232 = vunpack.c.l.bf16 %v1168
          %v1233 = vunpack.c.l.bf16 %v1169
          %v1234 = vunpack.c.l.bf16 %v1170
          %v1235 = vunpack.c.l.bf16 %v1171
          %v1236 = vunpack.c.l.bf16 %v1172
          %v1237 = vunpack.c.l.bf16 %v1173
          %v1238 = vunpack.c.l.bf16 %v1174
          %v1239 = vunpack.c.l.bf16 %v1175
          %v1240 = vunpack.c.l.bf16 %v1176
          %v1241 = vunpack.c.l.bf16 %v1177
          %v1242 = vunpack.c.l.bf16 %v1178
          %v1243 = vunpack.c.l.bf16 %v1179
          %v1244 = vunpack.c.l.bf16 %v1180
          %v1245 = vunpack.c.l.bf16 %v1181
          %v1246 = vunpack.c.l.bf16 %v1182
          %v1247 = vunpack.c.l.bf16 %v1183
          %v1248 = vunpack.c.l.bf16 %v1184
          %v1249 = vunpack.c.l.bf16 %v1185
          %v1250 = vunpack.c.l.bf16 %v1186
          %v1251 = vunpack.c.l.bf16 %v1187
          %v1252 = vunpack.c.l.bf16 %v1188
          %v1253 = vunpack.c.l.bf16 %v1189
          %v1254 = vunpack.c.l.bf16 %v1190
          %v1255 = vunpack.c.l.bf16 %v1191
          %v1256 = vunpack.c.l.bf16 %v1192
          %v1257 = vunpack.c.l.bf16 %v1193
          %v1258 = vunpack.c.l.bf16 %v1194
          %v1259 = vunpack.c.l.bf16 %v1195
          %v1260 = vunpack.c.l.bf16 %v1196
          %v1261 = vunpack.c.l.bf16 %v1197
          %v1262 = vunpack.c.l.bf16 %v1198
          %v1263 = vunpack.c.l.bf16 %v1199
          %v1264 = vunpack.c.l.bf16 %v1200
          %v1265 = vunpack.c.l.bf16 %v1201
          %v1266 = vunpack.c.l.bf16 %v1202
          %v1267 = vunpack.c.l.bf16 %v1203
          %v1268 = vunpack.c.l.bf16 %v1204
          %v1269 = vunpack.c.l.bf16 %v1205
          %v1270 = vunpack.c.l.bf16 %v1206
          %v1271 = vunpack.c.l.bf16 %v1207
          %v1272 = vunpack.c.l.bf16 %v1208
          %v1273 = vunpack.c.l.bf16 %v1209
          %v1274 = vunpack.c.l.bf16 %v1210
          %v1275 = vunpack.c.l.bf16 %v1211
          %v1276 = vunpack.c.l.bf16 %v1212
          %v1277 = vunpack.c.l.bf16 %v1213
          %v1278 = vunpack.c.l.bf16 %v1214
          %v1279 = vunpack.c.l.bf16 %v1215
          %v1280 = vunpack.c.l.bf16 %v1216
          %v1281 = vunpack.c.l.bf16 %v1217
          %v1282 = vunpack.c.l.bf16 %v1218
          %v1283 = vunpack.c.l.bf16 %v1219
          %v1284 = vunpack.c.l.bf16 %v1220
          %v1285 = vunpack.c.l.bf16 %v1221
          %v1286 = vunpack.c.l.bf16 %v1222
          %v1287 = vunpack.c.l.bf16 %v1223
          %v1288 = vunpack.c.l.bf16 %v1224
          %v1289 = vunpack.c.l.bf16 %v1225
          %v1290 = vunpack.c.l.bf16 %v1226
          %v1291 = vunpack.c.l.bf16 %v1227
          %v1292 = vunpack.c.l.bf16 %v1228
          %v1293 = vunpack.c.l.bf16 %v1229
          %v1294 = vunpack.c.l.bf16 %v1230
          %v1296 = vperm.slane %v1151, 0
          %v1298 = vsub.f32 %v1231, %v1296
          %v1299 = vsub.f32 %v1232, %v1296
          %v1300 = vsub.f32 %v1233, %v1296
          %v1301 = vsub.f32 %v1234, %v1296
          %v1302 = vsub.f32 %v1235, %v1296
          %v1303 = vsub.f32 %v1236, %v1296
          %v1304 = vsub.f32 %v1237, %v1296
          %v1305 = vsub.f32 %v1238, %v1296
          %v1306 = vsub.f32 %v1239, %v1296
          %v1307 = vsub.f32 %v1240, %v1296
          %v1308 = vsub.f32 %v1241, %v1296
          %v1309 = vsub.f32 %v1242, %v1296
          %v1310 = vsub.f32 %v1243, %v1296
          %v1311 = vsub.f32 %v1244, %v1296
          %v1312 = vsub.f32 %v1245, %v1296
          %v1313 = vsub.f32 %v1246, %v1296
          %v1314 = vsub.f32 %v1247, %v1296
          %v1315 = vsub.f32 %v1248, %v1296
          %v1316 = vsub.f32 %v1249, %v1296
          %v1317 = vsub.f32 %v1250, %v1296
          %v1318 = vsub.f32 %v1251, %v1296
          %v1319 = vsub.f32 %v1252, %v1296
          %v1320 = vsub.f32 %v1253, %v1296
          %v1321 = vsub.f32 %v1254, %v1296
          %v1322 = vsub.f32 %v1255, %v1296
          %v1323 = vsub.f32 %v1256, %v1296
          %v1324 = vsub.f32 %v1257, %v1296
          %v1325 = vsub.f32 %v1258, %v1296
          %v1326 = vsub.f32 %v1259, %v1296
          %v1327 = vsub.f32 %v1260, %v1296
          %v1328 = vsub.f32 %v1261, %v1296
          %v1329 = vsub.f32 %v1262, %v1296
          %v1330 = vsub.f32 %v1263, %v1296
          %v1331 = vsub.f32 %v1264, %v1296
          %v1332 = vsub.f32 %v1265, %v1296
          %v1333 = vsub.f32 %v1266, %v1296
          %v1334 = vsub.f32 %v1267, %v1296
          %v1335 = vsub.f32 %v1268, %v1296
          %v1336 = vsub.f32 %v1269, %v1296
          %v1337 = vsub.f32 %v1270, %v1296
          %v1338 = vsub.f32 %v1271, %v1296
          %v1339 = vsub.f32 %v1272, %v1296
          %v1340 = vsub.f32 %v1273, %v1296
          %v1341 = vsub.f32 %v1274, %v1296
          %v1342 = vsub.f32 %v1275, %v1296
          %v1343 = vsub.f32 %v1276, %v1296
          %v1344 = vsub.f32 %v1277, %v1296
          %v1345 = vsub.f32 %v1278, %v1296
          %v1346 = vsub.f32 %v1279, %v1296
          %v1347 = vsub.f32 %v1280, %v1296
          %v1348 = vsub.f32 %v1281, %v1296
          %v1349 = vsub.f32 %v1282, %v1296
          %v1350 = vsub.f32 %v1283, %v1296
          %v1351 = vsub.f32 %v1284, %v1296
          %v1352 = vsub.f32 %v1285, %v1296
          %v1353 = vsub.f32 %v1286, %v1296
          %v1354 = vsub.f32 %v1287, %v1296
          %v1355 = vsub.f32 %v1288, %v1296
          %v1356 = vsub.f32 %v1289, %v1296
          %v1357 = vsub.f32 %v1290, %v1296
          %v1358 = vsub.f32 %v1291, %v1296
          %v1359 = vsub.f32 %v1292, %v1296
          %v1360 = vsub.f32 %v1293, %v1296
          %v1361 = vsub.f32 %v1294, %v1296
          %v1363 = vperm.slane %v1166, 0
          %v1365 = vmul.f32 %v1298, %v1363
          %v1366 = vmul.f32 %v1299, %v1363
          %v1367 = vmul.f32 %v1300, %v1363
          %v1368 = vmul.f32 %v1301, %v1363
          %v1369 = vmul.f32 %v1302, %v1363
          %v1370 = vmul.f32 %v1303, %v1363
          %v1371 = vmul.f32 %v1304, %v1363
          %v1372 = vmul.f32 %v1305, %v1363
          %v1373 = vmul.f32 %v1306, %v1363
          %v1374 = vmul.f32 %v1307, %v1363
          %v1375 = vmul.f32 %v1308, %v1363
          %v1376 = vmul.f32 %v1309, %v1363
          %v1377 = vmul.f32 %v1310, %v1363
          %v1378 = vmul.f32 %v1311, %v1363
          %v1379 = vmul.f32 %v1312, %v1363
          %v1380 = vmul.f32 %v1313, %v1363
          %v1381 = vmul.f32 %v1314, %v1363
          %v1382 = vmul.f32 %v1315, %v1363
          %v1383 = vmul.f32 %v1316, %v1363
          %v1384 = vmul.f32 %v1317, %v1363
          %v1385 = vmul.f32 %v1318, %v1363
          %v1386 = vmul.f32 %v1319, %v1363
          %v1387 = vmul.f32 %v1320, %v1363
          %v1388 = vmul.f32 %v1321, %v1363
          %v1389 = vmul.f32 %v1322, %v1363
          %v1390 = vmul.f32 %v1323, %v1363
          %v1391 = vmul.f32 %v1324, %v1363
          %v1392 = vmul.f32 %v1325, %v1363
          %v1393 = vmul.f32 %v1326, %v1363
          %v1394 = vmul.f32 %v1327, %v1363
          %v1395 = vmul.f32 %v1328, %v1363
          %v1396 = vmul.f32 %v1329, %v1363
          %v1397 = vmul.f32 %v1330, %v1363
          %v1398 = vmul.f32 %v1331, %v1363
          %v1399 = vmul.f32 %v1332, %v1363
          %v1400 = vmul.f32 %v1333, %v1363
          %v1401 = vmul.f32 %v1334, %v1363
          %v1402 = vmul.f32 %v1335, %v1363
          %v1403 = vmul.f32 %v1336, %v1363
          %v1404 = vmul.f32 %v1337, %v1363
          %v1405 = vmul.f32 %v1338, %v1363
          %v1406 = vmul.f32 %v1339, %v1363
          %v1407 = vmul.f32 %v1340, %v1363
          %v1408 = vmul.f32 %v1341, %v1363
          %v1409 = vmul.f32 %v1342, %v1363
          %v1410 = vmul.f32 %v1343, %v1363
          %v1411 = vmul.f32 %v1344, %v1363
          %v1412 = vmul.f32 %v1345, %v1363
          %v1413 = vmul.f32 %v1346, %v1363
          %v1414 = vmul.f32 %v1347, %v1363
          %v1415 = vmul.f32 %v1348, %v1363
          %v1416 = vmul.f32 %v1349, %v1363
          %v1417 = vmul.f32 %v1350, %v1363
          %v1418 = vmul.f32 %v1351, %v1363
          %v1419 = vmul.f32 %v1352, %v1363
          %v1420 = vmul.f32 %v1353, %v1363
          %v1421 = vmul.f32 %v1354, %v1363
          %v1422 = vmul.f32 %v1355, %v1363
          %v1423 = vmul.f32 %v1356, %v1363
          %v1424 = vmul.f32 %v1357, %v1363
          %v1425 = vmul.f32 %v1358, %v1363
          %v1426 = vmul.f32 %v1359, %v1363
          %v1427 = vmul.f32 %v1360, %v1363
          %v1428 = vmul.f32 %v1361, %v1363
          %v1429 = vmax.f32 %v1365, 0.0
          %v1430 = vmax.f32 %v1366, 0.0
          %v1431 = vmax.f32 %v1367, 0.0
          %v1432 = vmax.f32 %v1368, 0.0
          %v1433 = vmax.f32 %v1369, 0.0
          %v1434 = vmax.f32 %v1370, 0.0
          %v1435 = vmax.f32 %v1371, 0.0
          %v1436 = vmax.f32 %v1372, 0.0
          %v1437 = vmax.f32 %v1373, 0.0
          %v1438 = vmax.f32 %v1374, 0.0
          %v1439 = vmax.f32 %v1375, 0.0
          %v1440 = vmax.f32 %v1376, 0.0
          %v1441 = vmax.f32 %v1377, 0.0
          %v1442 = vmax.f32 %v1378, 0.0
          %v1443 = vmax.f32 %v1379, 0.0
          %v1444 = vmax.f32 %v1380, 0.0
          %v1445 = vmax.f32 %v1381, 0.0
          %v1446 = vmax.f32 %v1382, 0.0
          %v1447 = vmax.f32 %v1383, 0.0
          %v1448 = vmax.f32 %v1384, 0.0
          %v1449 = vmax.f32 %v1385, 0.0
          %v1450 = vmax.f32 %v1386, 0.0
          %v1451 = vmax.f32 %v1387, 0.0
          %v1452 = vmax.f32 %v1388, 0.0
          %v1453 = vmax.f32 %v1389, 0.0
          %v1454 = vmax.f32 %v1390, 0.0
          %v1455 = vmax.f32 %v1391, 0.0
          %v1456 = vmax.f32 %v1392, 0.0
          %v1457 = vmax.f32 %v1393, 0.0
          %v1458 = vmax.f32 %v1394, 0.0
          %v1459 = vmax.f32 %v1395, 0.0
          %v1460 = vmax.f32 %v1396, 0.0
          %v1461 = vmax.f32 %v1397, 0.0
          %v1462 = vmax.f32 %v1398, 0.0
          %v1463 = vmax.f32 %v1399, 0.0
          %v1464 = vmax.f32 %v1400, 0.0
          %v1465 = vmax.f32 %v1401, 0.0
          %v1466 = vmax.f32 %v1402, 0.0
          %v1467 = vmax.f32 %v1403, 0.0
          %v1468 = vmax.f32 %v1404, 0.0
          %v1469 = vmax.f32 %v1405, 0.0
          %v1470 = vmax.f32 %v1406, 0.0
          %v1471 = vmax.f32 %v1407, 0.0
          %v1472 = vmax.f32 %v1408, 0.0
          %v1473 = vmax.f32 %v1409, 0.0
          %v1474 = vmax.f32 %v1410, 0.0
          %v1475 = vmax.f32 %v1411, 0.0
          %v1476 = vmax.f32 %v1412, 0.0
          %v1477 = vmax.f32 %v1413, 0.0
          %v1478 = vmax.f32 %v1414, 0.0
          %v1479 = vmax.f32 %v1415, 0.0
          %v1480 = vmax.f32 %v1416, 0.0
          %v1481 = vmax.f32 %v1417, 0.0
          %v1482 = vmax.f32 %v1418, 0.0
          %v1483 = vmax.f32 %v1419, 0.0
          %v1484 = vmax.f32 %v1420, 0.0
          %v1485 = vmax.f32 %v1421, 0.0
          %v1486 = vmax.f32 %v1422, 0.0
          %v1487 = vmax.f32 %v1423, 0.0
          %v1488 = vmax.f32 %v1424, 0.0
          %v1489 = vmax.f32 %v1425, 0.0
          %v1490 = vmax.f32 %v1426, 0.0
          %v1491 = vmax.f32 %v1427, 0.0
          %v1492 = vmax.f32 %v1428, 0.0
          %v1493 = vpack.c.bf16 %v1429, %v1429
          %v1494 = vpack.c.bf16 %v1430, %v1430
          %v1495 = vpack.c.bf16 %v1431, %v1431
          %v1496 = vpack.c.bf16 %v1432, %v1432
          %v1497 = vpack.c.bf16 %v1433, %v1433
          %v1498 = vpack.c.bf16 %v1434, %v1434
          %v1499 = vpack.c.bf16 %v1435, %v1435
          %v1500 = vpack.c.bf16 %v1436, %v1436
          %v1501 = vpack.c.bf16 %v1437, %v1437
          %v1502 = vpack.c.bf16 %v1438, %v1438
          %v1503 = vpack.c.bf16 %v1439, %v1439
          %v1504 = vpack.c.bf16 %v1440, %v1440
          %v1505 = vpack.c.bf16 %v1441, %v1441
          %v1506 = vpack.c.bf16 %v1442, %v1442
          %v1507 = vpack.c.bf16 %v1443, %v1443
          %v1508 = vpack.c.bf16 %v1444, %v1444
          %v1509 = vpack.c.bf16 %v1445, %v1445
          %v1510 = vpack.c.bf16 %v1446, %v1446
          %v1511 = vpack.c.bf16 %v1447, %v1447
          %v1512 = vpack.c.bf16 %v1448, %v1448
          %v1513 = vpack.c.bf16 %v1449, %v1449
          %v1514 = vpack.c.bf16 %v1450, %v1450
          %v1515 = vpack.c.bf16 %v1451, %v1451
          %v1516 = vpack.c.bf16 %v1452, %v1452
          %v1517 = vpack.c.bf16 %v1453, %v1453
          %v1518 = vpack.c.bf16 %v1454, %v1454
          %v1519 = vpack.c.bf16 %v1455, %v1455
          %v1520 = vpack.c.bf16 %v1456, %v1456
          %v1521 = vpack.c.bf16 %v1457, %v1457
          %v1522 = vpack.c.bf16 %v1458, %v1458
          %v1523 = vpack.c.bf16 %v1459, %v1459
          %v1524 = vpack.c.bf16 %v1460, %v1460
          %v1525 = vpack.c.bf16 %v1461, %v1461
          %v1526 = vpack.c.bf16 %v1462, %v1462
          %v1527 = vpack.c.bf16 %v1463, %v1463
          %v1528 = vpack.c.bf16 %v1464, %v1464
          %v1529 = vpack.c.bf16 %v1465, %v1465
          %v1530 = vpack.c.bf16 %v1466, %v1466
          %v1531 = vpack.c.bf16 %v1467, %v1467
          %v1532 = vpack.c.bf16 %v1468, %v1468
          %v1533 = vpack.c.bf16 %v1469, %v1469
          %v1534 = vpack.c.bf16 %v1470, %v1470
          %v1535 = vpack.c.bf16 %v1471, %v1471
          %v1536 = vpack.c.bf16 %v1472, %v1472
          %v1537 = vpack.c.bf16 %v1473, %v1473
          %v1538 = vpack.c.bf16 %v1474, %v1474
          %v1539 = vpack.c.bf16 %v1475, %v1475
          %v1540 = vpack.c.bf16 %v1476, %v1476
          %v1541 = vpack.c.bf16 %v1477, %v1477
          %v1542 = vpack.c.bf16 %v1478, %v1478
          %v1543 = vpack.c.bf16 %v1479, %v1479
          %v1544 = vpack.c.bf16 %v1480, %v1480
          %v1545 = vpack.c.bf16 %v1481, %v1481
          %v1546 = vpack.c.bf16 %v1482, %v1482
          %v1547 = vpack.c.bf16 %v1483, %v1483
          %v1548 = vpack.c.bf16 %v1484, %v1484
          %v1549 = vpack.c.bf16 %v1485, %v1485
          %v1550 = vpack.c.bf16 %v1486, %v1486
          %v1551 = vpack.c.bf16 %v1487, %v1487
          %v1552 = vpack.c.bf16 %v1488, %v1488
          %v1553 = vpack.c.bf16 %v1489, %v1489
          %v1554 = vpack.c.bf16 %v1490, %v1490
          %v1555 = vpack.c.bf16 %v1491, %v1491
          %v1556 = vpack.c.bf16 %v1492, %v1492
          %1557 = vst [vmem:[%s264] sm:$0xf] %v1493
          %1558 = vst [vmem:[%s264 + $0x4] sm:$0xf] %v1494
          %1559 = vst [vmem:[%s264 + $0x8] sm:$0xf] %v1495
          %1560 = vst [vmem:[%s264 + $0xc] sm:$0xf] %v1496
          %1561 = vst [vmem:[%s264 + $0x10] sm:$0xf] %v1497
          %1562 = vst [vmem:[%s264 + $0x14] sm:$0xf] %v1498
          %1563 = vst [vmem:[%s264 + $0x18] sm:$0xf] %v1499
          %1564 = vst [vmem:[%s264 + $0x1c] sm:$0xf] %v1500
          %1565 = vst [vmem:[%s264 + $0x20] sm:$0xf] %v1501
          %1566 = vst [vmem:[%s264 + $0x24] sm:$0xf] %v1502
          %1567 = vst [vmem:[%s264 + $0x28] sm:$0xf] %v1503
          %1568 = vst [vmem:[%s264 + $0x2c] sm:$0xf] %v1504
          %1569 = vst [vmem:[%s264 + $0x30] sm:$0xf] %v1505
          %1570 = vst [vmem:[%s264 + $0x34] sm:$0xf] %v1506
          %1571 = vst [vmem:[%s264 + $0x38] sm:$0xf] %v1507
          %1572 = vst [vmem:[%s264 + $0x3c] sm:$0xf] %v1508
          %1573 = vst [vmem:[%s264 + $0x40] sm:$0xf] %v1509
          %1574 = vst [vmem:[%s264 + $0x44] sm:$0xf] %v1510
          %1575 = vst [vmem:[%s264 + $0x48] sm:$0xf] %v1511
          %1576 = vst [vmem:[%s264 + $0x4c] sm:$0xf] %v1512
          %1577 = vst [vmem:[%s264 + $0x50] sm:$0xf] %v1513
          %1578 = vst [vmem:[%s264 + $0x54] sm:$0xf] %v1514
          %1579 = vst [vmem:[%s264 + $0x58] sm:$0xf] %v1515
          %1580 = vst [vmem:[%s264 + $0x5c] sm:$0xf] %v1516
          %1581 = vst [vmem:[%s264 + $0x60] sm:$0xf] %v1517
          %1582 = vst [vmem:[%s264 + $0x64] sm:$0xf] %v1518
          %1583 = vst [vmem:[%s264 + $0x68] sm:$0xf] %v1519
          %1584 = vst [vmem:[%s264 + $0x6c] sm:$0xf] %v1520
          %1585 = vst [vmem:[%s264 + $0x70] sm:$0xf] %v1521
          %1586 = vst [vmem:[%s264 + $0x74] sm:$0xf] %v1522
          %1587 = vst [vmem:[%s264 + $0x78] sm:$0xf] %v1523
          %1588 = vst [vmem:[%s264 + $0x7c] sm:$0xf] %v1524
          %1589 = vst [vmem:[%s264 + $0x80] sm:$0xf] %v1525
          %1590 = vst [vmem:[%s264 + $0x84] sm:$0xf] %v1526
          %1591 = vst [vmem:[%s264 + $0x88] sm:$0xf] %v1527
          %1592 = vst [vmem:[%s264 + $0x8c] sm:$0xf] %v1528
          %1593 = vst [vmem:[%s264 + $0x90] sm:$0xf] %v1529
          %1594 = vst [vmem:[%s264 + $0x94] sm:$0xf] %v1530
          %1595 = vst [vmem:[%s264 + $0x98] sm:$0xf] %v1531
          %1596 = vst [vmem:[%s264 + $0x9c] sm:$0xf] %v1532
          %1597 = vst [vmem:[%s264 + $0xa0] sm:$0xf] %v1533
          %1598 = vst [vmem:[%s264 + $0xa4] sm:$0xf] %v1534
          %1599 = vst [vmem:[%s264 + $0xa8] sm:$0xf] %v1535
          %1600 = vst [vmem:[%s264 + $0xac] sm:$0xf] %v1536
          %1601 = vst [vmem:[%s264 + $0xb0] sm:$0xf] %v1537
          %1602 = vst [vmem:[%s264 + $0xb4] sm:$0xf] %v1538
          %1603 = vst [vmem:[%s264 + $0xb8] sm:$0xf] %v1539
          %1604 = vst [vmem:[%s264 + $0xbc] sm:$0xf] %v1540
          %1605 = vst [vmem:[%s264 + $0xc0] sm:$0xf] %v1541
          %1606 = vst [vmem:[%s264 + $0xc4] sm:$0xf] %v1542
          %1607 = vst [vmem:[%s264 + $0xc8] sm:$0xf] %v1543
          %1608 = vst [vmem:[%s264 + $0xcc] sm:$0xf] %v1544
          %1609 = vst [vmem:[%s264 + $0xd0] sm:$0xf] %v1545
          %1610 = vst [vmem:[%s264 + $0xd4] sm:$0xf] %v1546
          %1611 = vst [vmem:[%s264 + $0xd8] sm:$0xf] %v1547
          %1612 = vst [vmem:[%s264 + $0xdc] sm:$0xf] %v1548
          %1613 = vst [vmem:[%s264 + $0xe0] sm:$0xf] %v1549
          %1614 = vst [vmem:[%s264 + $0xe4] sm:$0xf] %v1550
          %1615 = vst [vmem:[%s264 + $0xe8] sm:$0xf] %v1551
          %1616 = vst [vmem:[%s264 + $0xec] sm:$0xf] %v1552
          %1617 = vst [vmem:[%s264 + $0xf0] sm:$0xf] %v1553
          %1618 = vst [vmem:[%s264 + $0xf4] sm:$0xf] %v1554
          %1619 = vst [vmem:[%s264 + $0xf8] sm:$0xf] %v1555
          %1620 = vst [vmem:[%s264 + $0xfc] sm:$0xf] %v1556
        $region48: #{apply.2} parent=31 // pred_fallthru
          _
        %s1621 = sand.u32 %s131, 1
        %s1622 = sand.u32 %s131, 1
        %s1623 = smul.addr %s1622, 256
        %s1624 = scalar_lea.vmem [#allocation7], %s1623
        // Predicated region
        $region49: #{apply.2} parent=31 // pred_check
          %p1625 = pneg %p141
        $region50: #{apply.2} parent=31 // pred_check_branch
          %1627 = sbr.rel (%p1625) target = $region52
        $region51: #{apply.2} parent=31 // pred_region
          %s1628 = smul.addr %s25, 128
          %s1629 = sadd.s32 %s26, %s1628
          %s1630 = smul.addr %s1629, 4
          %s1631 = scalar_lea.vmem %s3, %s1630
          // Predicated region
          $region53: #{apply.2} parent=51 // pred_check
            _
          $region54: #{apply.2} parent=51 // pred_check_branch
            %1633 = sbr.rel (0) target = $region56
          $region55: #{apply.2} parent=51 // pred_region
            // Predicated region
            $region57: #{apply.2} parent=55 // pred_check
              _
            $region58: #{apply.2} parent=55 // pred_check_branch
              %1635 = sbr.rel target = $region60
            $region59: #{apply.2} parent=55 // pred_region
              // Predicated region
              $region72: #{apply.2} parent=59 // pred_check
                _
              $region73: #{apply.2} parent=59 // pred_check_branch
                %1777 = sbr.rel (0) target = $region75
              $region74: #{apply.2} parent=59 // pred_region
                loop: start=0, step=1, limit=1
                $region76: #{apply.2} parent=74 // loop_pre_header
                  _
                $region77: #{apply.2} parent=74 // loop_header
                  %s1779 = sphi 0, %s1783
                  %p1780 = scmp.ge.s32.totalorder %s1779, 1
                  %s1784 = sphi %s1624, %s1624
                  %s1785 = sphi %s1631, %s1631
                $region78: #{apply.2} parent=74 // loop_header_branch
                  %1782 = sbr.rel (%p1780) target = $region82
                $region79: #{apply.2} parent=74 // loop_body
                  _
                $region80: #{apply.2} parent=74 // loop_footer
                  %s1783 = sadd.s32 1, %s1779
                $region81: #{apply.2} parent=74 // loop_footer_branch
                  %1778 = sbr.rel target = $region77
                $region82: #{apply.2} parent=74 // loop_exit
                  _
                %s1787 = ssub.s32 16, 1
                loop: start=0, step=1, limit=1
                $region83: #{apply.2} parent=74 // loop_pre_header
                  _
                $region84: #{apply.2} parent=74 // loop_header
                  %s1789 = sphi 0, %s1793
                  %p1790 = scmp.ge.s32.totalorder %s1789, 1
                  %s1794 = sphi %s1624, %s1624
                  %s1795 = sphi %s1631, %s1631
                $region85: #{apply.2} parent=74 // loop_header_branch
                  %1792 = sbr.rel (%p1790) target = $region89
                $region86: #{apply.2} parent=74 // loop_body
                  %v1796 = vld [vmem:[%s1794] sm:%s1787]
                  %1797 = vst [vmem:[%s1795] sm:%s1787] %v1796
                  %v1798 = vld [vmem:[%s1794 + $0x4] sm:%s1787]
                  %1799 = vst [vmem:[%s1795 + $0x8] sm:%s1787] %v1798
                  %v1800 = vld [vmem:[%s1794 + $0x8] sm:%s1787]
                  %1801 = vst [vmem:[%s1795 + $0x10] sm:%s1787] %v1800
                  %v1802 = vld [vmem:[%s1794 + $0xc] sm:%s1787]
                  %1803 = vst [vmem:[%s1795 + $0x18] sm:%s1787] %v1802
                  %v1804 = vld [vmem:[%s1794 + $0x10] sm:%s1787]
                  %1805 = vst [vmem:[%s1795 + $0x20] sm:%s1787] %v1804
                  %v1806 = vld [vmem:[%s1794 + $0x14] sm:%s1787]
                  %1807 = vst [vmem:[%s1795 + $0x28] sm:%s1787] %v1806
                  %v1808 = vld [vmem:[%s1794 + $0x18] sm:%s1787]
                  %1809 = vst [vmem:[%s1795 + $0x30] sm:%s1787] %v1808
                  %v1810 = vld [vmem:[%s1794 + $0x1c] sm:%s1787]
                  %1811 = vst [vmem:[%s1795 + $0x38] sm:%s1787] %v1810
                  %v1812 = vld [vmem:[%s1794 + $0x20] sm:%s1787]
                  %1813 = vst [vmem:[%s1795 + $0x40] sm:%s1787] %v1812
                  %v1814 = vld [vmem:[%s1794 + $0x24] sm:%s1787]
                  %1815 = vst [vmem:[%s1795 + $0x48] sm:%s1787] %v1814
                  %v1816 = vld [vmem:[%s1794 + $0x28] sm:%s1787]
                  %1817 = vst [vmem:[%s1795 + $0x50] sm:%s1787] %v1816
                  %v1818 = vld [vmem:[%s1794 + $0x2c] sm:%s1787]
                  %1819 = vst [vmem:[%s1795 + $0x58] sm:%s1787] %v1818
                  %v1820 = vld [vmem:[%s1794 + $0x30] sm:%s1787]
                  %1821 = vst [vmem:[%s1795 + $0x60] sm:%s1787] %v1820
                  %v1822 = vld [vmem:[%s1794 + $0x34] sm:%s1787]
                  %1823 = vst [vmem:[%s1795 + $0x68] sm:%s1787] %v1822
                  %v1824 = vld [vmem:[%s1794 + $0x38] sm:%s1787]
                  %1825 = vst [vmem:[%s1795 + $0x70] sm:%s1787] %v1824
                  %v1826 = vld [vmem:[%s1794 + $0x3c] sm:%s1787]
                  %1827 = vst [vmem:[%s1795 + $0x78] sm:%s1787] %v1826
                  %v1828 = vld [vmem:[%s1794 + $0x40] sm:%s1787]
                  %1829 = vst [vmem:[%s1795 + $0x80] sm:%s1787] %v1828
                  %v1830 = vld [vmem:[%s1794 + $0x44] sm:%s1787]
                  %1831 = vst [vmem:[%s1795 + $0x88] sm:%s1787] %v1830
                  %v1832 = vld [vmem:[%s1794 + $0x48] sm:%s1787]
                  %1833 = vst [vmem:[%s1795 + $0x90] sm:%s1787] %v1832
                  %v1834 = vld [vmem:[%s1794 + $0x4c] sm:%s1787]
                  %1835 = vst [vmem:[%s1795 + $0x98] sm:%s1787] %v1834
                  %v1836 = vld [vmem:[%s1794 + $0x50] sm:%s1787]
                  %1837 = vst [vmem:[%s1795 + $0xa0] sm:%s1787] %v1836
                  %v1838 = vld [vmem:[%s1794 + $0x54] sm:%s1787]
                  %1839 = vst [vmem:[%s1795 + $0xa8] sm:%s1787] %v1838
                  %v1840 = vld [vmem:[%s1794 + $0x58] sm:%s1787]
                  %1841 = vst [vmem:[%s1795 + $0xb0] sm:%s1787] %v1840
                  %v1842 = vld [vmem:[%s1794 + $0x5c] sm:%s1787]
                  %1843 = vst [vmem:[%s1795 + $0xb8] sm:%s1787] %v1842
                  %v1844 = vld [vmem:[%s1794 + $0x60] sm:%s1787]
                  %1845 = vst [vmem:[%s1795 + $0xc0] sm:%s1787] %v1844
                  %v1846 = vld [vmem:[%s1794 + $0x64] sm:%s1787]
                  %1847 = vst [vmem:[%s1795 + $0xc8] sm:%s1787] %v1846
                  %v1848 = vld [vmem:[%s1794 + $0x68] sm:%s1787]
                  %1849 = vst [vmem:[%s1795 + $0xd0] sm:%s1787] %v1848
                  %v1850 = vld [vmem:[%s1794 + $0x6c] sm:%s1787]
                  %1851 = vst [vmem:[%s1795 + $0xd8] sm:%s1787] %v1850
                  %v1852 = vld [vmem:[%s1794 + $0x70] sm:%s1787]
                  %1853 = vst [vmem:[%s1795 + $0xe0] sm:%s1787] %v1852
                  %v1854 = vld [vmem:[%s1794 + $0x74] sm:%s1787]
                  %1855 = vst [vmem:[%s1795 + $0xe8] sm:%s1787] %v1854
                  %v1856 = vld [vmem:[%s1794 + $0x78] sm:%s1787]
                  %1857 = vst [vmem:[%s1795 + $0xf0] sm:%s1787] %v1856
                  %v1858 = vld [vmem:[%s1794 + $0x7c] sm:%s1787]
                  %1859 = vst [vmem:[%s1795 + $0xf8] sm:%s1787] %v1858
                  %v1860 = vld [vmem:[%s1794 + $0x80] sm:%s1787]
                  %1861 = vst [vmem:[%s1795 + $0x100] sm:%s1787] %v1860
                  %v1862 = vld [vmem:[%s1794 + $0x84] sm:%s1787]
                  %1863 = vst [vmem:[%s1795 + $0x108] sm:%s1787] %v1862
                  %v1864 = vld [vmem:[%s1794 + $0x88] sm:%s1787]
                  %1865 = vst [vmem:[%s1795 + $0x110] sm:%s1787] %v1864
                  %v1866 = vld [vmem:[%s1794 + $0x8c] sm:%s1787]
                  %1867 = vst [vmem:[%s1795 + $0x118] sm:%s1787] %v1866
                  %v1868 = vld [vmem:[%s1794 + $0x90] sm:%s1787]
                  %1869 = vst [vmem:[%s1795 + $0x120] sm:%s1787] %v1868
                  %v1870 = vld [vmem:[%s1794 + $0x94] sm:%s1787]
                  %1871 = vst [vmem:[%s1795 + $0x128] sm:%s1787] %v1870
                  %v1872 = vld [vmem:[%s1794 + $0x98] sm:%s1787]
                  %1873 = vst [vmem:[%s1795 + $0x130] sm:%s1787] %v1872
                  %v1874 = vld [vmem:[%s1794 + $0x9c] sm:%s1787]
                  %1875 = vst [vmem:[%s1795 + $0x138] sm:%s1787] %v1874
                  %v1876 = vld [vmem:[%s1794 + $0xa0] sm:%s1787]
                  %1877 = vst [vmem:[%s1795 + $0x140] sm:%s1787] %v1876
                  %v1878 = vld [vmem:[%s1794 + $0xa4] sm:%s1787]
                  %1879 = vst [vmem:[%s1795 + $0x148] sm:%s1787] %v1878
                  %v1880 = vld [vmem:[%s1794 + $0xa8] sm:%s1787]
                  %1881 = vst [vmem:[%s1795 + $0x150] sm:%s1787] %v1880
                  %v1882 = vld [vmem:[%s1794 + $0xac] sm:%s1787]
                  %1883 = vst [vmem:[%s1795 + $0x158] sm:%s1787] %v1882
                  %v1884 = vld [vmem:[%s1794 + $0xb0] sm:%s1787]
                  %1885 = vst [vmem:[%s1795 + $0x160] sm:%s1787] %v1884
                  %v1886 = vld [vmem:[%s1794 + $0xb4] sm:%s1787]
                  %1887 = vst [vmem:[%s1795 + $0x168] sm:%s1787] %v1886
                  %v1888 = vld [vmem:[%s1794 + $0xb8] sm:%s1787]
                  %1889 = vst [vmem:[%s1795 + $0x170] sm:%s1787] %v1888
                  %v1890 = vld [vmem:[%s1794 + $0xbc] sm:%s1787]
                  %1891 = vst [vmem:[%s1795 + $0x178] sm:%s1787] %v1890
                  %v1892 = vld [vmem:[%s1794 + $0xc0] sm:%s1787]
                  %1893 = vst [vmem:[%s1795 + $0x180] sm:%s1787] %v1892
                  %v1894 = vld [vmem:[%s1794 + $0xc4] sm:%s1787]
                  %1895 = vst [vmem:[%s1795 + $0x188] sm:%s1787] %v1894
                  %v1896 = vld [vmem:[%s1794 + $0xc8] sm:%s1787]
                  %1897 = vst [vmem:[%s1795 + $0x190] sm:%s1787] %v1896
                  %v1898 = vld [vmem:[%s1794 + $0xcc] sm:%s1787]
                  %1899 = vst [vmem:[%s1795 + $0x198] sm:%s1787] %v1898
                  %v1900 = vld [vmem:[%s1794 + $0xd0] sm:%s1787]
                  %1901 = vst [vmem:[%s1795 + $0x1a0] sm:%s1787] %v1900
                  %v1902 = vld [vmem:[%s1794 + $0xd4] sm:%s1787]
                  %1903 = vst [vmem:[%s1795 + $0x1a8] sm:%s1787] %v1902
                  %v1904 = vld [vmem:[%s1794 + $0xd8] sm:%s1787]
                  %1905 = vst [vmem:[%s1795 + $0x1b0] sm:%s1787] %v1904
                  %v1906 = vld [vmem:[%s1794 + $0xdc] sm:%s1787]
                  %1907 = vst [vmem:[%s1795 + $0x1b8] sm:%s1787] %v1906
                  %v1908 = vld [vmem:[%s1794 + $0xe0] sm:%s1787]
                  %1909 = vst [vmem:[%s1795 + $0x1c0] sm:%s1787] %v1908
                  %v1910 = vld [vmem:[%s1794 + $0xe4] sm:%s1787]
                  %1911 = vst [vmem:[%s1795 + $0x1c8] sm:%s1787] %v1910
                  %v1912 = vld [vmem:[%s1794 + $0xe8] sm:%s1787]
                  %1913 = vst [vmem:[%s1795 + $0x1d0] sm:%s1787] %v1912
                  %v1914 = vld [vmem:[%s1794 + $0xec] sm:%s1787]
                  %1915 = vst [vmem:[%s1795 + $0x1d8] sm:%s1787] %v1914
                  %v1916 = vld [vmem:[%s1794 + $0xf0] sm:%s1787]
                  %1917 = vst [vmem:[%s1795 + $0x1e0] sm:%s1787] %v1916
                  %v1918 = vld [vmem:[%s1794 + $0xf4] sm:%s1787]
                  %1919 = vst [vmem:[%s1795 + $0x1e8] sm:%s1787] %v1918
                  %v1920 = vld [vmem:[%s1794 + $0xf8] sm:%s1787]
                  %1921 = vst [vmem:[%s1795 + $0x1f0] sm:%s1787] %v1920
                  %v1922 = vld [vmem:[%s1794 + $0xfc] sm:%s1787]
                  %1923 = vst [vmem:[%s1795 + $0x1f8] sm:%s1787] %v1922
                $region87: #{apply.2} parent=74 // loop_footer
                  %s1793 = sadd.s32 1, %s1789
                $region88: #{apply.2} parent=74 // loop_footer_branch
                  %1788 = sbr.rel target = $region84
                $region89: #{apply.2} parent=74 // loop_exit
                  _
              $region75: #{apply.2} parent=59 // pred_fallthru
                _
            $region60: #{apply.2} parent=55 // pred_fallthru
              _
            // Predicated region
            $region61: #{apply.2} parent=55 // pred_check
              _
            $region62: #{apply.2} parent=55 // pred_check_branch
              %1637 = sbr.rel (0) target = $region64
            $region63: #{apply.2} parent=55 // pred_region
              %s1639 = ssub.s32 16, 1
              loop: start=0, step=1, limit=1
              $region65: #{apply.2} parent=63 // loop_pre_header
                _
              $region66: #{apply.2} parent=63 // loop_header
                %s1641 = sphi 0, %s1645
                %p1642 = scmp.ge.s32.totalorder %s1641, 1
                %s1646 = sphi %s1624, %s1624
                %s1647 = sphi %s1631, %s1631
              $region67: #{apply.2} parent=63 // loop_header_branch
                %1644 = sbr.rel (%p1642) target = $region71
              $region68: #{apply.2} parent=63 // loop_body
                %v1648 = vld [vmem:[%s1646] sm:%s1639]
                %1649 = vst [vmem:[%s1647] sm:%s1639] %v1648
                %v1650 = vld [vmem:[%s1646 + $0x4] sm:%s1639]
                %1651 = vst [vmem:[%s1647 + $0x8] sm:%s1639] %v1650
                %v1652 = vld [vmem:[%s1646 + $0x8] sm:%s1639]
                %1653 = vst [vmem:[%s1647 + $0x10] sm:%s1639] %v1652
                %v1654 = vld [vmem:[%s1646 + $0xc] sm:%s1639]
                %1655 = vst [vmem:[%s1647 + $0x18] sm:%s1639] %v1654
                %v1656 = vld [vmem:[%s1646 + $0x10] sm:%s1639]
                %1657 = vst [vmem:[%s1647 + $0x20] sm:%s1639] %v1656
                %v1658 = vld [vmem:[%s1646 + $0x14] sm:%s1639]
                %1659 = vst [vmem:[%s1647 + $0x28] sm:%s1639] %v1658
                %v1660 = vld [vmem:[%s1646 + $0x18] sm:%s1639]
                %1661 = vst [vmem:[%s1647 + $0x30] sm:%s1639] %v1660
                %v1662 = vld [vmem:[%s1646 + $0x1c] sm:%s1639]
                %1663 = vst [vmem:[%s1647 + $0x38] sm:%s1639] %v1662
                %v1664 = vld [vmem:[%s1646 + $0x20] sm:%s1639]
                %1665 = vst [vmem:[%s1647 + $0x40] sm:%s1639] %v1664
                %v1666 = vld [vmem:[%s1646 + $0x24] sm:%s1639]
                %1667 = vst [vmem:[%s1647 + $0x48] sm:%s1639] %v1666
                %v1668 = vld [vmem:[%s1646 + $0x28] sm:%s1639]
                %1669 = vst [vmem:[%s1647 + $0x50] sm:%s1639] %v1668
                %v1670 = vld [vmem:[%s1646 + $0x2c] sm:%s1639]
                %1671 = vst [vmem:[%s1647 + $0x58] sm:%s1639] %v1670
                %v1672 = vld [vmem:[%s1646 + $0x30] sm:%s1639]
                %1673 = vst [vmem:[%s1647 + $0x60] sm:%s1639] %v1672
                %v1674 = vld [vmem:[%s1646 + $0x34] sm:%s1639]
                %1675 = vst [vmem:[%s1647 + $0x68] sm:%s1639] %v1674
                %v1676 = vld [vmem:[%s1646 + $0x38] sm:%s1639]
                %1677 = vst [vmem:[%s1647 + $0x70] sm:%s1639] %v1676
                %v1678 = vld [vmem:[%s1646 + $0x3c] sm:%s1639]
                %1679 = vst [vmem:[%s1647 + $0x78] sm:%s1639] %v1678
                %v1680 = vld [vmem:[%s1646 + $0x40] sm:%s1639]
                %1681 = vst [vmem:[%s1647 + $0x80] sm:%s1639] %v1680
                %v1682 = vld [vmem:[%s1646 + $0x44] sm:%s1639]
                %1683 = vst [vmem:[%s1647 + $0x88] sm:%s1639] %v1682
                %v1684 = vld [vmem:[%s1646 + $0x48] sm:%s1639]
                %1685 = vst [vmem:[%s1647 + $0x90] sm:%s1639] %v1684
                %v1686 = vld [vmem:[%s1646 + $0x4c] sm:%s1639]
                %1687 = vst [vmem:[%s1647 + $0x98] sm:%s1639] %v1686
                %v1688 = vld [vmem:[%s1646 + $0x50] sm:%s1639]
                %1689 = vst [vmem:[%s1647 + $0xa0] sm:%s1639] %v1688
                %v1690 = vld [vmem:[%s1646 + $0x54] sm:%s1639]
                %1691 = vst [vmem:[%s1647 + $0xa8] sm:%s1639] %v1690
                %v1692 = vld [vmem:[%s1646 + $0x58] sm:%s1639]
                %1693 = vst [vmem:[%s1647 + $0xb0] sm:%s1639] %v1692
                %v1694 = vld [vmem:[%s1646 + $0x5c] sm:%s1639]
                %1695 = vst [vmem:[%s1647 + $0xb8] sm:%s1639] %v1694
                %v1696 = vld [vmem:[%s1646 + $0x60] sm:%s1639]
                %1697 = vst [vmem:[%s1647 + $0xc0] sm:%s1639] %v1696
                %v1698 = vld [vmem:[%s1646 + $0x64] sm:%s1639]
                %1699 = vst [vmem:[%s1647 + $0xc8] sm:%s1639] %v1698
                %v1700 = vld [vmem:[%s1646 + $0x68] sm:%s1639]
                %1701 = vst [vmem:[%s1647 + $0xd0] sm:%s1639] %v1700
                %v1702 = vld [vmem:[%s1646 + $0x6c] sm:%s1639]
                %1703 = vst [vmem:[%s1647 + $0xd8] sm:%s1639] %v1702
                %v1704 = vld [vmem:[%s1646 + $0x70] sm:%s1639]
                %1705 = vst [vmem:[%s1647 + $0xe0] sm:%s1639] %v1704
                %v1706 = vld [vmem:[%s1646 + $0x74] sm:%s1639]
                %1707 = vst [vmem:[%s1647 + $0xe8] sm:%s1639] %v1706
                %v1708 = vld [vmem:[%s1646 + $0x78] sm:%s1639]
                %1709 = vst [vmem:[%s1647 + $0xf0] sm:%s1639] %v1708
                %v1710 = vld [vmem:[%s1646 + $0x7c] sm:%s1639]
                %1711 = vst [vmem:[%s1647 + $0xf8] sm:%s1639] %v1710
                %v1712 = vld [vmem:[%s1646 + $0x80] sm:%s1639]
                %1713 = vst [vmem:[%s1647 + $0x100] sm:%s1639] %v1712
                %v1714 = vld [vmem:[%s1646 + $0x84] sm:%s1639]
                %1715 = vst [vmem:[%s1647 + $0x108] sm:%s1639] %v1714
                %v1716 = vld [vmem:[%s1646 + $0x88] sm:%s1639]
                %1717 = vst [vmem:[%s1647 + $0x110] sm:%s1639] %v1716
                %v1718 = vld [vmem:[%s1646 + $0x8c] sm:%s1639]
                %1719 = vst [vmem:[%s1647 + $0x118] sm:%s1639] %v1718
                %v1720 = vld [vmem:[%s1646 + $0x90] sm:%s1639]
                %1721 = vst [vmem:[%s1647 + $0x120] sm:%s1639] %v1720
                %v1722 = vld [vmem:[%s1646 + $0x94] sm:%s1639]
                %1723 = vst [vmem:[%s1647 + $0x128] sm:%s1639] %v1722
                %v1724 = vld [vmem:[%s1646 + $0x98] sm:%s1639]
                %1725 = vst [vmem:[%s1647 + $0x130] sm:%s1639] %v1724
                %v1726 = vld [vmem:[%s1646 + $0x9c] sm:%s1639]
                %1727 = vst [vmem:[%s1647 + $0x138] sm:%s1639] %v1726
                %v1728 = vld [vmem:[%s1646 + $0xa0] sm:%s1639]
                %1729 = vst [vmem:[%s1647 + $0x140] sm:%s1639] %v1728
                %v1730 = vld [vmem:[%s1646 + $0xa4] sm:%s1639]
                %1731 = vst [vmem:[%s1647 + $0x148] sm:%s1639] %v1730
                %v1732 = vld [vmem:[%s1646 + $0xa8] sm:%s1639]
                %1733 = vst [vmem:[%s1647 + $0x150] sm:%s1639] %v1732
                %v1734 = vld [vmem:[%s1646 + $0xac] sm:%s1639]
                %1735 = vst [vmem:[%s1647 + $0x158] sm:%s1639] %v1734
                %v1736 = vld [vmem:[%s1646 + $0xb0] sm:%s1639]
                %1737 = vst [vmem:[%s1647 + $0x160] sm:%s1639] %v1736
                %v1738 = vld [vmem:[%s1646 + $0xb4] sm:%s1639]
                %1739 = vst [vmem:[%s1647 + $0x168] sm:%s1639] %v1738
                %v1740 = vld [vmem:[%s1646 + $0xb8] sm:%s1639]
                %1741 = vst [vmem:[%s1647 + $0x170] sm:%s1639] %v1740
                %v1742 = vld [vmem:[%s1646 + $0xbc] sm:%s1639]
                %1743 = vst [vmem:[%s1647 + $0x178] sm:%s1639] %v1742
                %v1744 = vld [vmem:[%s1646 + $0xc0] sm:%s1639]
                %1745 = vst [vmem:[%s1647 + $0x180] sm:%s1639] %v1744
                %v1746 = vld [vmem:[%s1646 + $0xc4] sm:%s1639]
                %1747 = vst [vmem:[%s1647 + $0x188] sm:%s1639] %v1746
                %v1748 = vld [vmem:[%s1646 + $0xc8] sm:%s1639]
                %1749 = vst [vmem:[%s1647 + $0x190] sm:%s1639] %v1748
                %v1750 = vld [vmem:[%s1646 + $0xcc] sm:%s1639]
                %1751 = vst [vmem:[%s1647 + $0x198] sm:%s1639] %v1750
                %v1752 = vld [vmem:[%s1646 + $0xd0] sm:%s1639]
                %1753 = vst [vmem:[%s1647 + $0x1a0] sm:%s1639] %v1752
                %v1754 = vld [vmem:[%s1646 + $0xd4] sm:%s1639]
                %1755 = vst [vmem:[%s1647 + $0x1a8] sm:%s1639] %v1754
                %v1756 = vld [vmem:[%s1646 + $0xd8] sm:%s1639]
                %1757 = vst [vmem:[%s1647 + $0x1b0] sm:%s1639] %v1756
                %v1758 = vld [vmem:[%s1646 + $0xdc] sm:%s1639]
                %1759 = vst [vmem:[%s1647 + $0x1b8] sm:%s1639] %v1758
                %v1760 = vld [vmem:[%s1646 + $0xe0] sm:%s1639]
                %1761 = vst [vmem:[%s1647 + $0x1c0] sm:%s1639] %v1760
                %v1762 = vld [vmem:[%s1646 + $0xe4] sm:%s1639]
                %1763 = vst [vmem:[%s1647 + $0x1c8] sm:%s1639] %v1762
                %v1764 = vld [vmem:[%s1646 + $0xe8] sm:%s1639]
                %1765 = vst [vmem:[%s1647 + $0x1d0] sm:%s1639] %v1764
                %v1766 = vld [vmem:[%s1646 + $0xec] sm:%s1639]
                %1767 = vst [vmem:[%s1647 + $0x1d8] sm:%s1639] %v1766
                %v1768 = vld [vmem:[%s1646 + $0xf0] sm:%s1639]
                %1769 = vst [vmem:[%s1647 + $0x1e0] sm:%s1639] %v1768
                %v1770 = vld [vmem:[%s1646 + $0xf4] sm:%s1639]
                %1771 = vst [vmem:[%s1647 + $0x1e8] sm:%s1639] %v1770
                %v1772 = vld [vmem:[%s1646 + $0xf8] sm:%s1639]
                %1773 = vst [vmem:[%s1647 + $0x1f0] sm:%s1639] %v1772
                %v1774 = vld [vmem:[%s1646 + $0xfc] sm:%s1639]
                %1775 = vst [vmem:[%s1647 + $0x1f8] sm:%s1639] %v1774
              $region69: #{apply.2} parent=63 // loop_footer
                %s1645 = sadd.s32 1, %s1641
              $region70: #{apply.2} parent=63 // loop_footer_branch
                %1640 = sbr.rel target = $region66
              $region71: #{apply.2} parent=63 // loop_exit
                _
            $region64: #{apply.2} parent=55 // pred_fallthru
              _
          $region56: #{apply.2} parent=51 // pred_fallthru
            _
          %1924 = vnop
        $region52: #{apply.2} parent=31 // pred_fallthru
          _
      $region32: #{apply.2} parent=5 // pred_fallthru
        _
      %p1925 = scmp.le.s32.totalorder 2, %s15
      // Predicated region
      $region90: #{apply.2} parent=5 // pred_check
        %p1926 = pneg %p1925
      $region91: #{apply.2} parent=5 // pred_check_branch
        %1928 = sbr.rel (%p1926) target = $region93
      $region92: #{apply.2} parent=5 // pred_region
        %s1929 = ssub.s32 %s15, 2
        // Predicated region
        $region94: #{apply.2} parent=92 // pred_check
          %p1930 = pneg %p147
        $region95: #{apply.2} parent=92 // pred_check_branch
          %1932 = sbr.rel (%p1930) target = $region97
        $region96: #{apply.2} parent=92 // pred_region
          %s1933 = sand.u32 %s132, 1
          %s1934 = sand.u32 %s132, 1
          %s1935 = smul.addr %s1934, 256
          %s1936 = scalar_lea.vmem [#allocation7], %s1935
        $region97: #{apply.2} parent=92 // pred_fallthru
          _
      $region93: #{apply.2} parent=5 // pred_fallthru
        _
    $region6: #{apply.2} parent=1 // loop_footer
      %s19 = sadd.s32 1, %s15
    $region7: #{apply.2} parent=1 // loop_footer_branch
      %14 = sbr.rel target = $region3
    $region8: #{apply.2} parent=1 // loop_exit
      _
    %1937 = vsyncpa [#allocation4], 1
    %s1938 = scalar_lea.sflag [#allocation4], 1
    %1939 = vsyncpa %s1938, 1
    %1940 = vsyncpa [#allocation6], 1
    %s1941 = scalar_lea.sflag [#allocation6], 1
    %1942 = vsyncpa %s1941, 1

// kernel: apply.3
$region0: #{apply.3}
  #allocation0 [shape = 'u32[]', space=smem, size = 0x4, offset = 0x4, fixed_abs, tag = 'smem constant byte address 0x4 - core index']
  #allocation1 [shape = 'u32[72,128]{1,0:T(1,128)}', space=vmem, size = 0x9000, scoped, tag = 'internal scratch']
  #allocation2 [shape = 'f32[2,1,128]{2,1,0:T(1,128)}', space=vmem, size = 0x400, scoped, tag = 'scratch operand']
  %s0 = inlined_call_operand.vmem [shape: bf16[3,22,2,22,32], index: 0, kind: input, shape index: {}]
  %s1 = inlined_call_operand.vmem [shape: bf16[3,7,224,128], index: 1, kind: input, shape index: {}]
  %s2 = inlined_call_operand.vmem [shape: f32[3,1,128], index: 2, kind: input, shape index: {}]
  %s3 = inlined_call_operand.vmem [shape: bf16[3,1,512,128], index: 3, kind: output, shape index: {}]
  %s4 = sld [smem:[#allocation0]]
  $region53: #{apply.3} parent=0
    _
  %s6 = ssub.s32 1, %s4
  %s7 = scalar_select 0, %s6, %s4
  loop: start=0, step=1, limit=5
  $region2: #{apply.3} parent=0 // loop_pre_header
    _
  $region3: #{apply.3} parent=0 // loop_header
    %s9 = sphi 0, %s13
    %p10 = scmp.ge.s32.totalorder %s9, 5
    %s16 = sphi 0, %s35
    %s17 = sphi 0, %s31
    %s18 = sphi 0, %s27
    %s19 = sphi 0, %s16
    %s20 = sphi 0, %s17
    %s21 = sphi 0, %s18
    %s22 = sphi 0, %s19
    %s23 = sphi 0, %s20
    %s24 = sphi 0, %s21
    %s38 = sphi 0, %s40
    %s41 = sphi 0, %s38
    %s42 = sphi 0, %s41
    %s58 = sphi 0, %s42
    %s66 = sphi 0, %s68
    %s69 = sphi 0, %s66
    %s70 = sphi 0, %s69
    %s86 = sphi 0, %s70
    %s94 = sphi 0, %s96
    %s97 = sphi 0, %s94
    %s98 = sphi 0, %s97
    %s114 = sphi 0, %s98
    %s122 = sphi 0, %s124
    %s125 = sphi 0, %s122
    %s126 = sphi 0, %s125
    %s142 = sphi 0, %s126
  $region4: #{apply.3} parent=0 // loop_header_branch
    %12 = sbr.rel (%p10) target = $region8
  $region5: #{apply.3} parent=0 // loop_body
    %s14 = ssub.s32 %s9, 1
    %s15 = ssub.s32 %s9, 2
    %s25 = sadd.s32 1, %s18
    %p26 = scmp.ge.s32.totalorder %s25, 1
    %s27 = scalar_select %p26, 0, %s25
    %s28 = sadd.s32 1, %s17
    %s29 = scalar_select %p26, %s28, %s17
    %p30 = scmp.ge.s32.totalorder %s29, 1
    %s31 = scalar_select %p30, 0, %s29
    %s32 = sadd.s32 1, %s16
    %s33 = scalar_select %p30, %s32, %s16
    %p34 = scmp.ge.s32.totalorder %s33, 3
    %s35 = scalar_select %p34, 0, %s33
    %s36 = ssub.s32 %s16, %s35
    %p37 = scmp.eq.s32.totalorder %s36, 0
    %s39 = sadd.s32 %s38, 1
    %s40 = scalar_select %p37, %s38, %s39
    %p43 = pneg %p37
    %p44 = scmp.eq.s32.totalorder %s9, 2
    %p45 = por %p43, %p44
    %p46 = scmp.ne.s32.totalorder %s38, %s41
    %p47 = scmp.eq.s32.totalorder %s9, 0
    %p48 = por %p46, %p47
    %p49 = scmp.ne.s32.totalorder %s38, %s41
    %p50 = scmp.eq.s32.totalorder %s14, 2
    %p51 = por %p49, %p50
    %p52 = scmp.ne.s32.totalorder %s41, %s42
    %p53 = scmp.eq.s32.totalorder %s14, 0
    %p54 = por %p52, %p53
    %p55 = scmp.ne.s32.totalorder %s41, %s42
    %p56 = scmp.eq.s32.totalorder %s15, 2
    %p57 = por %p55, %p56
    %p59 = scmp.ne.s32.totalorder %s42, %s58
    %p60 = scmp.eq.s32.totalorder %s15, 0
    %p61 = por %p59, %p60
    %s62 = ssub.s32 %s16, %s35
    %s63 = ssub.s32 %s17, %s31
    %s64 = sor.u32 %s62, %s63
    %p65 = scmp.eq.s32.totalorder %s64, 0
    %s67 = sadd.s32 %s66, 1
    %s68 = scalar_select %p65, %s66, %s67
    %p71 = pneg %p65
    %p72 = scmp.eq.s32.totalorder %s9, 2
    %p73 = por %p71, %p72
    %p74 = scmp.ne.s32.totalorder %s66, %s69
    %p75 = scmp.eq.s32.totalorder %s9, 0
    %p76 = por %p74, %p75
    %p77 = scmp.ne.s32.totalorder %s66, %s69
    %p78 = scmp.eq.s32.totalorder %s14, 2
    %p79 = por %p77, %p78
    %p80 = scmp.ne.s32.totalorder %s69, %s70
    %p81 = scmp.eq.s32.totalorder %s14, 0
    %p82 = por %p80, %p81
    %p83 = scmp.ne.s32.totalorder %s69, %s70
    %p84 = scmp.eq.s32.totalorder %s15, 2
    %p85 = por %p83, %p84
    %p87 = scmp.ne.s32.totalorder %s70, %s86
    %p88 = scmp.eq.s32.totalorder %s15, 0
    %p89 = por %p87, %p88
    %s90 = ssub.s32 %s16, %s35
    %s91 = ssub.s32 %s17, %s31
    %s92 = sor.u32 %s90, %s91
    %p93 = scmp.eq.s32.totalorder %s92, 0
    %s95 = sadd.s32 %s94, 1
    %s96 = scalar_select %p93, %s94, %s95
    %p99 = pneg %p93
    %p100 = scmp.eq.s32.totalorder %s9, 2
    %p101 = por %p99, %p100
    %p102 = scmp.ne.s32.totalorder %s94, %s97
    %p103 = scmp.eq.s32.totalorder %s9, 0
    %p104 = por %p102, %p103
    %p105 = scmp.ne.s32.totalorder %s94, %s97
    %p106 = scmp.eq.s32.totalorder %s14, 2
    %p107 = por %p105, %p106
    %p108 = scmp.ne.s32.totalorder %s97, %s98
    %p109 = scmp.eq.s32.totalorder %s14, 0
    %p110 = por %p108, %p109
    %p111 = scmp.ne.s32.totalorder %s97, %s98
    %p112 = scmp.eq.s32.totalorder %s15, 2
    %p113 = por %p111, %p112
    %p115 = scmp.ne.s32.totalorder %s98, %s114
    %p116 = scmp.eq.s32.totalorder %s15, 0
    %p117 = por %p115, %p116
    %s118 = ssub.s32 %s16, %s35
    %s119 = ssub.s32 %s17, %s31
    %s120 = sor.u32 %s118, %s119
    %p121 = scmp.eq.s32.totalorder %s120, 0
    %s123 = sadd.s32 %s122, 1
    %s124 = scalar_select %p121, %s122, %s123
    %p127 = pneg %p121
    %p128 = scmp.eq.s32.totalorder %s9, 2
    %p129 = por %p127, %p128
    %p130 = scmp.ne.s32.totalorder %s122, %s125
    %p131 = scmp.eq.s32.totalorder %s9, 0
    %p132 = por %p130, %p131
    %p133 = scmp.ne.s32.totalorder %s122, %s125
    %p134 = scmp.eq.s32.totalorder %s14, 2
    %p135 = por %p133, %p134
    %p136 = scmp.ne.s32.totalorder %s125, %s126
    %p137 = scmp.eq.s32.totalorder %s14, 0
    %p138 = por %p136, %p137
    %p139 = scmp.ne.s32.totalorder %s125, %s126
    %p140 = scmp.eq.s32.totalorder %s15, 2
    %p141 = por %p139, %p140
    %p143 = scmp.ne.s32.totalorder %s126, %s142
    %p144 = scmp.eq.s32.totalorder %s15, 0
    %p145 = por %p143, %p144
    %p146 = scmp.le.s32.totalorder 1, %s9
    %p147 = scmp.lt.s32.totalorder %s9, 4
    %p148 = pnand %p146, %p147
    %p149 = pneg %p148
    // Predicated region
    $region9: #{apply.3} parent=5 // pred_check
      _
    $region10: #{apply.3} parent=5 // pred_check_branch
      %151 = sbr.rel (%p148) target = $region12
    $region11: #{apply.3} parent=5 // pred_region
      %s152 = ssub.s32 %s9, 1
    $region12: #{apply.3} parent=5 // pred_fallthru
      _
    %p153 = scmp.lt.s32.totalorder %s9, 3
    // Predicated region
    $region13: #{apply.3} parent=5 // pred_check
      %p154 = pneg %p153
    $region14: #{apply.3} parent=5 // pred_check_branch
      %156 = sbr.rel (%p154) target = $region16
    $region15: #{apply.3} parent=5 // pred_region
      // Predicated region
      $region17: #{apply.3} parent=15 // pred_check
        %p157 = pneg %p48
      $region18: #{apply.3} parent=15 // pred_check_branch
        %159 = sbr.rel (%p157) target = $region20
      $region19: #{apply.3} parent=15 // pred_region
        %p160 = scmp.lt.s32.totalorder %s16, 2
        %s161 = scalar_select %p160, %s16, 2
        %s162 = smul.addr %s161, 132
        %s163 = smul.addr %s162, 4
        %s164 = scalar_lea.vmem %s0, %s163
      $region20: #{apply.3} parent=15 // pred_fallthru
        _
      // Predicated region
      $region21: #{apply.3} parent=15 // pred_check
        %p165 = pneg %p76
      $region22: #{apply.3} parent=15 // pred_check_branch
        %167 = sbr.rel (%p165) target = $region24
      $region23: #{apply.3} parent=15 // pred_region
        %p168 = scmp.lt.s32.totalorder %s16, 2
        %s169 = scalar_select %p168, %s16, 2
        %p170 = scmp.lt.s32.totalorder %s17, 0
        %s171 = scalar_select %p170, %s17, 0
        %s172 = smul.addr %s169, 196
        %s173 = sadd.s32 %s171, %s172
        %s174 = smul.addr %s173, 4
        %s175 = scalar_lea.vmem %s1, %s174
      $region24: #{apply.3} parent=15 // pred_fallthru
        _
      // Predicated region
      $region25: #{apply.3} parent=15 // pred_check
        %p176 = pneg %p104
      $region26: #{apply.3} parent=15 // pred_check_branch
        %178 = sbr.rel (%p176) target = $region28
      $region27: #{apply.3} parent=15 // pred_region
        %p179 = scmp.lt.s32.totalorder %s16, 2
        %s180 = scalar_select %p179, %s16, 2
        %p181 = scmp.lt.s32.totalorder %s17, 0
        %s182 = scalar_select %p181, %s17, 0
        %s183 = sadd.s32 %s182, %s180
        %s184 = scalar_lea.vmem %s2, %s183
      $region28: #{apply.3} parent=15 // pred_fallthru
        _
    $region16: #{apply.3} parent=5 // pred_fallthru
      _
    %p185 = scmp.le.s32.totalorder 1, %s9
    %p186 = scmp.lt.s32.totalorder %s9, 4
    %p187 = pnand %p185, %p186
    %p188 = pneg %p187
    // Predicated region
    $region29: #{apply.3} parent=5 // pred_check
      _
    $region30: #{apply.3} parent=5 // pred_check_branch
      %190 = sbr.rel (%p187) target = $region32
    $region31: #{apply.3} parent=5 // pred_region
      %s191 = ssub.s32 %s9, 1
      %p192 = scmp.lt.s32.totalorder %s19, 2
      %s193 = scalar_select %p192, %s19, 2
      %s194 = smul.addr %s193, 132
      %s195 = smul.addr %s194, 4
      %s196 = scalar_lea.vmem %s0, %s195
      %p197 = pneg %p54
      %p198 = pneg %p51
      %p199 = scmp.lt.s32.totalorder %s19, 2
      %s200 = scalar_select %p199, %s19, 2
      %p201 = scmp.lt.s32.totalorder %s20, 0
      %s202 = scalar_select %p201, %s20, 0
      %s203 = smul.addr %s200, 196
      %s204 = sadd.s32 %s202, %s203
      %s205 = smul.addr %s204, 4
      %s206 = scalar_lea.vmem %s1, %s205
      %p207 = pneg %p82
      %p208 = pneg %p79
      %p209 = scmp.lt.s32.totalorder %s19, 2
      %s210 = scalar_select %p209, %s19, 2
      %p211 = scmp.lt.s32.totalorder %s20, 0
      %s212 = scalar_select %p211, %s20, 0
      %s213 = sadd.s32 %s212, %s210
      %s214 = scalar_lea.vmem %s2, %s213
      %p215 = pneg %p110
      %p216 = pneg %p107
      %p217 = pneg %p138
      %p218 = pneg %p135
      %p219 = scmp.lt.s32.totalorder %s19, 2
      %s220 = scalar_select %p219, %s19, 2
      %p221 = scmp.lt.s32.totalorder %s20, 0
      %s222 = scalar_select %p221, %s20, 0
      %s223 = smul.addr %s220, 64
      %s224 = sadd.s32 %s222, %s223
      %s225 = smul.addr %s224, 4
      %s226 = scalar_lea.vmem %s3, %s225
      %p227 = scmp.lt.s32.totalorder %s19, 2
      %s228 = scalar_select %p227, %s19, 2
      %s229 = smul.addr %s228, 132
      %s230 = smul.addr %s229, 4
      %s231 = scalar_lea.vmem %s0, %s230
      %p232 = scmp.lt.s32.totalorder %s19, 2
      %s233 = scalar_select %p232, %s19, 2
      %p234 = scmp.lt.s32.totalorder %s20, 0
      %s235 = scalar_select %p234, %s20, 0
      %s236 = smul.addr %s233, 196
      %s237 = sadd.s32 %s235, %s236
      %s238 = smul.addr %s237, 4
      %s239 = scalar_lea.vmem %s1, %s238
      %p240 = scmp.lt.s32.totalorder %s19, 2
      %s241 = scalar_select %p240, %s19, 2
      %p242 = scmp.lt.s32.totalorder %s20, 0
      %s243 = scalar_select %p242, %s20, 0
      %s244 = sadd.s32 %s243, %s241
      %s245 = scalar_lea.vmem %s2, %s244
      %p246 = scmp.lt.s32.totalorder %s19, 2
      %s247 = scalar_select %p246, %s19, 2
      %p248 = scmp.lt.s32.totalorder %s20, 0
      %s249 = scalar_select %p248, %s20, 0
      %s250 = smul.addr %s247, 64
      %s251 = sadd.s32 %s249, %s250
      %s252 = smul.addr %s251, 4
      %s253 = scalar_lea.vmem %s3, %s252
      %s255 = smul.u32 %s21, 16
      %s256 = smul.u32 %s255, 6
      %s257 = smul.addr %s256, 4
      %s258 = scalar_lea.vmem %s231, %s257
      %v259 = vld [vmem:[%s258] sm:$0xf]
      %v260 = vld [vmem:[%s258 + $0x4] sm:$0xf]
      %v261 = vld [vmem:[%s258 + $0x8] sm:$0x7]
      %v262 = vld [vmem:[%s258 + $0xc] sm:$0xf]
      %v263 = vld [vmem:[%s258 + $0x10] sm:$0xf]
      %v264 = vld [vmem:[%s258 + $0x14] sm:$0x7]
      %v265 = vld [vmem:[%s258 + $0x18] sm:$0xf]
      %v266 = vld [vmem:[%s258 + $0x1c] sm:$0xf]
      %v267 = vld [vmem:[%s258 + $0x20] sm:$0x7]
      %v268 = vld [vmem:[%s258 + $0x24] sm:$0xf]
      %v269 = vld [vmem:[%s258 + $0x28] sm:$0xf]
      %v270 = vld [vmem:[%s258 + $0x2c] sm:$0x7]
      %v271 = vld [vmem:[%s258 + $0x30] sm:$0xf]
      %v272 = vld [vmem:[%s258 + $0x34] sm:$0xf]
      %v273 = vld [vmem:[%s258 + $0x38] sm:$0x7]
      %v274 = vld [vmem:[%s258 + $0x3c] sm:$0xf]
      %v275 = vld [vmem:[%s258 + $0x40] sm:$0xf]
      %v276 = vld [vmem:[%s258 + $0x44] sm:$0x7]
      %v277 = vld [vmem:[%s258 + $0x48] sm:$0xf]
      %v278 = vld [vmem:[%s258 + $0x4c] sm:$0xf]
      %v279 = vld [vmem:[%s258 + $0x50] sm:$0x7]
      %v280 = vld [vmem:[%s258 + $0x54] sm:$0xf]
      %v281 = vld [vmem:[%s258 + $0x58] sm:$0xf]
      %v282 = vld [vmem:[%s258 + $0x5c] sm:$0x7]
      %v283 = vld [vmem:[%s258 + $0x60] sm:$0xf]
      %v284 = vld [vmem:[%s258 + $0x64] sm:$0xf]
      %v285 = vld [vmem:[%s258 + $0x68] sm:$0x7]
      %v286 = vld [vmem:[%s258 + $0x6c] sm:$0xf]
      %v287 = vld [vmem:[%s258 + $0x70] sm:$0xf]
      %v288 = vld [vmem:[%s258 + $0x74] sm:$0x7]
      %v289 = vld [vmem:[%s258 + $0x78] sm:$0xf]
      %v290 = vld [vmem:[%s258 + $0x7c] sm:$0xf]
      %v291 = vld [vmem:[%s258 + $0x80] sm:$0x7]
      %v292 = vld [vmem:[%s258 + $0x84] sm:$0xf]
      %v293 = vld [vmem:[%s258 + $0x88] sm:$0xf]
      %v294 = vld [vmem:[%s258 + $0x8c] sm:$0x7]
      %v295 = vld [vmem:[%s258 + $0x90] sm:$0xf]
      %v296 = vld [vmem:[%s258 + $0x94] sm:$0xf]
      %v297 = vld [vmem:[%s258 + $0x98] sm:$0x7]
      %v298 = vld [vmem:[%s258 + $0x9c] sm:$0xf]
      %v299 = vld [vmem:[%s258 + $0xa0] sm:$0xf]
      %v300 = vld [vmem:[%s258 + $0xa4] sm:$0x7]
      %v301 = vld [vmem:[%s258 + $0xa8] sm:$0xf]
      %v302 = vld [vmem:[%s258 + $0xac] sm:$0xf]
      %v303 = vld [vmem:[%s258 + $0xb0] sm:$0x7]
      %v304 = vld [vmem:[%s258 + $0xb4] sm:$0xf]
      %v305 = vld [vmem:[%s258 + $0xb8] sm:$0xf]
      %v306 = vld [vmem:[%s258 + $0xbc] sm:$0x7]
      %v307 = vld [vmem:[%s258 + $0xc0] sm:$0xf]
      %v308 = vld [vmem:[%s258 + $0xc4] sm:$0xf]
      %v309 = vld [vmem:[%s258 + $0xc8] sm:$0x7]
      %v310 = vld [vmem:[%s258 + $0xcc] sm:$0xf]
      %v311 = vld [vmem:[%s258 + $0xd0] sm:$0xf]
      %v312 = vld [vmem:[%s258 + $0xd4] sm:$0x7]
      %v313 = vld [vmem:[%s258 + $0xd8] sm:$0xf]
      %v314 = vld [vmem:[%s258 + $0xdc] sm:$0xf]
      %v315 = vld [vmem:[%s258 + $0xe0] sm:$0x7]
      %v316 = vld [vmem:[%s258 + $0xe4] sm:$0xf]
      %v317 = vld [vmem:[%s258 + $0xe8] sm:$0xf]
      %v318 = vld [vmem:[%s258 + $0xec] sm:$0x7]
      %v319 = vld [vmem:[%s258 + $0xf0] sm:$0xf]
      %v320 = vld [vmem:[%s258 + $0xf4] sm:$0xf]
      %v321 = vld [vmem:[%s258 + $0xf8] sm:$0x7]
      %v322 = vld [vmem:[%s258 + $0xfc] sm:$0xf]
      %v323 = vld [vmem:[%s258 + $0x100] sm:$0xf]
      %v324 = vld [vmem:[%s258 + $0x104] sm:$0x7]
      %v325 = vld [vmem:[%s258 + $0x108] sm:$0xf]
      %v326 = vld [vmem:[%s258 + $0x10c] sm:$0xf]
      %v327 = vld [vmem:[%s258 + $0x110] sm:$0x7]
      %v328 = vld [vmem:[%s258 + $0x114] sm:$0xf]
      %v329 = vld [vmem:[%s258 + $0x118] sm:$0xf]
      %v330 = vld [vmem:[%s258 + $0x11c] sm:$0x7]
      %v331 = vld [vmem:[%s258 + $0x120] sm:$0xf]
      %v332 = vld [vmem:[%s258 + $0x124] sm:$0xf]
      %v333 = vld [vmem:[%s258 + $0x128] sm:$0x7]
      %v334 = vld [vmem:[%s258 + $0x12c] sm:$0xf]
      %v335 = vld [vmem:[%s258 + $0x130] sm:$0xf]
      %v336 = vld [vmem:[%s258 + $0x134] sm:$0x7]
      %v337 = vld [vmem:[%s258 + $0x138] sm:$0xf]
      %v338 = vld [vmem:[%s258 + $0x13c] sm:$0xf]
      %v339 = vld [vmem:[%s258 + $0x140] sm:$0x7]
      %v340 = vld [vmem:[%s258 + $0x144] sm:$0xf]
      %v341 = vld [vmem:[%s258 + $0x148] sm:$0xf]
      %v342 = vld [vmem:[%s258 + $0x14c] sm:$0x7]
      %v343 = vld [vmem:[%s258 + $0x150] sm:$0xf]
      %v344 = vld [vmem:[%s258 + $0x154] sm:$0xf]
      %v345 = vld [vmem:[%s258 + $0x158] sm:$0x7]
      %v346 = vld [vmem:[%s258 + $0x15c] sm:$0xf]
      %v347 = vld [vmem:[%s258 + $0x160] sm:$0xf]
      %v348 = vld [vmem:[%s258 + $0x164] sm:$0x7]
      %v349 = vld [vmem:[%s258 + $0x168] sm:$0xf]
      %v350 = vld [vmem:[%s258 + $0x16c] sm:$0xf]
      %v351 = vld [vmem:[%s258 + $0x170] sm:$0x7]
      %v352 = vld [vmem:[%s258 + $0x174] sm:$0xf]
      %v353 = vld [vmem:[%s258 + $0x178] sm:$0xf]
      %v354 = vld [vmem:[%s258 + $0x17c] sm:$0x7]
      %v355 = vld [vmem:[%s258 + $0x180] sm:$0xf]
      %v356 = vld [vmem:[%s258 + $0x184] sm:$0xf]
      %v357 = vld [vmem:[%s258 + $0x188] sm:$0x7]
      %v358 = vld [vmem:[%s258 + $0x18c] sm:$0xf]
      %v359 = vld [vmem:[%s258 + $0x190] sm:$0xf]
      %v360 = vld [vmem:[%s258 + $0x194] sm:$0x7]
      %v361 = vld [vmem:[%s258 + $0x198] sm:$0xf]
      %v362 = vld [vmem:[%s258 + $0x19c] sm:$0xf]
      %v363 = vld [vmem:[%s258 + $0x1a0] sm:$0x7]
      %v364 = vld [vmem:[%s258 + $0x1a4] sm:$0xf]
      %v365 = vld [vmem:[%s258 + $0x1a8] sm:$0xf]
      %v366 = vld [vmem:[%s258 + $0x1ac] sm:$0x7]
      %v367 = vld [vmem:[%s258 + $0x1b0] sm:$0xf]
      %v368 = vld [vmem:[%s258 + $0x1b4] sm:$0xf]
      %v369 = vld [vmem:[%s258 + $0x1b8] sm:$0x7]
      %v370 = vld [vmem:[%s258 + $0x1bc] sm:$0xf]
      %v371 = vld [vmem:[%s258 + $0x1c0] sm:$0xf]
      %v372 = vld [vmem:[%s258 + $0x1c4] sm:$0x7]
      %v373 = vld [vmem:[%s258 + $0x1c8] sm:$0xf]
      %v374 = vld [vmem:[%s258 + $0x1cc] sm:$0xf]
      %v375 = vld [vmem:[%s258 + $0x1d0] sm:$0x7]
      %v376 = vld [vmem:[%s258 + $0x1d4] sm:$0xf]
      %v377 = vld [vmem:[%s258 + $0x1d8] sm:$0xf]
      %v378 = vld [vmem:[%s258 + $0x1dc] sm:$0x7]
      %v379 = vld [vmem:[%s258 + $0x1e0] sm:$0xf]
      %v380 = vld [vmem:[%s258 + $0x1e4] sm:$0xf]
      %v381 = vld [vmem:[%s258 + $0x1e8] sm:$0x7]
      %v382 = vld [vmem:[%s258 + $0x1ec] sm:$0xf]
      %v383 = vld [vmem:[%s258 + $0x1f0] sm:$0xf]
      %v384 = vld [vmem:[%s258 + $0x1f4] sm:$0x7]
      %v385 = vld [vmem:[%s258 + $0x1f8] sm:$0xf]
      %v386 = vld [vmem:[%s258 + $0x1fc] sm:$0xf]
      %v387 = vld [vmem:[%s258 + $0x200] sm:$0x7]
      %v388 = vld [vmem:[%s258 + $0x204] sm:$0xf]
      %v389 = vld [vmem:[%s258 + $0x208] sm:$0xf]
      %v390 = vld [vmem:[%s258 + $0x20c] sm:$0x7]
      %v391 = vunpack.c.l.bf16 %v259
      %v392 = vunpack.c.l.bf16 %v260
      %v393 = vunpack.c.l.bf16 %v261
      %v394 = vunpack.c.l.bf16 %v262
      %v395 = vunpack.c.l.bf16 %v263
      %v396 = vunpack.c.l.bf16 %v264
      %v397 = vunpack.c.l.bf16 %v265
      %v398 = vunpack.c.l.bf16 %v266
      %v399 = vunpack.c.l.bf16 %v267
      %v400 = vunpack.c.l.bf16 %v268
      %v401 = vunpack.c.l.bf16 %v269
      %v402 = vunpack.c.l.bf16 %v270
      %v403 = vunpack.c.l.bf16 %v271
      %v404 = vunpack.c.l.bf16 %v272
      %v405 = vunpack.c.l.bf16 %v273
      %v406 = vunpack.c.l.bf16 %v274
      %v407 = vunpack.c.l.bf16 %v275
      %v408 = vunpack.c.l.bf16 %v276
      %v409 = vunpack.c.l.bf16 %v277
      %v410 = vunpack.c.l.bf16 %v278
      %v411 = vunpack.c.l.bf16 %v279
      %v412 = vunpack.c.l.bf16 %v280
      %v413 = vunpack.c.l.bf16 %v281
      %v414 = vunpack.c.l.bf16 %v282
      %v415 = vunpack.c.l.bf16 %v283
      %v416 = vunpack.c.l.bf16 %v284
      %v417 = vunpack.c.l.bf16 %v285
      %v418 = vunpack.c.l.bf16 %v286
      %v419 = vunpack.c.l.bf16 %v287
      %v420 = vunpack.c.l.bf16 %v288
      %v421 = vunpack.c.l.bf16 %v289
      %v422 = vunpack.c.l.bf16 %v290
      %v423 = vunpack.c.l.bf16 %v291
      %v424 = vunpack.c.l.bf16 %v292
      %v425 = vunpack.c.l.bf16 %v293
      %v426 = vunpack.c.l.bf16 %v294
      %v427 = vunpack.c.l.bf16 %v295
      %v428 = vunpack.c.l.bf16 %v296
      %v429 = vunpack.c.l.bf16 %v297
      %v430 = vunpack.c.l.bf16 %v298
      %v431 = vunpack.c.l.bf16 %v299
      %v432 = vunpack.c.l.bf16 %v300
      %v433 = vunpack.c.l.bf16 %v301
      %v434 = vunpack.c.l.bf16 %v302
      %v435 = vunpack.c.l.bf16 %v303
      %v436 = vunpack.c.l.bf16 %v304
      %v437 = vunpack.c.l.bf16 %v305
      %v438 = vunpack.c.l.bf16 %v306
      %v439 = vunpack.c.l.bf16 %v307
      %v440 = vunpack.c.l.bf16 %v308
      %v441 = vunpack.c.l.bf16 %v309
      %v442 = vunpack.c.l.bf16 %v310
      %v443 = vunpack.c.l.bf16 %v311
      %v444 = vunpack.c.l.bf16 %v312
      %v445 = vunpack.c.l.bf16 %v313
      %v446 = vunpack.c.l.bf16 %v314
      %v447 = vunpack.c.l.bf16 %v315
      %v448 = vunpack.c.l.bf16 %v316
      %v449 = vunpack.c.l.bf16 %v317
      %v450 = vunpack.c.l.bf16 %v318
      %v451 = vunpack.c.l.bf16 %v319
      %v452 = vunpack.c.l.bf16 %v320
      %v453 = vunpack.c.l.bf16 %v321
      %v454 = vunpack.c.l.bf16 %v322
      %v455 = vunpack.c.l.bf16 %v323
      %v456 = vunpack.c.l.bf16 %v324
      %v457 = vunpack.c.l.bf16 %v325
      %v458 = vunpack.c.l.bf16 %v326
      %v459 = vunpack.c.l.bf16 %v327
      %v460 = vunpack.c.l.bf16 %v328
      %v461 = vunpack.c.l.bf16 %v329
      %v462 = vunpack.c.l.bf16 %v330
      %v463 = vunpack.c.l.bf16 %v331
      %v464 = vunpack.c.l.bf16 %v332
      %v465 = vunpack.c.l.bf16 %v333
      %v466 = vunpack.c.l.bf16 %v334
      %v467 = vunpack.c.l.bf16 %v335
      %v468 = vunpack.c.l.bf16 %v336
      %v469 = vunpack.c.l.bf16 %v337
      %v470 = vunpack.c.l.bf16 %v338
      %v471 = vunpack.c.l.bf16 %v339
      %v472 = vunpack.c.l.bf16 %v340
      %v473 = vunpack.c.l.bf16 %v341
      %v474 = vunpack.c.l.bf16 %v342
      %v475 = vunpack.c.l.bf16 %v343
      %v476 = vunpack.c.l.bf16 %v344
      %v477 = vunpack.c.l.bf16 %v345
      %v478 = vunpack.c.l.bf16 %v346
      %v479 = vunpack.c.l.bf16 %v347
      %v480 = vunpack.c.l.bf16 %v348
      %v481 = vunpack.c.l.bf16 %v349
      %v482 = vunpack.c.l.bf16 %v350
      %v483 = vunpack.c.l.bf16 %v351
      %v484 = vunpack.c.l.bf16 %v352
      %v485 = vunpack.c.l.bf16 %v353
      %v486 = vunpack.c.l.bf16 %v354
      %v487 = vunpack.c.l.bf16 %v355
      %v488 = vunpack.c.l.bf16 %v356
      %v489 = vunpack.c.l.bf16 %v357
      %v490 = vunpack.c.l.bf16 %v358
      %v491 = vunpack.c.l.bf16 %v359
      %v492 = vunpack.c.l.bf16 %v360
      %v493 = vunpack.c.l.bf16 %v361
      %v494 = vunpack.c.l.bf16 %v362
      %v495 = vunpack.c.l.bf16 %v363
      %v496 = vunpack.c.l.bf16 %v364
      %v497 = vunpack.c.l.bf16 %v365
      %v498 = vunpack.c.l.bf16 %v366
      %v499 = vunpack.c.l.bf16 %v367
      %v500 = vunpack.c.l.bf16 %v368
      %v501 = vunpack.c.l.bf16 %v369
      %v502 = vunpack.c.l.bf16 %v370
      %v503 = vunpack.c.l.bf16 %v371
      %v504 = vunpack.c.l.bf16 %v372
      %v505 = vunpack.c.l.bf16 %v373
      %v506 = vunpack.c.l.bf16 %v374
      %v507 = vunpack.c.l.bf16 %v375
      %v508 = vunpack.c.l.bf16 %v376
      %v509 = vunpack.c.l.bf16 %v377
      %v510 = vunpack.c.l.bf16 %v378
      %v511 = vunpack.c.l.bf16 %v379
      %v512 = vunpack.c.l.bf16 %v380
      %v513 = vunpack.c.l.bf16 %v381
      %v514 = vunpack.c.l.bf16 %v382
      %v515 = vunpack.c.l.bf16 %v383
      %v516 = vunpack.c.l.bf16 %v384
      %v517 = vunpack.c.l.bf16 %v385
      %v518 = vunpack.c.l.bf16 %v386
      %v519 = vunpack.c.l.bf16 %v387
      %v520 = vunpack.c.l.bf16 %v388
      %v521 = vunpack.c.l.bf16 %v389
      %v522 = vunpack.c.l.bf16 %v390
      %vm655 = vcmask 1046528
      %v656 = vrot.slane %v391, 1
      %v657 = vrot.slane %v392, 1
      %v658 = vsel %vm655, %v656, %v657
      %v659 = vrot.slane %v393, 1
      %v660 = vsel %vm655, %v657, %v659
      %v661 = vrot.slane %v394, 1
      %v662 = vrot.slane %v395, 1
      %v663 = vsel %vm655, %v661, %v662
      %v664 = vrot.slane %v396, 1
      %v665 = vsel %vm655, %v662, %v664
      %v666 = vrot.slane %v397, 1
      %v667 = vrot.slane %v398, 1
      %v668 = vsel %vm655, %v666, %v667
      %v669 = vrot.slane %v399, 1
      %v670 = vsel %vm655, %v667, %v669
      %v671 = vrot.slane %v400, 1
      %v672 = vrot.slane %v401, 1
      %v673 = vsel %vm655, %v671, %v672
      %v674 = vrot.slane %v402, 1
      %v675 = vsel %vm655, %v672, %v674
      %v676 = vrot.slane %v403, 1
      %v677 = vrot.slane %v404, 1
      %v678 = vsel %vm655, %v676, %v677
      %v679 = vrot.slane %v405, 1
      %v680 = vsel %vm655, %v677, %v679
      %v681 = vrot.slane %v406, 1
      %v682 = vrot.slane %v407, 1
      %v683 = vsel %vm655, %v681, %v682
      %v684 = vrot.slane %v408, 1
      %v685 = vsel %vm655, %v682, %v684
      %v686 = vrot.slane %v409, 1
      %v687 = vrot.slane %v410, 1
      %v688 = vsel %vm655, %v686, %v687
      %v689 = vrot.slane %v411, 1
      %v690 = vsel %vm655, %v687, %v689
      %v691 = vrot.slane %v412, 1
      %v692 = vrot.slane %v413, 1
      %v693 = vsel %vm655, %v691, %v692
      %v694 = vrot.slane %v414, 1
      %v695 = vsel %vm655, %v692, %v694
      %v696 = vrot.slane %v415, 1
      %v697 = vrot.slane %v416, 1
      %v698 = vsel %vm655, %v696, %v697
      %v699 = vrot.slane %v417, 1
      %v700 = vsel %vm655, %v697, %v699
      %v701 = vrot.slane %v418, 1
      %v702 = vrot.slane %v419, 1
      %v703 = vsel %vm655, %v701, %v702
      %v704 = vrot.slane %v420, 1
      %v705 = vsel %vm655, %v702, %v704
      %v706 = vrot.slane %v421, 1
      %v707 = vrot.slane %v422, 1
      %v708 = vsel %vm655, %v706, %v707
      %v709 = vrot.slane %v423, 1
      %v710 = vsel %vm655, %v707, %v709
      %v711 = vrot.slane %v424, 1
      %v712 = vrot.slane %v425, 1
      %v713 = vsel %vm655, %v711, %v712
      %v714 = vrot.slane %v426, 1
      %v715 = vsel %vm655, %v712, %v714
      %v716 = vrot.slane %v427, 1
      %v717 = vrot.slane %v428, 1
      %v718 = vsel %vm655, %v716, %v717
      %v719 = vrot.slane %v429, 1
      %v720 = vsel %vm655, %v717, %v719
      %v721 = vrot.slane %v430, 1
      %v722 = vrot.slane %v431, 1
      %v723 = vsel %vm655, %v721, %v722
      %v724 = vrot.slane %v432, 1
      %v725 = vsel %vm655, %v722, %v724
      %v726 = vrot.slane %v433, 1
      %v727 = vrot.slane %v434, 1
      %v728 = vsel %vm655, %v726, %v727
      %v729 = vrot.slane %v435, 1
      %v730 = vsel %vm655, %v727, %v729
      %v731 = vrot.slane %v436, 1
      %v732 = vrot.slane %v437, 1
      %v733 = vsel %vm655, %v731, %v732
      %v734 = vrot.slane %v438, 1
      %v735 = vsel %vm655, %v732, %v734
      %v736 = vrot.slane %v439, 1
      %v737 = vrot.slane %v440, 1
      %v738 = vsel %vm655, %v736, %v737
      %v739 = vrot.slane %v441, 1
      %v740 = vsel %vm655, %v737, %v739
      %v741 = vrot.slane %v442, 1
      %v742 = vrot.slane %v443, 1
      %v743 = vsel %vm655, %v741, %v742
      %v744 = vrot.slane %v444, 1
      %v745 = vsel %vm655, %v742, %v744
      %v746 = vrot.slane %v445, 1
      %v747 = vrot.slane %v446, 1
      %v748 = vsel %vm655, %v746, %v747
      %v749 = vrot.slane %v447, 1
      %v750 = vsel %vm655, %v747, %v749
      %v751 = vrot.slane %v448, 1
      %v752 = vrot.slane %v449, 1
      %v753 = vsel %vm655, %v751, %v752
      %v754 = vrot.slane %v450, 1
      %v755 = vsel %vm655, %v752, %v754
      %v756 = vrot.slane %v451, 1
      %v757 = vrot.slane %v452, 1
      %v758 = vsel %vm655, %v756, %v757
      %v759 = vrot.slane %v453, 1
      %v760 = vsel %vm655, %v757, %v759
      %v761 = vrot.slane %v454, 1
      %v762 = vrot.slane %v455, 1
      %v763 = vsel %vm655, %v761, %v762
      %v764 = vrot.slane %v456, 1
      %v765 = vsel %vm655, %v762, %v764
      %v766 = vrot.slane %v457, 1
      %v767 = vrot.slane %v458, 1
      %v768 = vsel %vm655, %v766, %v767
      %v769 = vrot.slane %v459, 1
      %v770 = vsel %vm655, %v767, %v769
      %v771 = vrot.slane %v460, 1
      %v772 = vrot.slane %v461, 1
      %v773 = vsel %vm655, %v771, %v772
      %v774 = vrot.slane %v462, 1
      %v775 = vsel %vm655, %v772, %v774
      %v776 = vrot.slane %v463, 1
      %v777 = vrot.slane %v464, 1
      %v778 = vsel %vm655, %v776, %v777
      %v779 = vrot.slane %v465, 1
      %v780 = vsel %vm655, %v777, %v779
      %v781 = vrot.slane %v466, 1
      %v782 = vrot.slane %v467, 1
      %v783 = vsel %vm655, %v781, %v782
      %v784 = vrot.slane %v468, 1
      %v785 = vsel %vm655, %v782, %v784
      %v786 = vrot.slane %v469, 1
      %v787 = vrot.slane %v470, 1
      %v788 = vsel %vm655, %v786, %v787
      %v789 = vrot.slane %v471, 1
      %v790 = vsel %vm655, %v787, %v789
      %v791 = vrot.slane %v472, 1
      %v792 = vrot.slane %v473, 1
      %v793 = vsel %vm655, %v791, %v792
      %v794 = vrot.slane %v474, 1
      %v795 = vsel %vm655, %v792, %v794
      %v796 = vrot.slane %v475, 1
      %v797 = vrot.slane %v476, 1
      %v798 = vsel %vm655, %v796, %v797
      %v799 = vrot.slane %v477, 1
      %v800 = vsel %vm655, %v797, %v799
      %v801 = vrot.slane %v478, 1
      %v802 = vrot.slane %v479, 1
      %v803 = vsel %vm655, %v801, %v802
      %v804 = vrot.slane %v480, 1
      %v805 = vsel %vm655, %v802, %v804
      %v806 = vrot.slane %v481, 1
      %v807 = vrot.slane %v482, 1
      %v808 = vsel %vm655, %v806, %v807
      %v809 = vrot.slane %v483, 1
      %v810 = vsel %vm655, %v807, %v809
      %v811 = vrot.slane %v484, 1
      %v812 = vrot.slane %v485, 1
      %v813 = vsel %vm655, %v811, %v812
      %v814 = vrot.slane %v486, 1
      %v815 = vsel %vm655, %v812, %v814
      %v816 = vrot.slane %v487, 1
      %v817 = vrot.slane %v488, 1
      %v818 = vsel %vm655, %v816, %v817
      %v819 = vrot.slane %v489, 1
      %v820 = vsel %vm655, %v817, %v819
      %v821 = vrot.slane %v490, 1
      %v822 = vrot.slane %v491, 1
      %v823 = vsel %vm655, %v821, %v822
      %v824 = vrot.slane %v492, 1
      %v825 = vsel %vm655, %v822, %v824
      %v826 = vrot.slane %v493, 1
      %v827 = vrot.slane %v494, 1
      %v828 = vsel %vm655, %v826, %v827
      %v829 = vrot.slane %v495, 1
      %v830 = vsel %vm655, %v827, %v829
      %v831 = vrot.slane %v496, 1
      %v832 = vrot.slane %v497, 1
      %v833 = vsel %vm655, %v831, %v832
      %v834 = vrot.slane %v498, 1
      %v835 = vsel %vm655, %v832, %v834
      %v836 = vrot.slane %v499, 1
      %v837 = vrot.slane %v500, 1
      %v838 = vsel %vm655, %v836, %v837
      %v839 = vrot.slane %v501, 1
      %v840 = vsel %vm655, %v837, %v839
      %v841 = vrot.slane %v502, 1
      %v842 = vrot.slane %v503, 1
      %v843 = vsel %vm655, %v841, %v842
      %v844 = vrot.slane %v504, 1
      %v845 = vsel %vm655, %v842, %v844
      %v846 = vrot.slane %v505, 1
      %v847 = vrot.slane %v506, 1
      %v848 = vsel %vm655, %v846, %v847
      %v849 = vrot.slane %v507, 1
      %v850 = vsel %vm655, %v847, %v849
      %v851 = vrot.slane %v508, 1
      %v852 = vrot.slane %v509, 1
      %v853 = vsel %vm655, %v851, %v852
      %v854 = vrot.slane %v510, 1
      %v855 = vsel %vm655, %v852, %v854
      %v856 = vrot.slane %v511, 1
      %v857 = vrot.slane %v512, 1
      %v858 = vsel %vm655, %v856, %v857
      %v859 = vrot.slane %v513, 1
      %v860 = vsel %vm655, %v857, %v859
      %v861 = vrot.slane %v514, 1
      %v862 = vrot.slane %v515, 1
      %v863 = vsel %vm655, %v861, %v862
      %v864 = vrot.slane %v516, 1
      %v865 = vsel %vm655, %v862, %v864
      %v866 = vrot.slane %v517, 1
      %v867 = vrot.slane %v518, 1
      %v868 = vsel %vm655, %v866, %v867
      %v869 = vrot.slane %v519, 1
      %v870 = vsel %vm655, %v867, %v869
      %v871 = vrot.slane %v520, 1
      %v872 = vrot.slane %v521, 1
      %v873 = vsel %vm655, %v871, %v872
      %v874 = vrot.slane %v522, 1
      %v875 = vsel %vm655, %v872, %v874
      %876 = vrot.lane.b32.xlu0 %v658, 32
      %v877 = vpop.permute.xlu0 %876
      %878 = vrot.lane.b32.xlu0 %v660, 32
      %v879 = vpop.permute.xlu0 %878
      %880 = vrot.lane.b32.xlu0 %v663, 32
      %v881 = vpop.permute.xlu0 %880
      %882 = vrot.lane.b32.xlu0 %v665, 32
      %v883 = vpop.permute.xlu0 %882
      %884 = vrot.lane.b32.xlu0 %v668, 32
      %v885 = vpop.permute.xlu0 %884
      %886 = vrot.lane.b32.xlu0 %v670, 32
      %v887 = vpop.permute.xlu0 %886
      %888 = vrot.lane.b32.xlu0 %v673, 32
      %v889 = vpop.permute.xlu0 %888
      %890 = vrot.lane.b32.xlu0 %v675, 32
      %v891 = vpop.permute.xlu0 %890
      %892 = vrot.lane.b32.xlu0 %v678, 32
      %v893 = vpop.permute.xlu0 %892
      %894 = vrot.lane.b32.xlu0 %v680, 32
      %v895 = vpop.permute.xlu0 %894
      %896 = vrot.lane.b32.xlu0 %v683, 32
      %v897 = vpop.permute.xlu0 %896
      %898 = vrot.lane.b32.xlu0 %v685, 32
      %v899 = vpop.permute.xlu0 %898
      %900 = vrot.lane.b32.xlu0 %v688, 32
      %v901 = vpop.permute.xlu0 %900
      %902 = vrot.lane.b32.xlu0 %v690, 32
      %v903 = vpop.permute.xlu0 %902
      %904 = vrot.lane.b32.xlu0 %v693, 32
      %v905 = vpop.permute.xlu0 %904
      %906 = vrot.lane.b32.xlu0 %v695, 32
      %v907 = vpop.permute.xlu0 %906
      %908 = vrot.lane.b32.xlu0 %v698, 32
      %v909 = vpop.permute.xlu0 %908
      %910 = vrot.lane.b32.xlu0 %v700, 32
      %v911 = vpop.permute.xlu0 %910
      %912 = vrot.lane.b32.xlu0 %v703, 32
      %v913 = vpop.permute.xlu0 %912
      %914 = vrot.lane.b32.xlu0 %v705, 32
      %v915 = vpop.permute.xlu0 %914
      %916 = vrot.lane.b32.xlu0 %v708, 32
      %v917 = vpop.permute.xlu0 %916
      %918 = vrot.lane.b32.xlu0 %v710, 32
      %v919 = vpop.permute.xlu0 %918
      %920 = vrot.lane.b32.xlu0 %v713, 32
      %v921 = vpop.permute.xlu0 %920
      %922 = vrot.lane.b32.xlu0 %v715, 32
      %v923 = vpop.permute.xlu0 %922
      %924 = vrot.lane.b32.xlu0 %v718, 32
      %v925 = vpop.permute.xlu0 %924
      %926 = vrot.lane.b32.xlu0 %v720, 32
      %v927 = vpop.permute.xlu0 %926
      %928 = vrot.lane.b32.xlu0 %v723, 32
      %v929 = vpop.permute.xlu0 %928
      %930 = vrot.lane.b32.xlu0 %v725, 32
      %v931 = vpop.permute.xlu0 %930
      %932 = vrot.lane.b32.xlu0 %v728, 32
      %v933 = vpop.permute.xlu0 %932
      %934 = vrot.lane.b32.xlu0 %v730, 32
      %v935 = vpop.permute.xlu0 %934
      %936 = vrot.lane.b32.xlu0 %v733, 32
      %v937 = vpop.permute.xlu0 %936
      %938 = vrot.lane.b32.xlu0 %v735, 32
      %v939 = vpop.permute.xlu0 %938
      %940 = vrot.lane.b32.xlu0 %v738, 32
      %v941 = vpop.permute.xlu0 %940
      %942 = vrot.lane.b32.xlu0 %v740, 32
      %v943 = vpop.permute.xlu0 %942
      %944 = vrot.lane.b32.xlu0 %v743, 32
      %v945 = vpop.permute.xlu0 %944
      %946 = vrot.lane.b32.xlu0 %v745, 32
      %v947 = vpop.permute.xlu0 %946
      %948 = vrot.lane.b32.xlu0 %v748, 32
      %v949 = vpop.permute.xlu0 %948
      %950 = vrot.lane.b32.xlu0 %v750, 32
      %v951 = vpop.permute.xlu0 %950
      %952 = vrot.lane.b32.xlu0 %v753, 32
      %v953 = vpop.permute.xlu0 %952
      %954 = vrot.lane.b32.xlu0 %v755, 32
      %v955 = vpop.permute.xlu0 %954
      %956 = vrot.lane.b32.xlu0 %v758, 32
      %v957 = vpop.permute.xlu0 %956
      %958 = vrot.lane.b32.xlu0 %v760, 32
      %v959 = vpop.permute.xlu0 %958
      %960 = vrot.lane.b32.xlu0 %v763, 32
      %v961 = vpop.permute.xlu0 %960
      %962 = vrot.lane.b32.xlu0 %v765, 32
      %v963 = vpop.permute.xlu0 %962
      %964 = vrot.lane.b32.xlu0 %v768, 32
      %v965 = vpop.permute.xlu0 %964
      %966 = vrot.lane.b32.xlu0 %v770, 32
      %v967 = vpop.permute.xlu0 %966
      %968 = vrot.lane.b32.xlu0 %v773, 32
      %v969 = vpop.permute.xlu0 %968
      %970 = vrot.lane.b32.xlu0 %v775, 32
      %v971 = vpop.permute.xlu0 %970
      %972 = vrot.lane.b32.xlu0 %v778, 32
      %v973 = vpop.permute.xlu0 %972
      %974 = vrot.lane.b32.xlu0 %v780, 32
      %v975 = vpop.permute.xlu0 %974
      %976 = vrot.lane.b32.xlu0 %v783, 32
      %v977 = vpop.permute.xlu0 %976
      %978 = vrot.lane.b32.xlu0 %v785, 32
      %v979 = vpop.permute.xlu0 %978
      %980 = vrot.lane.b32.xlu0 %v788, 32
      %v981 = vpop.permute.xlu0 %980
      %982 = vrot.lane.b32.xlu0 %v790, 32
      %v983 = vpop.permute.xlu0 %982
      %984 = vrot.lane.b32.xlu0 %v793, 32
      %v985 = vpop.permute.xlu0 %984
      %986 = vrot.lane.b32.xlu0 %v795, 32
      %v987 = vpop.permute.xlu0 %986
      %988 = vrot.lane.b32.xlu0 %v798, 32
      %v989 = vpop.permute.xlu0 %988
      %990 = vrot.lane.b32.xlu0 %v800, 32
      %v991 = vpop.permute.xlu0 %990
      %992 = vrot.lane.b32.xlu0 %v803, 32
      %v993 = vpop.permute.xlu0 %992
      %994 = vrot.lane.b32.xlu0 %v805, 32
      %v995 = vpop.permute.xlu0 %994
      %996 = vrot.lane.b32.xlu0 %v808, 32
      %v997 = vpop.permute.xlu0 %996
      %998 = vrot.lane.b32.xlu0 %v810, 32
      %v999 = vpop.permute.xlu0 %998
      %1000 = vrot.lane.b32.xlu0 %v813, 32
      %v1001 = vpop.permute.xlu0 %1000
      %1002 = vrot.lane.b32.xlu0 %v815, 32
      %v1003 = vpop.permute.xlu0 %1002
      %1004 = vrot.lane.b32.xlu0 %v818, 32
      %v1005 = vpop.permute.xlu0 %1004
      %1006 = vrot.lane.b32.xlu0 %v820, 32
      %v1007 = vpop.permute.xlu0 %1006
      %1008 = vrot.lane.b32.xlu0 %v823, 32
      %v1009 = vpop.permute.xlu0 %1008
      %1010 = vrot.lane.b32.xlu0 %v825, 32
      %v1011 = vpop.permute.xlu0 %1010
      %1012 = vrot.lane.b32.xlu0 %v828, 32
      %v1013 = vpop.permute.xlu0 %1012
      %1014 = vrot.lane.b32.xlu0 %v830, 32
      %v1015 = vpop.permute.xlu0 %1014
      %1016 = vrot.lane.b32.xlu0 %v833, 32
      %v1017 = vpop.permute.xlu0 %1016
      %1018 = vrot.lane.b32.xlu0 %v835, 32
      %v1019 = vpop.permute.xlu0 %1018
      %1020 = vrot.lane.b32.xlu0 %v838, 32
      %v1021 = vpop.permute.xlu0 %1020
      %1022 = vrot.lane.b32.xlu0 %v840, 32
      %v1023 = vpop.permute.xlu0 %1022
      %1024 = vrot.lane.b32.xlu0 %v843, 32
      %v1025 = vpop.permute.xlu0 %1024
      %1026 = vrot.lane.b32.xlu0 %v845, 32
      %v1027 = vpop.permute.xlu0 %1026
      %1028 = vrot.lane.b32.xlu0 %v848, 32
      %v1029 = vpop.permute.xlu0 %1028
      %1030 = vrot.lane.b32.xlu0 %v850, 32
      %v1031 = vpop.permute.xlu0 %1030
      %1032 = vrot.lane.b32.xlu0 %v853, 32
      %v1033 = vpop.permute.xlu0 %1032
      %1034 = vrot.lane.b32.xlu0 %v855, 32
      %v1035 = vpop.permute.xlu0 %1034
      %1036 = vrot.lane.b32.xlu0 %v858, 32
      %v1037 = vpop.permute.xlu0 %1036
      %1038 = vrot.lane.b32.xlu0 %v860, 32
      %v1039 = vpop.permute.xlu0 %1038
      %1040 = vrot.lane.b32.xlu0 %v863, 32
      %v1041 = vpop.permute.xlu0 %1040
      %1042 = vrot.lane.b32.xlu0 %v865, 32
      %v1043 = vpop.permute.xlu0 %1042
      %1044 = vrot.lane.b32.xlu0 %v868, 32
      %v1045 = vpop.permute.xlu0 %1044
      %1046 = vrot.lane.b32.xlu0 %v870, 32
      %v1047 = vpop.permute.xlu0 %1046
      %1048 = vrot.lane.b32.xlu0 %v873, 32
      %v1049 = vpop.permute.xlu0 %1048
      %1050 = vrot.lane.b32.xlu0 %v875, 32
      %v1051 = vpop.permute.xlu0 %1050
      %vm1140 = vcmask 1045504
      %v1141 = vrot.slane %v391, 2
      %v1142 = vrot.slane %v392, 2
      %v1143 = vsel %vm1140, %v1141, %v1142
      %v1144 = vrot.slane %v393, 2
      %v1145 = vsel %vm1140, %v1142, %v1144
      %v1146 = vrot.slane %v394, 2
      %v1147 = vrot.slane %v395, 2
      %v1148 = vsel %vm1140, %v1146, %v1147
      %v1149 = vrot.slane %v396, 2
      %v1150 = vsel %vm1140, %v1147, %v1149
      %v1151 = vrot.slane %v397, 2
      %v1152 = vrot.slane %v398, 2
      %v1153 = vsel %vm1140, %v1151, %v1152
      %v1154 = vrot.slane %v399, 2
      %v1155 = vsel %vm1140, %v1152, %v1154
      %v1156 = vrot.slane %v400, 2
      %v1157 = vrot.slane %v401, 2
      %v1158 = vsel %vm1140, %v1156, %v1157
      %v1159 = vrot.slane %v402, 2
      %v1160 = vsel %vm1140, %v1157, %v1159
      %v1161 = vrot.slane %v403, 2
      %v1162 = vrot.slane %v404, 2
      %v1163 = vsel %vm1140, %v1161, %v1162
      %v1164 = vrot.slane %v405, 2
      %v1165 = vsel %vm1140, %v1162, %v1164
      %v1166 = vrot.slane %v406, 2
      %v1167 = vrot.slane %v407, 2
      %v1168 = vsel %vm1140, %v1166, %v1167
      %v1169 = vrot.slane %v408, 2
      %v1170 = vsel %vm1140, %v1167, %v1169
      %v1171 = vrot.slane %v409, 2
      %v1172 = vrot.slane %v410, 2
      %v1173 = vsel %vm1140, %v1171, %v1172
      %v1174 = vrot.slane %v411, 2
      %v1175 = vsel %vm1140, %v1172, %v1174
      %v1176 = vrot.slane %v412, 2
      %v1177 = vrot.slane %v413, 2
      %v1178 = vsel %vm1140, %v1176, %v1177
      %v1179 = vrot.slane %v414, 2
      %v1180 = vsel %vm1140, %v1177, %v1179
      %v1181 = vrot.slane %v415, 2
      %v1182 = vrot.slane %v416, 2
      %v1183 = vsel %vm1140, %v1181, %v1182
      %v1184 = vrot.slane %v417, 2
      %v1185 = vsel %vm1140, %v1182, %v1184
      %v1186 = vrot.slane %v418, 2
      %v1187 = vrot.slane %v419, 2
      %v1188 = vsel %vm1140, %v1186, %v1187
      %v1189 = vrot.slane %v420, 2
      %v1190 = vsel %vm1140, %v1187, %v1189
      %v1191 = vrot.slane %v421, 2
      %v1192 = vrot.slane %v422, 2
      %v1193 = vsel %vm1140, %v1191, %v1192
      %v1194 = vrot.slane %v423, 2
      %v1195 = vsel %vm1140, %v1192, %v1194
      %v1196 = vrot.slane %v424, 2
      %v1197 = vrot.slane %v425, 2
      %v1198 = vsel %vm1140, %v1196, %v1197
      %v1199 = vrot.slane %v426, 2
      %v1200 = vsel %vm1140, %v1197, %v1199
      %v1201 = vrot.slane %v427, 2
      %v1202 = vrot.slane %v428, 2
      %v1203 = vsel %vm1140, %v1201, %v1202
      %v1204 = vrot.slane %v429, 2
      %v1205 = vsel %vm1140, %v1202, %v1204
      %v1206 = vrot.slane %v430, 2
      %v1207 = vrot.slane %v431, 2
      %v1208 = vsel %vm1140, %v1206, %v1207
      %v1209 = vrot.slane %v432, 2
      %v1210 = vsel %vm1140, %v1207, %v1209
      %v1211 = vrot.slane %v433, 2
      %v1212 = vrot.slane %v434, 2
      %v1213 = vsel %vm1140, %v1211, %v1212
      %v1214 = vrot.slane %v435, 2
      %v1215 = vsel %vm1140, %v1212, %v1214
      %v1216 = vrot.slane %v436, 2
      %v1217 = vrot.slane %v437, 2
      %v1218 = vsel %vm1140, %v1216, %v1217
      %v1219 = vrot.slane %v438, 2
      %v1220 = vsel %vm1140, %v1217, %v1219
      %v1221 = vrot.slane %v439, 2
      %v1222 = vrot.slane %v440, 2
      %v1223 = vsel %vm1140, %v1221, %v1222
      %v1224 = vrot.slane %v441, 2
      %v1225 = vsel %vm1140, %v1222, %v1224
      %v1226 = vrot.slane %v442, 2
      %v1227 = vrot.slane %v443, 2
      %v1228 = vsel %vm1140, %v1226, %v1227
      %v1229 = vrot.slane %v444, 2
      %v1230 = vsel %vm1140, %v1227, %v1229
      %v1231 = vrot.slane %v445, 2
      %v1232 = vrot.slane %v446, 2
      %v1233 = vsel %vm1140, %v1231, %v1232
      %v1234 = vrot.slane %v447, 2
      %v1235 = vsel %vm1140, %v1232, %v1234
      %v1236 = vrot.slane %v448, 2
      %v1237 = vrot.slane %v449, 2
      %v1238 = vsel %vm1140, %v1236, %v1237
      %v1239 = vrot.slane %v450, 2
      %v1240 = vsel %vm1140, %v1237, %v1239
      %v1241 = vrot.slane %v451, 2
      %v1242 = vrot.slane %v452, 2
      %v1243 = vsel %vm1140, %v1241, %v1242
      %v1244 = vrot.slane %v453, 2
      %v1245 = vsel %vm1140, %v1242, %v1244
      %v1246 = vrot.slane %v454, 2
      %v1247 = vrot.slane %v455, 2
      %v1248 = vsel %vm1140, %v1246, %v1247
      %v1249 = vrot.slane %v456, 2
      %v1250 = vsel %vm1140, %v1247, %v1249
      %v1251 = vrot.slane %v457, 2
      %v1252 = vrot.slane %v458, 2
      %v1253 = vsel %vm1140, %v1251, %v1252
      %v1254 = vrot.slane %v459, 2
      %v1255 = vsel %vm1140, %v1252, %v1254
      %v1256 = vrot.slane %v460, 2
      %v1257 = vrot.slane %v461, 2
      %v1258 = vsel %vm1140, %v1256, %v1257
      %v1259 = vrot.slane %v462, 2
      %v1260 = vsel %vm1140, %v1257, %v1259
      %v1261 = vrot.slane %v463, 2
      %v1262 = vrot.slane %v464, 2
      %v1263 = vsel %vm1140, %v1261, %v1262
      %v1264 = vrot.slane %v465, 2
      %v1265 = vsel %vm1140, %v1262, %v1264
      %v1266 = vrot.slane %v466, 2
      %v1267 = vrot.slane %v467, 2
      %v1268 = vsel %vm1140, %v1266, %v1267
      %v1269 = vrot.slane %v468, 2
      %v1270 = vsel %vm1140, %v1267, %v1269
      %v1271 = vrot.slane %v469, 2
      %v1272 = vrot.slane %v470, 2
      %v1273 = vsel %vm1140, %v1271, %v1272
      %v1274 = vrot.slane %v471, 2
      %v1275 = vsel %vm1140, %v1272, %v1274
      %v1276 = vrot.slane %v472, 2
      %v1277 = vrot.slane %v473, 2
      %v1278 = vsel %vm1140, %v1276, %v1277
      %v1279 = vrot.slane %v474, 2
      %v1280 = vsel %vm1140, %v1277, %v1279
      %v1281 = vrot.slane %v475, 2
      %v1282 = vrot.slane %v476, 2
      %v1283 = vsel %vm1140, %v1281, %v1282
      %v1284 = vrot.slane %v477, 2
      %v1285 = vsel %vm1140, %v1282, %v1284
      %v1286 = vrot.slane %v478, 2
      %v1287 = vrot.slane %v479, 2
      %v1288 = vsel %vm1140, %v1286, %v1287
      %v1289 = vrot.slane %v480, 2
      %v1290 = vsel %vm1140, %v1287, %v1289
      %v1291 = vrot.slane %v481, 2
      %v1292 = vrot.slane %v482, 2
      %v1293 = vsel %vm1140, %v1291, %v1292
      %v1294 = vrot.slane %v483, 2
      %v1295 = vsel %vm1140, %v1292, %v1294
      %v1296 = vrot.slane %v484, 2
      %v1297 = vrot.slane %v485, 2
      %v1298 = vsel %vm1140, %v1296, %v1297
      %v1299 = vrot.slane %v486, 2
      %v1300 = vsel %vm1140, %v1297, %v1299
      %v1301 = vrot.slane %v487, 2
      %v1302 = vrot.slane %v488, 2
      %v1303 = vsel %vm1140, %v1301, %v1302
      %v1304 = vrot.slane %v489, 2
      %v1305 = vsel %vm1140, %v1302, %v1304
      %v1306 = vrot.slane %v490, 2
      %v1307 = vrot.slane %v491, 2
      %v1308 = vsel %vm1140, %v1306, %v1307
      %v1309 = vrot.slane %v492, 2
      %v1310 = vsel %vm1140, %v1307, %v1309
      %v1311 = vrot.slane %v493, 2
      %v1312 = vrot.slane %v494, 2
      %v1313 = vsel %vm1140, %v1311, %v1312
      %v1314 = vrot.slane %v495, 2
      %v1315 = vsel %vm1140, %v1312, %v1314
      %v1316 = vrot.slane %v496, 2
      %v1317 = vrot.slane %v497, 2
      %v1318 = vsel %vm1140, %v1316, %v1317
      %v1319 = vrot.slane %v498, 2
      %v1320 = vsel %vm1140, %v1317, %v1319
      %v1321 = vrot.slane %v499, 2
      %v1322 = vrot.slane %v500, 2
      %v1323 = vsel %vm1140, %v1321, %v1322
      %v1324 = vrot.slane %v501, 2
      %v1325 = vsel %vm1140, %v1322, %v1324
      %v1326 = vrot.slane %v502, 2
      %v1327 = vrot.slane %v503, 2
      %v1328 = vsel %vm1140, %v1326, %v1327
      %v1329 = vrot.slane %v504, 2
      %v1330 = vsel %vm1140, %v1327, %v1329
      %v1331 = vrot.slane %v505, 2
      %v1332 = vrot.slane %v506, 2
      %v1333 = vsel %vm1140, %v1331, %v1332
      %v1334 = vrot.slane %v507, 2
      %v1335 = vsel %vm1140, %v1332, %v1334
      %v1336 = vrot.slane %v508, 2
      %v1337 = vrot.slane %v509, 2
      %v1338 = vsel %vm1140, %v1336, %v1337
      %v1339 = vrot.slane %v510, 2
      %v1340 = vsel %vm1140, %v1337, %v1339
      %v1341 = vrot.slane %v511, 2
      %v1342 = vrot.slane %v512, 2
      %v1343 = vsel %vm1140, %v1341, %v1342
      %v1344 = vrot.slane %v513, 2
      %v1345 = vsel %vm1140, %v1342, %v1344
      %v1346 = vrot.slane %v514, 2
      %v1347 = vrot.slane %v515, 2
      %v1348 = vsel %vm1140, %v1346, %v1347
      %v1349 = vrot.slane %v516, 2
      %v1350 = vsel %vm1140, %v1347, %v1349
      %v1351 = vrot.slane %v517, 2
      %v1352 = vrot.slane %v518, 2
      %v1353 = vsel %vm1140, %v1351, %v1352
      %v1354 = vrot.slane %v519, 2
      %v1355 = vsel %vm1140, %v1352, %v1354
      %v1356 = vrot.slane %v520, 2
      %v1357 = vrot.slane %v521, 2
      %v1358 = vsel %vm1140, %v1356, %v1357
      %v1359 = vrot.slane %v522, 2
      %v1360 = vsel %vm1140, %v1357, %v1359
      %1361 = vrot.lane.b32.xlu0 %v1143, 64
      %v1362 = vpop.permute.xlu0 %1361
      %1363 = vrot.lane.b32.xlu0 %v1145, 64
      %v1364 = vpop.permute.xlu0 %1363
      %1365 = vrot.lane.b32.xlu0 %v1148, 64
      %v1366 = vpop.permute.xlu0 %1365
      %1367 = vrot.lane.b32.xlu0 %v1150, 64
      %v1368 = vpop.permute.xlu0 %1367
      %1369 = vrot.lane.b32.xlu0 %v1153, 64
      %v1370 = vpop.permute.xlu0 %1369
      %1371 = vrot.lane.b32.xlu0 %v1155, 64
      %v1372 = vpop.permute.xlu0 %1371
      %1373 = vrot.lane.b32.xlu0 %v1158, 64
      %v1374 = vpop.permute.xlu0 %1373
      %1375 = vrot.lane.b32.xlu0 %v1160, 64
      %v1376 = vpop.permute.xlu0 %1375
      %1377 = vrot.lane.b32.xlu0 %v1163, 64
      %v1378 = vpop.permute.xlu0 %1377
      %1379 = vrot.lane.b32.xlu0 %v1165, 64
      %v1380 = vpop.permute.xlu0 %1379
      %1381 = vrot.lane.b32.xlu0 %v1168, 64
      %v1382 = vpop.permute.xlu0 %1381
      %1383 = vrot.lane.b32.xlu0 %v1170, 64
      %v1384 = vpop.permute.xlu0 %1383
      %1385 = vrot.lane.b32.xlu0 %v1173, 64
      %v1386 = vpop.permute.xlu0 %1385
      %1387 = vrot.lane.b32.xlu0 %v1175, 64
      %v1388 = vpop.permute.xlu0 %1387
      %1389 = vrot.lane.b32.xlu0 %v1178, 64
      %v1390 = vpop.permute.xlu0 %1389
      %1391 = vrot.lane.b32.xlu0 %v1180, 64
      %v1392 = vpop.permute.xlu0 %1391
      %1393 = vrot.lane.b32.xlu0 %v1183, 64
      %v1394 = vpop.permute.xlu0 %1393
      %1395 = vrot.lane.b32.xlu0 %v1185, 64
      %v1396 = vpop.permute.xlu0 %1395
      %1397 = vrot.lane.b32.xlu0 %v1188, 64
      %v1398 = vpop.permute.xlu0 %1397
      %1399 = vrot.lane.b32.xlu0 %v1190, 64
      %v1400 = vpop.permute.xlu0 %1399
      %1401 = vrot.lane.b32.xlu0 %v1193, 64
      %v1402 = vpop.permute.xlu0 %1401
      %1403 = vrot.lane.b32.xlu0 %v1195, 64
      %v1404 = vpop.permute.xlu0 %1403
      %1405 = vrot.lane.b32.xlu0 %v1198, 64
      %v1406 = vpop.permute.xlu0 %1405
      %1407 = vrot.lane.b32.xlu0 %v1200, 64
      %v1408 = vpop.permute.xlu0 %1407
      %1409 = vrot.lane.b32.xlu0 %v1203, 64
      %v1410 = vpop.permute.xlu0 %1409
      %1411 = vrot.lane.b32.xlu0 %v1205, 64
      %v1412 = vpop.permute.xlu0 %1411
      %1413 = vrot.lane.b32.xlu0 %v1208, 64
      %v1414 = vpop.permute.xlu0 %1413
      %1415 = vrot.lane.b32.xlu0 %v1210, 64
      %v1416 = vpop.permute.xlu0 %1415
      %1417 = vrot.lane.b32.xlu0 %v1213, 64
      %v1418 = vpop.permute.xlu0 %1417
      %1419 = vrot.lane.b32.xlu0 %v1215, 64
      %v1420 = vpop.permute.xlu0 %1419
      %1421 = vrot.lane.b32.xlu0 %v1218, 64
      %v1422 = vpop.permute.xlu0 %1421
      %1423 = vrot.lane.b32.xlu0 %v1220, 64
      %v1424 = vpop.permute.xlu0 %1423
      %1425 = vrot.lane.b32.xlu0 %v1223, 64
      %v1426 = vpop.permute.xlu0 %1425
      %1427 = vrot.lane.b32.xlu0 %v1225, 64
      %v1428 = vpop.permute.xlu0 %1427
      %1429 = vrot.lane.b32.xlu0 %v1228, 64
      %v1430 = vpop.permute.xlu0 %1429
      %1431 = vrot.lane.b32.xlu0 %v1230, 64
      %v1432 = vpop.permute.xlu0 %1431
      %1433 = vrot.lane.b32.xlu0 %v1233, 64
      %v1434 = vpop.permute.xlu0 %1433
      %1435 = vrot.lane.b32.xlu0 %v1235, 64
      %v1436 = vpop.permute.xlu0 %1435
      %1437 = vrot.lane.b32.xlu0 %v1238, 64
      %v1438 = vpop.permute.xlu0 %1437
      %1439 = vrot.lane.b32.xlu0 %v1240, 64
      %v1440 = vpop.permute.xlu0 %1439
      %1441 = vrot.lane.b32.xlu0 %v1243, 64
      %v1442 = vpop.permute.xlu0 %1441
      %1443 = vrot.lane.b32.xlu0 %v1245, 64
      %v1444 = vpop.permute.xlu0 %1443
      %1445 = vrot.lane.b32.xlu0 %v1248, 64
      %v1446 = vpop.permute.xlu0 %1445
      %1447 = vrot.lane.b32.xlu0 %v1250, 64
      %v1448 = vpop.permute.xlu0 %1447
      %1449 = vrot.lane.b32.xlu0 %v1253, 64
      %v1450 = vpop.permute.xlu0 %1449
      %1451 = vrot.lane.b32.xlu0 %v1255, 64
      %v1452 = vpop.permute.xlu0 %1451
      %1453 = vrot.lane.b32.xlu0 %v1258, 64
      %v1454 = vpop.permute.xlu0 %1453
      %1455 = vrot.lane.b32.xlu0 %v1260, 64
      %v1456 = vpop.permute.xlu0 %1455
      %1457 = vrot.lane.b32.xlu0 %v1263, 64
      %v1458 = vpop.permute.xlu0 %1457
      %1459 = vrot.lane.b32.xlu0 %v1265, 64
      %v1460 = vpop.permute.xlu0 %1459
      %1461 = vrot.lane.b32.xlu0 %v1268, 64
      %v1462 = vpop.permute.xlu0 %1461
      %1463 = vrot.lane.b32.xlu0 %v1270, 64
      %v1464 = vpop.permute.xlu0 %1463
      %1465 = vrot.lane.b32.xlu0 %v1273, 64
      %v1466 = vpop.permute.xlu0 %1465
      %1467 = vrot.lane.b32.xlu0 %v1275, 64
      %v1468 = vpop.permute.xlu0 %1467
      %1469 = vrot.lane.b32.xlu0 %v1278, 64
      %v1470 = vpop.permute.xlu0 %1469
      %1471 = vrot.lane.b32.xlu0 %v1280, 64
      %v1472 = vpop.permute.xlu0 %1471
      %1473 = vrot.lane.b32.xlu0 %v1283, 64
      %v1474 = vpop.permute.xlu0 %1473
      %1475 = vrot.lane.b32.xlu0 %v1285, 64
      %v1476 = vpop.permute.xlu0 %1475
      %1477 = vrot.lane.b32.xlu0 %v1288, 64
      %v1478 = vpop.permute.xlu0 %1477
      %1479 = vrot.lane.b32.xlu0 %v1290, 64
      %v1480 = vpop.permute.xlu0 %1479
      %1481 = vrot.lane.b32.xlu0 %v1293, 64
      %v1482 = vpop.permute.xlu0 %1481
      %1483 = vrot.lane.b32.xlu0 %v1295, 64
      %v1484 = vpop.permute.xlu0 %1483
      %1485 = vrot.lane.b32.xlu0 %v1298, 64
      %v1486 = vpop.permute.xlu0 %1485
      %1487 = vrot.lane.b32.xlu0 %v1300, 64
      %v1488 = vpop.permute.xlu0 %1487
      %1489 = vrot.lane.b32.xlu0 %v1303, 64
      %v1490 = vpop.permute.xlu0 %1489
      %1491 = vrot.lane.b32.xlu0 %v1305, 64
      %v1492 = vpop.permute.xlu0 %1491
      %1493 = vrot.lane.b32.xlu0 %v1308, 64
      %v1494 = vpop.permute.xlu0 %1493
      %1495 = vrot.lane.b32.xlu0 %v1310, 64
      %v1496 = vpop.permute.xlu0 %1495
      %1497 = vrot.lane.b32.xlu0 %v1313, 64
      %v1498 = vpop.permute.xlu0 %1497
      %1499 = vrot.lane.b32.xlu0 %v1315, 64
      %v1500 = vpop.permute.xlu0 %1499
      %1501 = vrot.lane.b32.xlu0 %v1318, 64
      %v1502 = vpop.permute.xlu0 %1501
      %1503 = vrot.lane.b32.xlu0 %v1320, 64
      %v1504 = vpop.permute.xlu0 %1503
      %1505 = vrot.lane.b32.xlu0 %v1323, 64
      %v1506 = vpop.permute.xlu0 %1505
      %1507 = vrot.lane.b32.xlu0 %v1325, 64
      %v1508 = vpop.permute.xlu0 %1507
      %1509 = vrot.lane.b32.xlu0 %v1328, 64
      %v1510 = vpop.permute.xlu0 %1509
      %1511 = vrot.lane.b32.xlu0 %v1330, 64
      %v1512 = vpop.permute.xlu0 %1511
      %1513 = vrot.lane.b32.xlu0 %v1333, 64
      %v1514 = vpop.permute.xlu0 %1513
      %1515 = vrot.lane.b32.xlu0 %v1335, 64
      %v1516 = vpop.permute.xlu0 %1515
      %1517 = vrot.lane.b32.xlu0 %v1338, 64
      %v1518 = vpop.permute.xlu0 %1517
      %1519 = vrot.lane.b32.xlu0 %v1340, 64
      %v1520 = vpop.permute.xlu0 %1519
      %1521 = vrot.lane.b32.xlu0 %v1343, 64
      %v1522 = vpop.permute.xlu0 %1521
      %1523 = vrot.lane.b32.xlu0 %v1345, 64
      %v1524 = vpop.permute.xlu0 %1523
      %1525 = vrot.lane.b32.xlu0 %v1348, 64
      %v1526 = vpop.permute.xlu0 %1525
      %1527 = vrot.lane.b32.xlu0 %v1350, 64
      %v1528 = vpop.permute.xlu0 %1527
      %1529 = vrot.lane.b32.xlu0 %v1353, 64
      %v1530 = vpop.permute.xlu0 %1529
      %1531 = vrot.lane.b32.xlu0 %v1355, 64
      %v1532 = vpop.permute.xlu0 %1531
      %1533 = vrot.lane.b32.xlu0 %v1358, 64
      %v1534 = vpop.permute.xlu0 %1533
      %1535 = vrot.lane.b32.xlu0 %v1360, 64
      %v1536 = vpop.permute.xlu0 %1535
      %vm1625 = vcmask 1044480
      %v1626 = vrot.slane %v391, 3
      %v1627 = vrot.slane %v392, 3
      %v1628 = vsel %vm1625, %v1626, %v1627
      %v1629 = vrot.slane %v393, 3
      %v1630 = vsel %vm1625, %v1627, %v1629
      %v1631 = vrot.slane %v394, 3
      %v1632 = vrot.slane %v395, 3
      %v1633 = vsel %vm1625, %v1631, %v1632
      %v1634 = vrot.slane %v396, 3
      %v1635 = vsel %vm1625, %v1632, %v1634
      %v1636 = vrot.slane %v397, 3
      %v1637 = vrot.slane %v398, 3
      %v1638 = vsel %vm1625, %v1636, %v1637
      %v1639 = vrot.slane %v399, 3
      %v1640 = vsel %vm1625, %v1637, %v1639
      %v1641 = vrot.slane %v400, 3
      %v1642 = vrot.slane %v401, 3
      %v1643 = vsel %vm1625, %v1641, %v1642
      %v1644 = vrot.slane %v402, 3
      %v1645 = vsel %vm1625, %v1642, %v1644
      %v1646 = vrot.slane %v403, 3
      %v1647 = vrot.slane %v404, 3
      %v1648 = vsel %vm1625, %v1646, %v1647
      %v1649 = vrot.slane %v405, 3
      %v1650 = vsel %vm1625, %v1647, %v1649
      %v1651 = vrot.slane %v406, 3
      %v1652 = vrot.slane %v407, 3
      %v1653 = vsel %vm1625, %v1651, %v1652
      %v1654 = vrot.slane %v408, 3
      %v1655 = vsel %vm1625, %v1652, %v1654
      %v1656 = vrot.slane %v409, 3
      %v1657 = vrot.slane %v410, 3
      %v1658 = vsel %vm1625, %v1656, %v1657
      %v1659 = vrot.slane %v411, 3
      %v1660 = vsel %vm1625, %v1657, %v1659
      %v1661 = vrot.slane %v412, 3
      %v1662 = vrot.slane %v413, 3
      %v1663 = vsel %vm1625, %v1661, %v1662
      %v1664 = vrot.slane %v414, 3
      %v1665 = vsel %vm1625, %v1662, %v1664
      %v1666 = vrot.slane %v415, 3
      %v1667 = vrot.slane %v416, 3
      %v1668 = vsel %vm1625, %v1666, %v1667
      %v1669 = vrot.slane %v417, 3
      %v1670 = vsel %vm1625, %v1667, %v1669
      %v1671 = vrot.slane %v418, 3
      %v1672 = vrot.slane %v419, 3
      %v1673 = vsel %vm1625, %v1671, %v1672
      %v1674 = vrot.slane %v420, 3
      %v1675 = vsel %vm1625, %v1672, %v1674
      %v1676 = vrot.slane %v421, 3
      %v1677 = vrot.slane %v422, 3
      %v1678 = vsel %vm1625, %v1676, %v1677
      %v1679 = vrot.slane %v423, 3
      %v1680 = vsel %vm1625, %v1677, %v1679
      %v1681 = vrot.slane %v424, 3
      %v1682 = vrot.slane %v425, 3
      %v1683 = vsel %vm1625, %v1681, %v1682
      %v1684 = vrot.slane %v426, 3
      %v1685 = vsel %vm1625, %v1682, %v1684
      %v1686 = vrot.slane %v427, 3
      %v1687 = vrot.slane %v428, 3
      %v1688 = vsel %vm1625, %v1686, %v1687
      %v1689 = vrot.slane %v429, 3
      %v1690 = vsel %vm1625, %v1687, %v1689
      %v1691 = vrot.slane %v430, 3
      %v1692 = vrot.slane %v431, 3
      %v1693 = vsel %vm1625, %v1691, %v1692
      %v1694 = vrot.slane %v432, 3
      %v1695 = vsel %vm1625, %v1692, %v1694
      %v1696 = vrot.slane %v433, 3
      %v1697 = vrot.slane %v434, 3
      %v1698 = vsel %vm1625, %v1696, %v1697
      %v1699 = vrot.slane %v435, 3
      %v1700 = vsel %vm1625, %v1697, %v1699
      %v1701 = vrot.slane %v436, 3
      %v1702 = vrot.slane %v437, 3
      %v1703 = vsel %vm1625, %v1701, %v1702
      %v1704 = vrot.slane %v438, 3
      %v1705 = vsel %vm1625, %v1702, %v1704
      %v1706 = vrot.slane %v439, 3
      %v1707 = vrot.slane %v440, 3
      %v1708 = vsel %vm1625, %v1706, %v1707
      %v1709 = vrot.slane %v441, 3
      %v1710 = vsel %vm1625, %v1707, %v1709
      %v1711 = vrot.slane %v442, 3
      %v1712 = vrot.slane %v443, 3
      %v1713 = vsel %vm1625, %v1711, %v1712
      %v1714 = vrot.slane %v444, 3
      %v1715 = vsel %vm1625, %v1712, %v1714
      %v1716 = vrot.slane %v445, 3
      %v1717 = vrot.slane %v446, 3
      %v1718 = vsel %vm1625, %v1716, %v1717
      %v1719 = vrot.slane %v447, 3
      %v1720 = vsel %vm1625, %v1717, %v1719
      %v1721 = vrot.slane %v448, 3
      %v1722 = vrot.slane %v449, 3
      %v1723 = vsel %vm1625, %v1721, %v1722
      %v1724 = vrot.slane %v450, 3
      %v1725 = vsel %vm1625, %v1722, %v1724
      %v1726 = vrot.slane %v451, 3
      %v1727 = vrot.slane %v452, 3
      %v1728 = vsel %vm1625, %v1726, %v1727
      %v1729 = vrot.slane %v453, 3
      %v1730 = vsel %vm1625, %v1727, %v1729
      %v1731 = vrot.slane %v454, 3
      %v1732 = vrot.slane %v455, 3
      %v1733 = vsel %vm1625, %v1731, %v1732
      %v1734 = vrot.slane %v456, 3
      %v1735 = vsel %vm1625, %v1732, %v1734
      %v1736 = vrot.slane %v457, 3
      %v1737 = vrot.slane %v458, 3
      %v1738 = vsel %vm1625, %v1736, %v1737
      %v1739 = vrot.slane %v459, 3
      %v1740 = vsel %vm1625, %v1737, %v1739
      %v1741 = vrot.slane %v460, 3
      %v1742 = vrot.slane %v461, 3
      %v1743 = vsel %vm1625, %v1741, %v1742
      %v1744 = vrot.slane %v462, 3
      %v1745 = vsel %vm1625, %v1742, %v1744
      %v1746 = vrot.slane %v463, 3
      %v1747 = vrot.slane %v464, 3
      %v1748 = vsel %vm1625, %v1746, %v1747
      %v1749 = vrot.slane %v465, 3
      %v1750 = vsel %vm1625, %v1747, %v1749
      %v1751 = vrot.slane %v466, 3
      %v1752 = vrot.slane %v467, 3
      %v1753 = vsel %vm1625, %v1751, %v1752
      %v1754 = vrot.slane %v468, 3
      %v1755 = vsel %vm1625, %v1752, %v1754
      %v1756 = vrot.slane %v469, 3
      %v1757 = vrot.slane %v470, 3
      %v1758 = vsel %vm1625, %v1756, %v1757
      %v1759 = vrot.slane %v471, 3
      %v1760 = vsel %vm1625, %v1757, %v1759
      %v1761 = vrot.slane %v472, 3
      %v1762 = vrot.slane %v473, 3
      %v1763 = vsel %vm1625, %v1761, %v1762
      %v1764 = vrot.slane %v474, 3
      %v1765 = vsel %vm1625, %v1762, %v1764
      %v1766 = vrot.slane %v475, 3
      %v1767 = vrot.slane %v476, 3
      %v1768 = vsel %vm1625, %v1766, %v1767
      %v1769 = vrot.slane %v477, 3
      %v1770 = vsel %vm1625, %v1767, %v1769
      %v1771 = vrot.slane %v478, 3
      %v1772 = vrot.slane %v479, 3
      %v1773 = vsel %vm1625, %v1771, %v1772
      %v1774 = vrot.slane %v480, 3
      %v1775 = vsel %vm1625, %v1772, %v1774
      %v1776 = vrot.slane %v481, 3
      %v1777 = vrot.slane %v482, 3
      %v1778 = vsel %vm1625, %v1776, %v1777
      %v1779 = vrot.slane %v483, 3
      %v1780 = vsel %vm1625, %v1777, %v1779
      %v1781 = vrot.slane %v484, 3
      %v1782 = vrot.slane %v485, 3
      %v1783 = vsel %vm1625, %v1781, %v1782
      %v1784 = vrot.slane %v486, 3
      %v1785 = vsel %vm1625, %v1782, %v1784
      %v1786 = vrot.slane %v487, 3
      %v1787 = vrot.slane %v488, 3
      %v1788 = vsel %vm1625, %v1786, %v1787
      %v1789 = vrot.slane %v489, 3
      %v1790 = vsel %vm1625, %v1787, %v1789
      %v1791 = vrot.slane %v490, 3
      %v1792 = vrot.slane %v491, 3
      %v1793 = vsel %vm1625, %v1791, %v1792
      %v1794 = vrot.slane %v492, 3
      %v1795 = vsel %vm1625, %v1792, %v1794
      %v1796 = vrot.slane %v493, 3
      %v1797 = vrot.slane %v494, 3
      %v1798 = vsel %vm1625, %v1796, %v1797
      %v1799 = vrot.slane %v495, 3
      %v1800 = vsel %vm1625, %v1797, %v1799
      %v1801 = vrot.slane %v496, 3
      %v1802 = vrot.slane %v497, 3
      %v1803 = vsel %vm1625, %v1801, %v1802
      %v1804 = vrot.slane %v498, 3
      %v1805 = vsel %vm1625, %v1802, %v1804
      %v1806 = vrot.slane %v499, 3
      %v1807 = vrot.slane %v500, 3
      %v1808 = vsel %vm1625, %v1806, %v1807
      %v1809 = vrot.slane %v501, 3
      %v1810 = vsel %vm1625, %v1807, %v1809
      %v1811 = vrot.slane %v502, 3
      %v1812 = vrot.slane %v503, 3
      %v1813 = vsel %vm1625, %v1811, %v1812
      %v1814 = vrot.slane %v504, 3
      %v1815 = vsel %vm1625, %v1812, %v1814
      %v1816 = vrot.slane %v505, 3
      %v1817 = vrot.slane %v506, 3
      %v1818 = vsel %vm1625, %v1816, %v1817
      %v1819 = vrot.slane %v507, 3
      %v1820 = vsel %vm1625, %v1817, %v1819
      %v1821 = vrot.slane %v508, 3
      %v1822 = vrot.slane %v509, 3
      %v1823 = vsel %vm1625, %v1821, %v1822
      %v1824 = vrot.slane %v510, 3
      %v1825 = vsel %vm1625, %v1822, %v1824
      %v1826 = vrot.slane %v511, 3
      %v1827 = vrot.slane %v512, 3
      %v1828 = vsel %vm1625, %v1826, %v1827
      %v1829 = vrot.slane %v513, 3
      %v1830 = vsel %vm1625, %v1827, %v1829
      %v1831 = vrot.slane %v514, 3
      %v1832 = vrot.slane %v515, 3
      %v1833 = vsel %vm1625, %v1831, %v1832
      %v1834 = vrot.slane %v516, 3
      %v1835 = vsel %vm1625, %v1832, %v1834
      %v1836 = vrot.slane %v517, 3
      %v1837 = vrot.slane %v518, 3
      %v1838 = vsel %vm1625, %v1836, %v1837
      %v1839 = vrot.slane %v519, 3
      %v1840 = vsel %vm1625, %v1837, %v1839
      %v1841 = vrot.slane %v520, 3
      %v1842 = vrot.slane %v521, 3
      %v1843 = vsel %vm1625, %v1841, %v1842
      %v1844 = vrot.slane %v522, 3
      %v1845 = vsel %vm1625, %v1842, %v1844
      %1846 = vrot.lane.b32.xlu0 %v1628, 96
      %v1847 = vpop.permute.xlu0 %1846
      %1848 = vrot.lane.b32.xlu0 %v1630, 96
      %v1849 = vpop.permute.xlu0 %1848
      %1850 = vrot.lane.b32.xlu0 %v1633, 96
      %v1851 = vpop.permute.xlu0 %1850
      %1852 = vrot.lane.b32.xlu0 %v1635, 96
      %v1853 = vpop.permute.xlu0 %1852
      %1854 = vrot.lane.b32.xlu0 %v1638, 96
      %v1855 = vpop.permute.xlu0 %1854
      %1856 = vrot.lane.b32.xlu0 %v1640, 96
      %v1857 = vpop.permute.xlu0 %1856
      %1858 = vrot.lane.b32.xlu0 %v1643, 96
      %v1859 = vpop.permute.xlu0 %1858
      %1860 = vrot.lane.b32.xlu0 %v1645, 96
      %v1861 = vpop.permute.xlu0 %1860
      %1862 = vrot.lane.b32.xlu0 %v1648, 96
      %v1863 = vpop.permute.xlu0 %1862
      %1864 = vrot.lane.b32.xlu0 %v1650, 96
      %v1865 = vpop.permute.xlu0 %1864
      %1866 = vrot.lane.b32.xlu0 %v1653, 96
      %v1867 = vpop.permute.xlu0 %1866
      %1868 = vrot.lane.b32.xlu0 %v1655, 96
      %v1869 = vpop.permute.xlu0 %1868
      %1870 = vrot.lane.b32.xlu0 %v1658, 96
      %v1871 = vpop.permute.xlu0 %1870
      %1872 = vrot.lane.b32.xlu0 %v1660, 96
      %v1873 = vpop.permute.xlu0 %1872
      %1874 = vrot.lane.b32.xlu0 %v1663, 96
      %v1875 = vpop.permute.xlu0 %1874
      %1876 = vrot.lane.b32.xlu0 %v1665, 96
      %v1877 = vpop.permute.xlu0 %1876
      %1878 = vrot.lane.b32.xlu0 %v1668, 96
      %v1879 = vpop.permute.xlu0 %1878
      %1880 = vrot.lane.b32.xlu0 %v1670, 96
      %v1881 = vpop.permute.xlu0 %1880
      %1882 = vrot.lane.b32.xlu0 %v1673, 96
      %v1883 = vpop.permute.xlu0 %1882
      %1884 = vrot.lane.b32.xlu0 %v1675, 96
      %v1885 = vpop.permute.xlu0 %1884
      %1886 = vrot.lane.b32.xlu0 %v1678, 96
      %v1887 = vpop.permute.xlu0 %1886
      %1888 = vrot.lane.b32.xlu0 %v1680, 96
      %v1889 = vpop.permute.xlu0 %1888
      %1890 = vrot.lane.b32.xlu0 %v1683, 96
      %v1891 = vpop.permute.xlu0 %1890
      %1892 = vrot.lane.b32.xlu0 %v1685, 96
      %v1893 = vpop.permute.xlu0 %1892
      %1894 = vrot.lane.b32.xlu0 %v1688, 96
      %v1895 = vpop.permute.xlu0 %1894
      %1896 = vrot.lane.b32.xlu0 %v1690, 96
      %v1897 = vpop.permute.xlu0 %1896
      %1898 = vrot.lane.b32.xlu0 %v1693, 96
      %v1899 = vpop.permute.xlu0 %1898
      %1900 = vrot.lane.b32.xlu0 %v1695, 96
      %v1901 = vpop.permute.xlu0 %1900
      %1902 = vrot.lane.b32.xlu0 %v1698, 96
      %v1903 = vpop.permute.xlu0 %1902
      %1904 = vrot.lane.b32.xlu0 %v1700, 96
      %v1905 = vpop.permute.xlu0 %1904
      %1906 = vrot.lane.b32.xlu0 %v1703, 96
      %v1907 = vpop.permute.xlu0 %1906
      %1908 = vrot.lane.b32.xlu0 %v1705, 96
      %v1909 = vpop.permute.xlu0 %1908
      %1910 = vrot.lane.b32.xlu0 %v1708, 96
      %v1911 = vpop.permute.xlu0 %1910
      %1912 = vrot.lane.b32.xlu0 %v1710, 96
      %v1913 = vpop.permute.xlu0 %1912
      %1914 = vrot.lane.b32.xlu0 %v1713, 96
      %v1915 = vpop.permute.xlu0 %1914
      %1916 = vrot.lane.b32.xlu0 %v1715, 96
      %v1917 = vpop.permute.xlu0 %1916
      %1918 = vrot.lane.b32.xlu0 %v1718, 96
      %v1919 = vpop.permute.xlu0 %1918
      %1920 = vrot.lane.b32.xlu0 %v1720, 96
      %v1921 = vpop.permute.xlu0 %1920
      %1922 = vrot.lane.b32.xlu0 %v1723, 96
      %v1923 = vpop.permute.xlu0 %1922
      %1924 = vrot.lane.b32.xlu0 %v1725, 96
      %v1925 = vpop.permute.xlu0 %1924
      %1926 = vrot.lane.b32.xlu0 %v1728, 96
      %v1927 = vpop.permute.xlu0 %1926
      %1928 = vrot.lane.b32.xlu0 %v1730, 96
      %v1929 = vpop.permute.xlu0 %1928
      %1930 = vrot.lane.b32.xlu0 %v1733, 96
      %v1931 = vpop.permute.xlu0 %1930
      %1932 = vrot.lane.b32.xlu0 %v1735, 96
      %v1933 = vpop.permute.xlu0 %1932
      %1934 = vrot.lane.b32.xlu0 %v1738, 96
      %v1935 = vpop.permute.xlu0 %1934
      %1936 = vrot.lane.b32.xlu0 %v1740, 96
      %v1937 = vpop.permute.xlu0 %1936
      %1938 = vrot.lane.b32.xlu0 %v1743, 96
      %v1939 = vpop.permute.xlu0 %1938
      %1940 = vrot.lane.b32.xlu0 %v1745, 96
      %v1941 = vpop.permute.xlu0 %1940
      %1942 = vrot.lane.b32.xlu0 %v1748, 96
      %v1943 = vpop.permute.xlu0 %1942
      %1944 = vrot.lane.b32.xlu0 %v1750, 96
      %v1945 = vpop.permute.xlu0 %1944
      %1946 = vrot.lane.b32.xlu0 %v1753, 96
      %v1947 = vpop.permute.xlu0 %1946
      %1948 = vrot.lane.b32.xlu0 %v1755, 96
      %v1949 = vpop.permute.xlu0 %1948
      %1950 = vrot.lane.b32.xlu0 %v1758, 96
      %v1951 = vpop.permute.xlu0 %1950
      %1952 = vrot.lane.b32.xlu0 %v1760, 96
      %v1953 = vpop.permute.xlu0 %1952
      %1954 = vrot.lane.b32.xlu0 %v1763, 96
      %v1955 = vpop.permute.xlu0 %1954
      %1956 = vrot.lane.b32.xlu0 %v1765, 96
      %v1957 = vpop.permute.xlu0 %1956
      %1958 = vrot.lane.b32.xlu0 %v1768, 96
      %v1959 = vpop.permute.xlu0 %1958
      %1960 = vrot.lane.b32.xlu0 %v1770, 96
      %v1961 = vpop.permute.xlu0 %1960
      %1962 = vrot.lane.b32.xlu0 %v1773, 96
      %v1963 = vpop.permute.xlu0 %1962
      %1964 = vrot.lane.b32.xlu0 %v1775, 96
      %v1965 = vpop.permute.xlu0 %1964
      %1966 = vrot.lane.b32.xlu0 %v1778, 96
      %v1967 = vpop.permute.xlu0 %1966
      %1968 = vrot.lane.b32.xlu0 %v1780, 96
      %v1969 = vpop.permute.xlu0 %1968
      %1970 = vrot.lane.b32.xlu0 %v1783, 96
      %v1971 = vpop.permute.xlu0 %1970
      %1972 = vrot.lane.b32.xlu0 %v1785, 96
      %v1973 = vpop.permute.xlu0 %1972
      %1974 = vrot.lane.b32.xlu0 %v1788, 96
      %v1975 = vpop.permute.xlu0 %1974
      %1976 = vrot.lane.b32.xlu0 %v1790, 96
      %v1977 = vpop.permute.xlu0 %1976
      %1978 = vrot.lane.b32.xlu0 %v1793, 96
      %v1979 = vpop.permute.xlu0 %1978
      %1980 = vrot.lane.b32.xlu0 %v1795, 96
      %v1981 = vpop.permute.xlu0 %1980
      %1982 = vrot.lane.b32.xlu0 %v1798, 96
      %v1983 = vpop.permute.xlu0 %1982
      %1984 = vrot.lane.b32.xlu0 %v1800, 96
      %v1985 = vpop.permute.xlu0 %1984
      %1986 = vrot.lane.b32.xlu0 %v1803, 96
      %v1987 = vpop.permute.xlu0 %1986
      %1988 = vrot.lane.b32.xlu0 %v1805, 96
      %v1989 = vpop.permute.xlu0 %1988
      %1990 = vrot.lane.b32.xlu0 %v1808, 96
      %v1991 = vpop.permute.xlu0 %1990
      %1992 = vrot.lane.b32.xlu0 %v1810, 96
      %v1993 = vpop.permute.xlu0 %1992
      %1994 = vrot.lane.b32.xlu0 %v1813, 96
      %v1995 = vpop.permute.xlu0 %1994
      %1996 = vrot.lane.b32.xlu0 %v1815, 96
      %v1997 = vpop.permute.xlu0 %1996
      %1998 = vrot.lane.b32.xlu0 %v1818, 96
      %v1999 = vpop.permute.xlu0 %1998
      %2000 = vrot.lane.b32.xlu0 %v1820, 96
      %v2001 = vpop.permute.xlu0 %2000
      %2002 = vrot.lane.b32.xlu0 %v1823, 96
      %v2003 = vpop.permute.xlu0 %2002
      %2004 = vrot.lane.b32.xlu0 %v1825, 96
      %v2005 = vpop.permute.xlu0 %2004
      %2006 = vrot.lane.b32.xlu0 %v1828, 96
      %v2007 = vpop.permute.xlu0 %2006
      %2008 = vrot.lane.b32.xlu0 %v1830, 96
      %v2009 = vpop.permute.xlu0 %2008
      %2010 = vrot.lane.b32.xlu0 %v1833, 96
      %v2011 = vpop.permute.xlu0 %2010
      %2012 = vrot.lane.b32.xlu0 %v1835, 96
      %v2013 = vpop.permute.xlu0 %2012
      %2014 = vrot.lane.b32.xlu0 %v1838, 96
      %v2015 = vpop.permute.xlu0 %2014
      %2016 = vrot.lane.b32.xlu0 %v1840, 96
      %v2017 = vpop.permute.xlu0 %2016
      %2018 = vrot.lane.b32.xlu0 %v1843, 96
      %v2019 = vpop.permute.xlu0 %2018
      %2020 = vrot.lane.b32.xlu0 %v1845, 96
      %v2021 = vpop.permute.xlu0 %2020
      %vm2110 = vcmask 1043456
      %v2111 = vrot.slane %v391, 4
      %v2112 = vrot.slane %v392, 4
      %v2113 = vsel %vm2110, %v2111, %v2112
      %v2114 = vrot.slane %v393, 4
      %v2115 = vsel %vm2110, %v2112, %v2114
      %v2116 = vrot.slane %v394, 4
      %v2117 = vrot.slane %v395, 4
      %v2118 = vsel %vm2110, %v2116, %v2117
      %v2119 = vrot.slane %v396, 4
      %v2120 = vsel %vm2110, %v2117, %v2119
      %v2121 = vrot.slane %v397, 4
      %v2122 = vrot.slane %v398, 4
      %v2123 = vsel %vm2110, %v2121, %v2122
      %v2124 = vrot.slane %v399, 4
      %v2125 = vsel %vm2110, %v2122, %v2124
      %v2126 = vrot.slane %v400, 4
      %v2127 = vrot.slane %v401, 4
      %v2128 = vsel %vm2110, %v2126, %v2127
      %v2129 = vrot.slane %v402, 4
      %v2130 = vsel %vm2110, %v2127, %v2129
      %v2131 = vrot.slane %v403, 4
      %v2132 = vrot.slane %v404, 4
      %v2133 = vsel %vm2110, %v2131, %v2132
      %v2134 = vrot.slane %v405, 4
      %v2135 = vsel %vm2110, %v2132, %v2134
      %v2136 = vrot.slane %v406, 4
      %v2137 = vrot.slane %v407, 4
      %v2138 = vsel %vm2110, %v2136, %v2137
      %v2139 = vrot.slane %v408, 4
      %v2140 = vsel %vm2110, %v2137, %v2139
      %v2141 = vrot.slane %v409, 4
      %v2142 = vrot.slane %v410, 4
      %v2143 = vsel %vm2110, %v2141, %v2142
      %v2144 = vrot.slane %v411, 4
      %v2145 = vsel %vm2110, %v2142, %v2144
      %v2146 = vrot.slane %v412, 4
      %v2147 = vrot.slane %v413, 4
      %v2148 = vsel %vm2110, %v2146, %v2147
      %v2149 = vrot.slane %v414, 4
      %v2150 = vsel %vm2110, %v2147, %v2149
      %v2151 = vrot.slane %v415, 4
      %v2152 = vrot.slane %v416, 4
      %v2153 = vsel %vm2110, %v2151, %v2152
      %v2154 = vrot.slane %v417, 4
      %v2155 = vsel %vm2110, %v2152, %v2154
      %v2156 = vrot.slane %v418, 4
      %v2157 = vrot.slane %v419, 4
      %v2158 = vsel %vm2110, %v2156, %v2157
      %v2159 = vrot.slane %v420, 4
      %v2160 = vsel %vm2110, %v2157, %v2159
      %v2161 = vrot.slane %v421, 4
      %v2162 = vrot.slane %v422, 4
      %v2163 = vsel %vm2110, %v2161, %v2162
      %v2164 = vrot.slane %v423, 4
      %v2165 = vsel %vm2110, %v2162, %v2164
      %v2166 = vrot.slane %v424, 4
      %v2167 = vrot.slane %v425, 4
      %v2168 = vsel %vm2110, %v2166, %v2167
      %v2169 = vrot.slane %v426, 4
      %v2170 = vsel %vm2110, %v2167, %v2169
      %v2171 = vrot.slane %v427, 4
      %v2172 = vrot.slane %v428, 4
      %v2173 = vsel %vm2110, %v2171, %v2172
      %v2174 = vrot.slane %v429, 4
      %v2175 = vsel %vm2110, %v2172, %v2174
      %v2176 = vrot.slane %v430, 4
      %v2177 = vrot.slane %v431, 4
      %v2178 = vsel %vm2110, %v2176, %v2177
      %v2179 = vrot.slane %v432, 4
      %v2180 = vsel %vm2110, %v2177, %v2179
      %v2181 = vrot.slane %v433, 4
      %v2182 = vrot.slane %v434, 4
      %v2183 = vsel %vm2110, %v2181, %v2182
      %v2184 = vrot.slane %v435, 4
      %v2185 = vsel %vm2110, %v2182, %v2184
      %v2186 = vrot.slane %v436, 4
      %v2187 = vrot.slane %v437, 4
      %v2188 = vsel %vm2110, %v2186, %v2187
      %v2189 = vrot.slane %v438, 4
      %v2190 = vsel %vm2110, %v2187, %v2189
      %v2191 = vrot.slane %v439, 4
      %v2192 = vrot.slane %v440, 4
      %v2193 = vsel %vm2110, %v2191, %v2192
      %v2194 = vrot.slane %v441, 4
      %v2195 = vsel %vm2110, %v2192, %v2194
      %v2196 = vrot.slane %v442, 4
      %v2197 = vrot.slane %v443, 4
      %v2198 = vsel %vm2110, %v2196, %v2197
      %v2199 = vrot.slane %v444, 4
      %v2200 = vsel %vm2110, %v2197, %v2199
      %v2201 = vrot.slane %v445, 4
      %v2202 = vrot.slane %v446, 4
      %v2203 = vsel %vm2110, %v2201, %v2202
      %v2204 = vrot.slane %v447, 4
      %v2205 = vsel %vm2110, %v2202, %v2204
      %v2206 = vrot.slane %v448, 4
      %v2207 = vrot.slane %v449, 4
      %v2208 = vsel %vm2110, %v2206, %v2207
      %v2209 = vrot.slane %v450, 4
      %v2210 = vsel %vm2110, %v2207, %v2209
      %v2211 = vrot.slane %v451, 4
      %v2212 = vrot.slane %v452, 4
      %v2213 = vsel %vm2110, %v2211, %v2212
      %v2214 = vrot.slane %v453, 4
      %v2215 = vsel %vm2110, %v2212, %v2214
      %v2216 = vrot.slane %v454, 4
      %v2217 = vrot.slane %v455, 4
      %v2218 = vsel %vm2110, %v2216, %v2217
      %v2219 = vrot.slane %v456, 4
      %v2220 = vsel %vm2110, %v2217, %v2219
      %v2221 = vrot.slane %v457, 4
      %v2222 = vrot.slane %v458, 4
      %v2223 = vsel %vm2110, %v2221, %v2222
      %v2224 = vrot.slane %v459, 4
      %v2225 = vsel %vm2110, %v2222, %v2224
      %v2226 = vrot.slane %v460, 4
      %v2227 = vrot.slane %v461, 4
      %v2228 = vsel %vm2110, %v2226, %v2227
      %v2229 = vrot.slane %v462, 4
      %v2230 = vsel %vm2110, %v2227, %v2229
      %v2231 = vrot.slane %v463, 4
      %v2232 = vrot.slane %v464, 4
      %v2233 = vsel %vm2110, %v2231, %v2232
      %v2234 = vrot.slane %v465, 4
      %v2235 = vsel %vm2110, %v2232, %v2234
      %v2236 = vrot.slane %v466, 4
      %v2237 = vrot.slane %v467, 4
      %v2238 = vsel %vm2110, %v2236, %v2237
      %v2239 = vrot.slane %v468, 4
      %v2240 = vsel %vm2110, %v2237, %v2239
      %v2241 = vrot.slane %v469, 4
      %v2242 = vrot.slane %v470, 4
      %v2243 = vsel %vm2110, %v2241, %v2242
      %v2244 = vrot.slane %v471, 4
      %v2245 = vsel %vm2110, %v2242, %v2244
      %v2246 = vrot.slane %v472, 4
      %v2247 = vrot.slane %v473, 4
      %v2248 = vsel %vm2110, %v2246, %v2247
      %v2249 = vrot.slane %v474, 4
      %v2250 = vsel %vm2110, %v2247, %v2249
      %v2251 = vrot.slane %v475, 4
      %v2252 = vrot.slane %v476, 4
      %v2253 = vsel %vm2110, %v2251, %v2252
      %v2254 = vrot.slane %v477, 4
      %v2255 = vsel %vm2110, %v2252, %v2254
      %v2256 = vrot.slane %v478, 4
      %v2257 = vrot.slane %v479, 4
      %v2258 = vsel %vm2110, %v2256, %v2257
      %v2259 = vrot.slane %v480, 4
      %v2260 = vsel %vm2110, %v2257, %v2259
      %v2261 = vrot.slane %v481, 4
      %v2262 = vrot.slane %v482, 4
      %v2263 = vsel %vm2110, %v2261, %v2262
      %v2264 = vrot.slane %v483, 4
      %v2265 = vsel %vm2110, %v2262, %v2264
      %v2266 = vrot.slane %v484, 4
      %v2267 = vrot.slane %v485, 4
      %v2268 = vsel %vm2110, %v2266, %v2267
      %v2269 = vrot.slane %v486, 4
      %v2270 = vsel %vm2110, %v2267, %v2269
      %v2271 = vrot.slane %v487, 4
      %v2272 = vrot.slane %v488, 4
      %v2273 = vsel %vm2110, %v2271, %v2272
      %v2274 = vrot.slane %v489, 4
      %v2275 = vsel %vm2110, %v2272, %v2274
      %v2276 = vrot.slane %v490, 4
      %v2277 = vrot.slane %v491, 4
      %v2278 = vsel %vm2110, %v2276, %v2277
      %v2279 = vrot.slane %v492, 4
      %v2280 = vsel %vm2110, %v2277, %v2279
      %v2281 = vrot.slane %v493, 4
      %v2282 = vrot.slane %v494, 4
      %v2283 = vsel %vm2110, %v2281, %v2282
      %v2284 = vrot.slane %v495, 4
      %v2285 = vsel %vm2110, %v2282, %v2284
      %v2286 = vrot.slane %v496, 4
      %v2287 = vrot.slane %v497, 4
      %v2288 = vsel %vm2110, %v2286, %v2287
      %v2289 = vrot.slane %v498, 4
      %v2290 = vsel %vm2110, %v2287, %v2289
      %v2291 = vrot.slane %v499, 4
      %v2292 = vrot.slane %v500, 4
      %v2293 = vsel %vm2110, %v2291, %v2292
      %v2294 = vrot.slane %v501, 4
      %v2295 = vsel %vm2110, %v2292, %v2294
      %v2296 = vrot.slane %v502, 4
      %v2297 = vrot.slane %v503, 4
      %v2298 = vsel %vm2110, %v2296, %v2297
      %v2299 = vrot.slane %v504, 4
      %v2300 = vsel %vm2110, %v2297, %v2299
      %v2301 = vrot.slane %v505, 4
      %v2302 = vrot.slane %v506, 4
      %v2303 = vsel %vm2110, %v2301, %v2302
      %v2304 = vrot.slane %v507, 4
      %v2305 = vsel %vm2110, %v2302, %v2304
      %v2306 = vrot.slane %v508, 4
      %v2307 = vrot.slane %v509, 4
      %v2308 = vsel %vm2110, %v2306, %v2307
      %v2309 = vrot.slane %v510, 4
      %v2310 = vsel %vm2110, %v2307, %v2309
      %v2311 = vrot.slane %v511, 4
      %v2312 = vrot.slane %v512, 4
      %v2313 = vsel %vm2110, %v2311, %v2312
      %v2314 = vrot.slane %v513, 4
      %v2315 = vsel %vm2110, %v2312, %v2314
      %v2316 = vrot.slane %v514, 4
      %v2317 = vrot.slane %v515, 4
      %v2318 = vsel %vm2110, %v2316, %v2317
      %v2319 = vrot.slane %v516, 4
      %v2320 = vsel %vm2110, %v2317, %v2319
      %v2321 = vrot.slane %v517, 4
      %v2322 = vrot.slane %v518, 4
      %v2323 = vsel %vm2110, %v2321, %v2322
      %v2324 = vrot.slane %v519, 4
      %v2325 = vsel %vm2110, %v2322, %v2324
      %v2326 = vrot.slane %v520, 4
      %v2327 = vrot.slane %v521, 4
      %v2328 = vsel %vm2110, %v2326, %v2327
      %v2329 = vrot.slane %v522, 4
      %v2330 = vsel %vm2110, %v2327, %v2329
      %vm2419 = vcmask 1042432
      %v2420 = vrot.slane %v391, 5
      %v2421 = vrot.slane %v392, 5
      %v2422 = vsel %vm2419, %v2420, %v2421
      %v2423 = vrot.slane %v393, 5
      %v2424 = vsel %vm2419, %v2421, %v2423
      %v2425 = vrot.slane %v394, 5
      %v2426 = vrot.slane %v395, 5
      %v2427 = vsel %vm2419, %v2425, %v2426
      %v2428 = vrot.slane %v396, 5
      %v2429 = vsel %vm2419, %v2426, %v2428
      %v2430 = vrot.slane %v397, 5
      %v2431 = vrot.slane %v398, 5
      %v2432 = vsel %vm2419, %v2430, %v2431
      %v2433 = vrot.slane %v399, 5
      %v2434 = vsel %vm2419, %v2431, %v2433
      %v2435 = vrot.slane %v400, 5
      %v2436 = vrot.slane %v401, 5
      %v2437 = vsel %vm2419, %v2435, %v2436
      %v2438 = vrot.slane %v402, 5
      %v2439 = vsel %vm2419, %v2436, %v2438
      %v2440 = vrot.slane %v403, 5
      %v2441 = vrot.slane %v404, 5
      %v2442 = vsel %vm2419, %v2440, %v2441
      %v2443 = vrot.slane %v405, 5
      %v2444 = vsel %vm2419, %v2441, %v2443
      %v2445 = vrot.slane %v406, 5
      %v2446 = vrot.slane %v407, 5
      %v2447 = vsel %vm2419, %v2445, %v2446
      %v2448 = vrot.slane %v408, 5
      %v2449 = vsel %vm2419, %v2446, %v2448
      %v2450 = vrot.slane %v409, 5
      %v2451 = vrot.slane %v410, 5
      %v2452 = vsel %vm2419, %v2450, %v2451
      %v2453 = vrot.slane %v411, 5
      %v2454 = vsel %vm2419, %v2451, %v2453
      %v2455 = vrot.slane %v412, 5
      %v2456 = vrot.slane %v413, 5
      %v2457 = vsel %vm2419, %v2455, %v2456
      %v2458 = vrot.slane %v414, 5
      %v2459 = vsel %vm2419, %v2456, %v2458
      %v2460 = vrot.slane %v415, 5
      %v2461 = vrot.slane %v416, 5
      %v2462 = vsel %vm2419, %v2460, %v2461
      %v2463 = vrot.slane %v417, 5
      %v2464 = vsel %vm2419, %v2461, %v2463
      %v2465 = vrot.slane %v418, 5
      %v2466 = vrot.slane %v419, 5
      %v2467 = vsel %vm2419, %v2465, %v2466
      %v2468 = vrot.slane %v420, 5
      %v2469 = vsel %vm2419, %v2466, %v2468
      %v2470 = vrot.slane %v421, 5
      %v2471 = vrot.slane %v422, 5
      %v2472 = vsel %vm2419, %v2470, %v2471
      %v2473 = vrot.slane %v423, 5
      %v2474 = vsel %vm2419, %v2471, %v2473
      %v2475 = vrot.slane %v424, 5
      %v2476 = vrot.slane %v425, 5
      %v2477 = vsel %vm2419, %v2475, %v2476
      %v2478 = vrot.slane %v426, 5
      %v2479 = vsel %vm2419, %v2476, %v2478
      %v2480 = vrot.slane %v427, 5
      %v2481 = vrot.slane %v428, 5
      %v2482 = vsel %vm2419, %v2480, %v2481
      %v2483 = vrot.slane %v429, 5
      %v2484 = vsel %vm2419, %v2481, %v2483
      %v2485 = vrot.slane %v430, 5
      %v2486 = vrot.slane %v431, 5
      %v2487 = vsel %vm2419, %v2485, %v2486
      %v2488 = vrot.slane %v432, 5
      %v2489 = vsel %vm2419, %v2486, %v2488
      %v2490 = vrot.slane %v433, 5
      %v2491 = vrot.slane %v434, 5
      %v2492 = vsel %vm2419, %v2490, %v2491
      %v2493 = vrot.slane %v435, 5
      %v2494 = vsel %vm2419, %v2491, %v2493
      %v2495 = vrot.slane %v436, 5
      %v2496 = vrot.slane %v437, 5
      %v2497 = vsel %vm2419, %v2495, %v2496
      %v2498 = vrot.slane %v438, 5
      %v2499 = vsel %vm2419, %v2496, %v2498
      %v2500 = vrot.slane %v439, 5
      %v2501 = vrot.slane %v440, 5
      %v2502 = vsel %vm2419, %v2500, %v2501
      %v2503 = vrot.slane %v441, 5
      %v2504 = vsel %vm2419, %v2501, %v2503
      %v2505 = vrot.slane %v442, 5
      %v2506 = vrot.slane %v443, 5
      %v2507 = vsel %vm2419, %v2505, %v2506
      %v2508 = vrot.slane %v444, 5
      %v2509 = vsel %vm2419, %v2506, %v2508
      %v2510 = vrot.slane %v445, 5
      %v2511 = vrot.slane %v446, 5
      %v2512 = vsel %vm2419, %v2510, %v2511
      %v2513 = vrot.slane %v447, 5
      %v2514 = vsel %vm2419, %v2511, %v2513
      %v2515 = vrot.slane %v448, 5
      %v2516 = vrot.slane %v449, 5
      %v2517 = vsel %vm2419, %v2515, %v2516
      %v2518 = vrot.slane %v450, 5
      %v2519 = vsel %vm2419, %v2516, %v2518
      %v2520 = vrot.slane %v451, 5
      %v2521 = vrot.slane %v452, 5
      %v2522 = vsel %vm2419, %v2520, %v2521
      %v2523 = vrot.slane %v453, 5
      %v2524 = vsel %vm2419, %v2521, %v2523
      %v2525 = vrot.slane %v454, 5
      %v2526 = vrot.slane %v455, 5
      %v2527 = vsel %vm2419, %v2525, %v2526
      %v2528 = vrot.slane %v456, 5
      %v2529 = vsel %vm2419, %v2526, %v2528
      %v2530 = vrot.slane %v457, 5
      %v2531 = vrot.slane %v458, 5
      %v2532 = vsel %vm2419, %v2530, %v2531
      %v2533 = vrot.slane %v459, 5
      %v2534 = vsel %vm2419, %v2531, %v2533
      %v2535 = vrot.slane %v460, 5
      %v2536 = vrot.slane %v461, 5
      %v2537 = vsel %vm2419, %v2535, %v2536
      %v2538 = vrot.slane %v462, 5
      %v2539 = vsel %vm2419, %v2536, %v2538
      %v2540 = vrot.slane %v463, 5
      %v2541 = vrot.slane %v464, 5
      %v2542 = vsel %vm2419, %v2540, %v2541
      %v2543 = vrot.slane %v465, 5
      %v2544 = vsel %vm2419, %v2541, %v2543
      %v2545 = vrot.slane %v466, 5
      %v2546 = vrot.slane %v467, 5
      %v2547 = vsel %vm2419, %v2545, %v2546
      %v2548 = vrot.slane %v468, 5
      %v2549 = vsel %vm2419, %v2546, %v2548
      %v2550 = vrot.slane %v469, 5
      %v2551 = vrot.slane %v470, 5
      %v2552 = vsel %vm2419, %v2550, %v2551
      %v2553 = vrot.slane %v471, 5
      %v2554 = vsel %vm2419, %v2551, %v2553
      %v2555 = vrot.slane %v472, 5
      %v2556 = vrot.slane %v473, 5
      %v2557 = vsel %vm2419, %v2555, %v2556
      %v2558 = vrot.slane %v474, 5
      %v2559 = vsel %vm2419, %v2556, %v2558
      %v2560 = vrot.slane %v475, 5
      %v2561 = vrot.slane %v476, 5
      %v2562 = vsel %vm2419, %v2560, %v2561
      %v2563 = vrot.slane %v477, 5
      %v2564 = vsel %vm2419, %v2561, %v2563
      %v2565 = vrot.slane %v478, 5
      %v2566 = vrot.slane %v479, 5
      %v2567 = vsel %vm2419, %v2565, %v2566
      %v2568 = vrot.slane %v480, 5
      %v2569 = vsel %vm2419, %v2566, %v2568
      %v2570 = vrot.slane %v481, 5
      %v2571 = vrot.slane %v482, 5
      %v2572 = vsel %vm2419, %v2570, %v2571
      %v2573 = vrot.slane %v483, 5
      %v2574 = vsel %vm2419, %v2571, %v2573
      %v2575 = vrot.slane %v484, 5
      %v2576 = vrot.slane %v485, 5
      %v2577 = vsel %vm2419, %v2575, %v2576
      %v2578 = vrot.slane %v486, 5
      %v2579 = vsel %vm2419, %v2576, %v2578
      %v2580 = vrot.slane %v487, 5
      %v2581 = vrot.slane %v488, 5
      %v2582 = vsel %vm2419, %v2580, %v2581
      %v2583 = vrot.slane %v489, 5
      %v2584 = vsel %vm2419, %v2581, %v2583
      %v2585 = vrot.slane %v490, 5
      %v2586 = vrot.slane %v491, 5
      %v2587 = vsel %vm2419, %v2585, %v2586
      %v2588 = vrot.slane %v492, 5
      %v2589 = vsel %vm2419, %v2586, %v2588
      %v2590 = vrot.slane %v493, 5
      %v2591 = vrot.slane %v494, 5
      %v2592 = vsel %vm2419, %v2590, %v2591
      %v2593 = vrot.slane %v495, 5
      %v2594 = vsel %vm2419, %v2591, %v2593
      %v2595 = vrot.slane %v496, 5
      %v2596 = vrot.slane %v497, 5
      %v2597 = vsel %vm2419, %v2595, %v2596
      %v2598 = vrot.slane %v498, 5
      %v2599 = vsel %vm2419, %v2596, %v2598
      %v2600 = vrot.slane %v499, 5
      %v2601 = vrot.slane %v500, 5
      %v2602 = vsel %vm2419, %v2600, %v2601
      %v2603 = vrot.slane %v501, 5
      %v2604 = vsel %vm2419, %v2601, %v2603
      %v2605 = vrot.slane %v502, 5
      %v2606 = vrot.slane %v503, 5
      %v2607 = vsel %vm2419, %v2605, %v2606
      %v2608 = vrot.slane %v504, 5
      %v2609 = vsel %vm2419, %v2606, %v2608
      %v2610 = vrot.slane %v505, 5
      %v2611 = vrot.slane %v506, 5
      %v2612 = vsel %vm2419, %v2610, %v2611
      %v2613 = vrot.slane %v507, 5
      %v2614 = vsel %vm2419, %v2611, %v2613
      %v2615 = vrot.slane %v508, 5
      %v2616 = vrot.slane %v509, 5
      %v2617 = vsel %vm2419, %v2615, %v2616
      %v2618 = vrot.slane %v510, 5
      %v2619 = vsel %vm2419, %v2616, %v2618
      %v2620 = vrot.slane %v511, 5
      %v2621 = vrot.slane %v512, 5
      %v2622 = vsel %vm2419, %v2620, %v2621
      %v2623 = vrot.slane %v513, 5
      %v2624 = vsel %vm2419, %v2621, %v2623
      %v2625 = vrot.slane %v514, 5
      %v2626 = vrot.slane %v515, 5
      %v2627 = vsel %vm2419, %v2625, %v2626
      %v2628 = vrot.slane %v516, 5
      %v2629 = vsel %vm2419, %v2626, %v2628
      %v2630 = vrot.slane %v517, 5
      %v2631 = vrot.slane %v518, 5
      %v2632 = vsel %vm2419, %v2630, %v2631
      %v2633 = vrot.slane %v519, 5
      %v2634 = vsel %vm2419, %v2631, %v2633
      %v2635 = vrot.slane %v520, 5
      %v2636 = vrot.slane %v521, 5
      %v2637 = vsel %vm2419, %v2635, %v2636
      %v2638 = vrot.slane %v522, 5
      %v2639 = vsel %vm2419, %v2636, %v2638
      %2640 = vrot.lane.b32.xlu0 %v2422, 32
      %v2641 = vpop.permute.xlu0 %2640
      %2642 = vrot.lane.b32.xlu0 %v2424, 32
      %v2643 = vpop.permute.xlu0 %2642
      %2644 = vrot.lane.b32.xlu0 %v2427, 32
      %v2645 = vpop.permute.xlu0 %2644
      %2646 = vrot.lane.b32.xlu0 %v2429, 32
      %v2647 = vpop.permute.xlu0 %2646
      %2648 = vrot.lane.b32.xlu0 %v2432, 32
      %v2649 = vpop.permute.xlu0 %2648
      %2650 = vrot.lane.b32.xlu0 %v2434, 32
      %v2651 = vpop.permute.xlu0 %2650
      %2652 = vrot.lane.b32.xlu0 %v2437, 32
      %v2653 = vpop.permute.xlu0 %2652
      %2654 = vrot.lane.b32.xlu0 %v2439, 32
      %v2655 = vpop.permute.xlu0 %2654
      %2656 = vrot.lane.b32.xlu0 %v2442, 32
      %v2657 = vpop.permute.xlu0 %2656
      %2658 = vrot.lane.b32.xlu0 %v2444, 32
      %v2659 = vpop.permute.xlu0 %2658
      %2660 = vrot.lane.b32.xlu0 %v2447, 32
      %v2661 = vpop.permute.xlu0 %2660
      %2662 = vrot.lane.b32.xlu0 %v2449, 32
      %v2663 = vpop.permute.xlu0 %2662
      %2664 = vrot.lane.b32.xlu0 %v2452, 32
      %v2665 = vpop.permute.xlu0 %2664
      %2666 = vrot.lane.b32.xlu0 %v2454, 32
      %v2667 = vpop.permute.xlu0 %2666
      %2668 = vrot.lane.b32.xlu0 %v2457, 32
      %v2669 = vpop.permute.xlu0 %2668
      %2670 = vrot.lane.b32.xlu0 %v2459, 32
      %v2671 = vpop.permute.xlu0 %2670
      %2672 = vrot.lane.b32.xlu0 %v2462, 32
      %v2673 = vpop.permute.xlu0 %2672
      %2674 = vrot.lane.b32.xlu0 %v2464, 32
      %v2675 = vpop.permute.xlu0 %2674
      %2676 = vrot.lane.b32.xlu0 %v2467, 32
      %v2677 = vpop.permute.xlu0 %2676
      %2678 = vrot.lane.b32.xlu0 %v2469, 32
      %v2679 = vpop.permute.xlu0 %2678
      %2680 = vrot.lane.b32.xlu0 %v2472, 32
      %v2681 = vpop.permute.xlu0 %2680
      %2682 = vrot.lane.b32.xlu0 %v2474, 32
      %v2683 = vpop.permute.xlu0 %2682
      %2684 = vrot.lane.b32.xlu0 %v2477, 32
      %v2685 = vpop.permute.xlu0 %2684
      %2686 = vrot.lane.b32.xlu0 %v2479, 32
      %v2687 = vpop.permute.xlu0 %2686
      %2688 = vrot.lane.b32.xlu0 %v2482, 32
      %v2689 = vpop.permute.xlu0 %2688
      %2690 = vrot.lane.b32.xlu0 %v2484, 32
      %v2691 = vpop.permute.xlu0 %2690
      %2692 = vrot.lane.b32.xlu0 %v2487, 32
      %v2693 = vpop.permute.xlu0 %2692
      %2694 = vrot.lane.b32.xlu0 %v2489, 32
      %v2695 = vpop.permute.xlu0 %2694
      %2696 = vrot.lane.b32.xlu0 %v2492, 32
      %v2697 = vpop.permute.xlu0 %2696
      %2698 = vrot.lane.b32.xlu0 %v2494, 32
      %v2699 = vpop.permute.xlu0 %2698
      %2700 = vrot.lane.b32.xlu0 %v2497, 32
      %v2701 = vpop.permute.xlu0 %2700
      %2702 = vrot.lane.b32.xlu0 %v2499, 32
      %v2703 = vpop.permute.xlu0 %2702
      %2704 = vrot.lane.b32.xlu0 %v2502, 32
      %v2705 = vpop.permute.xlu0 %2704
      %2706 = vrot.lane.b32.xlu0 %v2504, 32
      %v2707 = vpop.permute.xlu0 %2706
      %2708 = vrot.lane.b32.xlu0 %v2507, 32
      %v2709 = vpop.permute.xlu0 %2708
      %2710 = vrot.lane.b32.xlu0 %v2509, 32
      %v2711 = vpop.permute.xlu0 %2710
      %2712 = vrot.lane.b32.xlu0 %v2512, 32
      %v2713 = vpop.permute.xlu0 %2712
      %2714 = vrot.lane.b32.xlu0 %v2514, 32
      %v2715 = vpop.permute.xlu0 %2714
      %2716 = vrot.lane.b32.xlu0 %v2517, 32
      %v2717 = vpop.permute.xlu0 %2716
      %2718 = vrot.lane.b32.xlu0 %v2519, 32
      %v2719 = vpop.permute.xlu0 %2718
      %2720 = vrot.lane.b32.xlu0 %v2522, 32
      %v2721 = vpop.permute.xlu0 %2720
      %2722 = vrot.lane.b32.xlu0 %v2524, 32
      %v2723 = vpop.permute.xlu0 %2722
      %2724 = vrot.lane.b32.xlu0 %v2527, 32
      %v2725 = vpop.permute.xlu0 %2724
      %2726 = vrot.lane.b32.xlu0 %v2529, 32
      %v2727 = vpop.permute.xlu0 %2726
      %2728 = vrot.lane.b32.xlu0 %v2532, 32
      %v2729 = vpop.permute.xlu0 %2728
      %2730 = vrot.lane.b32.xlu0 %v2534, 32
      %v2731 = vpop.permute.xlu0 %2730
      %2732 = vrot.lane.b32.xlu0 %v2537, 32
      %v2733 = vpop.permute.xlu0 %2732
      %2734 = vrot.lane.b32.xlu0 %v2539, 32
      %v2735 = vpop.permute.xlu0 %2734
      %2736 = vrot.lane.b32.xlu0 %v2542, 32
      %v2737 = vpop.permute.xlu0 %2736
      %2738 = vrot.lane.b32.xlu0 %v2544, 32
      %v2739 = vpop.permute.xlu0 %2738
      %2740 = vrot.lane.b32.xlu0 %v2547, 32
      %v2741 = vpop.permute.xlu0 %2740
      %2742 = vrot.lane.b32.xlu0 %v2549, 32
      %v2743 = vpop.permute.xlu0 %2742
      %2744 = vrot.lane.b32.xlu0 %v2552, 32
      %v2745 = vpop.permute.xlu0 %2744
      %2746 = vrot.lane.b32.xlu0 %v2554, 32
      %v2747 = vpop.permute.xlu0 %2746
      %2748 = vrot.lane.b32.xlu0 %v2557, 32
      %v2749 = vpop.permute.xlu0 %2748
      %2750 = vrot.lane.b32.xlu0 %v2559, 32
      %v2751 = vpop.permute.xlu0 %2750
      %2752 = vrot.lane.b32.xlu0 %v2562, 32
      %v2753 = vpop.permute.xlu0 %2752
      %2754 = vrot.lane.b32.xlu0 %v2564, 32
      %v2755 = vpop.permute.xlu0 %2754
      %2756 = vrot.lane.b32.xlu0 %v2567, 32
      %v2757 = vpop.permute.xlu0 %2756
      %2758 = vrot.lane.b32.xlu0 %v2569, 32
      %v2759 = vpop.permute.xlu0 %2758
      %2760 = vrot.lane.b32.xlu0 %v2572, 32
      %v2761 = vpop.permute.xlu0 %2760
      %2762 = vrot.lane.b32.xlu0 %v2574, 32
      %v2763 = vpop.permute.xlu0 %2762
      %2764 = vrot.lane.b32.xlu0 %v2577, 32
      %v2765 = vpop.permute.xlu0 %2764
      %2766 = vrot.lane.b32.xlu0 %v2579, 32
      %v2767 = vpop.permute.xlu0 %2766
      %2768 = vrot.lane.b32.xlu0 %v2582, 32
      %v2769 = vpop.permute.xlu0 %2768
      %2770 = vrot.lane.b32.xlu0 %v2584, 32
      %v2771 = vpop.permute.xlu0 %2770
      %2772 = vrot.lane.b32.xlu0 %v2587, 32
      %v2773 = vpop.permute.xlu0 %2772
      %2774 = vrot.lane.b32.xlu0 %v2589, 32
      %v2775 = vpop.permute.xlu0 %2774
      %2776 = vrot.lane.b32.xlu0 %v2592, 32
      %v2777 = vpop.permute.xlu0 %2776
      %2778 = vrot.lane.b32.xlu0 %v2594, 32
      %v2779 = vpop.permute.xlu0 %2778
      %2780 = vrot.lane.b32.xlu0 %v2597, 32
      %v2781 = vpop.permute.xlu0 %2780
      %2782 = vrot.lane.b32.xlu0 %v2599, 32
      %v2783 = vpop.permute.xlu0 %2782
      %2784 = vrot.lane.b32.xlu0 %v2602, 32
      %v2785 = vpop.permute.xlu0 %2784
      %2786 = vrot.lane.b32.xlu0 %v2604, 32
      %v2787 = vpop.permute.xlu0 %2786
      %2788 = vrot.lane.b32.xlu0 %v2607, 32
      %v2789 = vpop.permute.xlu0 %2788
      %2790 = vrot.lane.b32.xlu0 %v2609, 32
      %v2791 = vpop.permute.xlu0 %2790
      %2792 = vrot.lane.b32.xlu0 %v2612, 32
      %v2793 = vpop.permute.xlu0 %2792
      %2794 = vrot.lane.b32.xlu0 %v2614, 32
      %v2795 = vpop.permute.xlu0 %2794
      %2796 = vrot.lane.b32.xlu0 %v2617, 32
      %v2797 = vpop.permute.xlu0 %2796
      %2798 = vrot.lane.b32.xlu0 %v2619, 32
      %v2799 = vpop.permute.xlu0 %2798
      %2800 = vrot.lane.b32.xlu0 %v2622, 32
      %v2801 = vpop.permute.xlu0 %2800
      %2802 = vrot.lane.b32.xlu0 %v2624, 32
      %v2803 = vpop.permute.xlu0 %2802
      %2804 = vrot.lane.b32.xlu0 %v2627, 32
      %v2805 = vpop.permute.xlu0 %2804
      %2806 = vrot.lane.b32.xlu0 %v2629, 32
      %v2807 = vpop.permute.xlu0 %2806
      %2808 = vrot.lane.b32.xlu0 %v2632, 32
      %v2809 = vpop.permute.xlu0 %2808
      %2810 = vrot.lane.b32.xlu0 %v2634, 32
      %v2811 = vpop.permute.xlu0 %2810
      %2812 = vrot.lane.b32.xlu0 %v2637, 32
      %v2813 = vpop.permute.xlu0 %2812
      %2814 = vrot.lane.b32.xlu0 %v2639, 32
      %v2815 = vpop.permute.xlu0 %2814
      %vm2904 = vcmask 1041408
      %v2905 = vrot.slane %v391, 6
      %v2906 = vrot.slane %v392, 6
      %v2907 = vsel %vm2904, %v2905, %v2906
      %v2908 = vrot.slane %v393, 6
      %v2909 = vsel %vm2904, %v2906, %v2908
      %v2910 = vrot.slane %v394, 6
      %v2911 = vrot.slane %v395, 6
      %v2912 = vsel %vm2904, %v2910, %v2911
      %v2913 = vrot.slane %v396, 6
      %v2914 = vsel %vm2904, %v2911, %v2913
      %v2915 = vrot.slane %v397, 6
      %v2916 = vrot.slane %v398, 6
      %v2917 = vsel %vm2904, %v2915, %v2916
      %v2918 = vrot.slane %v399, 6
      %v2919 = vsel %vm2904, %v2916, %v2918
      %v2920 = vrot.slane %v400, 6
      %v2921 = vrot.slane %v401, 6
      %v2922 = vsel %vm2904, %v2920, %v2921
      %v2923 = vrot.slane %v402, 6
      %v2924 = vsel %vm2904, %v2921, %v2923
      %v2925 = vrot.slane %v403, 6
      %v2926 = vrot.slane %v404, 6
      %v2927 = vsel %vm2904, %v2925, %v2926
      %v2928 = vrot.slane %v405, 6
      %v2929 = vsel %vm2904, %v2926, %v2928
      %v2930 = vrot.slane %v406, 6
      %v2931 = vrot.slane %v407, 6
      %v2932 = vsel %vm2904, %v2930, %v2931
      %v2933 = vrot.slane %v408, 6
      %v2934 = vsel %vm2904, %v2931, %v2933
      %v2935 = vrot.slane %v409, 6
      %v2936 = vrot.slane %v410, 6
      %v2937 = vsel %vm2904, %v2935, %v2936
      %v2938 = vrot.slane %v411, 6
      %v2939 = vsel %vm2904, %v2936, %v2938
      %v2940 = vrot.slane %v412, 6
      %v2941 = vrot.slane %v413, 6
      %v2942 = vsel %vm2904, %v2940, %v2941
      %v2943 = vrot.slane %v414, 6
      %v2944 = vsel %vm2904, %v2941, %v2943
      %v2945 = vrot.slane %v415, 6
      %v2946 = vrot.slane %v416, 6
      %v2947 = vsel %vm2904, %v2945, %v2946
      %v2948 = vrot.slane %v417, 6
      %v2949 = vsel %vm2904, %v2946, %v2948
      %v2950 = vrot.slane %v418, 6
      %v2951 = vrot.slane %v419, 6
      %v2952 = vsel %vm2904, %v2950, %v2951
      %v2953 = vrot.slane %v420, 6
      %v2954 = vsel %vm2904, %v2951, %v2953
      %v2955 = vrot.slane %v421, 6
      %v2956 = vrot.slane %v422, 6
      %v2957 = vsel %vm2904, %v2955, %v2956
      %v2958 = vrot.slane %v423, 6
      %v2959 = vsel %vm2904, %v2956, %v2958
      %v2960 = vrot.slane %v424, 6
      %v2961 = vrot.slane %v425, 6
      %v2962 = vsel %vm2904, %v2960, %v2961
      %v2963 = vrot.slane %v426, 6
      %v2964 = vsel %vm2904, %v2961, %v2963
      %v2965 = vrot.slane %v427, 6
      %v2966 = vrot.slane %v428, 6
      %v2967 = vsel %vm2904, %v2965, %v2966
      %v2968 = vrot.slane %v429, 6
      %v2969 = vsel %vm2904, %v2966, %v2968
      %v2970 = vrot.slane %v430, 6
      %v2971 = vrot.slane %v431, 6
      %v2972 = vsel %vm2904, %v2970, %v2971
      %v2973 = vrot.slane %v432, 6
      %v2974 = vsel %vm2904, %v2971, %v2973
      %v2975 = vrot.slane %v433, 6
      %v2976 = vrot.slane %v434, 6
      %v2977 = vsel %vm2904, %v2975, %v2976
      %v2978 = vrot.slane %v435, 6
      %v2979 = vsel %vm2904, %v2976, %v2978
      %v2980 = vrot.slane %v436, 6
      %v2981 = vrot.slane %v437, 6
      %v2982 = vsel %vm2904, %v2980, %v2981
      %v2983 = vrot.slane %v438, 6
      %v2984 = vsel %vm2904, %v2981, %v2983
      %v2985 = vrot.slane %v439, 6
      %v2986 = vrot.slane %v440, 6
      %v2987 = vsel %vm2904, %v2985, %v2986
      %v2988 = vrot.slane %v441, 6
      %v2989 = vsel %vm2904, %v2986, %v2988
      %v2990 = vrot.slane %v442, 6
      %v2991 = vrot.slane %v443, 6
      %v2992 = vsel %vm2904, %v2990, %v2991
      %v2993 = vrot.slane %v444, 6
      %v2994 = vsel %vm2904, %v2991, %v2993
      %v2995 = vrot.slane %v445, 6
      %v2996 = vrot.slane %v446, 6
      %v2997 = vsel %vm2904, %v2995, %v2996
      %v2998 = vrot.slane %v447, 6
      %v2999 = vsel %vm2904, %v2996, %v2998
      %v3000 = vrot.slane %v448, 6
      %v3001 = vrot.slane %v449, 6
      %v3002 = vsel %vm2904, %v3000, %v3001
      %v3003 = vrot.slane %v450, 6
      %v3004 = vsel %vm2904, %v3001, %v3003
      %v3005 = vrot.slane %v451, 6
      %v3006 = vrot.slane %v452, 6
      %v3007 = vsel %vm2904, %v3005, %v3006
      %v3008 = vrot.slane %v453, 6
      %v3009 = vsel %vm2904, %v3006, %v3008
      %v3010 = vrot.slane %v454, 6
      %v3011 = vrot.slane %v455, 6
      %v3012 = vsel %vm2904, %v3010, %v3011
      %v3013 = vrot.slane %v456, 6
      %v3014 = vsel %vm2904, %v3011, %v3013
      %v3015 = vrot.slane %v457, 6
      %v3016 = vrot.slane %v458, 6
      %v3017 = vsel %vm2904, %v3015, %v3016
      %v3018 = vrot.slane %v459, 6
      %v3019 = vsel %vm2904, %v3016, %v3018
      %v3020 = vrot.slane %v460, 6
      %v3021 = vrot.slane %v461, 6
      %v3022 = vsel %vm2904, %v3020, %v3021
      %v3023 = vrot.slane %v462, 6
      %v3024 = vsel %vm2904, %v3021, %v3023
      %v3025 = vrot.slane %v463, 6
      %v3026 = vrot.slane %v464, 6
      %v3027 = vsel %vm2904, %v3025, %v3026
      %v3028 = vrot.slane %v465, 6
      %v3029 = vsel %vm2904, %v3026, %v3028
      %v3030 = vrot.slane %v466, 6
      %v3031 = vrot.slane %v467, 6
      %v3032 = vsel %vm2904, %v3030, %v3031
      %v3033 = vrot.slane %v468, 6
      %v3034 = vsel %vm2904, %v3031, %v3033
      %v3035 = vrot.slane %v469, 6
      %v3036 = vrot.slane %v470, 6
      %v3037 = vsel %vm2904, %v3035, %v3036
      %v3038 = vrot.slane %v471, 6
      %v3039 = vsel %vm2904, %v3036, %v3038
      %v3040 = vrot.slane %v472, 6
      %v3041 = vrot.slane %v473, 6
      %v3042 = vsel %vm2904, %v3040, %v3041
      %v3043 = vrot.slane %v474, 6
      %v3044 = vsel %vm2904, %v3041, %v3043
      %v3045 = vrot.slane %v475, 6
      %v3046 = vrot.slane %v476, 6
      %v3047 = vsel %vm2904, %v3045, %v3046
      %v3048 = vrot.slane %v477, 6
      %v3049 = vsel %vm2904, %v3046, %v3048
      %v3050 = vrot.slane %v478, 6
      %v3051 = vrot.slane %v479, 6
      %v3052 = vsel %vm2904, %v3050, %v3051
      %v3053 = vrot.slane %v480, 6
      %v3054 = vsel %vm2904, %v3051, %v3053
      %v3055 = vrot.slane %v481, 6
      %v3056 = vrot.slane %v482, 6
      %v3057 = vsel %vm2904, %v3055, %v3056
      %v3058 = vrot.slane %v483, 6
      %v3059 = vsel %vm2904, %v3056, %v3058
      %v3060 = vrot.slane %v484, 6
      %v3061 = vrot.slane %v485, 6
      %v3062 = vsel %vm2904, %v3060, %v3061
      %v3063 = vrot.slane %v486, 6
      %v3064 = vsel %vm2904, %v3061, %v3063
      %v3065 = vrot.slane %v487, 6
      %v3066 = vrot.slane %v488, 6
      %v3067 = vsel %vm2904, %v3065, %v3066
      %v3068 = vrot.slane %v489, 6
      %v3069 = vsel %vm2904, %v3066, %v3068
      %v3070 = vrot.slane %v490, 6
      %v3071 = vrot.slane %v491, 6
      %v3072 = vsel %vm2904, %v3070, %v3071
      %v3073 = vrot.slane %v492, 6
      %v3074 = vsel %vm2904, %v3071, %v3073
      %v3075 = vrot.slane %v493, 6
      %v3076 = vrot.slane %v494, 6
      %v3077 = vsel %vm2904, %v3075, %v3076
      %v3078 = vrot.slane %v495, 6
      %v3079 = vsel %vm2904, %v3076, %v3078
      %v3080 = vrot.slane %v496, 6
      %v3081 = vrot.slane %v497, 6
      %v3082 = vsel %vm2904, %v3080, %v3081
      %v3083 = vrot.slane %v498, 6
      %v3084 = vsel %vm2904, %v3081, %v3083
      %v3085 = vrot.slane %v499, 6
      %v3086 = vrot.slane %v500, 6
      %v3087 = vsel %vm2904, %v3085, %v3086
      %v3088 = vrot.slane %v501, 6
      %v3089 = vsel %vm2904, %v3086, %v3088
      %v3090 = vrot.slane %v502, 6
      %v3091 = vrot.slane %v503, 6
      %v3092 = vsel %vm2904, %v3090, %v3091
      %v3093 = vrot.slane %v504, 6
      %v3094 = vsel %vm2904, %v3091, %v3093
      %v3095 = vrot.slane %v505, 6
      %v3096 = vrot.slane %v506, 6
      %v3097 = vsel %vm2904, %v3095, %v3096
      %v3098 = vrot.slane %v507, 6
      %v3099 = vsel %vm2904, %v3096, %v3098
      %v3100 = vrot.slane %v508, 6
      %v3101 = vrot.slane %v509, 6
      %v3102 = vsel %vm2904, %v3100, %v3101
      %v3103 = vrot.slane %v510, 6
      %v3104 = vsel %vm2904, %v3101, %v3103
      %v3105 = vrot.slane %v511, 6
      %v3106 = vrot.slane %v512, 6
      %v3107 = vsel %vm2904, %v3105, %v3106
      %v3108 = vrot.slane %v513, 6
      %v3109 = vsel %vm2904, %v3106, %v3108
      %v3110 = vrot.slane %v514, 6
      %v3111 = vrot.slane %v515, 6
      %v3112 = vsel %vm2904, %v3110, %v3111
      %v3113 = vrot.slane %v516, 6
      %v3114 = vsel %vm2904, %v3111, %v3113
      %v3115 = vrot.slane %v517, 6
      %v3116 = vrot.slane %v518, 6
      %v3117 = vsel %vm2904, %v3115, %v3116
      %v3118 = vrot.slane %v519, 6
      %v3119 = vsel %vm2904, %v3116, %v3118
      %v3120 = vrot.slane %v520, 6
      %v3121 = vrot.slane %v521, 6
      %v3122 = vsel %vm2904, %v3120, %v3121
      %v3123 = vrot.slane %v522, 6
      %v3124 = vsel %vm2904, %v3121, %v3123
      %3125 = vrot.lane.b32.xlu0 %v2907, 64
      %v3126 = vpop.permute.xlu0 %3125
      %3127 = vrot.lane.b32.xlu0 %v2909, 64
      %v3128 = vpop.permute.xlu0 %3127
      %3129 = vrot.lane.b32.xlu0 %v2912, 64
      %v3130 = vpop.permute.xlu0 %3129
      %3131 = vrot.lane.b32.xlu0 %v2914, 64
      %v3132 = vpop.permute.xlu0 %3131
      %3133 = vrot.lane.b32.xlu0 %v2917, 64
      %v3134 = vpop.permute.xlu0 %3133
      %3135 = vrot.lane.b32.xlu0 %v2919, 64
      %v3136 = vpop.permute.xlu0 %3135
      %3137 = vrot.lane.b32.xlu0 %v2922, 64
      %v3138 = vpop.permute.xlu0 %3137
      %3139 = vrot.lane.b32.xlu0 %v2924, 64
      %v3140 = vpop.permute.xlu0 %3139
      %3141 = vrot.lane.b32.xlu0 %v2927, 64
      %v3142 = vpop.permute.xlu0 %3141
      %3143 = vrot.lane.b32.xlu0 %v2929, 64
      %v3144 = vpop.permute.xlu0 %3143
      %3145 = vrot.lane.b32.xlu0 %v2932, 64
      %v3146 = vpop.permute.xlu0 %3145
      %3147 = vrot.lane.b32.xlu0 %v2934, 64
      %v3148 = vpop.permute.xlu0 %3147
      %3149 = vrot.lane.b32.xlu0 %v2937, 64
      %v3150 = vpop.permute.xlu0 %3149
      %3151 = vrot.lane.b32.xlu0 %v2939, 64
      %v3152 = vpop.permute.xlu0 %3151
      %3153 = vrot.lane.b32.xlu0 %v2942, 64
      %v3154 = vpop.permute.xlu0 %3153
      %3155 = vrot.lane.b32.xlu0 %v2944, 64
      %v3156 = vpop.permute.xlu0 %3155
      %3157 = vrot.lane.b32.xlu0 %v2947, 64
      %v3158 = vpop.permute.xlu0 %3157
      %3159 = vrot.lane.b32.xlu0 %v2949, 64
      %v3160 = vpop.permute.xlu0 %3159
      %3161 = vrot.lane.b32.xlu0 %v2952, 64
      %v3162 = vpop.permute.xlu0 %3161
      %3163 = vrot.lane.b32.xlu0 %v2954, 64
      %v3164 = vpop.permute.xlu0 %3163
      %3165 = vrot.lane.b32.xlu0 %v2957, 64
      %v3166 = vpop.permute.xlu0 %3165
      %3167 = vrot.lane.b32.xlu0 %v2959, 64
      %v3168 = vpop.permute.xlu0 %3167
      %3169 = vrot.lane.b32.xlu0 %v2962, 64
      %v3170 = vpop.permute.xlu0 %3169
      %3171 = vrot.lane.b32.xlu0 %v2964, 64
      %v3172 = vpop.permute.xlu0 %3171
      %3173 = vrot.lane.b32.xlu0 %v2967, 64
      %v3174 = vpop.permute.xlu0 %3173
      %3175 = vrot.lane.b32.xlu0 %v2969, 64
      %v3176 = vpop.permute.xlu0 %3175
      %3177 = vrot.lane.b32.xlu0 %v2972, 64
      %v3178 = vpop.permute.xlu0 %3177
      %3179 = vrot.lane.b32.xlu0 %v2974, 64
      %v3180 = vpop.permute.xlu0 %3179
      %3181 = vrot.lane.b32.xlu0 %v2977, 64
      %v3182 = vpop.permute.xlu0 %3181
      %3183 = vrot.lane.b32.xlu0 %v2979, 64
      %v3184 = vpop.permute.xlu0 %3183
      %3185 = vrot.lane.b32.xlu0 %v2982, 64
      %v3186 = vpop.permute.xlu0 %3185
      %3187 = vrot.lane.b32.xlu0 %v2984, 64
      %v3188 = vpop.permute.xlu0 %3187
      %3189 = vrot.lane.b32.xlu0 %v2987, 64
      %v3190 = vpop.permute.xlu0 %3189
      %3191 = vrot.lane.b32.xlu0 %v2989, 64
      %v3192 = vpop.permute.xlu0 %3191
      %3193 = vrot.lane.b32.xlu0 %v2992, 64
      %v3194 = vpop.permute.xlu0 %3193
      %3195 = vrot.lane.b32.xlu0 %v2994, 64
      %v3196 = vpop.permute.xlu0 %3195
      %3197 = vrot.lane.b32.xlu0 %v2997, 64
      %v3198 = vpop.permute.xlu0 %3197
      %3199 = vrot.lane.b32.xlu0 %v2999, 64
      %v3200 = vpop.permute.xlu0 %3199
      %3201 = vrot.lane.b32.xlu0 %v3002, 64
      %v3202 = vpop.permute.xlu0 %3201
      %3203 = vrot.lane.b32.xlu0 %v3004, 64
      %v3204 = vpop.permute.xlu0 %3203
      %3205 = vrot.lane.b32.xlu0 %v3007, 64
      %v3206 = vpop.permute.xlu0 %3205
      %3207 = vrot.lane.b32.xlu0 %v3009, 64
      %v3208 = vpop.permute.xlu0 %3207
      %3209 = vrot.lane.b32.xlu0 %v3012, 64
      %v3210 = vpop.permute.xlu0 %3209
      %3211 = vrot.lane.b32.xlu0 %v3014, 64
      %v3212 = vpop.permute.xlu0 %3211
      %3213 = vrot.lane.b32.xlu0 %v3017, 64
      %v3214 = vpop.permute.xlu0 %3213
      %3215 = vrot.lane.b32.xlu0 %v3019, 64
      %v3216 = vpop.permute.xlu0 %3215
      %3217 = vrot.lane.b32.xlu0 %v3022, 64
      %v3218 = vpop.permute.xlu0 %3217
      %3219 = vrot.lane.b32.xlu0 %v3024, 64
      %v3220 = vpop.permute.xlu0 %3219
      %3221 = vrot.lane.b32.xlu0 %v3027, 64
      %v3222 = vpop.permute.xlu0 %3221
      %3223 = vrot.lane.b32.xlu0 %v3029, 64
      %v3224 = vpop.permute.xlu0 %3223
      %3225 = vrot.lane.b32.xlu0 %v3032, 64
      %v3226 = vpop.permute.xlu0 %3225
      %3227 = vrot.lane.b32.xlu0 %v3034, 64
      %v3228 = vpop.permute.xlu0 %3227
      %3229 = vrot.lane.b32.xlu0 %v3037, 64
      %v3230 = vpop.permute.xlu0 %3229
      %3231 = vrot.lane.b32.xlu0 %v3039, 64
      %v3232 = vpop.permute.xlu0 %3231
      %3233 = vrot.lane.b32.xlu0 %v3042, 64
      %v3234 = vpop.permute.xlu0 %3233
      %3235 = vrot.lane.b32.xlu0 %v3044, 64
      %v3236 = vpop.permute.xlu0 %3235
      %3237 = vrot.lane.b32.xlu0 %v3047, 64
      %v3238 = vpop.permute.xlu0 %3237
      %3239 = vrot.lane.b32.xlu0 %v3049, 64
      %v3240 = vpop.permute.xlu0 %3239
      %3241 = vrot.lane.b32.xlu0 %v3052, 64
      %v3242 = vpop.permute.xlu0 %3241
      %3243 = vrot.lane.b32.xlu0 %v3054, 64
      %v3244 = vpop.permute.xlu0 %3243
      %3245 = vrot.lane.b32.xlu0 %v3057, 64
      %v3246 = vpop.permute.xlu0 %3245
      %3247 = vrot.lane.b32.xlu0 %v3059, 64
      %v3248 = vpop.permute.xlu0 %3247
      %3249 = vrot.lane.b32.xlu0 %v3062, 64
      %v3250 = vpop.permute.xlu0 %3249
      %3251 = vrot.lane.b32.xlu0 %v3064, 64
      %v3252 = vpop.permute.xlu0 %3251
      %3253 = vrot.lane.b32.xlu0 %v3067, 64
      %v3254 = vpop.permute.xlu0 %3253
      %3255 = vrot.lane.b32.xlu0 %v3069, 64
      %v3256 = vpop.permute.xlu0 %3255
      %3257 = vrot.lane.b32.xlu0 %v3072, 64
      %v3258 = vpop.permute.xlu0 %3257
      %3259 = vrot.lane.b32.xlu0 %v3074, 64
      %v3260 = vpop.permute.xlu0 %3259
      %3261 = vrot.lane.b32.xlu0 %v3077, 64
      %v3262 = vpop.permute.xlu0 %3261
      %3263 = vrot.lane.b32.xlu0 %v3079, 64
      %v3264 = vpop.permute.xlu0 %3263
      %3265 = vrot.lane.b32.xlu0 %v3082, 64
      %v3266 = vpop.permute.xlu0 %3265
      %3267 = vrot.lane.b32.xlu0 %v3084, 64
      %v3268 = vpop.permute.xlu0 %3267
      %3269 = vrot.lane.b32.xlu0 %v3087, 64
      %v3270 = vpop.permute.xlu0 %3269
      %3271 = vrot.lane.b32.xlu0 %v3089, 64
      %v3272 = vpop.permute.xlu0 %3271
      %3273 = vrot.lane.b32.xlu0 %v3092, 64
      %v3274 = vpop.permute.xlu0 %3273
      %3275 = vrot.lane.b32.xlu0 %v3094, 64
      %v3276 = vpop.permute.xlu0 %3275
      %3277 = vrot.lane.b32.xlu0 %v3097, 64
      %v3278 = vpop.permute.xlu0 %3277
      %3279 = vrot.lane.b32.xlu0 %v3099, 64
      %v3280 = vpop.permute.xlu0 %3279
      %3281 = vrot.lane.b32.xlu0 %v3102, 64
      %v3282 = vpop.permute.xlu0 %3281
      %3283 = vrot.lane.b32.xlu0 %v3104, 64
      %v3284 = vpop.permute.xlu0 %3283
      %3285 = vrot.lane.b32.xlu0 %v3107, 64
      %v3286 = vpop.permute.xlu0 %3285
      %3287 = vrot.lane.b32.xlu0 %v3109, 64
      %v3288 = vpop.permute.xlu0 %3287
      %3289 = vrot.lane.b32.xlu0 %v3112, 64
      %v3290 = vpop.permute.xlu0 %3289
      %3291 = vrot.lane.b32.xlu0 %v3114, 64
      %v3292 = vpop.permute.xlu0 %3291
      %3293 = vrot.lane.b32.xlu0 %v3117, 64
      %v3294 = vpop.permute.xlu0 %3293
      %3295 = vrot.lane.b32.xlu0 %v3119, 64
      %v3296 = vpop.permute.xlu0 %3295
      %3297 = vrot.lane.b32.xlu0 %v3122, 64
      %v3298 = vpop.permute.xlu0 %3297
      %3299 = vrot.lane.b32.xlu0 %v3124, 64
      %v3300 = vpop.permute.xlu0 %3299
      %vm3389 = vcmask 261120
      %v3390 = vsel %vm3389, %v391, %v877
      %v3391 = vsel %vm3389, %v392, %v879
      %v3392 = vsel %vm3389, %v394, %v881
      %v3393 = vsel %vm3389, %v395, %v883
      %v3394 = vsel %vm3389, %v397, %v885
      %v3395 = vsel %vm3389, %v398, %v887
      %v3396 = vsel %vm3389, %v400, %v889
      %v3397 = vsel %vm3389, %v401, %v891
      %v3398 = vsel %vm3389, %v403, %v893
      %v3399 = vsel %vm3389, %v404, %v895
      %v3400 = vsel %vm3389, %v406, %v897
      %v3401 = vsel %vm3389, %v407, %v899
      %v3402 = vsel %vm3389, %v409, %v901
      %v3403 = vsel %vm3389, %v410, %v903
      %v3404 = vsel %vm3389, %v412, %v905
      %v3405 = vsel %vm3389, %v413, %v907
      %v3406 = vsel %vm3389, %v415, %v909
      %v3407 = vsel %vm3389, %v416, %v911
      %v3408 = vsel %vm3389, %v418, %v913
      %v3409 = vsel %vm3389, %v419, %v915
      %v3410 = vsel %vm3389, %v421, %v917
      %v3411 = vsel %vm3389, %v422, %v919
      %v3412 = vsel %vm3389, %v424, %v921
      %v3413 = vsel %vm3389, %v425, %v923
      %v3414 = vsel %vm3389, %v427, %v925
      %v3415 = vsel %vm3389, %v428, %v927
      %v3416 = vsel %vm3389, %v430, %v929
      %v3417 = vsel %vm3389, %v431, %v931
      %v3418 = vsel %vm3389, %v433, %v933
      %v3419 = vsel %vm3389, %v434, %v935
      %v3420 = vsel %vm3389, %v436, %v937
      %v3421 = vsel %vm3389, %v437, %v939
      %v3422 = vsel %vm3389, %v439, %v941
      %v3423 = vsel %vm3389, %v440, %v943
      %v3424 = vsel %vm3389, %v442, %v945
      %v3425 = vsel %vm3389, %v443, %v947
      %v3426 = vsel %vm3389, %v445, %v949
      %v3427 = vsel %vm3389, %v446, %v951
      %v3428 = vsel %vm3389, %v448, %v953
      %v3429 = vsel %vm3389, %v449, %v955
      %v3430 = vsel %vm3389, %v451, %v957
      %v3431 = vsel %vm3389, %v452, %v959
      %v3432 = vsel %vm3389, %v454, %v961
      %v3433 = vsel %vm3389, %v455, %v963
      %v3434 = vsel %vm3389, %v457, %v965
      %v3435 = vsel %vm3389, %v458, %v967
      %v3436 = vsel %vm3389, %v460, %v969
      %v3437 = vsel %vm3389, %v461, %v971
      %v3438 = vsel %vm3389, %v463, %v973
      %v3439 = vsel %vm3389, %v464, %v975
      %v3440 = vsel %vm3389, %v466, %v977
      %v3441 = vsel %vm3389, %v467, %v979
      %v3442 = vsel %vm3389, %v469, %v981
      %v3443 = vsel %vm3389, %v470, %v983
      %v3444 = vsel %vm3389, %v472, %v985
      %v3445 = vsel %vm3389, %v473, %v987
      %v3446 = vsel %vm3389, %v475, %v989
      %v3447 = vsel %vm3389, %v476, %v991
      %v3448 = vsel %vm3389, %v478, %v993
      %v3449 = vsel %vm3389, %v479, %v995
      %v3450 = vsel %vm3389, %v481, %v997
      %v3451 = vsel %vm3389, %v482, %v999
      %v3452 = vsel %vm3389, %v484, %v1001
      %v3453 = vsel %vm3389, %v485, %v1003
      %v3454 = vsel %vm3389, %v487, %v1005
      %v3455 = vsel %vm3389, %v488, %v1007
      %v3456 = vsel %vm3389, %v490, %v1009
      %v3457 = vsel %vm3389, %v491, %v1011
      %v3458 = vsel %vm3389, %v493, %v1013
      %v3459 = vsel %vm3389, %v494, %v1015
      %v3460 = vsel %vm3389, %v496, %v1017
      %v3461 = vsel %vm3389, %v497, %v1019
      %v3462 = vsel %vm3389, %v499, %v1021
      %v3463 = vsel %vm3389, %v500, %v1023
      %v3464 = vsel %vm3389, %v502, %v1025
      %v3465 = vsel %vm3389, %v503, %v1027
      %v3466 = vsel %vm3389, %v505, %v1029
      %v3467 = vsel %vm3389, %v506, %v1031
      %v3468 = vsel %vm3389, %v508, %v1033
      %v3469 = vsel %vm3389, %v509, %v1035
      %v3470 = vsel %vm3389, %v511, %v1037
      %v3471 = vsel %vm3389, %v512, %v1039
      %v3472 = vsel %vm3389, %v514, %v1041
      %v3473 = vsel %vm3389, %v515, %v1043
      %v3474 = vsel %vm3389, %v517, %v1045
      %v3475 = vsel %vm3389, %v518, %v1047
      %v3476 = vsel %vm3389, %v520, %v1049
      %v3477 = vsel %vm3389, %v521, %v1051
      %vm3478 = vcmask 523264
      %v3479 = vsel %vm3478, %v3390, %v1362
      %v3480 = vsel %vm3478, %v3391, %v1364
      %v3481 = vsel %vm3478, %v3392, %v1366
      %v3482 = vsel %vm3478, %v3393, %v1368
      %v3483 = vsel %vm3478, %v3394, %v1370
      %v3484 = vsel %vm3478, %v3395, %v1372
      %v3485 = vsel %vm3478, %v3396, %v1374
      %v3486 = vsel %vm3478, %v3397, %v1376
      %v3487 = vsel %vm3478, %v3398, %v1378
      %v3488 = vsel %vm3478, %v3399, %v1380
      %v3489 = vsel %vm3478, %v3400, %v1382
      %v3490 = vsel %vm3478, %v3401, %v1384
      %v3491 = vsel %vm3478, %v3402, %v1386
      %v3492 = vsel %vm3478, %v3403, %v1388
      %v3493 = vsel %vm3478, %v3404, %v1390
      %v3494 = vsel %vm3478, %v3405, %v1392
      %v3495 = vsel %vm3478, %v3406, %v1394
      %v3496 = vsel %vm3478, %v3407, %v1396
      %v3497 = vsel %vm3478, %v3408, %v1398
      %v3498 = vsel %vm3478, %v3409, %v1400
      %v3499 = vsel %vm3478, %v3410, %v1402
      %v3500 = vsel %vm3478, %v3411, %v1404
      %v3501 = vsel %vm3478, %v3412, %v1406
      %v3502 = vsel %vm3478, %v3413, %v1408
      %v3503 = vsel %vm3478, %v3414, %v1410
      %v3504 = vsel %vm3478, %v3415, %v1412
      %v3505 = vsel %vm3478, %v3416, %v1414
      %v3506 = vsel %vm3478, %v3417, %v1416
      %v3507 = vsel %vm3478, %v3418, %v1418
      %v3508 = vsel %vm3478, %v3419, %v1420
      %v3509 = vsel %vm3478, %v3420, %v1422
      %v3510 = vsel %vm3478, %v3421, %v1424
      %v3511 = vsel %vm3478, %v3422, %v1426
      %v3512 = vsel %vm3478, %v3423, %v1428
      %v3513 = vsel %vm3478, %v3424, %v1430
      %v3514 = vsel %vm3478, %v3425, %v1432
      %v3515 = vsel %vm3478, %v3426, %v1434
      %v3516 = vsel %vm3478, %v3427, %v1436
      %v3517 = vsel %vm3478, %v3428, %v1438
      %v3518 = vsel %vm3478, %v3429, %v1440
      %v3519 = vsel %vm3478, %v3430, %v1442
      %v3520 = vsel %vm3478, %v3431, %v1444
      %v3521 = vsel %vm3478, %v3432, %v1446
      %v3522 = vsel %vm3478, %v3433, %v1448
      %v3523 = vsel %vm3478, %v3434, %v1450
      %v3524 = vsel %vm3478, %v3435, %v1452
      %v3525 = vsel %vm3478, %v3436, %v1454
      %v3526 = vsel %vm3478, %v3437, %v1456
      %v3527 = vsel %vm3478, %v3438, %v1458
      %v3528 = vsel %vm3478, %v3439, %v1460
      %v3529 = vsel %vm3478, %v3440, %v1462
      %v3530 = vsel %vm3478, %v3441, %v1464
      %v3531 = vsel %vm3478, %v3442, %v1466
      %v3532 = vsel %vm3478, %v3443, %v1468
      %v3533 = vsel %vm3478, %v3444, %v1470
      %v3534 = vsel %vm3478, %v3445, %v1472
      %v3535 = vsel %vm3478, %v3446, %v1474
      %v3536 = vsel %vm3478, %v3447, %v1476
      %v3537 = vsel %vm3478, %v3448, %v1478
      %v3538 = vsel %vm3478, %v3449, %v1480
      %v3539 = vsel %vm3478, %v3450, %v1482
      %v3540 = vsel %vm3478, %v3451, %v1484
      %v3541 = vsel %vm3478, %v3452, %v1486
      %v3542 = vsel %vm3478, %v3453, %v1488
      %v3543 = vsel %vm3478, %v3454, %v1490
      %v3544 = vsel %vm3478, %v3455, %v1492
      %v3545 = vsel %vm3478, %v3456, %v1494
      %v3546 = vsel %vm3478, %v3457, %v1496
      %v3547 = vsel %vm3478, %v3458, %v1498
      %v3548 = vsel %vm3478, %v3459, %v1500
      %v3549 = vsel %vm3478, %v3460, %v1502
      %v3550 = vsel %vm3478, %v3461, %v1504
      %v3551 = vsel %vm3478, %v3462, %v1506
      %v3552 = vsel %vm3478, %v3463, %v1508
      %v3553 = vsel %vm3478, %v3464, %v1510
      %v3554 = vsel %vm3478, %v3465, %v1512
      %v3555 = vsel %vm3478, %v3466, %v1514
      %v3556 = vsel %vm3478, %v3467, %v1516
      %v3557 = vsel %vm3478, %v3468, %v1518
      %v3558 = vsel %vm3478, %v3469, %v1520
      %v3559 = vsel %vm3478, %v3470, %v1522
      %v3560 = vsel %vm3478, %v3471, %v1524
      %v3561 = vsel %vm3478, %v3472, %v1526
      %v3562 = vsel %vm3478, %v3473, %v1528
      %v3563 = vsel %vm3478, %v3474, %v1530
      %v3564 = vsel %vm3478, %v3475, %v1532
      %v3565 = vsel %vm3478, %v3476, %v1534
      %v3566 = vsel %vm3478, %v3477, %v1536
      %vm3567 = vcmask 785408
      %v3568 = vsel %vm3567, %v3479, %v1847
      %v3569 = vsel %vm3567, %v3480, %v1849
      %v3570 = vsel %vm3567, %v3481, %v1851
      %v3571 = vsel %vm3567, %v3482, %v1853
      %v3572 = vsel %vm3567, %v3483, %v1855
      %v3573 = vsel %vm3567, %v3484, %v1857
      %v3574 = vsel %vm3567, %v3485, %v1859
      %v3575 = vsel %vm3567, %v3486, %v1861
      %v3576 = vsel %vm3567, %v3487, %v1863
      %v3577 = vsel %vm3567, %v3488, %v1865
      %v3578 = vsel %vm3567, %v3489, %v1867
      %v3579 = vsel %vm3567, %v3490, %v1869
      %v3580 = vsel %vm3567, %v3491, %v1871
      %v3581 = vsel %vm3567, %v3492, %v1873
      %v3582 = vsel %vm3567, %v3493, %v1875
      %v3583 = vsel %vm3567, %v3494, %v1877
      %v3584 = vsel %vm3567, %v3495, %v1879
      %v3585 = vsel %vm3567, %v3496, %v1881
      %v3586 = vsel %vm3567, %v3497, %v1883
      %v3587 = vsel %vm3567, %v3498, %v1885
      %v3588 = vsel %vm3567, %v3499, %v1887
      %v3589 = vsel %vm3567, %v3500, %v1889
      %v3590 = vsel %vm3567, %v3501, %v1891
      %v3591 = vsel %vm3567, %v3502, %v1893
      %v3592 = vsel %vm3567, %v3503, %v1895
      %v3593 = vsel %vm3567, %v3504, %v1897
      %v3594 = vsel %vm3567, %v3505, %v1899
      %v3595 = vsel %vm3567, %v3506, %v1901
      %v3596 = vsel %vm3567, %v3507, %v1903
      %v3597 = vsel %vm3567, %v3508, %v1905
      %v3598 = vsel %vm3567, %v3509, %v1907
      %v3599 = vsel %vm3567, %v3510, %v1909
      %v3600 = vsel %vm3567, %v3511, %v1911
      %v3601 = vsel %vm3567, %v3512, %v1913
      %v3602 = vsel %vm3567, %v3513, %v1915
      %v3603 = vsel %vm3567, %v3514, %v1917
      %v3604 = vsel %vm3567, %v3515, %v1919
      %v3605 = vsel %vm3567, %v3516, %v1921
      %v3606 = vsel %vm3567, %v3517, %v1923
      %v3607 = vsel %vm3567, %v3518, %v1925
      %v3608 = vsel %vm3567, %v3519, %v1927
      %v3609 = vsel %vm3567, %v3520, %v1929
      %v3610 = vsel %vm3567, %v3521, %v1931
      %v3611 = vsel %vm3567, %v3522, %v1933
      %v3612 = vsel %vm3567, %v3523, %v1935
      %v3613 = vsel %vm3567, %v3524, %v1937
      %v3614 = vsel %vm3567, %v3525, %v1939
      %v3615 = vsel %vm3567, %v3526, %v1941
      %v3616 = vsel %vm3567, %v3527, %v1943
      %v3617 = vsel %vm3567, %v3528, %v1945
      %v3618 = vsel %vm3567, %v3529, %v1947
      %v3619 = vsel %vm3567, %v3530, %v1949
      %v3620 = vsel %vm3567, %v3531, %v1951
      %v3621 = vsel %vm3567, %v3532, %v1953
      %v3622 = vsel %vm3567, %v3533, %v1955
      %v3623 = vsel %vm3567, %v3534, %v1957
      %v3624 = vsel %vm3567, %v3535, %v1959
      %v3625 = vsel %vm3567, %v3536, %v1961
      %v3626 = vsel %vm3567, %v3537, %v1963
      %v3627 = vsel %vm3567, %v3538, %v1965
      %v3628 = vsel %vm3567, %v3539, %v1967
      %v3629 = vsel %vm3567, %v3540, %v1969
      %v3630 = vsel %vm3567, %v3541, %v1971
      %v3631 = vsel %vm3567, %v3542, %v1973
      %v3632 = vsel %vm3567, %v3543, %v1975
      %v3633 = vsel %vm3567, %v3544, %v1977
      %v3634 = vsel %vm3567, %v3545, %v1979
      %v3635 = vsel %vm3567, %v3546, %v1981
      %v3636 = vsel %vm3567, %v3547, %v1983
      %v3637 = vsel %vm3567, %v3548, %v1985
      %v3638 = vsel %vm3567, %v3549, %v1987
      %v3639 = vsel %vm3567, %v3550, %v1989
      %v3640 = vsel %vm3567, %v3551, %v1991
      %v3641 = vsel %vm3567, %v3552, %v1993
      %v3642 = vsel %vm3567, %v3553, %v1995
      %v3643 = vsel %vm3567, %v3554, %v1997
      %v3644 = vsel %vm3567, %v3555, %v1999
      %v3645 = vsel %vm3567, %v3556, %v2001
      %v3646 = vsel %vm3567, %v3557, %v2003
      %v3647 = vsel %vm3567, %v3558, %v2005
      %v3648 = vsel %vm3567, %v3559, %v2007
      %v3649 = vsel %vm3567, %v3560, %v2009
      %v3650 = vsel %vm3567, %v3561, %v2011
      %v3651 = vsel %vm3567, %v3562, %v2013
      %v3652 = vsel %vm3567, %v3563, %v2015
      %v3653 = vsel %vm3567, %v3564, %v2017
      %v3654 = vsel %vm3567, %v3565, %v2019
      %v3655 = vsel %vm3567, %v3566, %v2021
      %v3656 = vsel %vm3389, %v2113, %v2641
      %v3657 = vsel %vm3389, %v2115, %v2643
      %v3658 = vsel %vm3389, %v2118, %v2645
      %v3659 = vsel %vm3389, %v2120, %v2647
      %v3660 = vsel %vm3389, %v2123, %v2649
      %v3661 = vsel %vm3389, %v2125, %v2651
      %v3662 = vsel %vm3389, %v2128, %v2653
      %v3663 = vsel %vm3389, %v2130, %v2655
      %v3664 = vsel %vm3389, %v2133, %v2657
      %v3665 = vsel %vm3389, %v2135, %v2659
      %v3666 = vsel %vm3389, %v2138, %v2661
      %v3667 = vsel %vm3389, %v2140, %v2663
      %v3668 = vsel %vm3389, %v2143, %v2665
      %v3669 = vsel %vm3389, %v2145, %v2667
      %v3670 = vsel %vm3389, %v2148, %v2669
      %v3671 = vsel %vm3389, %v2150, %v2671
      %v3672 = vsel %vm3389, %v2153, %v2673
      %v3673 = vsel %vm3389, %v2155, %v2675
      %v3674 = vsel %vm3389, %v2158, %v2677
      %v3675 = vsel %vm3389, %v2160, %v2679
      %v3676 = vsel %vm3389, %v2163, %v2681
      %v3677 = vsel %vm3389, %v2165, %v2683
      %v3678 = vsel %vm3389, %v2168, %v2685
      %v3679 = vsel %vm3389, %v2170, %v2687
      %v3680 = vsel %vm3389, %v2173, %v2689
      %v3681 = vsel %vm3389, %v2175, %v2691
      %v3682 = vsel %vm3389, %v2178, %v2693
      %v3683 = vsel %vm3389, %v2180, %v2695
      %v3684 = vsel %vm3389, %v2183, %v2697
      %v3685 = vsel %vm3389, %v2185, %v2699
      %v3686 = vsel %vm3389, %v2188, %v2701
      %v3687 = vsel %vm3389, %v2190, %v2703
      %v3688 = vsel %vm3389, %v2193, %v2705
      %v3689 = vsel %vm3389, %v2195, %v2707
      %v3690 = vsel %vm3389, %v2198, %v2709
      %v3691 = vsel %vm3389, %v2200, %v2711
      %v3692 = vsel %vm3389, %v2203, %v2713
      %v3693 = vsel %vm3389, %v2205, %v2715
      %v3694 = vsel %vm3389, %v2208, %v2717
      %v3695 = vsel %vm3389, %v2210, %v2719
      %v3696 = vsel %vm3389, %v2213, %v2721
      %v3697 = vsel %vm3389, %v2215, %v2723
      %v3698 = vsel %vm3389, %v2218, %v2725
      %v3699 = vsel %vm3389, %v2220, %v2727
      %v3700 = vsel %vm3389, %v2223, %v2729
      %v3701 = vsel %vm3389, %v2225, %v2731
      %v3702 = vsel %vm3389, %v2228, %v2733
      %v3703 = vsel %vm3389, %v2230, %v2735
      %v3704 = vsel %vm3389, %v2233, %v2737
      %v3705 = vsel %vm3389, %v2235, %v2739
      %v3706 = vsel %vm3389, %v2238, %v2741
      %v3707 = vsel %vm3389, %v2240, %v2743
      %v3708 = vsel %vm3389, %v2243, %v2745
      %v3709 = vsel %vm3389, %v2245, %v2747
      %v3710 = vsel %vm3389, %v2248, %v2749
      %v3711 = vsel %vm3389, %v2250, %v2751
      %v3712 = vsel %vm3389, %v2253, %v2753
      %v3713 = vsel %vm3389, %v2255, %v2755
      %v3714 = vsel %vm3389, %v2258, %v2757
      %v3715 = vsel %vm3389, %v2260, %v2759
      %v3716 = vsel %vm3389, %v2263, %v2761
      %v3717 = vsel %vm3389, %v2265, %v2763
      %v3718 = vsel %vm3389, %v2268, %v2765
      %v3719 = vsel %vm3389, %v2270, %v2767
      %v3720 = vsel %vm3389, %v2273, %v2769
      %v3721 = vsel %vm3389, %v2275, %v2771
      %v3722 = vsel %vm3389, %v2278, %v2773
      %v3723 = vsel %vm3389, %v2280, %v2775
      %v3724 = vsel %vm3389, %v2283, %v2777
      %v3725 = vsel %vm3389, %v2285, %v2779
      %v3726 = vsel %vm3389, %v2288, %v2781
      %v3727 = vsel %vm3389, %v2290, %v2783
      %v3728 = vsel %vm3389, %v2293, %v2785
      %v3729 = vsel %vm3389, %v2295, %v2787
      %v3730 = vsel %vm3389, %v2298, %v2789
      %v3731 = vsel %vm3389, %v2300, %v2791
      %v3732 = vsel %vm3389, %v2303, %v2793
      %v3733 = vsel %vm3389, %v2305, %v2795
      %v3734 = vsel %vm3389, %v2308, %v2797
      %v3735 = vsel %vm3389, %v2310, %v2799
      %v3736 = vsel %vm3389, %v2313, %v2801
      %v3737 = vsel %vm3389, %v2315, %v2803
      %v3738 = vsel %vm3389, %v2318, %v2805
      %v3739 = vsel %vm3389, %v2320, %v2807
      %v3740 = vsel %vm3389, %v2323, %v2809
      %v3741 = vsel %vm3389, %v2325, %v2811
      %v3742 = vsel %vm3389, %v2328, %v2813
      %v3743 = vsel %vm3389, %v2330, %v2815
      %v3744 = vsel %vm3478, %v3656, %v3126
      %v3745 = vsel %vm3478, %v3657, %v3128
      %v3746 = vsel %vm3478, %v3658, %v3130
      %v3747 = vsel %vm3478, %v3659, %v3132
      %v3748 = vsel %vm3478, %v3660, %v3134
      %v3749 = vsel %vm3478, %v3661, %v3136
      %v3750 = vsel %vm3478, %v3662, %v3138
      %v3751 = vsel %vm3478, %v3663, %v3140
      %v3752 = vsel %vm3478, %v3664, %v3142
      %v3753 = vsel %vm3478, %v3665, %v3144
      %v3754 = vsel %vm3478, %v3666, %v3146
      %v3755 = vsel %vm3478, %v3667, %v3148
      %v3756 = vsel %vm3478, %v3668, %v3150
      %v3757 = vsel %vm3478, %v3669, %v3152
      %v3758 = vsel %vm3478, %v3670, %v3154
      %v3759 = vsel %vm3478, %v3671, %v3156
      %v3760 = vsel %vm3478, %v3672, %v3158
      %v3761 = vsel %vm3478, %v3673, %v3160
      %v3762 = vsel %vm3478, %v3674, %v3162
      %v3763 = vsel %vm3478, %v3675, %v3164
      %v3764 = vsel %vm3478, %v3676, %v3166
      %v3765 = vsel %vm3478, %v3677, %v3168
      %v3766 = vsel %vm3478, %v3678, %v3170
      %v3767 = vsel %vm3478, %v3679, %v3172
      %v3768 = vsel %vm3478, %v3680, %v3174
      %v3769 = vsel %vm3478, %v3681, %v3176
      %v3770 = vsel %vm3478, %v3682, %v3178
      %v3771 = vsel %vm3478, %v3683, %v3180
      %v3772 = vsel %vm3478, %v3684, %v3182
      %v3773 = vsel %vm3478, %v3685, %v3184
      %v3774 = vsel %vm3478, %v3686, %v3186
      %v3775 = vsel %vm3478, %v3687, %v3188
      %v3776 = vsel %vm3478, %v3688, %v3190
      %v3777 = vsel %vm3478, %v3689, %v3192
      %v3778 = vsel %vm3478, %v3690, %v3194
      %v3779 = vsel %vm3478, %v3691, %v3196
      %v3780 = vsel %vm3478, %v3692, %v3198
      %v3781 = vsel %vm3478, %v3693, %v3200
      %v3782 = vsel %vm3478, %v3694, %v3202
      %v3783 = vsel %vm3478, %v3695, %v3204
      %v3784 = vsel %vm3478, %v3696, %v3206
      %v3785 = vsel %vm3478, %v3697, %v3208
      %v3786 = vsel %vm3478, %v3698, %v3210
      %v3787 = vsel %vm3478, %v3699, %v3212
      %v3788 = vsel %vm3478, %v3700, %v3214
      %v3789 = vsel %vm3478, %v3701, %v3216
      %v3790 = vsel %vm3478, %v3702, %v3218
      %v3791 = vsel %vm3478, %v3703, %v3220
      %v3792 = vsel %vm3478, %v3704, %v3222
      %v3793 = vsel %vm3478, %v3705, %v3224
      %v3794 = vsel %vm3478, %v3706, %v3226
      %v3795 = vsel %vm3478, %v3707, %v3228
      %v3796 = vsel %vm3478, %v3708, %v3230
      %v3797 = vsel %vm3478, %v3709, %v3232
      %v3798 = vsel %vm3478, %v3710, %v3234
      %v3799 = vsel %vm3478, %v3711, %v3236
      %v3800 = vsel %vm3478, %v3712, %v3238
      %v3801 = vsel %vm3478, %v3713, %v3240
      %v3802 = vsel %vm3478, %v3714, %v3242
      %v3803 = vsel %vm3478, %v3715, %v3244
      %v3804 = vsel %vm3478, %v3716, %v3246
      %v3805 = vsel %vm3478, %v3717, %v3248
      %v3806 = vsel %vm3478, %v3718, %v3250
      %v3807 = vsel %vm3478, %v3719, %v3252
      %v3808 = vsel %vm3478, %v3720, %v3254
      %v3809 = vsel %vm3478, %v3721, %v3256
      %v3810 = vsel %vm3478, %v3722, %v3258
      %v3811 = vsel %vm3478, %v3723, %v3260
      %v3812 = vsel %vm3478, %v3724, %v3262
      %v3813 = vsel %vm3478, %v3725, %v3264
      %v3814 = vsel %vm3478, %v3726, %v3266
      %v3815 = vsel %vm3478, %v3727, %v3268
      %v3816 = vsel %vm3478, %v3728, %v3270
      %v3817 = vsel %vm3478, %v3729, %v3272
      %v3818 = vsel %vm3478, %v3730, %v3274
      %v3819 = vsel %vm3478, %v3731, %v3276
      %v3820 = vsel %vm3478, %v3732, %v3278
      %v3821 = vsel %vm3478, %v3733, %v3280
      %v3822 = vsel %vm3478, %v3734, %v3282
      %v3823 = vsel %vm3478, %v3735, %v3284
      %v3824 = vsel %vm3478, %v3736, %v3286
      %v3825 = vsel %vm3478, %v3737, %v3288
      %v3826 = vsel %vm3478, %v3738, %v3290
      %v3827 = vsel %vm3478, %v3739, %v3292
      %v3828 = vsel %vm3478, %v3740, %v3294
      %v3829 = vsel %vm3478, %v3741, %v3296
      %v3830 = vsel %vm3478, %v3742, %v3298
      %v3831 = vsel %vm3478, %v3743, %v3300
      %v3832 = vpack.c.bf16 %v3744, %v3568
      %v3833 = vpack.c.bf16 %v3745, %v3569
      %v3834 = vpack.c.bf16 %v3746, %v3570
      %v3835 = vpack.c.bf16 %v3747, %v3571
      %v3836 = vpack.c.bf16 %v3748, %v3572
      %v3837 = vpack.c.bf16 %v3749, %v3573
      %v3838 = vpack.c.bf16 %v3750, %v3574
      %v3839 = vpack.c.bf16 %v3751, %v3575
      %v3840 = vpack.c.bf16 %v3752, %v3576
      %v3841 = vpack.c.bf16 %v3753, %v3577
      %v3842 = vpack.c.bf16 %v3754, %v3578
      %v3843 = vpack.c.bf16 %v3755, %v3579
      %v3844 = vpack.c.bf16 %v3756, %v3580
      %v3845 = vpack.c.bf16 %v3757, %v3581
      %v3846 = vpack.c.bf16 %v3758, %v3582
      %v3847 = vpack.c.bf16 %v3759, %v3583
      %v3848 = vpack.c.bf16 %v3760, %v3584
      %v3849 = vpack.c.bf16 %v3761, %v3585
      %v3850 = vpack.c.bf16 %v3762, %v3586
      %v3851 = vpack.c.bf16 %v3763, %v3587
      %v3852 = vpack.c.bf16 %v3764, %v3588
      %v3853 = vpack.c.bf16 %v3765, %v3589
      %v3854 = vpack.c.bf16 %v3766, %v3590
      %v3855 = vpack.c.bf16 %v3767, %v3591
      %v3856 = vpack.c.bf16 %v3768, %v3592
      %v3857 = vpack.c.bf16 %v3769, %v3593
      %v3858 = vpack.c.bf16 %v3770, %v3594
      %v3859 = vpack.c.bf16 %v3771, %v3595
      %v3860 = vpack.c.bf16 %v3772, %v3596
      %v3861 = vpack.c.bf16 %v3773, %v3597
      %v3862 = vpack.c.bf16 %v3774, %v3598
      %v3863 = vpack.c.bf16 %v3775, %v3599
      %v3864 = vpack.c.bf16 %v3776, %v3600
      %v3865 = vpack.c.bf16 %v3777, %v3601
      %v3866 = vpack.c.bf16 %v3778, %v3602
      %v3867 = vpack.c.bf16 %v3779, %v3603
      %v3868 = vpack.c.bf16 %v3780, %v3604
      %v3869 = vpack.c.bf16 %v3781, %v3605
      %v3870 = vpack.c.bf16 %v3782, %v3606
      %v3871 = vpack.c.bf16 %v3783, %v3607
      %v3872 = vpack.c.bf16 %v3784, %v3608
      %v3873 = vpack.c.bf16 %v3785, %v3609
      %v3874 = vpack.c.bf16 %v3786, %v3610
      %v3875 = vpack.c.bf16 %v3787, %v3611
      %v3876 = vpack.c.bf16 %v3788, %v3612
      %v3877 = vpack.c.bf16 %v3789, %v3613
      %v3878 = vpack.c.bf16 %v3790, %v3614
      %v3879 = vpack.c.bf16 %v3791, %v3615
      %v3880 = vpack.c.bf16 %v3792, %v3616
      %v3881 = vpack.c.bf16 %v3793, %v3617
      %v3882 = vpack.c.bf16 %v3794, %v3618
      %v3883 = vpack.c.bf16 %v3795, %v3619
      %v3884 = vpack.c.bf16 %v3796, %v3620
      %v3885 = vpack.c.bf16 %v3797, %v3621
      %v3886 = vpack.c.bf16 %v3798, %v3622
      %v3887 = vpack.c.bf16 %v3799, %v3623
      %v3888 = vpack.c.bf16 %v3800, %v3624
      %v3889 = vpack.c.bf16 %v3801, %v3625
      %v3890 = vpack.c.bf16 %v3802, %v3626
      %v3891 = vpack.c.bf16 %v3803, %v3627
      %v3892 = vpack.c.bf16 %v3804, %v3628
      %v3893 = vpack.c.bf16 %v3805, %v3629
      %v3894 = vpack.c.bf16 %v3806, %v3630
      %v3895 = vpack.c.bf16 %v3807, %v3631
      %v3896 = vpack.c.bf16 %v3808, %v3632
      %v3897 = vpack.c.bf16 %v3809, %v3633
      %v3898 = vpack.c.bf16 %v3810, %v3634
      %v3899 = vpack.c.bf16 %v3811, %v3635
      %v3900 = vpack.c.bf16 %v3812, %v3636
      %v3901 = vpack.c.bf16 %v3813, %v3637
      %v3902 = vpack.c.bf16 %v3814, %v3638
      %v3903 = vpack.c.bf16 %v3815, %v3639
      %v3904 = vpack.c.bf16 %v3816, %v3640
      %v3905 = vpack.c.bf16 %v3817, %v3641
      %v3906 = vpack.c.bf16 %v3818, %v3642
      %v3907 = vpack.c.bf16 %v3819, %v3643
      %v3908 = vpack.c.bf16 %v3820, %v3644
      %v3909 = vpack.c.bf16 %v3821, %v3645
      %v3910 = vpack.c.bf16 %v3822, %v3646
      %v3911 = vpack.c.bf16 %v3823, %v3647
      %v3912 = vpack.c.bf16 %v3824, %v3648
      %v3913 = vpack.c.bf16 %v3825, %v3649
      %v3914 = vpack.c.bf16 %v3826, %v3650
      %v3915 = vpack.c.bf16 %v3827, %v3651
      %v3916 = vpack.c.bf16 %v3828, %v3652
      %v3917 = vpack.c.bf16 %v3829, %v3653
      %v3918 = vpack.c.bf16 %v3830, %v3654
      %v3919 = vpack.c.bf16 %v3831, %v3655
      %v3920 = vld [vmem:[%s239] sm:$0xf]
      %v3921 = vld [vmem:[%s239 + $0x4] sm:$0xf]
      %v3922 = vld [vmem:[%s239 + $0x8] sm:$0xf]
      %v3923 = vld [vmem:[%s239 + $0xc] sm:$0xf]
      %v3924 = vld [vmem:[%s239 + $0x10] sm:$0xf]
      %v3925 = vld [vmem:[%s239 + $0x14] sm:$0xf]
      %v3926 = vld [vmem:[%s239 + $0x18] sm:$0xf]
      %v3927 = vld [vmem:[%s239 + $0x1c] sm:$0xf]
      %v3928 = vld [vmem:[%s239 + $0x20] sm:$0xf]
      %v3929 = vld [vmem:[%s239 + $0x24] sm:$0xf]
      %v3930 = vld [vmem:[%s239 + $0x28] sm:$0xf]
      %v3931 = vld [vmem:[%s239 + $0x2c] sm:$0xf]
      %v3932 = vld [vmem:[%s239 + $0x30] sm:$0xf]
      %v3933 = vld [vmem:[%s239 + $0x34] sm:$0xf]
      %v3934 = vld [vmem:[%s239 + $0x38] sm:$0xf]
      %v3935 = vld [vmem:[%s239 + $0x3c] sm:$0xf]
      %v3936 = vld [vmem:[%s239 + $0x40] sm:$0xf]
      %v3937 = vld [vmem:[%s239 + $0x44] sm:$0xf]
      %v3938 = vld [vmem:[%s239 + $0x48] sm:$0xf]
      %v3939 = vld [vmem:[%s239 + $0x4c] sm:$0xf]
      %v3940 = vld [vmem:[%s239 + $0x50] sm:$0xf]
      %v3941 = vld [vmem:[%s239 + $0x54] sm:$0xf]
      %v3942 = vld [vmem:[%s239 + $0x58] sm:$0xf]
      %v3943 = vld [vmem:[%s239 + $0x5c] sm:$0xf]
      %v3944 = vld [vmem:[%s239 + $0x60] sm:$0xf]
      %v3945 = vld [vmem:[%s239 + $0x64] sm:$0xf]
      %v3946 = vld [vmem:[%s239 + $0x68] sm:$0xf]
      %v3947 = vld [vmem:[%s239 + $0x6c] sm:$0xf]
      %s3948 = scalar_lea.vmem %s239, 112
      %v3949 = vld [vmem:[%s3948] sm:$0xf]
      %v3950 = vld [vmem:[%s3948 + $0x4] sm:$0xf]
      %v3951 = vld [vmem:[%s3948 + $0x8] sm:$0xf]
      %v3952 = vld [vmem:[%s3948 + $0xc] sm:$0xf]
      %v3953 = vld [vmem:[%s3948 + $0x10] sm:$0xf]
      %v3954 = vld [vmem:[%s3948 + $0x14] sm:$0xf]
      %v3955 = vld [vmem:[%s3948 + $0x18] sm:$0xf]
      %v3956 = vld [vmem:[%s3948 + $0x1c] sm:$0xf]
      %v3957 = vld [vmem:[%s3948 + $0x20] sm:$0xf]
      %v3958 = vld [vmem:[%s3948 + $0x24] sm:$0xf]
      %v3959 = vld [vmem:[%s3948 + $0x28] sm:$0xf]
      %v3960 = vld [vmem:[%s3948 + $0x2c] sm:$0xf]
      %v3961 = vld [vmem:[%s3948 + $0x30] sm:$0xf]
      %v3962 = vld [vmem:[%s3948 + $0x34] sm:$0xf]
      %v3963 = vld [vmem:[%s3948 + $0x38] sm:$0xf]
      %v3964 = vld [vmem:[%s3948 + $0x3c] sm:$0xf]
      %v3965 = vld [vmem:[%s3948 + $0x40] sm:$0xf]
      %v3966 = vld [vmem:[%s3948 + $0x44] sm:$0xf]
      %v3967 = vld [vmem:[%s3948 + $0x48] sm:$0xf]
      %v3968 = vld [vmem:[%s3948 + $0x4c] sm:$0xf]
      %v3969 = vld [vmem:[%s3948 + $0x50] sm:$0xf]
      %v3970 = vld [vmem:[%s3948 + $0x54] sm:$0xf]
      %v3971 = vld [vmem:[%s3948 + $0x58] sm:$0xf]
      %v3972 = vld [vmem:[%s3948 + $0x5c] sm:$0xf]
      %v3973 = vld [vmem:[%s3948 + $0x60] sm:$0xf]
      %v3974 = vld [vmem:[%s3948 + $0x64] sm:$0xf]
      %v3975 = vld [vmem:[%s3948 + $0x68] sm:$0xf]
      %v3976 = vld [vmem:[%s3948 + $0x6c] sm:$0xf]
      %v4041 = vunpack.c.l.b16 %v3836
      %v4042 = vunpack.c.h.b16 %v3836
      %v4043 = vunpack.c.l.b16 %v3837
      %v4044 = vunpack.c.h.b16 %v3837
      %v4045 = vunpack.c.l.b16 %v3838
      %v4046 = vunpack.c.h.b16 %v3838
      %v4047 = vunpack.c.l.b16 %v3839
      %v4048 = vunpack.c.h.b16 %v3839
      %v4049 = vunpack.c.l.b16 %v3840
      %v4050 = vunpack.c.h.b16 %v3840
      %v4051 = vunpack.c.l.b16 %v3841
      %v4052 = vunpack.c.h.b16 %v3841
      %v4053 = vunpack.c.l.b16 %v3842
      %v4054 = vunpack.c.h.b16 %v3842
      %v4055 = vunpack.c.l.b16 %v3843
      %v4056 = vunpack.c.h.b16 %v3843
      %v4057 = vunpack.c.l.b16 %v3844
      %v4058 = vunpack.c.h.b16 %v3844
      %v4059 = vunpack.c.l.b16 %v3845
      %v4060 = vunpack.c.h.b16 %v3845
      %v4061 = vunpack.c.l.b16 %v3846
      %v4062 = vunpack.c.h.b16 %v3846
      %v4063 = vunpack.c.l.b16 %v3847
      %v4064 = vunpack.c.h.b16 %v3847
      %v4065 = vunpack.c.l.b16 %v3848
      %v4066 = vunpack.c.h.b16 %v3848
      %v4067 = vunpack.c.l.b16 %v3849
      %v4068 = vunpack.c.h.b16 %v3849
      %v4069 = vunpack.c.l.b16 %v3850
      %v4070 = vunpack.c.h.b16 %v3850
      %v4071 = vunpack.c.l.b16 %v3851
      %v4072 = vunpack.c.h.b16 %v3851
      %v4073 = vunpack.c.l.b16 %v3852
      %v4074 = vunpack.c.h.b16 %v3852
      %v4075 = vunpack.c.l.b16 %v3853
      %v4076 = vunpack.c.h.b16 %v3853
      %v4077 = vunpack.c.l.b16 %v3854
      %v4078 = vunpack.c.h.b16 %v3854
      %v4079 = vunpack.c.l.b16 %v3855
      %v4080 = vunpack.c.h.b16 %v3855
      %v4081 = vunpack.c.l.b16 %v3856
      %v4082 = vunpack.c.h.b16 %v3856
      %v4083 = vunpack.c.l.b16 %v3857
      %v4084 = vunpack.c.h.b16 %v3857
      %v4085 = vunpack.c.l.b16 %v3858
      %v4086 = vunpack.c.h.b16 %v3858
      %v4087 = vunpack.c.l.b16 %v3859
      %v4088 = vunpack.c.h.b16 %v3859
      %v4089 = vunpack.c.l.b16 %v3860
      %v4090 = vunpack.c.h.b16 %v3860
      %v4091 = vunpack.c.l.b16 %v3861
      %v4092 = vunpack.c.h.b16 %v3861
      %v4093 = vunpack.c.l.b16 %v3862
      %v4094 = vunpack.c.h.b16 %v3862
      %v4095 = vunpack.c.l.b16 %v3863
      %v4096 = vunpack.c.h.b16 %v3863
      %v4097 = vunpack.c.l.b16 %v3864
      %v4098 = vunpack.c.h.b16 %v3864
      %v4099 = vunpack.c.l.b16 %v3865
      %v4100 = vunpack.c.h.b16 %v3865
      %v4101 = vunpack.c.l.b16 %v3866
      %v4102 = vunpack.c.h.b16 %v3866
      %v4103 = vunpack.c.l.b16 %v3867
      %v4104 = vunpack.c.h.b16 %v3867
      %v4105 = vunpack.c.l.b16 %v3868
      %v4106 = vunpack.c.h.b16 %v3868
      %v4107 = vunpack.c.l.b16 %v3869
      %v4108 = vunpack.c.h.b16 %v3869
      %v4109 = vunpack.c.l.b16 %v3870
      %v4110 = vunpack.c.h.b16 %v3870
      %v4111 = vunpack.c.l.b16 %v3871
      %v4112 = vunpack.c.h.b16 %v3871
      %v4113 = vunpack.c.l.b16 %v3872
      %v4114 = vunpack.c.h.b16 %v3872
      %v4115 = vunpack.c.l.b16 %v3873
      %v4116 = vunpack.c.h.b16 %v3873
      %v4117 = vunpack.c.l.b16 %v3874
      %v4118 = vunpack.c.h.b16 %v3874
      %v4119 = vunpack.c.l.b16 %v3875
      %v4120 = vunpack.c.h.b16 %v3875
      %v4121 = vunpack.c.l.b16 %v3876
      %v4122 = vunpack.c.h.b16 %v3876
      %v4123 = vunpack.c.l.b16 %v3877
      %v4124 = vunpack.c.h.b16 %v3877
      %v4125 = vunpack.c.l.b16 %v3878
      %v4126 = vunpack.c.h.b16 %v3878
      %v4127 = vunpack.c.l.b16 %v3879
      %v4128 = vunpack.c.h.b16 %v3879
      %v4129 = vunpack.c.l.b16 %v3880
      %v4130 = vunpack.c.h.b16 %v3880
      %v4131 = vunpack.c.l.b16 %v3881
      %v4132 = vunpack.c.h.b16 %v3881
      %v4133 = vunpack.c.l.b16 %v3882
      %v4134 = vunpack.c.h.b16 %v3882
      %v4135 = vunpack.c.l.b16 %v3883
      %v4136 = vunpack.c.h.b16 %v3883
      %v4137 = vunpack.c.l.b16 %v3884
      %v4138 = vunpack.c.h.b16 %v3884
      %v4139 = vunpack.c.l.b16 %v3885
      %v4140 = vunpack.c.h.b16 %v3885
      %v4141 = vunpack.c.l.b16 %v3886
      %v4142 = vunpack.c.h.b16 %v3886
      %v4143 = vunpack.c.l.b16 %v3887
      %v4144 = vunpack.c.h.b16 %v3887
      %v4145 = vunpack.c.l.b16 %v3888
      %v4146 = vunpack.c.h.b16 %v3888
      %v4147 = vunpack.c.l.b16 %v3889
      %v4148 = vunpack.c.h.b16 %v3889
      %v4149 = vunpack.c.l.b16 %v3890
      %v4150 = vunpack.c.h.b16 %v3890
      %v4151 = vunpack.c.l.b16 %v3891
      %v4152 = vunpack.c.h.b16 %v3891
      %v4153 = vunpack.c.l.b16 %v3892
      %v4154 = vunpack.c.h.b16 %v3892
      %v4155 = vunpack.c.l.b16 %v3893
      %v4156 = vunpack.c.h.b16 %v3893
      %v4157 = vunpack.c.l.b16 %v3894
      %v4158 = vunpack.c.h.b16 %v3894
      %v4159 = vunpack.c.l.b16 %v3895
      %v4160 = vunpack.c.h.b16 %v3895
      %v4161 = vunpack.c.l.b16 %v3896
      %v4162 = vunpack.c.h.b16 %v3896
      %v4163 = vunpack.c.l.b16 %v3897
      %v4164 = vunpack.c.h.b16 %v3897
      %v4165 = vunpack.c.l.b16 %v3898
      %v4166 = vunpack.c.h.b16 %v3898
      %v4167 = vunpack.c.l.b16 %v3899
      %v4168 = vunpack.c.h.b16 %v3899
      %v4169 = vpack.c.b16 %v4043, %v4041
      %v4170 = vpack.c.b16 %v4044, %v4042
      %v4171 = vpack.c.b16 %v4047, %v4045
      %v4172 = vpack.c.b16 %v4048, %v4046
      %v4173 = vpack.c.b16 %v4051, %v4049
      %v4174 = vpack.c.b16 %v4052, %v4050
      %v4175 = vpack.c.b16 %v4055, %v4053
      %v4176 = vpack.c.b16 %v4056, %v4054
      %v4177 = vpack.c.b16 %v4059, %v4057
      %v4178 = vpack.c.b16 %v4060, %v4058
      %v4179 = vpack.c.b16 %v4063, %v4061
      %v4180 = vpack.c.b16 %v4064, %v4062
      %v4181 = vpack.c.b16 %v4067, %v4065
      %v4182 = vpack.c.b16 %v4068, %v4066
      %v4183 = vpack.c.b16 %v4071, %v4069
      %v4184 = vpack.c.b16 %v4072, %v4070
      %v4185 = vpack.c.b16 %v4075, %v4073
      %v4186 = vpack.c.b16 %v4076, %v4074
      %v4187 = vpack.c.b16 %v4079, %v4077
      %v4188 = vpack.c.b16 %v4080, %v4078
      %v4189 = vpack.c.b16 %v4083, %v4081
      %v4190 = vpack.c.b16 %v4084, %v4082
      %v4191 = vpack.c.b16 %v4087, %v4085
      %v4192 = vpack.c.b16 %v4088, %v4086
      %v4193 = vpack.c.b16 %v4091, %v4089
      %v4194 = vpack.c.b16 %v4092, %v4090
      %v4195 = vpack.c.b16 %v4095, %v4093
      %v4196 = vpack.c.b16 %v4096, %v4094
      %v4197 = vpack.c.b16 %v4099, %v4097
      %v4198 = vpack.c.b16 %v4100, %v4098
      %v4199 = vpack.c.b16 %v4103, %v4101
      %v4200 = vpack.c.b16 %v4104, %v4102
      %v4201 = vpack.c.b16 %v4107, %v4105
      %v4202 = vpack.c.b16 %v4108, %v4106
      %v4203 = vpack.c.b16 %v4111, %v4109
      %v4204 = vpack.c.b16 %v4112, %v4110
      %v4205 = vpack.c.b16 %v4115, %v4113
      %v4206 = vpack.c.b16 %v4116, %v4114
      %v4207 = vpack.c.b16 %v4119, %v4117
      %v4208 = vpack.c.b16 %v4120, %v4118
      %v4209 = vpack.c.b16 %v4123, %v4121
      %v4210 = vpack.c.b16 %v4124, %v4122
      %v4211 = vpack.c.b16 %v4127, %v4125
      %v4212 = vpack.c.b16 %v4128, %v4126
      %v4213 = vpack.c.b16 %v4131, %v4129
      %v4214 = vpack.c.b16 %v4132, %v4130
      %v4215 = vpack.c.b16 %v4135, %v4133
      %v4216 = vpack.c.b16 %v4136, %v4134
      %v4217 = vpack.c.b16 %v4139, %v4137
      %v4218 = vpack.c.b16 %v4140, %v4138
      %v4219 = vpack.c.b16 %v4143, %v4141
      %v4220 = vpack.c.b16 %v4144, %v4142
      %v4221 = vpack.c.b16 %v4147, %v4145
      %v4222 = vpack.c.b16 %v4148, %v4146
      %v4223 = vpack.c.b16 %v4151, %v4149
      %v4224 = vpack.c.b16 %v4152, %v4150
      %v4225 = vpack.c.b16 %v4155, %v4153
      %v4226 = vpack.c.b16 %v4156, %v4154
      %v4227 = vpack.c.b16 %v4159, %v4157
      %v4228 = vpack.c.b16 %v4160, %v4158
      %v4229 = vpack.c.b16 %v4163, %v4161
      %v4230 = vpack.c.b16 %v4164, %v4162
      %v4231 = vpack.c.b16 %v4167, %v4165
      %v4232 = vpack.c.b16 %v4168, %v4166
      %v4293 = vunpack.c.l.b16 %v3949
      %v4294 = vunpack.c.l.b16 %v3950
      %v4295 = vunpack.c.l.b16 %v3951
      %v4296 = vunpack.c.l.b16 %v3952
      %v4297 = vunpack.c.l.b16 %v3953
      %v4298 = vunpack.c.l.b16 %v3954
      %v4299 = vunpack.c.l.b16 %v3955
      %v4300 = vunpack.c.l.b16 %v3956
      %v4301 = vunpack.c.l.b16 %v3957
      %v4302 = vunpack.c.l.b16 %v3958
      %v4303 = vunpack.c.l.b16 %v3959
      %v4304 = vunpack.c.l.b16 %v3960
      %v4305 = vunpack.c.l.b16 %v3961
      %v4306 = vunpack.c.l.b16 %v3962
      %v4307 = vunpack.c.l.b16 %v3963
      %v4308 = vunpack.c.l.b16 %v3964
      %v4309 = vunpack.c.l.b16 %v3965
      %v4310 = vunpack.c.l.b16 %v3966
      %v4311 = vunpack.c.l.b16 %v3967
      %v4312 = vunpack.c.l.b16 %v3968
      %v4313 = vunpack.c.l.b16 %v3969
      %v4314 = vunpack.c.l.b16 %v3970
      %v4315 = vunpack.c.l.b16 %v3971
      %v4316 = vunpack.c.l.b16 %v3972
      %v4317 = vunpack.c.l.b16 %v3973
      %v4318 = vunpack.c.l.b16 %v3974
      %v4319 = vunpack.c.l.b16 %v3975
      %v4320 = vunpack.c.l.b16 %v3976
      %v4321 = vpack.c.b16 %v4294, %v4293
      %v4322 = vpack.c.b16 %v4296, %v4295
      %v4323 = vpack.c.b16 %v4298, %v4297
      %v4324 = vpack.c.b16 %v4300, %v4299
      %v4325 = vpack.c.b16 %v4302, %v4301
      %v4326 = vpack.c.b16 %v4304, %v4303
      %v4327 = vpack.c.b16 %v4306, %v4305
      %v4328 = vpack.c.b16 %v4308, %v4307
      %v4329 = vpack.c.b16 %v4310, %v4309
      %v4330 = vpack.c.b16 %v4312, %v4311
      %v4331 = vpack.c.b16 %v4314, %v4313
      %v4332 = vpack.c.b16 %v4316, %v4315
      %v4333 = vpack.c.b16 %v4318, %v4317
      %v4334 = vpack.c.b16 %v4320, %v4319
      %v4350 = vsel %vm3567, %v4170, 0
      %v4353 = vsel %vm3567, %v4172, 0
      %v4356 = vsel %vm3567, %v4174, 0
      %v4359 = vsel %vm3567, %v4176, 0
      %v4362 = vsel %vm3567, %v4178, 0
      %v4365 = vsel %vm3567, %v4180, 0
      %v4368 = vsel %vm3567, %v4182, 0
      %v4371 = vsel %vm3567, %v4184, 0
      %v4374 = vsel %vm3567, %v4186, 0
      %v4377 = vsel %vm3567, %v4188, 0
      %v4380 = vsel %vm3567, %v4190, 0
      %v4383 = vsel %vm3567, %v4192, 0
      %v4386 = vsel %vm3567, %v4194, 0
      %v4389 = vsel %vm3567, %v4196, 0
      %v4392 = vsel %vm3567, %v4198, 0
      %v4395 = vsel %vm3567, %v4200, 0
      %v4398 = vsel %vm3567, %v4202, 0
      %v4401 = vsel %vm3567, %v4204, 0
      %v4404 = vsel %vm3567, %v4206, 0
      %v4407 = vsel %vm3567, %v4208, 0
      %v4410 = vsel %vm3567, %v4210, 0
      %v4413 = vsel %vm3567, %v4212, 0
      %v4416 = vsel %vm3567, %v4214, 0
      %v4419 = vsel %vm3567, %v4216, 0
      %v4422 = vsel %vm3567, %v4218, 0
      %v4425 = vsel %vm3567, %v4220, 0
      %v4428 = vsel %vm3567, %v4222, 0
      %v4431 = vsel %vm3567, %v4224, 0
      %v4434 = vsel %vm3567, %v4226, 0
      %v4437 = vsel %vm3567, %v4228, 0
      %v4440 = vsel %vm3567, %v4230, 0
      %v4443 = vsel %vm3567, %v4232, 0
      %4445 = vmatpush.bf16.msra.mxu0 %v4328
      %4446 = vmatpush.bf16.msra.mxu0 %v4327
      %4447 = vmatpush.bf16.msra.mxu0 %v4326
      %4448 = vmatpush.bf16.msra.mxu0 %v4325
      %4449 = vmatpush.bf16.msra.mxu0 %v4324
      %4450 = vmatpush.bf16.msra.mxu0 %v4323
      %4451 = vmatpush.bf16.msra.mxu0 %v4322
      %4452 = vmatpush.bf16.msra.mxu0 %v4321
      %4453 = vmatmul.bf16.gmra.mxu0 %v4169
      %v4454 = vpop.f32.mrf.mxu0
      %v4455 = vadd.f32 0.0, %v4454
      %v4456 = vpop.f32.mrf.mxu0
      %v4457 = vadd.f32 0.0, %v4456
      %4458 = vmatmul.bf16.gmra.mxu0 %v4171
      %v4459 = vpop.f32.mrf.mxu0
      %v4460 = vadd.f32 0.0, %v4459
      %v4461 = vpop.f32.mrf.mxu0
      %v4462 = vadd.f32 0.0, %v4461
      %4463 = vmatmul.bf16.gmra.mxu0 %v4173
      %v4464 = vpop.f32.mrf.mxu0
      %v4465 = vadd.f32 0.0, %v4464
      %v4466 = vpop.f32.mrf.mxu0
      %v4467 = vadd.f32 0.0, %v4466
      %4468 = vmatmul.bf16.gmra.mxu0 %v4175
      %v4469 = vpop.f32.mrf.mxu0
      %v4470 = vadd.f32 0.0, %v4469
      %v4471 = vpop.f32.mrf.mxu0
      %v4472 = vadd.f32 0.0, %v4471
      %4473 = vmatmul.bf16.gmra.mxu0 %v4177
      %v4474 = vpop.f32.mrf.mxu0
      %v4475 = vadd.f32 0.0, %v4474
      %v4476 = vpop.f32.mrf.mxu0
      %v4477 = vadd.f32 0.0, %v4476
      %4478 = vmatmul.bf16.gmra.mxu0 %v4179
      %v4479 = vpop.f32.mrf.mxu0
      %v4480 = vadd.f32 0.0, %v4479
      %v4481 = vpop.f32.mrf.mxu0
      %v4482 = vadd.f32 0.0, %v4481
      %4483 = vmatmul.bf16.gmra.mxu0 %v4181
      %v4484 = vpop.f32.mrf.mxu0
      %v4485 = vadd.f32 0.0, %v4484
      %v4486 = vpop.f32.mrf.mxu0
      %v4487 = vadd.f32 0.0, %v4486
      %4488 = vmatmul.bf16.gmra.mxu0 %v4183
      %v4489 = vpop.f32.mrf.mxu0
      %v4490 = vadd.f32 0.0, %v4489
      %v4491 = vpop.f32.mrf.mxu0
      %v4492 = vadd.f32 0.0, %v4491
      %4493 = vmatmul.bf16.gmra.mxu0 %v4185
      %v4494 = vpop.f32.mrf.mxu0
      %v4495 = vadd.f32 0.0, %v4494
      %v4496 = vpop.f32.mrf.mxu0
      %v4497 = vadd.f32 0.0, %v4496
      %4498 = vmatmul.bf16.gmra.mxu0 %v4187
      %v4499 = vpop.f32.mrf.mxu0
      %v4500 = vadd.f32 0.0, %v4499
      %v4501 = vpop.f32.mrf.mxu0
      %v4502 = vadd.f32 0.0, %v4501
      %4503 = vmatmul.bf16.gmra.mxu0 %v4189
      %v4504 = vpop.f32.mrf.mxu0
      %v4505 = vadd.f32 0.0, %v4504
      %v4506 = vpop.f32.mrf.mxu0
      %v4507 = vadd.f32 0.0, %v4506
      %4508 = vmatmul.bf16.gmra.mxu0 %v4191
      %v4509 = vpop.f32.mrf.mxu0
      %v4510 = vadd.f32 0.0, %v4509
      %v4511 = vpop.f32.mrf.mxu0
      %v4512 = vadd.f32 0.0, %v4511
      %4513 = vmatmul.bf16.gmra.mxu0 %v4193
      %v4514 = vpop.f32.mrf.mxu0
      %v4515 = vadd.f32 0.0, %v4514
      %v4516 = vpop.f32.mrf.mxu0
      %v4517 = vadd.f32 0.0, %v4516
      %4518 = vmatmul.bf16.gmra.mxu0 %v4195
      %v4519 = vpop.f32.mrf.mxu0
      %v4520 = vadd.f32 0.0, %v4519
      %v4521 = vpop.f32.mrf.mxu0
      %v4522 = vadd.f32 0.0, %v4521
      %4523 = vmatmul.bf16.gmra.mxu0 %v4197
      %v4524 = vpop.f32.mrf.mxu0
      %v4525 = vadd.f32 0.0, %v4524
      %v4526 = vpop.f32.mrf.mxu0
      %v4527 = vadd.f32 0.0, %v4526
      %4528 = vmatmul.bf16.gmra.mxu0 %v4199
      %v4529 = vpop.f32.mrf.mxu0
      %v4530 = vadd.f32 0.0, %v4529
      %v4531 = vpop.f32.mrf.mxu0
      %v4532 = vadd.f32 0.0, %v4531
      %4533 = vmatmul.bf16.gmra.mxu0 %v4201
      %v4534 = vpop.f32.mrf.mxu0
      %v4535 = vadd.f32 0.0, %v4534
      %v4536 = vpop.f32.mrf.mxu0
      %v4537 = vadd.f32 0.0, %v4536
      %4538 = vmatmul.bf16.gmra.mxu0 %v4203
      %v4539 = vpop.f32.mrf.mxu0
      %v4540 = vadd.f32 0.0, %v4539
      %v4541 = vpop.f32.mrf.mxu0
      %v4542 = vadd.f32 0.0, %v4541
      %4543 = vmatmul.bf16.gmra.mxu0 %v4205
      %v4544 = vpop.f32.mrf.mxu0
      %v4545 = vadd.f32 0.0, %v4544
      %v4546 = vpop.f32.mrf.mxu0
      %v4547 = vadd.f32 0.0, %v4546
      %4548 = vmatmul.bf16.gmra.mxu0 %v4207
      %v4549 = vpop.f32.mrf.mxu0
      %v4550 = vadd.f32 0.0, %v4549
      %v4551 = vpop.f32.mrf.mxu0
      %v4552 = vadd.f32 0.0, %v4551
      %4553 = vmatmul.bf16.gmra.mxu0 %v4209
      %v4554 = vpop.f32.mrf.mxu0
      %v4555 = vadd.f32 0.0, %v4554
      %v4556 = vpop.f32.mrf.mxu0
      %v4557 = vadd.f32 0.0, %v4556
      %4558 = vmatmul.bf16.gmra.mxu0 %v4211
      %v4559 = vpop.f32.mrf.mxu0
      %v4560 = vadd.f32 0.0, %v4559
      %v4561 = vpop.f32.mrf.mxu0
      %v4562 = vadd.f32 0.0, %v4561
      %4563 = vmatmul.bf16.gmra.mxu0 %v4213
      %v4564 = vpop.f32.mrf.mxu0
      %v4565 = vadd.f32 0.0, %v4564
      %v4566 = vpop.f32.mrf.mxu0
      %v4567 = vadd.f32 0.0, %v4566
      %4568 = vmatmul.bf16.gmra.mxu0 %v4215
      %v4569 = vpop.f32.mrf.mxu0
      %v4570 = vadd.f32 0.0, %v4569
      %v4571 = vpop.f32.mrf.mxu0
      %v4572 = vadd.f32 0.0, %v4571
      %4573 = vmatmul.bf16.gmra.mxu0 %v4217
      %v4574 = vpop.f32.mrf.mxu0
      %v4575 = vadd.f32 0.0, %v4574
      %v4576 = vpop.f32.mrf.mxu0
      %v4577 = vadd.f32 0.0, %v4576
      %4578 = vmatmul.bf16.gmra.mxu0 %v4219
      %v4579 = vpop.f32.mrf.mxu0
      %v4580 = vadd.f32 0.0, %v4579
      %v4581 = vpop.f32.mrf.mxu0
      %v4582 = vadd.f32 0.0, %v4581
      %4583 = vmatmul.bf16.gmra.mxu0 %v4221
      %v4584 = vpop.f32.mrf.mxu0
      %v4585 = vadd.f32 0.0, %v4584
      %v4586 = vpop.f32.mrf.mxu0
      %v4587 = vadd.f32 0.0, %v4586
      %4588 = vmatmul.bf16.gmra.mxu0 %v4223
      %v4589 = vpop.f32.mrf.mxu0
      %v4590 = vadd.f32 0.0, %v4589
      %v4591 = vpop.f32.mrf.mxu0
      %v4592 = vadd.f32 0.0, %v4591
      %4593 = vmatmul.bf16.gmra.mxu0 %v4225
      %v4594 = vpop.f32.mrf.mxu0
      %v4595 = vadd.f32 0.0, %v4594
      %v4596 = vpop.f32.mrf.mxu0
      %v4597 = vadd.f32 0.0, %v4596
      %4598 = vmatmul.bf16.gmra.mxu0 %v4227
      %v4599 = vpop.f32.mrf.mxu0
      %v4600 = vadd.f32 0.0, %v4599
      %v4601 = vpop.f32.mrf.mxu0
      %v4602 = vadd.f32 0.0, %v4601
      %4603 = vmatmul.bf16.gmra.mxu0 %v4229
      %v4604 = vpop.f32.mrf.mxu0
      %v4605 = vadd.f32 0.0, %v4604
      %v4606 = vpop.f32.mrf.mxu0
      %v4607 = vadd.f32 0.0, %v4606
      %4608 = vmatmul.bf16.gmra.mxu0 %v4231
      %v4609 = vpop.f32.mrf.mxu0
      %v4610 = vadd.f32 0.0, %v4609
      %v4611 = vpop.f32.mrf.mxu0
      %v4612 = vadd.f32 0.0, %v4611
      %4613 = vdwg.mxu0
      %4614 = vmatpush.bf16.msra.mxu0 0
      %4615 = vmatpush.bf16.msra.mxu0 0
      %4616 = vmatpush.bf16.msra.mxu0 %v4334
      %4617 = vmatpush.bf16.msra.mxu0 %v4333
      %4618 = vmatpush.bf16.msra.mxu0 %v4332
      %4619 = vmatpush.bf16.msra.mxu0 %v4331
      %4620 = vmatpush.bf16.msra.mxu0 %v4330
      %4621 = vmatpush.bf16.msra.mxu0 %v4329
      %4622 = vmatmul.bf16.gmra.mxu0 %v4350
      %v4623 = vpop.f32.mrf.mxu0
      %v4624 = vadd.f32 %v4455, %v4623
      %v4625 = vpop.f32.mrf.mxu0
      %v4626 = vadd.f32 %v4457, %v4625
      %4627 = vmatmul.bf16.gmra.mxu0 %v4353
      %v4628 = vpop.f32.mrf.mxu0
      %v4629 = vadd.f32 %v4460, %v4628
      %v4630 = vpop.f32.mrf.mxu0
      %v4631 = vadd.f32 %v4462, %v4630
      %4632 = vmatmul.bf16.gmra.mxu0 %v4356
      %v4633 = vpop.f32.mrf.mxu0
      %v4634 = vadd.f32 %v4465, %v4633
      %v4635 = vpop.f32.mrf.mxu0
      %v4636 = vadd.f32 %v4467, %v4635
      %4637 = vmatmul.bf16.gmra.mxu0 %v4359
      %v4638 = vpop.f32.mrf.mxu0
      %v4639 = vadd.f32 %v4470, %v4638
      %v4640 = vpop.f32.mrf.mxu0
      %v4641 = vadd.f32 %v4472, %v4640
      %4642 = vmatmul.bf16.gmra.mxu0 %v4362
      %v4643 = vpop.f32.mrf.mxu0
      %v4644 = vadd.f32 %v4475, %v4643
      %v4645 = vpop.f32.mrf.mxu0
      %v4646 = vadd.f32 %v4477, %v4645
      %4647 = vmatmul.bf16.gmra.mxu0 %v4365
      %v4648 = vpop.f32.mrf.mxu0
      %v4649 = vadd.f32 %v4480, %v4648
      %v4650 = vpop.f32.mrf.mxu0
      %v4651 = vadd.f32 %v4482, %v4650
      %4652 = vmatmul.bf16.gmra.mxu0 %v4368
      %v4653 = vpop.f32.mrf.mxu0
      %v4654 = vadd.f32 %v4485, %v4653
      %v4655 = vpop.f32.mrf.mxu0
      %v4656 = vadd.f32 %v4487, %v4655
      %4657 = vmatmul.bf16.gmra.mxu0 %v4371
      %v4658 = vpop.f32.mrf.mxu0
      %v4659 = vadd.f32 %v4490, %v4658
      %v4660 = vpop.f32.mrf.mxu0
      %v4661 = vadd.f32 %v4492, %v4660
      %4662 = vmatmul.bf16.gmra.mxu0 %v4374
      %v4663 = vpop.f32.mrf.mxu0
      %v4664 = vadd.f32 %v4495, %v4663
      %v4665 = vpop.f32.mrf.mxu0
      %v4666 = vadd.f32 %v4497, %v4665
      %4667 = vmatmul.bf16.gmra.mxu0 %v4377
      %v4668 = vpop.f32.mrf.mxu0
      %v4669 = vadd.f32 %v4500, %v4668
      %v4670 = vpop.f32.mrf.mxu0
      %v4671 = vadd.f32 %v4502, %v4670
      %4672 = vmatmul.bf16.gmra.mxu0 %v4380
      %v4673 = vpop.f32.mrf.mxu0
      %v4674 = vadd.f32 %v4505, %v4673
      %v4675 = vpop.f32.mrf.mxu0
      %v4676 = vadd.f32 %v4507, %v4675
      %4677 = vmatmul.bf16.gmra.mxu0 %v4383
      %v4678 = vpop.f32.mrf.mxu0
      %v4679 = vadd.f32 %v4510, %v4678
      %v4680 = vpop.f32.mrf.mxu0
      %v4681 = vadd.f32 %v4512, %v4680
      %4682 = vmatmul.bf16.gmra.mxu0 %v4386
      %v4683 = vpop.f32.mrf.mxu0
      %v4684 = vadd.f32 %v4515, %v4683
      %v4685 = vpop.f32.mrf.mxu0
      %v4686 = vadd.f32 %v4517, %v4685
      %4687 = vmatmul.bf16.gmra.mxu0 %v4389
      %v4688 = vpop.f32.mrf.mxu0
      %v4689 = vadd.f32 %v4520, %v4688
      %v4690 = vpop.f32.mrf.mxu0
      %v4691 = vadd.f32 %v4522, %v4690
      %4692 = vmatmul.bf16.gmra.mxu0 %v4392
      %v4693 = vpop.f32.mrf.mxu0
      %v4694 = vadd.f32 %v4525, %v4693
      %v4695 = vpop.f32.mrf.mxu0
      %v4696 = vadd.f32 %v4527, %v4695
      %4697 = vmatmul.bf16.gmra.mxu0 %v4395
      %v4698 = vpop.f32.mrf.mxu0
      %v4699 = vadd.f32 %v4530, %v4698
      %v4700 = vpop.f32.mrf.mxu0
      %v4701 = vadd.f32 %v4532, %v4700
      %4702 = vmatmul.bf16.gmra.mxu0 %v4398
      %v4703 = vpop.f32.mrf.mxu0
      %v4704 = vadd.f32 %v4535, %v4703
      %v4705 = vpop.f32.mrf.mxu0
      %v4706 = vadd.f32 %v4537, %v4705
      %4707 = vmatmul.bf16.gmra.mxu0 %v4401
      %v4708 = vpop.f32.mrf.mxu0
      %v4709 = vadd.f32 %v4540, %v4708
      %v4710 = vpop.f32.mrf.mxu0
      %v4711 = vadd.f32 %v4542, %v4710
      %4712 = vmatmul.bf16.gmra.mxu0 %v4404
      %v4713 = vpop.f32.mrf.mxu0
      %v4714 = vadd.f32 %v4545, %v4713
      %v4715 = vpop.f32.mrf.mxu0
      %v4716 = vadd.f32 %v4547, %v4715
      %4717 = vmatmul.bf16.gmra.mxu0 %v4407
      %v4718 = vpop.f32.mrf.mxu0
      %v4719 = vadd.f32 %v4550, %v4718
      %v4720 = vpop.f32.mrf.mxu0
      %v4721 = vadd.f32 %v4552, %v4720
      %4722 = vmatmul.bf16.gmra.mxu0 %v4410
      %v4723 = vpop.f32.mrf.mxu0
      %v4724 = vadd.f32 %v4555, %v4723
      %v4725 = vpop.f32.mrf.mxu0
      %v4726 = vadd.f32 %v4557, %v4725
      %4727 = vmatmul.bf16.gmra.mxu0 %v4413
      %v4728 = vpop.f32.mrf.mxu0
      %v4729 = vadd.f32 %v4560, %v4728
      %v4730 = vpop.f32.mrf.mxu0
      %v4731 = vadd.f32 %v4562, %v4730
      %4732 = vmatmul.bf16.gmra.mxu0 %v4416
      %v4733 = vpop.f32.mrf.mxu0
      %v4734 = vadd.f32 %v4565, %v4733
      %v4735 = vpop.f32.mrf.mxu0
      %v4736 = vadd.f32 %v4567, %v4735
      %4737 = vmatmul.bf16.gmra.mxu0 %v4419
      %v4738 = vpop.f32.mrf.mxu0
      %v4739 = vadd.f32 %v4570, %v4738
      %v4740 = vpop.f32.mrf.mxu0
      %v4741 = vadd.f32 %v4572, %v4740
      %4742 = vmatmul.bf16.gmra.mxu0 %v4422
      %v4743 = vpop.f32.mrf.mxu0
      %v4744 = vadd.f32 %v4575, %v4743
      %v4745 = vpop.f32.mrf.mxu0
      %v4746 = vadd.f32 %v4577, %v4745
      %4747 = vmatmul.bf16.gmra.mxu0 %v4425
      %v4748 = vpop.f32.mrf.mxu0
      %v4749 = vadd.f32 %v4580, %v4748
      %v4750 = vpop.f32.mrf.mxu0
      %v4751 = vadd.f32 %v4582, %v4750
      %4752 = vmatmul.bf16.gmra.mxu0 %v4428
      %v4753 = vpop.f32.mrf.mxu0
      %v4754 = vadd.f32 %v4585, %v4753
      %v4755 = vpop.f32.mrf.mxu0
      %v4756 = vadd.f32 %v4587, %v4755
      %4757 = vmatmul.bf16.gmra.mxu0 %v4431
      %v4758 = vpop.f32.mrf.mxu0
      %v4759 = vadd.f32 %v4590, %v4758
      %v4760 = vpop.f32.mrf.mxu0
      %v4761 = vadd.f32 %v4592, %v4760
      %4762 = vmatmul.bf16.gmra.mxu0 %v4434
      %v4763 = vpop.f32.mrf.mxu0
      %v4764 = vadd.f32 %v4595, %v4763
      %v4765 = vpop.f32.mrf.mxu0
      %v4766 = vadd.f32 %v4597, %v4765
      %4767 = vmatmul.bf16.gmra.mxu0 %v4437
      %v4768 = vpop.f32.mrf.mxu0
      %v4769 = vadd.f32 %v4600, %v4768
      %v4770 = vpop.f32.mrf.mxu0
      %v4771 = vadd.f32 %v4602, %v4770
      %4772 = vmatmul.bf16.gmra.mxu0 %v4440
      %v4773 = vpop.f32.mrf.mxu0
      %v4774 = vadd.f32 %v4605, %v4773
      %v4775 = vpop.f32.mrf.mxu0
      %v4776 = vadd.f32 %v4607, %v4775
      %4777 = vmatmul.bf16.gmra.mxu0 %v4443
      %v4778 = vpop.f32.mrf.mxu0
      %v4779 = vadd.f32 %v4610, %v4778
      %v4780 = vpop.f32.mrf.mxu0
      %v4781 = vadd.f32 %v4612, %v4780
      %4782 = vdwg.mxu0
      %v4787 = vunpack.c.l.b16 %v3832
      %v4788 = vunpack.c.h.b16 %v3832
      %v4789 = vunpack.c.l.b16 %v3833
      %v4790 = vunpack.c.h.b16 %v3833
      %v4791 = vunpack.c.l.b16 %v3834
      %v4792 = vunpack.c.h.b16 %v3834
      %v4793 = vunpack.c.l.b16 %v3835
      %v4794 = vunpack.c.h.b16 %v3835
      %v4795 = vpack.c.b16 %v4789, %v4787
      %v4796 = vpack.c.b16 %v4790, %v4788
      %v4797 = vpack.c.b16 %v4793, %v4791
      %v4798 = vpack.c.b16 %v4794, %v4792
      %v4829 = vunpack.c.l.b16 %v3920
      %v4830 = vunpack.c.l.b16 %v3921
      %v4831 = vunpack.c.l.b16 %v3922
      %v4832 = vunpack.c.l.b16 %v3923
      %v4833 = vunpack.c.l.b16 %v3924
      %v4834 = vunpack.c.l.b16 %v3925
      %v4835 = vunpack.c.l.b16 %v3926
      %v4836 = vunpack.c.l.b16 %v3927
      %v4837 = vunpack.c.l.b16 %v3928
      %v4838 = vunpack.c.l.b16 %v3929
      %v4839 = vunpack.c.l.b16 %v3930
      %v4840 = vunpack.c.l.b16 %v3931
      %v4841 = vunpack.c.l.b16 %v3932
      %v4842 = vunpack.c.l.b16 %v3933
      %v4843 = vunpack.c.l.b16 %v3934
      %v4844 = vunpack.c.l.b16 %v3935
      %v4845 = vunpack.c.l.b16 %v3936
      %v4846 = vunpack.c.l.b16 %v3937
      %v4847 = vunpack.c.l.b16 %v3938
      %v4848 = vunpack.c.l.b16 %v3939
      %v4849 = vunpack.c.l.b16 %v3940
      %v4850 = vunpack.c.l.b16 %v3941
      %v4851 = vunpack.c.l.b16 %v3942
      %v4852 = vunpack.c.l.b16 %v3943
      %v4853 = vunpack.c.l.b16 %v3944
      %v4854 = vunpack.c.l.b16 %v3945
      %v4855 = vunpack.c.l.b16 %v3946
      %v4856 = vunpack.c.l.b16 %v3947
      %v4857 = vpack.c.b16 %v4830, %v4829
      %v4858 = vpack.c.b16 %v4832, %v4831
      %v4859 = vpack.c.b16 %v4834, %v4833
      %v4860 = vpack.c.b16 %v4836, %v4835
      %v4861 = vpack.c.b16 %v4838, %v4837
      %v4862 = vpack.c.b16 %v4840, %v4839
      %v4863 = vpack.c.b16 %v4842, %v4841
      %v4864 = vpack.c.b16 %v4844, %v4843
      %v4865 = vpack.c.b16 %v4846, %v4845
      %v4866 = vpack.c.b16 %v4848, %v4847
      %v4867 = vpack.c.b16 %v4850, %v4849
      %v4868 = vpack.c.b16 %v4852, %v4851
      %v4869 = vpack.c.b16 %v4854, %v4853
      %v4870 = vpack.c.b16 %v4856, %v4855
      %v4886 = vsel %vm3567, %v4796, 0
      %v4889 = vsel %vm3567, %v4798, 0
      %4891 = vmatpush.bf16.msra.mxu0 %v4864
      %4892 = vmatpush.bf16.msra.mxu0 %v4863
      %4893 = vmatpush.bf16.msra.mxu0 %v4862
      %4894 = vmatpush.bf16.msra.mxu0 %v4861
      %4895 = vmatpush.bf16.msra.mxu0 %v4860
      %4896 = vmatpush.bf16.msra.mxu0 %v4859
      %4897 = vmatpush.bf16.msra.mxu0 %v4858
      %4898 = vmatpush.bf16.msra.mxu0 %v4857
      %4899 = vmatmul.bf16.gmra.mxu0 %v4795
      %v4900 = vpop.f32.mrf.mxu0
      %v4901 = vadd.f32 %v4624, %v4900
      %v4902 = vpop.f32.mrf.mxu0
      %v4903 = vadd.f32 %v4626, %v4902
      %4904 = vmatmul.bf16.gmra.mxu0 %v4797
      %v4905 = vpop.f32.mrf.mxu0
      %v4906 = vadd.f32 %v4629, %v4905
      %v4907 = vpop.f32.mrf.mxu0
      %v4908 = vadd.f32 %v4631, %v4907
      %4909 = vmatmul.bf16.gmra.mxu0 %v4169
      %v4910 = vpop.f32.mrf.mxu0
      %v4911 = vadd.f32 %v4634, %v4910
      %v4912 = vpop.f32.mrf.mxu0
      %v4913 = vadd.f32 %v4636, %v4912
      %4914 = vmatmul.bf16.gmra.mxu0 %v4171
      %v4915 = vpop.f32.mrf.mxu0
      %v4916 = vadd.f32 %v4639, %v4915
      %v4917 = vpop.f32.mrf.mxu0
      %v4918 = vadd.f32 %v4641, %v4917
      %4919 = vmatmul.bf16.gmra.mxu0 %v4173
      %v4920 = vpop.f32.mrf.mxu0
      %v4921 = vadd.f32 %v4644, %v4920
      %v4922 = vpop.f32.mrf.mxu0
      %v4923 = vadd.f32 %v4646, %v4922
      %4924 = vmatmul.bf16.gmra.mxu0 %v4175
      %v4925 = vpop.f32.mrf.mxu0
      %v4926 = vadd.f32 %v4649, %v4925
      %v4927 = vpop.f32.mrf.mxu0
      %v4928 = vadd.f32 %v4651, %v4927
      %4929 = vmatmul.bf16.gmra.mxu0 %v4177
      %v4930 = vpop.f32.mrf.mxu0
      %v4931 = vadd.f32 %v4654, %v4930
      %v4932 = vpop.f32.mrf.mxu0
      %v4933 = vadd.f32 %v4656, %v4932
      %4934 = vmatmul.bf16.gmra.mxu0 %v4179
      %v4935 = vpop.f32.mrf.mxu0
      %v4936 = vadd.f32 %v4659, %v4935
      %v4937 = vpop.f32.mrf.mxu0
      %v4938 = vadd.f32 %v4661, %v4937
      %4939 = vmatmul.bf16.gmra.mxu0 %v4181
      %v4940 = vpop.f32.mrf.mxu0
      %v4941 = vadd.f32 %v4664, %v4940
      %v4942 = vpop.f32.mrf.mxu0
      %v4943 = vadd.f32 %v4666, %v4942
      %4944 = vmatmul.bf16.gmra.mxu0 %v4183
      %v4945 = vpop.f32.mrf.mxu0
      %v4946 = vadd.f32 %v4669, %v4945
      %v4947 = vpop.f32.mrf.mxu0
      %v4948 = vadd.f32 %v4671, %v4947
      %4949 = vmatmul.bf16.gmra.mxu0 %v4185
      %v4950 = vpop.f32.mrf.mxu0
      %v4951 = vadd.f32 %v4674, %v4950
      %v4952 = vpop.f32.mrf.mxu0
      %v4953 = vadd.f32 %v4676, %v4952
      %4954 = vmatmul.bf16.gmra.mxu0 %v4187
      %v4955 = vpop.f32.mrf.mxu0
      %v4956 = vadd.f32 %v4679, %v4955
      %v4957 = vpop.f32.mrf.mxu0
      %v4958 = vadd.f32 %v4681, %v4957
      %4959 = vmatmul.bf16.gmra.mxu0 %v4189
      %v4960 = vpop.f32.mrf.mxu0
      %v4961 = vadd.f32 %v4684, %v4960
      %v4962 = vpop.f32.mrf.mxu0
      %v4963 = vadd.f32 %v4686, %v4962
      %4964 = vmatmul.bf16.gmra.mxu0 %v4191
      %v4965 = vpop.f32.mrf.mxu0
      %v4966 = vadd.f32 %v4689, %v4965
      %v4967 = vpop.f32.mrf.mxu0
      %v4968 = vadd.f32 %v4691, %v4967
      %4969 = vmatmul.bf16.gmra.mxu0 %v4193
      %v4970 = vpop.f32.mrf.mxu0
      %v4971 = vadd.f32 %v4694, %v4970
      %v4972 = vpop.f32.mrf.mxu0
      %v4973 = vadd.f32 %v4696, %v4972
      %4974 = vmatmul.bf16.gmra.mxu0 %v4195
      %v4975 = vpop.f32.mrf.mxu0
      %v4976 = vadd.f32 %v4699, %v4975
      %v4977 = vpop.f32.mrf.mxu0
      %v4978 = vadd.f32 %v4701, %v4977
      %4979 = vmatmul.bf16.gmra.mxu0 %v4197
      %v4980 = vpop.f32.mrf.mxu0
      %v4981 = vadd.f32 %v4704, %v4980
      %v4982 = vpop.f32.mrf.mxu0
      %v4983 = vadd.f32 %v4706, %v4982
      %4984 = vmatmul.bf16.gmra.mxu0 %v4199
      %v4985 = vpop.f32.mrf.mxu0
      %v4986 = vadd.f32 %v4709, %v4985
      %v4987 = vpop.f32.mrf.mxu0
      %v4988 = vadd.f32 %v4711, %v4987
      %4989 = vmatmul.bf16.gmra.mxu0 %v4201
      %v4990 = vpop.f32.mrf.mxu0
      %v4991 = vadd.f32 %v4714, %v4990
      %v4992 = vpop.f32.mrf.mxu0
      %v4993 = vadd.f32 %v4716, %v4992
      %4994 = vmatmul.bf16.gmra.mxu0 %v4203
      %v4995 = vpop.f32.mrf.mxu0
      %v4996 = vadd.f32 %v4719, %v4995
      %v4997 = vpop.f32.mrf.mxu0
      %v4998 = vadd.f32 %v4721, %v4997
      %4999 = vmatmul.bf16.gmra.mxu0 %v4205
      %v5000 = vpop.f32.mrf.mxu0
      %v5001 = vadd.f32 %v4724, %v5000
      %v5002 = vpop.f32.mrf.mxu0
      %v5003 = vadd.f32 %v4726, %v5002
      %5004 = vmatmul.bf16.gmra.mxu0 %v4207
      %v5005 = vpop.f32.mrf.mxu0
      %v5006 = vadd.f32 %v4729, %v5005
      %v5007 = vpop.f32.mrf.mxu0
      %v5008 = vadd.f32 %v4731, %v5007
      %5009 = vmatmul.bf16.gmra.mxu0 %v4209
      %v5010 = vpop.f32.mrf.mxu0
      %v5011 = vadd.f32 %v4734, %v5010
      %v5012 = vpop.f32.mrf.mxu0
      %v5013 = vadd.f32 %v4736, %v5012
      %5014 = vmatmul.bf16.gmra.mxu0 %v4211
      %v5015 = vpop.f32.mrf.mxu0
      %v5016 = vadd.f32 %v4739, %v5015
      %v5017 = vpop.f32.mrf.mxu0
      %v5018 = vadd.f32 %v4741, %v5017
      %5019 = vmatmul.bf16.gmra.mxu0 %v4213
      %v5020 = vpop.f32.mrf.mxu0
      %v5021 = vadd.f32 %v4744, %v5020
      %v5022 = vpop.f32.mrf.mxu0
      %v5023 = vadd.f32 %v4746, %v5022
      %5024 = vmatmul.bf16.gmra.mxu0 %v4215
      %v5025 = vpop.f32.mrf.mxu0
      %v5026 = vadd.f32 %v4749, %v5025
      %v5027 = vpop.f32.mrf.mxu0
      %v5028 = vadd.f32 %v4751, %v5027
      %5029 = vmatmul.bf16.gmra.mxu0 %v4217
      %v5030 = vpop.f32.mrf.mxu0
      %v5031 = vadd.f32 %v4754, %v5030
      %v5032 = vpop.f32.mrf.mxu0
      %v5033 = vadd.f32 %v4756, %v5032
      %5034 = vmatmul.bf16.gmra.mxu0 %v4219
      %v5035 = vpop.f32.mrf.mxu0
      %v5036 = vadd.f32 %v4759, %v5035
      %v5037 = vpop.f32.mrf.mxu0
      %v5038 = vadd.f32 %v4761, %v5037
      %5039 = vmatmul.bf16.gmra.mxu0 %v4221
      %v5040 = vpop.f32.mrf.mxu0
      %v5041 = vadd.f32 %v4764, %v5040
      %v5042 = vpop.f32.mrf.mxu0
      %v5043 = vadd.f32 %v4766, %v5042
      %5044 = vmatmul.bf16.gmra.mxu0 %v4223
      %v5045 = vpop.f32.mrf.mxu0
      %v5046 = vadd.f32 %v4769, %v5045
      %v5047 = vpop.f32.mrf.mxu0
      %v5048 = vadd.f32 %v4771, %v5047
      %5049 = vmatmul.bf16.gmra.mxu0 %v4225
      %v5050 = vpop.f32.mrf.mxu0
      %v5051 = vadd.f32 %v4774, %v5050
      %v5052 = vpop.f32.mrf.mxu0
      %v5053 = vadd.f32 %v4776, %v5052
      %5054 = vmatmul.bf16.gmra.mxu0 %v4227
      %v5055 = vpop.f32.mrf.mxu0
      %v5056 = vadd.f32 %v4779, %v5055
      %v5057 = vpop.f32.mrf.mxu0
      %v5058 = vadd.f32 %v4781, %v5057
      %5059 = vdwg.mxu0
      %5060 = vmatpush.bf16.msra.mxu0 0
      %5061 = vmatpush.bf16.msra.mxu0 0
      %5062 = vmatpush.bf16.msra.mxu0 %v4870
      %5063 = vmatpush.bf16.msra.mxu0 %v4869
      %5064 = vmatpush.bf16.msra.mxu0 %v4868
      %5065 = vmatpush.bf16.msra.mxu0 %v4867
      %5066 = vmatpush.bf16.msra.mxu0 %v4866
      %5067 = vmatpush.bf16.msra.mxu0 %v4865
      %5068 = vmatmul.bf16.gmra.mxu0 %v4886
      %v5069 = vpop.f32.mrf.mxu0
      %v5070 = vadd.f32 %v4901, %v5069
      %v5071 = vpop.f32.mrf.mxu0
      %v5072 = vadd.f32 %v4903, %v5071
      %5073 = vmatmul.bf16.gmra.mxu0 %v4889
      %v5074 = vpop.f32.mrf.mxu0
      %v5075 = vadd.f32 %v4906, %v5074
      %v5076 = vpop.f32.mrf.mxu0
      %v5077 = vadd.f32 %v4908, %v5076
      %5078 = vmatmul.bf16.gmra.mxu0 %v4350
      %v5079 = vpop.f32.mrf.mxu0
      %v5080 = vadd.f32 %v4911, %v5079
      %v5081 = vpop.f32.mrf.mxu0
      %v5082 = vadd.f32 %v4913, %v5081
      %5083 = vmatmul.bf16.gmra.mxu0 %v4353
      %v5084 = vpop.f32.mrf.mxu0
      %v5085 = vadd.f32 %v4916, %v5084
      %v5086 = vpop.f32.mrf.mxu0
      %v5087 = vadd.f32 %v4918, %v5086
      %5088 = vmatmul.bf16.gmra.mxu0 %v4356
      %v5089 = vpop.f32.mrf.mxu0
      %v5090 = vadd.f32 %v4921, %v5089
      %v5091 = vpop.f32.mrf.mxu0
      %v5092 = vadd.f32 %v4923, %v5091
      %5093 = vmatmul.bf16.gmra.mxu0 %v4359
      %v5094 = vpop.f32.mrf.mxu0
      %v5095 = vadd.f32 %v4926, %v5094
      %v5096 = vpop.f32.mrf.mxu0
      %v5097 = vadd.f32 %v4928, %v5096
      %5098 = vmatmul.bf16.gmra.mxu0 %v4362
      %v5099 = vpop.f32.mrf.mxu0
      %v5100 = vadd.f32 %v4931, %v5099
      %v5101 = vpop.f32.mrf.mxu0
      %v5102 = vadd.f32 %v4933, %v5101
      %5103 = vmatmul.bf16.gmra.mxu0 %v4365
      %v5104 = vpop.f32.mrf.mxu0
      %v5105 = vadd.f32 %v4936, %v5104
      %v5106 = vpop.f32.mrf.mxu0
      %v5107 = vadd.f32 %v4938, %v5106
      %5108 = vmatmul.bf16.gmra.mxu0 %v4368
      %v5109 = vpop.f32.mrf.mxu0
      %v5110 = vadd.f32 %v4941, %v5109
      %v5111 = vpop.f32.mrf.mxu0
      %v5112 = vadd.f32 %v4943, %v5111
      %5113 = vmatmul.bf16.gmra.mxu0 %v4371
      %v5114 = vpop.f32.mrf.mxu0
      %v5115 = vadd.f32 %v4946, %v5114
      %v5116 = vpop.f32.mrf.mxu0
      %v5117 = vadd.f32 %v4948, %v5116
      %5118 = vmatmul.bf16.gmra.mxu0 %v4374
      %v5119 = vpop.f32.mrf.mxu0
      %v5120 = vadd.f32 %v4951, %v5119
      %v5121 = vpop.f32.mrf.mxu0
      %v5122 = vadd.f32 %v4953, %v5121
      %5123 = vmatmul.bf16.gmra.mxu0 %v4377
      %v5124 = vpop.f32.mrf.mxu0
      %v5125 = vadd.f32 %v4956, %v5124
      %v5126 = vpop.f32.mrf.mxu0
      %v5127 = vadd.f32 %v4958, %v5126
      %5128 = vmatmul.bf16.gmra.mxu0 %v4380
      %v5129 = vpop.f32.mrf.mxu0
      %v5130 = vadd.f32 %v4961, %v5129
      %v5131 = vpop.f32.mrf.mxu0
      %v5132 = vadd.f32 %v4963, %v5131
      %5133 = vmatmul.bf16.gmra.mxu0 %v4383
      %v5134 = vpop.f32.mrf.mxu0
      %v5135 = vadd.f32 %v4966, %v5134
      %v5136 = vpop.f32.mrf.mxu0
      %v5137 = vadd.f32 %v4968, %v5136
      %5138 = vmatmul.bf16.gmra.mxu0 %v4386
      %v5139 = vpop.f32.mrf.mxu0
      %v5140 = vadd.f32 %v4971, %v5139
      %v5141 = vpop.f32.mrf.mxu0
      %v5142 = vadd.f32 %v4973, %v5141
      %5143 = vmatmul.bf16.gmra.mxu0 %v4389
      %v5144 = vpop.f32.mrf.mxu0
      %v5145 = vadd.f32 %v4976, %v5144
      %v5146 = vpop.f32.mrf.mxu0
      %v5147 = vadd.f32 %v4978, %v5146
      %5148 = vmatmul.bf16.gmra.mxu0 %v4392
      %v5149 = vpop.f32.mrf.mxu0
      %v5150 = vadd.f32 %v4981, %v5149
      %v5151 = vpop.f32.mrf.mxu0
      %v5152 = vadd.f32 %v4983, %v5151
      %5153 = vmatmul.bf16.gmra.mxu0 %v4395
      %v5154 = vpop.f32.mrf.mxu0
      %v5155 = vadd.f32 %v4986, %v5154
      %v5156 = vpop.f32.mrf.mxu0
      %v5157 = vadd.f32 %v4988, %v5156
      %5158 = vmatmul.bf16.gmra.mxu0 %v4398
      %v5159 = vpop.f32.mrf.mxu0
      %v5160 = vadd.f32 %v4991, %v5159
      %v5161 = vpop.f32.mrf.mxu0
      %v5162 = vadd.f32 %v4993, %v5161
      %5163 = vmatmul.bf16.gmra.mxu0 %v4401
      %v5164 = vpop.f32.mrf.mxu0
      %v5165 = vadd.f32 %v4996, %v5164
      %v5166 = vpop.f32.mrf.mxu0
      %v5167 = vadd.f32 %v4998, %v5166
      %5168 = vmatmul.bf16.gmra.mxu0 %v4404
      %v5169 = vpop.f32.mrf.mxu0
      %v5170 = vadd.f32 %v5001, %v5169
      %v5171 = vpop.f32.mrf.mxu0
      %v5172 = vadd.f32 %v5003, %v5171
      %5173 = vmatmul.bf16.gmra.mxu0 %v4407
      %v5174 = vpop.f32.mrf.mxu0
      %v5175 = vadd.f32 %v5006, %v5174
      %v5176 = vpop.f32.mrf.mxu0
      %v5177 = vadd.f32 %v5008, %v5176
      %5178 = vmatmul.bf16.gmra.mxu0 %v4410
      %v5179 = vpop.f32.mrf.mxu0
      %v5180 = vadd.f32 %v5011, %v5179
      %v5181 = vpop.f32.mrf.mxu0
      %v5182 = vadd.f32 %v5013, %v5181
      %5183 = vmatmul.bf16.gmra.mxu0 %v4413
      %v5184 = vpop.f32.mrf.mxu0
      %v5185 = vadd.f32 %v5016, %v5184
      %v5186 = vpop.f32.mrf.mxu0
      %v5187 = vadd.f32 %v5018, %v5186
      %5188 = vmatmul.bf16.gmra.mxu0 %v4416
      %v5189 = vpop.f32.mrf.mxu0
      %v5190 = vadd.f32 %v5021, %v5189
      %v5191 = vpop.f32.mrf.mxu0
      %v5192 = vadd.f32 %v5023, %v5191
      %5193 = vmatmul.bf16.gmra.mxu0 %v4419
      %v5194 = vpop.f32.mrf.mxu0
      %v5195 = vadd.f32 %v5026, %v5194
      %v5196 = vpop.f32.mrf.mxu0
      %v5197 = vadd.f32 %v5028, %v5196
      %5198 = vmatmul.bf16.gmra.mxu0 %v4422
      %v5199 = vpop.f32.mrf.mxu0
      %v5200 = vadd.f32 %v5031, %v5199
      %v5201 = vpop.f32.mrf.mxu0
      %v5202 = vadd.f32 %v5033, %v5201
      %5203 = vmatmul.bf16.gmra.mxu0 %v4425
      %v5204 = vpop.f32.mrf.mxu0
      %v5205 = vadd.f32 %v5036, %v5204
      %v5206 = vpop.f32.mrf.mxu0
      %v5207 = vadd.f32 %v5038, %v5206
      %5208 = vmatmul.bf16.gmra.mxu0 %v4428
      %v5209 = vpop.f32.mrf.mxu0
      %v5210 = vadd.f32 %v5041, %v5209
      %v5211 = vpop.f32.mrf.mxu0
      %v5212 = vadd.f32 %v5043, %v5211
      %5213 = vmatmul.bf16.gmra.mxu0 %v4431
      %v5214 = vpop.f32.mrf.mxu0
      %v5215 = vadd.f32 %v5046, %v5214
      %v5216 = vpop.f32.mrf.mxu0
      %v5217 = vadd.f32 %v5048, %v5216
      %5218 = vmatmul.bf16.gmra.mxu0 %v4434
      %v5219 = vpop.f32.mrf.mxu0
      %v5220 = vadd.f32 %v5051, %v5219
      %v5221 = vpop.f32.mrf.mxu0
      %v5222 = vadd.f32 %v5053, %v5221
      %5223 = vmatmul.bf16.gmra.mxu0 %v4437
      %v5224 = vpop.f32.mrf.mxu0
      %v5225 = vadd.f32 %v5056, %v5224
      %v5226 = vpop.f32.mrf.mxu0
      %v5227 = vadd.f32 %v5058, %v5226
      %5228 = vdwg.mxu0
      %s5229 = scalar_lea.vmem %s239, 224
      %v5230 = vld [vmem:[%s5229] sm:$0xf]
      %v5231 = vld [vmem:[%s5229 + $0x4] sm:$0xf]
      %v5232 = vld [vmem:[%s5229 + $0x8] sm:$0xf]
      %v5233 = vld [vmem:[%s5229 + $0xc] sm:$0xf]
      %v5234 = vld [vmem:[%s5229 + $0x10] sm:$0xf]
      %v5235 = vld [vmem:[%s5229 + $0x14] sm:$0xf]
      %v5236 = vld [vmem:[%s5229 + $0x18] sm:$0xf]
      %v5237 = vld [vmem:[%s5229 + $0x1c] sm:$0xf]
      %v5238 = vld [vmem:[%s5229 + $0x20] sm:$0xf]
      %v5239 = vld [vmem:[%s5229 + $0x24] sm:$0xf]
      %v5240 = vld [vmem:[%s5229 + $0x28] sm:$0xf]
      %v5241 = vld [vmem:[%s5229 + $0x2c] sm:$0xf]
      %v5242 = vld [vmem:[%s5229 + $0x30] sm:$0xf]
      %v5243 = vld [vmem:[%s5229 + $0x34] sm:$0xf]
      %v5244 = vld [vmem:[%s5229 + $0x38] sm:$0xf]
      %v5245 = vld [vmem:[%s5229 + $0x3c] sm:$0xf]
      %v5246 = vld [vmem:[%s5229 + $0x40] sm:$0xf]
      %v5247 = vld [vmem:[%s5229 + $0x44] sm:$0xf]
      %v5248 = vld [vmem:[%s5229 + $0x48] sm:$0xf]
      %v5249 = vld [vmem:[%s5229 + $0x4c] sm:$0xf]
      %v5250 = vld [vmem:[%s5229 + $0x50] sm:$0xf]
      %v5251 = vld [vmem:[%s5229 + $0x54] sm:$0xf]
      %v5252 = vld [vmem:[%s5229 + $0x58] sm:$0xf]
      %v5253 = vld [vmem:[%s5229 + $0x5c] sm:$0xf]
      %v5254 = vld [vmem:[%s5229 + $0x60] sm:$0xf]
      %v5255 = vld [vmem:[%s5229 + $0x64] sm:$0xf]
      %v5256 = vld [vmem:[%s5229 + $0x68] sm:$0xf]
      %v5257 = vld [vmem:[%s5229 + $0x6c] sm:$0xf]
      %v5262 = vunpack.c.l.b16 %v3900
      %v5263 = vunpack.c.h.b16 %v3900
      %v5264 = vunpack.c.l.b16 %v3901
      %v5265 = vunpack.c.h.b16 %v3901
      %v5266 = vunpack.c.l.b16 %v3902
      %v5267 = vunpack.c.h.b16 %v3902
      %v5268 = vunpack.c.l.b16 %v3903
      %v5269 = vunpack.c.h.b16 %v3903
      %v5270 = vpack.c.b16 %v5264, %v5262
      %v5271 = vpack.c.b16 %v5265, %v5263
      %v5272 = vpack.c.b16 %v5268, %v5266
      %v5273 = vpack.c.b16 %v5269, %v5267
      %v5304 = vunpack.c.l.b16 %v5230
      %v5305 = vunpack.c.l.b16 %v5231
      %v5306 = vunpack.c.l.b16 %v5232
      %v5307 = vunpack.c.l.b16 %v5233
      %v5308 = vunpack.c.l.b16 %v5234
      %v5309 = vunpack.c.l.b16 %v5235
      %v5310 = vunpack.c.l.b16 %v5236
      %v5311 = vunpack.c.l.b16 %v5237
      %v5312 = vunpack.c.l.b16 %v5238
      %v5313 = vunpack.c.l.b16 %v5239
      %v5314 = vunpack.c.l.b16 %v5240
      %v5315 = vunpack.c.l.b16 %v5241
      %v5316 = vunpack.c.l.b16 %v5242
      %v5317 = vunpack.c.l.b16 %v5243
      %v5318 = vunpack.c.l.b16 %v5244
      %v5319 = vunpack.c.l.b16 %v5245
      %v5320 = vunpack.c.l.b16 %v5246
      %v5321 = vunpack.c.l.b16 %v5247
      %v5322 = vunpack.c.l.b16 %v5248
      %v5323 = vunpack.c.l.b16 %v5249
      %v5324 = vunpack.c.l.b16 %v5250
      %v5325 = vunpack.c.l.b16 %v5251
      %v5326 = vunpack.c.l.b16 %v5252
      %v5327 = vunpack.c.l.b16 %v5253
      %v5328 = vunpack.c.l.b16 %v5254
      %v5329 = vunpack.c.l.b16 %v5255
      %v5330 = vunpack.c.l.b16 %v5256
      %v5331 = vunpack.c.l.b16 %v5257
      %v5332 = vpack.c.b16 %v5305, %v5304
      %v5333 = vpack.c.b16 %v5307, %v5306
      %v5334 = vpack.c.b16 %v5309, %v5308
      %v5335 = vpack.c.b16 %v5311, %v5310
      %v5336 = vpack.c.b16 %v5313, %v5312
      %v5337 = vpack.c.b16 %v5315, %v5314
      %v5338 = vpack.c.b16 %v5317, %v5316
      %v5339 = vpack.c.b16 %v5319, %v5318
      %v5340 = vpack.c.b16 %v5321, %v5320
      %v5341 = vpack.c.b16 %v5323, %v5322
      %v5342 = vpack.c.b16 %v5325, %v5324
      %v5343 = vpack.c.b16 %v5327, %v5326
      %v5344 = vpack.c.b16 %v5329, %v5328
      %v5345 = vpack.c.b16 %v5331, %v5330
      %v5361 = vsel %vm3567, %v5271, 0
      %v5364 = vsel %vm3567, %v5273, 0
      %5366 = vmatpush.bf16.msra.mxu0 %v5339
      %5367 = vmatpush.bf16.msra.mxu0 %v5338
      %5368 = vmatpush.bf16.msra.mxu0 %v5337
      %5369 = vmatpush.bf16.msra.mxu0 %v5336
      %5370 = vmatpush.bf16.msra.mxu0 %v5335
      %5371 = vmatpush.bf16.msra.mxu0 %v5334
      %5372 = vmatpush.bf16.msra.mxu0 %v5333
      %5373 = vmatpush.bf16.msra.mxu0 %v5332
      %5374 = vmatmul.bf16.gmra.mxu0 %v4173
      %v5375 = vpop.f32.mrf.mxu0
      %v5376 = vadd.f32 0.0, %v5375
      %v5377 = vpop.f32.mrf.mxu0
      %v5378 = vadd.f32 0.0, %v5377
      %5379 = vmatmul.bf16.gmra.mxu0 %v4175
      %v5380 = vpop.f32.mrf.mxu0
      %v5381 = vadd.f32 0.0, %v5380
      %v5382 = vpop.f32.mrf.mxu0
      %v5383 = vadd.f32 0.0, %v5382
      %5384 = vmatmul.bf16.gmra.mxu0 %v4177
      %v5385 = vpop.f32.mrf.mxu0
      %v5386 = vadd.f32 0.0, %v5385
      %v5387 = vpop.f32.mrf.mxu0
      %v5388 = vadd.f32 0.0, %v5387
      %5389 = vmatmul.bf16.gmra.mxu0 %v4179
      %v5390 = vpop.f32.mrf.mxu0
      %v5391 = vadd.f32 0.0, %v5390
      %v5392 = vpop.f32.mrf.mxu0
      %v5393 = vadd.f32 0.0, %v5392
      %5394 = vmatmul.bf16.gmra.mxu0 %v4181
      %v5395 = vpop.f32.mrf.mxu0
      %v5396 = vadd.f32 0.0, %v5395
      %v5397 = vpop.f32.mrf.mxu0
      %v5398 = vadd.f32 0.0, %v5397
      %5399 = vmatmul.bf16.gmra.mxu0 %v4183
      %v5400 = vpop.f32.mrf.mxu0
      %v5401 = vadd.f32 0.0, %v5400
      %v5402 = vpop.f32.mrf.mxu0
      %v5403 = vadd.f32 0.0, %v5402
      %5404 = vmatmul.bf16.gmra.mxu0 %v4185
      %v5405 = vpop.f32.mrf.mxu0
      %v5406 = vadd.f32 0.0, %v5405
      %v5407 = vpop.f32.mrf.mxu0
      %v5408 = vadd.f32 0.0, %v5407
      %5409 = vmatmul.bf16.gmra.mxu0 %v4187
      %v5410 = vpop.f32.mrf.mxu0
      %v5411 = vadd.f32 0.0, %v5410
      %v5412 = vpop.f32.mrf.mxu0
      %v5413 = vadd.f32 0.0, %v5412
      %5414 = vmatmul.bf16.gmra.mxu0 %v4189
      %v5415 = vpop.f32.mrf.mxu0
      %v5416 = vadd.f32 0.0, %v5415
      %v5417 = vpop.f32.mrf.mxu0
      %v5418 = vadd.f32 0.0, %v5417
      %5419 = vmatmul.bf16.gmra.mxu0 %v4191
      %v5420 = vpop.f32.mrf.mxu0
      %v5421 = vadd.f32 0.0, %v5420
      %v5422 = vpop.f32.mrf.mxu0
      %v5423 = vadd.f32 0.0, %v5422
      %5424 = vmatmul.bf16.gmra.mxu0 %v4193
      %v5425 = vpop.f32.mrf.mxu0
      %v5426 = vadd.f32 0.0, %v5425
      %v5427 = vpop.f32.mrf.mxu0
      %v5428 = vadd.f32 0.0, %v5427
      %5429 = vmatmul.bf16.gmra.mxu0 %v4195
      %v5430 = vpop.f32.mrf.mxu0
      %v5431 = vadd.f32 0.0, %v5430
      %v5432 = vpop.f32.mrf.mxu0
      %v5433 = vadd.f32 0.0, %v5432
      %5434 = vmatmul.bf16.gmra.mxu0 %v4197
      %v5435 = vpop.f32.mrf.mxu0
      %v5436 = vadd.f32 0.0, %v5435
      %v5437 = vpop.f32.mrf.mxu0
      %v5438 = vadd.f32 0.0, %v5437
      %5439 = vmatmul.bf16.gmra.mxu0 %v4199
      %v5440 = vpop.f32.mrf.mxu0
      %v5441 = vadd.f32 0.0, %v5440
      %v5442 = vpop.f32.mrf.mxu0
      %v5443 = vadd.f32 0.0, %v5442
      %5444 = vmatmul.bf16.gmra.mxu0 %v4201
      %v5445 = vpop.f32.mrf.mxu0
      %v5446 = vadd.f32 0.0, %v5445
      %v5447 = vpop.f32.mrf.mxu0
      %v5448 = vadd.f32 0.0, %v5447
      %5449 = vmatmul.bf16.gmra.mxu0 %v4203
      %v5450 = vpop.f32.mrf.mxu0
      %v5451 = vadd.f32 0.0, %v5450
      %v5452 = vpop.f32.mrf.mxu0
      %v5453 = vadd.f32 0.0, %v5452
      %5454 = vmatmul.bf16.gmra.mxu0 %v4205
      %v5455 = vpop.f32.mrf.mxu0
      %v5456 = vadd.f32 0.0, %v5455
      %v5457 = vpop.f32.mrf.mxu0
      %v5458 = vadd.f32 0.0, %v5457
      %5459 = vmatmul.bf16.gmra.mxu0 %v4207
      %v5460 = vpop.f32.mrf.mxu0
      %v5461 = vadd.f32 0.0, %v5460
      %v5462 = vpop.f32.mrf.mxu0
      %v5463 = vadd.f32 0.0, %v5462
      %5464 = vmatmul.bf16.gmra.mxu0 %v4209
      %v5465 = vpop.f32.mrf.mxu0
      %v5466 = vadd.f32 0.0, %v5465
      %v5467 = vpop.f32.mrf.mxu0
      %v5468 = vadd.f32 0.0, %v5467
      %5469 = vmatmul.bf16.gmra.mxu0 %v4211
      %v5470 = vpop.f32.mrf.mxu0
      %v5471 = vadd.f32 0.0, %v5470
      %v5472 = vpop.f32.mrf.mxu0
      %v5473 = vadd.f32 0.0, %v5472
      %5474 = vmatmul.bf16.gmra.mxu0 %v4213
      %v5475 = vpop.f32.mrf.mxu0
      %v5476 = vadd.f32 0.0, %v5475
      %v5477 = vpop.f32.mrf.mxu0
      %v5478 = vadd.f32 0.0, %v5477
      %5479 = vmatmul.bf16.gmra.mxu0 %v4215
      %v5480 = vpop.f32.mrf.mxu0
      %v5481 = vadd.f32 0.0, %v5480
      %v5482 = vpop.f32.mrf.mxu0
      %v5483 = vadd.f32 0.0, %v5482
      %5484 = vmatmul.bf16.gmra.mxu0 %v4217
      %v5485 = vpop.f32.mrf.mxu0
      %v5486 = vadd.f32 0.0, %v5485
      %v5487 = vpop.f32.mrf.mxu0
      %v5488 = vadd.f32 0.0, %v5487
      %5489 = vmatmul.bf16.gmra.mxu0 %v4219
      %v5490 = vpop.f32.mrf.mxu0
      %v5491 = vadd.f32 0.0, %v5490
      %v5492 = vpop.f32.mrf.mxu0
      %v5493 = vadd.f32 0.0, %v5492
      %5494 = vmatmul.bf16.gmra.mxu0 %v4221
      %v5495 = vpop.f32.mrf.mxu0
      %v5496 = vadd.f32 0.0, %v5495
      %v5497 = vpop.f32.mrf.mxu0
      %v5498 = vadd.f32 0.0, %v5497
      %5499 = vmatmul.bf16.gmra.mxu0 %v4223
      %v5500 = vpop.f32.mrf.mxu0
      %v5501 = vadd.f32 0.0, %v5500
      %v5502 = vpop.f32.mrf.mxu0
      %v5503 = vadd.f32 0.0, %v5502
      %5504 = vmatmul.bf16.gmra.mxu0 %v4225
      %v5505 = vpop.f32.mrf.mxu0
      %v5506 = vadd.f32 0.0, %v5505
      %v5507 = vpop.f32.mrf.mxu0
      %v5508 = vadd.f32 0.0, %v5507
      %5509 = vmatmul.bf16.gmra.mxu0 %v4227
      %v5510 = vpop.f32.mrf.mxu0
      %v5511 = vadd.f32 0.0, %v5510
      %v5512 = vpop.f32.mrf.mxu0
      %v5513 = vadd.f32 0.0, %v5512
      %5514 = vmatmul.bf16.gmra.mxu0 %v4229
      %v5515 = vpop.f32.mrf.mxu0
      %v5516 = vadd.f32 0.0, %v5515
      %v5517 = vpop.f32.mrf.mxu0
      %v5518 = vadd.f32 0.0, %v5517
      %5519 = vmatmul.bf16.gmra.mxu0 %v4231
      %v5520 = vpop.f32.mrf.mxu0
      %v5521 = vadd.f32 0.0, %v5520
      %v5522 = vpop.f32.mrf.mxu0
      %v5523 = vadd.f32 0.0, %v5522
      %5524 = vmatmul.bf16.gmra.mxu0 %v5270
      %v5525 = vpop.f32.mrf.mxu0
      %v5526 = vadd.f32 0.0, %v5525
      %v5527 = vpop.f32.mrf.mxu0
      %v5528 = vadd.f32 0.0, %v5527
      %5529 = vmatmul.bf16.gmra.mxu0 %v5272
      %v5530 = vpop.f32.mrf.mxu0
      %v5531 = vadd.f32 0.0, %v5530
      %v5532 = vpop.f32.mrf.mxu0
      %v5533 = vadd.f32 0.0, %v5532
      %5534 = vdwg.mxu0
      %5535 = vmatpush.bf16.msra.mxu0 0
      %5536 = vmatpush.bf16.msra.mxu0 0
      %5537 = vmatpush.bf16.msra.mxu0 %v5345
      %5538 = vmatpush.bf16.msra.mxu0 %v5344
      %5539 = vmatpush.bf16.msra.mxu0 %v5343
      %5540 = vmatpush.bf16.msra.mxu0 %v5342
      %5541 = vmatpush.bf16.msra.mxu0 %v5341
      %5542 = vmatpush.bf16.msra.mxu0 %v5340
      %5543 = vmatmul.bf16.gmra.mxu0 %v4356
      %v5544 = vpop.f32.mrf.mxu0
      %v5545 = vadd.f32 %v5376, %v5544
      %v5546 = vpop.f32.mrf.mxu0
      %v5547 = vadd.f32 %v5378, %v5546
      %5548 = vmatmul.bf16.gmra.mxu0 %v4359
      %v5549 = vpop.f32.mrf.mxu0
      %v5550 = vadd.f32 %v5381, %v5549
      %v5551 = vpop.f32.mrf.mxu0
      %v5552 = vadd.f32 %v5383, %v5551
      %5553 = vmatmul.bf16.gmra.mxu0 %v4362
      %v5554 = vpop.f32.mrf.mxu0
      %v5555 = vadd.f32 %v5386, %v5554
      %v5556 = vpop.f32.mrf.mxu0
      %v5557 = vadd.f32 %v5388, %v5556
      %5558 = vmatmul.bf16.gmra.mxu0 %v4365
      %v5559 = vpop.f32.mrf.mxu0
      %v5560 = vadd.f32 %v5391, %v5559
      %v5561 = vpop.f32.mrf.mxu0
      %v5562 = vadd.f32 %v5393, %v5561
      %5563 = vmatmul.bf16.gmra.mxu0 %v4368
      %v5564 = vpop.f32.mrf.mxu0
      %v5565 = vadd.f32 %v5396, %v5564
      %v5566 = vpop.f32.mrf.mxu0
      %v5567 = vadd.f32 %v5398, %v5566
      %5568 = vmatmul.bf16.gmra.mxu0 %v4371
      %v5569 = vpop.f32.mrf.mxu0
      %v5570 = vadd.f32 %v5401, %v5569
      %v5571 = vpop.f32.mrf.mxu0
      %v5572 = vadd.f32 %v5403, %v5571
      %5573 = vmatmul.bf16.gmra.mxu0 %v4374
      %v5574 = vpop.f32.mrf.mxu0
      %v5575 = vadd.f32 %v5406, %v5574
      %v5576 = vpop.f32.mrf.mxu0
      %v5577 = vadd.f32 %v5408, %v5576
      %5578 = vmatmul.bf16.gmra.mxu0 %v4377
      %v5579 = vpop.f32.mrf.mxu0
      %v5580 = vadd.f32 %v5411, %v5579
      %v5581 = vpop.f32.mrf.mxu0
      %v5582 = vadd.f32 %v5413, %v5581
      %5583 = vmatmul.bf16.gmra.mxu0 %v4380
      %v5584 = vpop.f32.mrf.mxu0
      %v5585 = vadd.f32 %v5416, %v5584
      %v5586 = vpop.f32.mrf.mxu0
      %v5587 = vadd.f32 %v5418, %v5586
      %5588 = vmatmul.bf16.gmra.mxu0 %v4383
      %v5589 = vpop.f32.mrf.mxu0
      %v5590 = vadd.f32 %v5421, %v5589
      %v5591 = vpop.f32.mrf.mxu0
      %v5592 = vadd.f32 %v5423, %v5591
      %5593 = vmatmul.bf16.gmra.mxu0 %v4386
      %v5594 = vpop.f32.mrf.mxu0
      %v5595 = vadd.f32 %v5426, %v5594
      %v5596 = vpop.f32.mrf.mxu0
      %v5597 = vadd.f32 %v5428, %v5596
      %5598 = vmatmul.bf16.gmra.mxu0 %v4389
      %v5599 = vpop.f32.mrf.mxu0
      %v5600 = vadd.f32 %v5431, %v5599
      %v5601 = vpop.f32.mrf.mxu0
      %v5602 = vadd.f32 %v5433, %v5601
      %5603 = vmatmul.bf16.gmra.mxu0 %v4392
      %v5604 = vpop.f32.mrf.mxu0
      %v5605 = vadd.f32 %v5436, %v5604
      %v5606 = vpop.f32.mrf.mxu0
      %v5607 = vadd.f32 %v5438, %v5606
      %5608 = vmatmul.bf16.gmra.mxu0 %v4395
      %v5609 = vpop.f32.mrf.mxu0
      %v5610 = vadd.f32 %v5441, %v5609
      %v5611 = vpop.f32.mrf.mxu0
      %v5612 = vadd.f32 %v5443, %v5611
      %5613 = vmatmul.bf16.gmra.mxu0 %v4398
      %v5614 = vpop.f32.mrf.mxu0
      %v5615 = vadd.f32 %v5446, %v5614
      %v5616 = vpop.f32.mrf.mxu0
      %v5617 = vadd.f32 %v5448, %v5616
      %5618 = vmatmul.bf16.gmra.mxu0 %v4401
      %v5619 = vpop.f32.mrf.mxu0
      %v5620 = vadd.f32 %v5451, %v5619
      %v5621 = vpop.f32.mrf.mxu0
      %v5622 = vadd.f32 %v5453, %v5621
      %5623 = vmatmul.bf16.gmra.mxu0 %v4404
      %v5624 = vpop.f32.mrf.mxu0
      %v5625 = vadd.f32 %v5456, %v5624
      %v5626 = vpop.f32.mrf.mxu0
      %v5627 = vadd.f32 %v5458, %v5626
      %5628 = vmatmul.bf16.gmra.mxu0 %v4407
      %v5629 = vpop.f32.mrf.mxu0
      %v5630 = vadd.f32 %v5461, %v5629
      %v5631 = vpop.f32.mrf.mxu0
      %v5632 = vadd.f32 %v5463, %v5631
      %5633 = vmatmul.bf16.gmra.mxu0 %v4410
      %v5634 = vpop.f32.mrf.mxu0
      %v5635 = vadd.f32 %v5466, %v5634
      %v5636 = vpop.f32.mrf.mxu0
      %v5637 = vadd.f32 %v5468, %v5636
      %5638 = vmatmul.bf16.gmra.mxu0 %v4413
      %v5639 = vpop.f32.mrf.mxu0
      %v5640 = vadd.f32 %v5471, %v5639
      %v5641 = vpop.f32.mrf.mxu0
      %v5642 = vadd.f32 %v5473, %v5641
      %5643 = vmatmul.bf16.gmra.mxu0 %v4416
      %v5644 = vpop.f32.mrf.mxu0
      %v5645 = vadd.f32 %v5476, %v5644
      %v5646 = vpop.f32.mrf.mxu0
      %v5647 = vadd.f32 %v5478, %v5646
      %5648 = vmatmul.bf16.gmra.mxu0 %v4419
      %v5649 = vpop.f32.mrf.mxu0
      %v5650 = vadd.f32 %v5481, %v5649
      %v5651 = vpop.f32.mrf.mxu0
      %v5652 = vadd.f32 %v5483, %v5651
      %5653 = vmatmul.bf16.gmra.mxu0 %v4422
      %v5654 = vpop.f32.mrf.mxu0
      %v5655 = vadd.f32 %v5486, %v5654
      %v5656 = vpop.f32.mrf.mxu0
      %v5657 = vadd.f32 %v5488, %v5656
      %5658 = vmatmul.bf16.gmra.mxu0 %v4425
      %v5659 = vpop.f32.mrf.mxu0
      %v5660 = vadd.f32 %v5491, %v5659
      %v5661 = vpop.f32.mrf.mxu0
      %v5662 = vadd.f32 %v5493, %v5661
      %5663 = vmatmul.bf16.gmra.mxu0 %v4428
      %v5664 = vpop.f32.mrf.mxu0
      %v5665 = vadd.f32 %v5496, %v5664
      %v5666 = vpop.f32.mrf.mxu0
      %v5667 = vadd.f32 %v5498, %v5666
      %5668 = vmatmul.bf16.gmra.mxu0 %v4431
      %v5669 = vpop.f32.mrf.mxu0
      %v5670 = vadd.f32 %v5501, %v5669
      %v5671 = vpop.f32.mrf.mxu0
      %v5672 = vadd.f32 %v5503, %v5671
      %5673 = vmatmul.bf16.gmra.mxu0 %v4434
      %v5674 = vpop.f32.mrf.mxu0
      %v5675 = vadd.f32 %v5506, %v5674
      %v5676 = vpop.f32.mrf.mxu0
      %v5677 = vadd.f32 %v5508, %v5676
      %5678 = vmatmul.bf16.gmra.mxu0 %v4437
      %v5679 = vpop.f32.mrf.mxu0
      %v5680 = vadd.f32 %v5511, %v5679
      %v5681 = vpop.f32.mrf.mxu0
      %v5682 = vadd.f32 %v5513, %v5681
      %5683 = vmatmul.bf16.gmra.mxu0 %v4440
      %v5684 = vpop.f32.mrf.mxu0
      %v5685 = vadd.f32 %v5516, %v5684
      %v5686 = vpop.f32.mrf.mxu0
      %v5687 = vadd.f32 %v5518, %v5686
      %5688 = vmatmul.bf16.gmra.mxu0 %v4443
      %v5689 = vpop.f32.mrf.mxu0
      %v5690 = vadd.f32 %v5521, %v5689
      %v5691 = vpop.f32.mrf.mxu0
      %v5692 = vadd.f32 %v5523, %v5691
      %5693 = vmatmul.bf16.gmra.mxu0 %v5361
      %v5694 = vpop.f32.mrf.mxu0
      %v5695 = vadd.f32 %v5526, %v5694
      %v5696 = vpop.f32.mrf.mxu0
      %v5697 = vadd.f32 %v5528, %v5696
      %5698 = vmatmul.bf16.gmra.mxu0 %v5364
      %v5699 = vpop.f32.mrf.mxu0
      %v5700 = vadd.f32 %v5531, %v5699
      %v5701 = vpop.f32.mrf.mxu0
      %v5702 = vadd.f32 %v5533, %v5701
      %5703 = vdwg.mxu0
      %v5704 = vadd.f32 %v5070, %v5545
      %v5705 = vadd.f32 %v5072, %v5547
      %v5706 = vadd.f32 %v5075, %v5550
      %v5707 = vadd.f32 %v5077, %v5552
      %v5708 = vadd.f32 %v5080, %v5555
      %v5709 = vadd.f32 %v5082, %v5557
      %v5710 = vadd.f32 %v5085, %v5560
      %v5711 = vadd.f32 %v5087, %v5562
      %v5712 = vadd.f32 %v5090, %v5565
      %v5713 = vadd.f32 %v5092, %v5567
      %v5714 = vadd.f32 %v5095, %v5570
      %v5715 = vadd.f32 %v5097, %v5572
      %v5716 = vadd.f32 %v5100, %v5575
      %v5717 = vadd.f32 %v5102, %v5577
      %v5718 = vadd.f32 %v5105, %v5580
      %v5719 = vadd.f32 %v5107, %v5582
      %v5720 = vadd.f32 %v5110, %v5585
      %v5721 = vadd.f32 %v5112, %v5587
      %v5722 = vadd.f32 %v5115, %v5590
      %v5723 = vadd.f32 %v5117, %v5592
      %v5724 = vadd.f32 %v5120, %v5595
      %v5725 = vadd.f32 %v5122, %v5597
      %v5726 = vadd.f32 %v5125, %v5600
      %v5727 = vadd.f32 %v5127, %v5602
      %v5728 = vadd.f32 %v5130, %v5605
      %v5729 = vadd.f32 %v5132, %v5607
      %v5730 = vadd.f32 %v5135, %v5610
      %v5731 = vadd.f32 %v5137, %v5612
      %v5732 = vadd.f32 %v5140, %v5615
      %v5733 = vadd.f32 %v5142, %v5617
      %v5734 = vadd.f32 %v5145, %v5620
      %v5735 = vadd.f32 %v5147, %v5622
      %v5736 = vadd.f32 %v5150, %v5625
      %v5737 = vadd.f32 %v5152, %v5627
      %v5738 = vadd.f32 %v5155, %v5630
      %v5739 = vadd.f32 %v5157, %v5632
      %v5740 = vadd.f32 %v5160, %v5635
      %v5741 = vadd.f32 %v5162, %v5637
      %v5742 = vadd.f32 %v5165, %v5640
      %v5743 = vadd.f32 %v5167, %v5642
      %v5744 = vadd.f32 %v5170, %v5645
      %v5745 = vadd.f32 %v5172, %v5647
      %v5746 = vadd.f32 %v5175, %v5650
      %v5747 = vadd.f32 %v5177, %v5652
      %v5748 = vadd.f32 %v5180, %v5655
      %v5749 = vadd.f32 %v5182, %v5657
      %v5750 = vadd.f32 %v5185, %v5660
      %v5751 = vadd.f32 %v5187, %v5662
      %v5752 = vadd.f32 %v5190, %v5665
      %v5753 = vadd.f32 %v5192, %v5667
      %v5754 = vadd.f32 %v5195, %v5670
      %v5755 = vadd.f32 %v5197, %v5672
      %v5756 = vadd.f32 %v5200, %v5675
      %v5757 = vadd.f32 %v5202, %v5677
      %v5758 = vadd.f32 %v5205, %v5680
      %v5759 = vadd.f32 %v5207, %v5682
      %v5760 = vadd.f32 %v5210, %v5685
      %v5761 = vadd.f32 %v5212, %v5687
      %v5762 = vadd.f32 %v5215, %v5690
      %v5763 = vadd.f32 %v5217, %v5692
      %v5764 = vadd.f32 %v5220, %v5695
      %v5765 = vadd.f32 %v5222, %v5697
      %v5766 = vadd.f32 %v5225, %v5700
      %v5767 = vadd.f32 %v5227, %v5702
      %s5768 = scalar_lea.vmem %s239, 336
      %v5769 = vld [vmem:[%s5768] sm:$0xf]
      %v5770 = vld [vmem:[%s5768 + $0x4] sm:$0xf]
      %v5771 = vld [vmem:[%s5768 + $0x8] sm:$0xf]
      %v5772 = vld [vmem:[%s5768 + $0xc] sm:$0xf]
      %v5773 = vld [vmem:[%s5768 + $0x10] sm:$0xf]
      %v5774 = vld [vmem:[%s5768 + $0x14] sm:$0xf]
      %v5775 = vld [vmem:[%s5768 + $0x18] sm:$0xf]
      %v5776 = vld [vmem:[%s5768 + $0x1c] sm:$0xf]
      %v5777 = vld [vmem:[%s5768 + $0x20] sm:$0xf]
      %v5778 = vld [vmem:[%s5768 + $0x24] sm:$0xf]
      %v5779 = vld [vmem:[%s5768 + $0x28] sm:$0xf]
      %v5780 = vld [vmem:[%s5768 + $0x2c] sm:$0xf]
      %v5781 = vld [vmem:[%s5768 + $0x30] sm:$0xf]
      %v5782 = vld [vmem:[%s5768 + $0x34] sm:$0xf]
      %v5783 = vld [vmem:[%s5768 + $0x38] sm:$0xf]
      %v5784 = vld [vmem:[%s5768 + $0x3c] sm:$0xf]
      %v5785 = vld [vmem:[%s5768 + $0x40] sm:$0xf]
      %v5786 = vld [vmem:[%s5768 + $0x44] sm:$0xf]
      %v5787 = vld [vmem:[%s5768 + $0x48] sm:$0xf]
      %v5788 = vld [vmem:[%s5768 + $0x4c] sm:$0xf]
      %v5789 = vld [vmem:[%s5768 + $0x50] sm:$0xf]
      %v5790 = vld [vmem:[%s5768 + $0x54] sm:$0xf]
      %v5791 = vld [vmem:[%s5768 + $0x58] sm:$0xf]
      %v5792 = vld [vmem:[%s5768 + $0x5c] sm:$0xf]
      %v5793 = vld [vmem:[%s5768 + $0x60] sm:$0xf]
      %v5794 = vld [vmem:[%s5768 + $0x64] sm:$0xf]
      %v5795 = vld [vmem:[%s5768 + $0x68] sm:$0xf]
      %v5796 = vld [vmem:[%s5768 + $0x6c] sm:$0xf]
      %v5801 = vunpack.c.l.b16 %v3904
      %v5802 = vunpack.c.h.b16 %v3904
      %v5803 = vunpack.c.l.b16 %v3905
      %v5804 = vunpack.c.h.b16 %v3905
      %v5805 = vunpack.c.l.b16 %v3906
      %v5806 = vunpack.c.h.b16 %v3906
      %v5807 = vunpack.c.l.b16 %v3907
      %v5808 = vunpack.c.h.b16 %v3907
      %v5809 = vpack.c.b16 %v5803, %v5801
      %v5810 = vpack.c.b16 %v5804, %v5802
      %v5811 = vpack.c.b16 %v5807, %v5805
      %v5812 = vpack.c.b16 %v5808, %v5806
      %v5843 = vunpack.c.l.b16 %v5769
      %v5844 = vunpack.c.l.b16 %v5770
      %v5845 = vunpack.c.l.b16 %v5771
      %v5846 = vunpack.c.l.b16 %v5772
      %v5847 = vunpack.c.l.b16 %v5773
      %v5848 = vunpack.c.l.b16 %v5774
      %v5849 = vunpack.c.l.b16 %v5775
      %v5850 = vunpack.c.l.b16 %v5776
      %v5851 = vunpack.c.l.b16 %v5777
      %v5852 = vunpack.c.l.b16 %v5778
      %v5853 = vunpack.c.l.b16 %v5779
      %v5854 = vunpack.c.l.b16 %v5780
      %v5855 = vunpack.c.l.b16 %v5781
      %v5856 = vunpack.c.l.b16 %v5782
      %v5857 = vunpack.c.l.b16 %v5783
      %v5858 = vunpack.c.l.b16 %v5784
      %v5859 = vunpack.c.l.b16 %v5785
      %v5860 = vunpack.c.l.b16 %v5786
      %v5861 = vunpack.c.l.b16 %v5787
      %v5862 = vunpack.c.l.b16 %v5788
      %v5863 = vunpack.c.l.b16 %v5789
      %v5864 = vunpack.c.l.b16 %v5790
      %v5865 = vunpack.c.l.b16 %v5791
      %v5866 = vunpack.c.l.b16 %v5792
      %v5867 = vunpack.c.l.b16 %v5793
      %v5868 = vunpack.c.l.b16 %v5794
      %v5869 = vunpack.c.l.b16 %v5795
      %v5870 = vunpack.c.l.b16 %v5796
      %v5871 = vpack.c.b16 %v5844, %v5843
      %v5872 = vpack.c.b16 %v5846, %v5845
      %v5873 = vpack.c.b16 %v5848, %v5847
      %v5874 = vpack.c.b16 %v5850, %v5849
      %v5875 = vpack.c.b16 %v5852, %v5851
      %v5876 = vpack.c.b16 %v5854, %v5853
      %v5877 = vpack.c.b16 %v5856, %v5855
      %v5878 = vpack.c.b16 %v5858, %v5857
      %v5879 = vpack.c.b16 %v5860, %v5859
      %v5880 = vpack.c.b16 %v5862, %v5861
      %v5881 = vpack.c.b16 %v5864, %v5863
      %v5882 = vpack.c.b16 %v5866, %v5865
      %v5883 = vpack.c.b16 %v5868, %v5867
      %v5884 = vpack.c.b16 %v5870, %v5869
      %v5900 = vsel %vm3567, %v5810, 0
      %v5903 = vsel %vm3567, %v5812, 0
      %5905 = vmatpush.bf16.msra.mxu0 %v5878
      %5906 = vmatpush.bf16.msra.mxu0 %v5877
      %5907 = vmatpush.bf16.msra.mxu0 %v5876
      %5908 = vmatpush.bf16.msra.mxu0 %v5875
      %5909 = vmatpush.bf16.msra.mxu0 %v5874
      %5910 = vmatpush.bf16.msra.mxu0 %v5873
      %5911 = vmatpush.bf16.msra.mxu0 %v5872
      %5912 = vmatpush.bf16.msra.mxu0 %v5871
      %5913 = vmatmul.bf16.gmra.mxu0 %v4177
      %v5914 = vpop.f32.mrf.mxu0
      %v5915 = vadd.f32 0.0, %v5914
      %v5916 = vpop.f32.mrf.mxu0
      %v5917 = vadd.f32 0.0, %v5916
      %5918 = vmatmul.bf16.gmra.mxu0 %v4179
      %v5919 = vpop.f32.mrf.mxu0
      %v5920 = vadd.f32 0.0, %v5919
      %v5921 = vpop.f32.mrf.mxu0
      %v5922 = vadd.f32 0.0, %v5921
      %5923 = vmatmul.bf16.gmra.mxu0 %v4181
      %v5924 = vpop.f32.mrf.mxu0
      %v5925 = vadd.f32 0.0, %v5924
      %v5926 = vpop.f32.mrf.mxu0
      %v5927 = vadd.f32 0.0, %v5926
      %5928 = vmatmul.bf16.gmra.mxu0 %v4183
      %v5929 = vpop.f32.mrf.mxu0
      %v5930 = vadd.f32 0.0, %v5929
      %v5931 = vpop.f32.mrf.mxu0
      %v5932 = vadd.f32 0.0, %v5931
      %5933 = vmatmul.bf16.gmra.mxu0 %v4185
      %v5934 = vpop.f32.mrf.mxu0
      %v5935 = vadd.f32 0.0, %v5934
      %v5936 = vpop.f32.mrf.mxu0
      %v5937 = vadd.f32 0.0, %v5936
      %5938 = vmatmul.bf16.gmra.mxu0 %v4187
      %v5939 = vpop.f32.mrf.mxu0
      %v5940 = vadd.f32 0.0, %v5939
      %v5941 = vpop.f32.mrf.mxu0
      %v5942 = vadd.f32 0.0, %v5941
      %5943 = vmatmul.bf16.gmra.mxu0 %v4189
      %v5944 = vpop.f32.mrf.mxu0
      %v5945 = vadd.f32 0.0, %v5944
      %v5946 = vpop.f32.mrf.mxu0
      %v5947 = vadd.f32 0.0, %v5946
      %5948 = vmatmul.bf16.gmra.mxu0 %v4191
      %v5949 = vpop.f32.mrf.mxu0
      %v5950 = vadd.f32 0.0, %v5949
      %v5951 = vpop.f32.mrf.mxu0
      %v5952 = vadd.f32 0.0, %v5951
      %5953 = vmatmul.bf16.gmra.mxu0 %v4193
      %v5954 = vpop.f32.mrf.mxu0
      %v5955 = vadd.f32 0.0, %v5954
      %v5956 = vpop.f32.mrf.mxu0
      %v5957 = vadd.f32 0.0, %v5956
      %5958 = vmatmul.bf16.gmra.mxu0 %v4195
      %v5959 = vpop.f32.mrf.mxu0
      %v5960 = vadd.f32 0.0, %v5959
      %v5961 = vpop.f32.mrf.mxu0
      %v5962 = vadd.f32 0.0, %v5961
      %5963 = vmatmul.bf16.gmra.mxu0 %v4197
      %v5964 = vpop.f32.mrf.mxu0
      %v5965 = vadd.f32 0.0, %v5964
      %v5966 = vpop.f32.mrf.mxu0
      %v5967 = vadd.f32 0.0, %v5966
      %5968 = vmatmul.bf16.gmra.mxu0 %v4199
      %v5969 = vpop.f32.mrf.mxu0
      %v5970 = vadd.f32 0.0, %v5969
      %v5971 = vpop.f32.mrf.mxu0
      %v5972 = vadd.f32 0.0, %v5971
      %5973 = vmatmul.bf16.gmra.mxu0 %v4201
      %v5974 = vpop.f32.mrf.mxu0
      %v5975 = vadd.f32 0.0, %v5974
      %v5976 = vpop.f32.mrf.mxu0
      %v5977 = vadd.f32 0.0, %v5976
      %5978 = vmatmul.bf16.gmra.mxu0 %v4203
      %v5979 = vpop.f32.mrf.mxu0
      %v5980 = vadd.f32 0.0, %v5979
      %v5981 = vpop.f32.mrf.mxu0
      %v5982 = vadd.f32 0.0, %v5981
      %5983 = vmatmul.bf16.gmra.mxu0 %v4205
      %v5984 = vpop.f32.mrf.mxu0
      %v5985 = vadd.f32 0.0, %v5984
      %v5986 = vpop.f32.mrf.mxu0
      %v5987 = vadd.f32 0.0, %v5986
      %5988 = vmatmul.bf16.gmra.mxu0 %v4207
      %v5989 = vpop.f32.mrf.mxu0
      %v5990 = vadd.f32 0.0, %v5989
      %v5991 = vpop.f32.mrf.mxu0
      %v5992 = vadd.f32 0.0, %v5991
      %5993 = vmatmul.bf16.gmra.mxu0 %v4209
      %v5994 = vpop.f32.mrf.mxu0
      %v5995 = vadd.f32 0.0, %v5994
      %v5996 = vpop.f32.mrf.mxu0
      %v5997 = vadd.f32 0.0, %v5996
      %5998 = vmatmul.bf16.gmra.mxu0 %v4211
      %v5999 = vpop.f32.mrf.mxu0
      %v6000 = vadd.f32 0.0, %v5999
      %v6001 = vpop.f32.mrf.mxu0
      %v6002 = vadd.f32 0.0, %v6001
      %6003 = vmatmul.bf16.gmra.mxu0 %v4213
      %v6004 = vpop.f32.mrf.mxu0
      %v6005 = vadd.f32 0.0, %v6004
      %v6006 = vpop.f32.mrf.mxu0
      %v6007 = vadd.f32 0.0, %v6006
      %6008 = vmatmul.bf16.gmra.mxu0 %v4215
      %v6009 = vpop.f32.mrf.mxu0
      %v6010 = vadd.f32 0.0, %v6009
      %v6011 = vpop.f32.mrf.mxu0
      %v6012 = vadd.f32 0.0, %v6011
      %6013 = vmatmul.bf16.gmra.mxu0 %v4217
      %v6014 = vpop.f32.mrf.mxu0
      %v6015 = vadd.f32 0.0, %v6014
      %v6016 = vpop.f32.mrf.mxu0
      %v6017 = vadd.f32 0.0, %v6016
      %6018 = vmatmul.bf16.gmra.mxu0 %v4219
      %v6019 = vpop.f32.mrf.mxu0
      %v6020 = vadd.f32 0.0, %v6019
      %v6021 = vpop.f32.mrf.mxu0
      %v6022 = vadd.f32 0.0, %v6021
      %6023 = vmatmul.bf16.gmra.mxu0 %v4221
      %v6024 = vpop.f32.mrf.mxu0
      %v6025 = vadd.f32 0.0, %v6024
      %v6026 = vpop.f32.mrf.mxu0
      %v6027 = vadd.f32 0.0, %v6026
      %6028 = vmatmul.bf16.gmra.mxu0 %v4223
      %v6029 = vpop.f32.mrf.mxu0
      %v6030 = vadd.f32 0.0, %v6029
      %v6031 = vpop.f32.mrf.mxu0
      %v6032 = vadd.f32 0.0, %v6031
      %6033 = vmatmul.bf16.gmra.mxu0 %v4225
      %v6034 = vpop.f32.mrf.mxu0
      %v6035 = vadd.f32 0.0, %v6034
      %v6036 = vpop.f32.mrf.mxu0
      %v6037 = vadd.f32 0.0, %v6036
      %6038 = vmatmul.bf16.gmra.mxu0 %v4227
      %v6039 = vpop.f32.mrf.mxu0
      %v6040 = vadd.f32 0.0, %v6039
      %v6041 = vpop.f32.mrf.mxu0
      %v6042 = vadd.f32 0.0, %v6041
      %6043 = vmatmul.bf16.gmra.mxu0 %v4229
      %v6044 = vpop.f32.mrf.mxu0
      %v6045 = vadd.f32 0.0, %v6044
      %v6046 = vpop.f32.mrf.mxu0
      %v6047 = vadd.f32 0.0, %v6046
      %6048 = vmatmul.bf16.gmra.mxu0 %v4231
      %v6049 = vpop.f32.mrf.mxu0
      %v6050 = vadd.f32 0.0, %v6049
      %v6051 = vpop.f32.mrf.mxu0
      %v6052 = vadd.f32 0.0, %v6051
      %6053 = vmatmul.bf16.gmra.mxu0 %v5270
      %v6054 = vpop.f32.mrf.mxu0
      %v6055 = vadd.f32 0.0, %v6054
      %v6056 = vpop.f32.mrf.mxu0
      %v6057 = vadd.f32 0.0, %v6056
      %6058 = vmatmul.bf16.gmra.mxu0 %v5272
      %v6059 = vpop.f32.mrf.mxu0
      %v6060 = vadd.f32 0.0, %v6059
      %v6061 = vpop.f32.mrf.mxu0
      %v6062 = vadd.f32 0.0, %v6061
      %6063 = vmatmul.bf16.gmra.mxu0 %v5809
      %v6064 = vpop.f32.mrf.mxu0
      %v6065 = vadd.f32 0.0, %v6064
      %v6066 = vpop.f32.mrf.mxu0
      %v6067 = vadd.f32 0.0, %v6066
      %6068 = vmatmul.bf16.gmra.mxu0 %v5811
      %v6069 = vpop.f32.mrf.mxu0
      %v6070 = vadd.f32 0.0, %v6069
      %v6071 = vpop.f32.mrf.mxu0
      %v6072 = vadd.f32 0.0, %v6071
      %6073 = vdwg.mxu0
      %6074 = vmatpush.bf16.msra.mxu0 0
      %6075 = vmatpush.bf16.msra.mxu0 0
      %6076 = vmatpush.bf16.msra.mxu0 %v5884
      %6077 = vmatpush.bf16.msra.mxu0 %v5883
      %6078 = vmatpush.bf16.msra.mxu0 %v5882
      %6079 = vmatpush.bf16.msra.mxu0 %v5881
      %6080 = vmatpush.bf16.msra.mxu0 %v5880
      %6081 = vmatpush.bf16.msra.mxu0 %v5879
      %6082 = vmatmul.bf16.gmra.mxu0 %v4362
      %v6083 = vpop.f32.mrf.mxu0
      %v6084 = vadd.f32 %v5915, %v6083
      %v6085 = vpop.f32.mrf.mxu0
      %v6086 = vadd.f32 %v5917, %v6085
      %6087 = vmatmul.bf16.gmra.mxu0 %v4365
      %v6088 = vpop.f32.mrf.mxu0
      %v6089 = vadd.f32 %v5920, %v6088
      %v6090 = vpop.f32.mrf.mxu0
      %v6091 = vadd.f32 %v5922, %v6090
      %6092 = vmatmul.bf16.gmra.mxu0 %v4368
      %v6093 = vpop.f32.mrf.mxu0
      %v6094 = vadd.f32 %v5925, %v6093
      %v6095 = vpop.f32.mrf.mxu0
      %v6096 = vadd.f32 %v5927, %v6095
      %6097 = vmatmul.bf16.gmra.mxu0 %v4371
      %v6098 = vpop.f32.mrf.mxu0
      %v6099 = vadd.f32 %v5930, %v6098
      %v6100 = vpop.f32.mrf.mxu0
      %v6101 = vadd.f32 %v5932, %v6100
      %6102 = vmatmul.bf16.gmra.mxu0 %v4374
      %v6103 = vpop.f32.mrf.mxu0
      %v6104 = vadd.f32 %v5935, %v6103
      %v6105 = vpop.f32.mrf.mxu0
      %v6106 = vadd.f32 %v5937, %v6105
      %6107 = vmatmul.bf16.gmra.mxu0 %v4377
      %v6108 = vpop.f32.mrf.mxu0
      %v6109 = vadd.f32 %v5940, %v6108
      %v6110 = vpop.f32.mrf.mxu0
      %v6111 = vadd.f32 %v5942, %v6110
      %6112 = vmatmul.bf16.gmra.mxu0 %v4380
      %v6113 = vpop.f32.mrf.mxu0
      %v6114 = vadd.f32 %v5945, %v6113
      %v6115 = vpop.f32.mrf.mxu0
      %v6116 = vadd.f32 %v5947, %v6115
      %6117 = vmatmul.bf16.gmra.mxu0 %v4383
      %v6118 = vpop.f32.mrf.mxu0
      %v6119 = vadd.f32 %v5950, %v6118
      %v6120 = vpop.f32.mrf.mxu0
      %v6121 = vadd.f32 %v5952, %v6120
      %6122 = vmatmul.bf16.gmra.mxu0 %v4386
      %v6123 = vpop.f32.mrf.mxu0
      %v6124 = vadd.f32 %v5955, %v6123
      %v6125 = vpop.f32.mrf.mxu0
      %v6126 = vadd.f32 %v5957, %v6125
      %6127 = vmatmul.bf16.gmra.mxu0 %v4389
      %v6128 = vpop.f32.mrf.mxu0
      %v6129 = vadd.f32 %v5960, %v6128
      %v6130 = vpop.f32.mrf.mxu0
      %v6131 = vadd.f32 %v5962, %v6130
      %6132 = vmatmul.bf16.gmra.mxu0 %v4392
      %v6133 = vpop.f32.mrf.mxu0
      %v6134 = vadd.f32 %v5965, %v6133
      %v6135 = vpop.f32.mrf.mxu0
      %v6136 = vadd.f32 %v5967, %v6135
      %6137 = vmatmul.bf16.gmra.mxu0 %v4395
      %v6138 = vpop.f32.mrf.mxu0
      %v6139 = vadd.f32 %v5970, %v6138
      %v6140 = vpop.f32.mrf.mxu0
      %v6141 = vadd.f32 %v5972, %v6140
      %6142 = vmatmul.bf16.gmra.mxu0 %v4398
      %v6143 = vpop.f32.mrf.mxu0
      %v6144 = vadd.f32 %v5975, %v6143
      %v6145 = vpop.f32.mrf.mxu0
      %v6146 = vadd.f32 %v5977, %v6145
      %6147 = vmatmul.bf16.gmra.mxu0 %v4401
      %v6148 = vpop.f32.mrf.mxu0
      %v6149 = vadd.f32 %v5980, %v6148
      %v6150 = vpop.f32.mrf.mxu0
      %v6151 = vadd.f32 %v5982, %v6150
      %6152 = vmatmul.bf16.gmra.mxu0 %v4404
      %v6153 = vpop.f32.mrf.mxu0
      %v6154 = vadd.f32 %v5985, %v6153
      %v6155 = vpop.f32.mrf.mxu0
      %v6156 = vadd.f32 %v5987, %v6155
      %6157 = vmatmul.bf16.gmra.mxu0 %v4407
      %v6158 = vpop.f32.mrf.mxu0
      %v6159 = vadd.f32 %v5990, %v6158
      %v6160 = vpop.f32.mrf.mxu0
      %v6161 = vadd.f32 %v5992, %v6160
      %6162 = vmatmul.bf16.gmra.mxu0 %v4410
      %v6163 = vpop.f32.mrf.mxu0
      %v6164 = vadd.f32 %v5995, %v6163
      %v6165 = vpop.f32.mrf.mxu0
      %v6166 = vadd.f32 %v5997, %v6165
      %6167 = vmatmul.bf16.gmra.mxu0 %v4413
      %v6168 = vpop.f32.mrf.mxu0
      %v6169 = vadd.f32 %v6000, %v6168
      %v6170 = vpop.f32.mrf.mxu0
      %v6171 = vadd.f32 %v6002, %v6170
      %6172 = vmatmul.bf16.gmra.mxu0 %v4416
      %v6173 = vpop.f32.mrf.mxu0
      %v6174 = vadd.f32 %v6005, %v6173
      %v6175 = vpop.f32.mrf.mxu0
      %v6176 = vadd.f32 %v6007, %v6175
      %6177 = vmatmul.bf16.gmra.mxu0 %v4419
      %v6178 = vpop.f32.mrf.mxu0
      %v6179 = vadd.f32 %v6010, %v6178
      %v6180 = vpop.f32.mrf.mxu0
      %v6181 = vadd.f32 %v6012, %v6180
      %6182 = vmatmul.bf16.gmra.mxu0 %v4422
      %v6183 = vpop.f32.mrf.mxu0
      %v6184 = vadd.f32 %v6015, %v6183
      %v6185 = vpop.f32.mrf.mxu0
      %v6186 = vadd.f32 %v6017, %v6185
      %6187 = vmatmul.bf16.gmra.mxu0 %v4425
      %v6188 = vpop.f32.mrf.mxu0
      %v6189 = vadd.f32 %v6020, %v6188
      %v6190 = vpop.f32.mrf.mxu0
      %v6191 = vadd.f32 %v6022, %v6190
      %6192 = vmatmul.bf16.gmra.mxu0 %v4428
      %v6193 = vpop.f32.mrf.mxu0
      %v6194 = vadd.f32 %v6025, %v6193
      %v6195 = vpop.f32.mrf.mxu0
      %v6196 = vadd.f32 %v6027, %v6195
      %6197 = vmatmul.bf16.gmra.mxu0 %v4431
      %v6198 = vpop.f32.mrf.mxu0
      %v6199 = vadd.f32 %v6030, %v6198
      %v6200 = vpop.f32.mrf.mxu0
      %v6201 = vadd.f32 %v6032, %v6200
      %6202 = vmatmul.bf16.gmra.mxu0 %v4434
      %v6203 = vpop.f32.mrf.mxu0
      %v6204 = vadd.f32 %v6035, %v6203
      %v6205 = vpop.f32.mrf.mxu0
      %v6206 = vadd.f32 %v6037, %v6205
      %6207 = vmatmul.bf16.gmra.mxu0 %v4437
      %v6208 = vpop.f32.mrf.mxu0
      %v6209 = vadd.f32 %v6040, %v6208
      %v6210 = vpop.f32.mrf.mxu0
      %v6211 = vadd.f32 %v6042, %v6210
      %6212 = vmatmul.bf16.gmra.mxu0 %v4440
      %v6213 = vpop.f32.mrf.mxu0
      %v6214 = vadd.f32 %v6045, %v6213
      %v6215 = vpop.f32.mrf.mxu0
      %v6216 = vadd.f32 %v6047, %v6215
      %6217 = vmatmul.bf16.gmra.mxu0 %v4443
      %v6218 = vpop.f32.mrf.mxu0
      %v6219 = vadd.f32 %v6050, %v6218
      %v6220 = vpop.f32.mrf.mxu0
      %v6221 = vadd.f32 %v6052, %v6220
      %6222 = vmatmul.bf16.gmra.mxu0 %v5361
      %v6223 = vpop.f32.mrf.mxu0
      %v6224 = vadd.f32 %v6055, %v6223
      %v6225 = vpop.f32.mrf.mxu0
      %v6226 = vadd.f32 %v6057, %v6225
      %6227 = vmatmul.bf16.gmra.mxu0 %v5364
      %v6228 = vpop.f32.mrf.mxu0
      %v6229 = vadd.f32 %v6060, %v6228
      %v6230 = vpop.f32.mrf.mxu0
      %v6231 = vadd.f32 %v6062, %v6230
      %6232 = vmatmul.bf16.gmra.mxu0 %v5900
      %v6233 = vpop.f32.mrf.mxu0
      %v6234 = vadd.f32 %v6065, %v6233
      %v6235 = vpop.f32.mrf.mxu0
      %v6236 = vadd.f32 %v6067, %v6235
      %6237 = vmatmul.bf16.gmra.mxu0 %v5903
      %v6238 = vpop.f32.mrf.mxu0
      %v6239 = vadd.f32 %v6070, %v6238
      %v6240 = vpop.f32.mrf.mxu0
      %v6241 = vadd.f32 %v6072, %v6240
      %6242 = vdwg.mxu0
      %v6243 = vadd.f32 %v5704, %v6084
      %v6244 = vadd.f32 %v5705, %v6086
      %v6245 = vadd.f32 %v5706, %v6089
      %v6246 = vadd.f32 %v5707, %v6091
      %v6247 = vadd.f32 %v5708, %v6094
      %v6248 = vadd.f32 %v5709, %v6096
      %v6249 = vadd.f32 %v5710, %v6099
      %v6250 = vadd.f32 %v5711, %v6101
      %v6251 = vadd.f32 %v5712, %v6104
      %v6252 = vadd.f32 %v5713, %v6106
      %v6253 = vadd.f32 %v5714, %v6109
      %v6254 = vadd.f32 %v5715, %v6111
      %v6255 = vadd.f32 %v5716, %v6114
      %v6256 = vadd.f32 %v5717, %v6116
      %v6257 = vadd.f32 %v5718, %v6119
      %v6258 = vadd.f32 %v5719, %v6121
      %v6259 = vadd.f32 %v5720, %v6124
      %v6260 = vadd.f32 %v5721, %v6126
      %v6261 = vadd.f32 %v5722, %v6129
      %v6262 = vadd.f32 %v5723, %v6131
      %v6263 = vadd.f32 %v5724, %v6134
      %v6264 = vadd.f32 %v5725, %v6136
      %v6265 = vadd.f32 %v5726, %v6139
      %v6266 = vadd.f32 %v5727, %v6141
      %v6267 = vadd.f32 %v5728, %v6144
      %v6268 = vadd.f32 %v5729, %v6146
      %v6269 = vadd.f32 %v5730, %v6149
      %v6270 = vadd.f32 %v5731, %v6151
      %v6271 = vadd.f32 %v5732, %v6154
      %v6272 = vadd.f32 %v5733, %v6156
      %v6273 = vadd.f32 %v5734, %v6159
      %v6274 = vadd.f32 %v5735, %v6161
      %v6275 = vadd.f32 %v5736, %v6164
      %v6276 = vadd.f32 %v5737, %v6166
      %v6277 = vadd.f32 %v5738, %v6169
      %v6278 = vadd.f32 %v5739, %v6171
      %v6279 = vadd.f32 %v5740, %v6174
      %v6280 = vadd.f32 %v5741, %v6176
      %v6281 = vadd.f32 %v5742, %v6179
      %v6282 = vadd.f32 %v5743, %v6181
      %v6283 = vadd.f32 %v5744, %v6184
      %v6284 = vadd.f32 %v5745, %v6186
      %v6285 = vadd.f32 %v5746, %v6189
      %v6286 = vadd.f32 %v5747, %v6191
      %v6287 = vadd.f32 %v5748, %v6194
      %v6288 = vadd.f32 %v5749, %v6196
      %v6289 = vadd.f32 %v5750, %v6199
      %v6290 = vadd.f32 %v5751, %v6201
      %v6291 = vadd.f32 %v5752, %v6204
      %v6292 = vadd.f32 %v5753, %v6206
      %v6293 = vadd.f32 %v5754, %v6209
      %v6294 = vadd.f32 %v5755, %v6211
      %v6295 = vadd.f32 %v5756, %v6214
      %v6296 = vadd.f32 %v5757, %v6216
      %v6297 = vadd.f32 %v5758, %v6219
      %v6298 = vadd.f32 %v5759, %v6221
      %v6299 = vadd.f32 %v5760, %v6224
      %v6300 = vadd.f32 %v5761, %v6226
      %v6301 = vadd.f32 %v5762, %v6229
      %v6302 = vadd.f32 %v5763, %v6231
      %v6303 = vadd.f32 %v5764, %v6234
      %v6304 = vadd.f32 %v5765, %v6236
      %v6305 = vadd.f32 %v5766, %v6239
      %v6306 = vadd.f32 %v5767, %v6241
      %s6307 = scalar_lea.vmem %s239, 448
      %v6308 = vld [vmem:[%s6307] sm:$0xf]
      %v6309 = vld [vmem:[%s6307 + $0x4] sm:$0xf]
      %v6310 = vld [vmem:[%s6307 + $0x8] sm:$0xf]
      %v6311 = vld [vmem:[%s6307 + $0xc] sm:$0xf]
      %v6312 = vld [vmem:[%s6307 + $0x10] sm:$0xf]
      %v6313 = vld [vmem:[%s6307 + $0x14] sm:$0xf]
      %v6314 = vld [vmem:[%s6307 + $0x18] sm:$0xf]
      %v6315 = vld [vmem:[%s6307 + $0x1c] sm:$0xf]
      %v6316 = vld [vmem:[%s6307 + $0x20] sm:$0xf]
      %v6317 = vld [vmem:[%s6307 + $0x24] sm:$0xf]
      %v6318 = vld [vmem:[%s6307 + $0x28] sm:$0xf]
      %v6319 = vld [vmem:[%s6307 + $0x2c] sm:$0xf]
      %v6320 = vld [vmem:[%s6307 + $0x30] sm:$0xf]
      %v6321 = vld [vmem:[%s6307 + $0x34] sm:$0xf]
      %v6322 = vld [vmem:[%s6307 + $0x38] sm:$0xf]
      %v6323 = vld [vmem:[%s6307 + $0x3c] sm:$0xf]
      %v6324 = vld [vmem:[%s6307 + $0x40] sm:$0xf]
      %v6325 = vld [vmem:[%s6307 + $0x44] sm:$0xf]
      %v6326 = vld [vmem:[%s6307 + $0x48] sm:$0xf]
      %v6327 = vld [vmem:[%s6307 + $0x4c] sm:$0xf]
      %v6328 = vld [vmem:[%s6307 + $0x50] sm:$0xf]
      %v6329 = vld [vmem:[%s6307 + $0x54] sm:$0xf]
      %v6330 = vld [vmem:[%s6307 + $0x58] sm:$0xf]
      %v6331 = vld [vmem:[%s6307 + $0x5c] sm:$0xf]
      %v6332 = vld [vmem:[%s6307 + $0x60] sm:$0xf]
      %v6333 = vld [vmem:[%s6307 + $0x64] sm:$0xf]
      %v6334 = vld [vmem:[%s6307 + $0x68] sm:$0xf]
      %v6335 = vld [vmem:[%s6307 + $0x6c] sm:$0xf]
      %v6340 = vunpack.c.l.b16 %v3908
      %v6341 = vunpack.c.h.b16 %v3908
      %v6342 = vunpack.c.l.b16 %v3909
      %v6343 = vunpack.c.h.b16 %v3909
      %v6344 = vunpack.c.l.b16 %v3910
      %v6345 = vunpack.c.h.b16 %v3910
      %v6346 = vunpack.c.l.b16 %v3911
      %v6347 = vunpack.c.h.b16 %v3911
      %v6348 = vpack.c.b16 %v6342, %v6340
      %v6349 = vpack.c.b16 %v6343, %v6341
      %v6350 = vpack.c.b16 %v6346, %v6344
      %v6351 = vpack.c.b16 %v6347, %v6345
      %v6382 = vunpack.c.l.b16 %v6308
      %v6383 = vunpack.c.l.b16 %v6309
      %v6384 = vunpack.c.l.b16 %v6310
      %v6385 = vunpack.c.l.b16 %v6311
      %v6386 = vunpack.c.l.b16 %v6312
      %v6387 = vunpack.c.l.b16 %v6313
      %v6388 = vunpack.c.l.b16 %v6314
      %v6389 = vunpack.c.l.b16 %v6315
      %v6390 = vunpack.c.l.b16 %v6316
      %v6391 = vunpack.c.l.b16 %v6317
      %v6392 = vunpack.c.l.b16 %v6318
      %v6393 = vunpack.c.l.b16 %v6319
      %v6394 = vunpack.c.l.b16 %v6320
      %v6395 = vunpack.c.l.b16 %v6321
      %v6396 = vunpack.c.l.b16 %v6322
      %v6397 = vunpack.c.l.b16 %v6323
      %v6398 = vunpack.c.l.b16 %v6324
      %v6399 = vunpack.c.l.b16 %v6325
      %v6400 = vunpack.c.l.b16 %v6326
      %v6401 = vunpack.c.l.b16 %v6327
      %v6402 = vunpack.c.l.b16 %v6328
      %v6403 = vunpack.c.l.b16 %v6329
      %v6404 = vunpack.c.l.b16 %v6330
      %v6405 = vunpack.c.l.b16 %v6331
      %v6406 = vunpack.c.l.b16 %v6332
      %v6407 = vunpack.c.l.b16 %v6333
      %v6408 = vunpack.c.l.b16 %v6334
      %v6409 = vunpack.c.l.b16 %v6335
      %v6410 = vpack.c.b16 %v6383, %v6382
      %v6411 = vpack.c.b16 %v6385, %v6384
      %v6412 = vpack.c.b16 %v6387, %v6386
      %v6413 = vpack.c.b16 %v6389, %v6388
      %v6414 = vpack.c.b16 %v6391, %v6390
      %v6415 = vpack.c.b16 %v6393, %v6392
      %v6416 = vpack.c.b16 %v6395, %v6394
      %v6417 = vpack.c.b16 %v6397, %v6396
      %v6418 = vpack.c.b16 %v6399, %v6398
      %v6419 = vpack.c.b16 %v6401, %v6400
      %v6420 = vpack.c.b16 %v6403, %v6402
      %v6421 = vpack.c.b16 %v6405, %v6404
      %v6422 = vpack.c.b16 %v6407, %v6406
      %v6423 = vpack.c.b16 %v6409, %v6408
      %v6439 = vsel %vm3567, %v6349, 0
      %v6442 = vsel %vm3567, %v6351, 0
      %6444 = vmatpush.bf16.msra.mxu0 %v6417
      %6445 = vmatpush.bf16.msra.mxu0 %v6416
      %6446 = vmatpush.bf16.msra.mxu0 %v6415
      %6447 = vmatpush.bf16.msra.mxu0 %v6414
      %6448 = vmatpush.bf16.msra.mxu0 %v6413
      %6449 = vmatpush.bf16.msra.mxu0 %v6412
      %6450 = vmatpush.bf16.msra.mxu0 %v6411
      %6451 = vmatpush.bf16.msra.mxu0 %v6410
      %6452 = vmatmul.bf16.gmra.mxu0 %v4181
      %v6453 = vpop.f32.mrf.mxu0
      %v6454 = vadd.f32 0.0, %v6453
      %v6455 = vpop.f32.mrf.mxu0
      %v6456 = vadd.f32 0.0, %v6455
      %6457 = vmatmul.bf16.gmra.mxu0 %v4183
      %v6458 = vpop.f32.mrf.mxu0
      %v6459 = vadd.f32 0.0, %v6458
      %v6460 = vpop.f32.mrf.mxu0
      %v6461 = vadd.f32 0.0, %v6460
      %6462 = vmatmul.bf16.gmra.mxu0 %v4185
      %v6463 = vpop.f32.mrf.mxu0
      %v6464 = vadd.f32 0.0, %v6463
      %v6465 = vpop.f32.mrf.mxu0
      %v6466 = vadd.f32 0.0, %v6465
      %6467 = vmatmul.bf16.gmra.mxu0 %v4187
      %v6468 = vpop.f32.mrf.mxu0
      %v6469 = vadd.f32 0.0, %v6468
      %v6470 = vpop.f32.mrf.mxu0
      %v6471 = vadd.f32 0.0, %v6470
      %6472 = vmatmul.bf16.gmra.mxu0 %v4189
      %v6473 = vpop.f32.mrf.mxu0
      %v6474 = vadd.f32 0.0, %v6473
      %v6475 = vpop.f32.mrf.mxu0
      %v6476 = vadd.f32 0.0, %v6475
      %6477 = vmatmul.bf16.gmra.mxu0 %v4191
      %v6478 = vpop.f32.mrf.mxu0
      %v6479 = vadd.f32 0.0, %v6478
      %v6480 = vpop.f32.mrf.mxu0
      %v6481 = vadd.f32 0.0, %v6480
      %6482 = vmatmul.bf16.gmra.mxu0 %v4193
      %v6483 = vpop.f32.mrf.mxu0
      %v6484 = vadd.f32 0.0, %v6483
      %v6485 = vpop.f32.mrf.mxu0
      %v6486 = vadd.f32 0.0, %v6485
      %6487 = vmatmul.bf16.gmra.mxu0 %v4195
      %v6488 = vpop.f32.mrf.mxu0
      %v6489 = vadd.f32 0.0, %v6488
      %v6490 = vpop.f32.mrf.mxu0
      %v6491 = vadd.f32 0.0, %v6490
      %6492 = vmatmul.bf16.gmra.mxu0 %v4197
      %v6493 = vpop.f32.mrf.mxu0
      %v6494 = vadd.f32 0.0, %v6493
      %v6495 = vpop.f32.mrf.mxu0
      %v6496 = vadd.f32 0.0, %v6495
      %6497 = vmatmul.bf16.gmra.mxu0 %v4199
      %v6498 = vpop.f32.mrf.mxu0
      %v6499 = vadd.f32 0.0, %v6498
      %v6500 = vpop.f32.mrf.mxu0
      %v6501 = vadd.f32 0.0, %v6500
      %6502 = vmatmul.bf16.gmra.mxu0 %v4201
      %v6503 = vpop.f32.mrf.mxu0
      %v6504 = vadd.f32 0.0, %v6503
      %v6505 = vpop.f32.mrf.mxu0
      %v6506 = vadd.f32 0.0, %v6505
      %6507 = vmatmul.bf16.gmra.mxu0 %v4203
      %v6508 = vpop.f32.mrf.mxu0
      %v6509 = vadd.f32 0.0, %v6508
      %v6510 = vpop.f32.mrf.mxu0
      %v6511 = vadd.f32 0.0, %v6510
      %6512 = vmatmul.bf16.gmra.mxu0 %v4205
      %v6513 = vpop.f32.mrf.mxu0
      %v6514 = vadd.f32 0.0, %v6513
      %v6515 = vpop.f32.mrf.mxu0
      %v6516 = vadd.f32 0.0, %v6515
      %6517 = vmatmul.bf16.gmra.mxu0 %v4207
      %v6518 = vpop.f32.mrf.mxu0
      %v6519 = vadd.f32 0.0, %v6518
      %v6520 = vpop.f32.mrf.mxu0
      %v6521 = vadd.f32 0.0, %v6520
      %6522 = vmatmul.bf16.gmra.mxu0 %v4209
      %v6523 = vpop.f32.mrf.mxu0
      %v6524 = vadd.f32 0.0, %v6523
      %v6525 = vpop.f32.mrf.mxu0
      %v6526 = vadd.f32 0.0, %v6525
      %6527 = vmatmul.bf16.gmra.mxu0 %v4211
      %v6528 = vpop.f32.mrf.mxu0
      %v6529 = vadd.f32 0.0, %v6528
      %v6530 = vpop.f32.mrf.mxu0
      %v6531 = vadd.f32 0.0, %v6530
      %6532 = vmatmul.bf16.gmra.mxu0 %v4213
      %v6533 = vpop.f32.mrf.mxu0
      %v6534 = vadd.f32 0.0, %v6533
      %v6535 = vpop.f32.mrf.mxu0
      %v6536 = vadd.f32 0.0, %v6535
      %6537 = vmatmul.bf16.gmra.mxu0 %v4215
      %v6538 = vpop.f32.mrf.mxu0
      %v6539 = vadd.f32 0.0, %v6538
      %v6540 = vpop.f32.mrf.mxu0
      %v6541 = vadd.f32 0.0, %v6540
      %6542 = vmatmul.bf16.gmra.mxu0 %v4217
      %v6543 = vpop.f32.mrf.mxu0
      %v6544 = vadd.f32 0.0, %v6543
      %v6545 = vpop.f32.mrf.mxu0
      %v6546 = vadd.f32 0.0, %v6545
      %6547 = vmatmul.bf16.gmra.mxu0 %v4219
      %v6548 = vpop.f32.mrf.mxu0
      %v6549 = vadd.f32 0.0, %v6548
      %v6550 = vpop.f32.mrf.mxu0
      %v6551 = vadd.f32 0.0, %v6550
      %6552 = vmatmul.bf16.gmra.mxu0 %v4221
      %v6553 = vpop.f32.mrf.mxu0
      %v6554 = vadd.f32 0.0, %v6553
      %v6555 = vpop.f32.mrf.mxu0
      %v6556 = vadd.f32 0.0, %v6555
      %6557 = vmatmul.bf16.gmra.mxu0 %v4223
      %v6558 = vpop.f32.mrf.mxu0
      %v6559 = vadd.f32 0.0, %v6558
      %v6560 = vpop.f32.mrf.mxu0
      %v6561 = vadd.f32 0.0, %v6560
      %6562 = vmatmul.bf16.gmra.mxu0 %v4225
      %v6563 = vpop.f32.mrf.mxu0
      %v6564 = vadd.f32 0.0, %v6563
      %v6565 = vpop.f32.mrf.mxu0
      %v6566 = vadd.f32 0.0, %v6565
      %6567 = vmatmul.bf16.gmra.mxu0 %v4227
      %v6568 = vpop.f32.mrf.mxu0
      %v6569 = vadd.f32 0.0, %v6568
      %v6570 = vpop.f32.mrf.mxu0
      %v6571 = vadd.f32 0.0, %v6570
      %6572 = vmatmul.bf16.gmra.mxu0 %v4229
      %v6573 = vpop.f32.mrf.mxu0
      %v6574 = vadd.f32 0.0, %v6573
      %v6575 = vpop.f32.mrf.mxu0
      %v6576 = vadd.f32 0.0, %v6575
      %6577 = vmatmul.bf16.gmra.mxu0 %v4231
      %v6578 = vpop.f32.mrf.mxu0
      %v6579 = vadd.f32 0.0, %v6578
      %v6580 = vpop.f32.mrf.mxu0
      %v6581 = vadd.f32 0.0, %v6580
      %6582 = vmatmul.bf16.gmra.mxu0 %v5270
      %v6583 = vpop.f32.mrf.mxu0
      %v6584 = vadd.f32 0.0, %v6583
      %v6585 = vpop.f32.mrf.mxu0
      %v6586 = vadd.f32 0.0, %v6585
      %6587 = vmatmul.bf16.gmra.mxu0 %v5272
      %v6588 = vpop.f32.mrf.mxu0
      %v6589 = vadd.f32 0.0, %v6588
      %v6590 = vpop.f32.mrf.mxu0
      %v6591 = vadd.f32 0.0, %v6590
      %6592 = vmatmul.bf16.gmra.mxu0 %v5809
      %v6593 = vpop.f32.mrf.mxu0
      %v6594 = vadd.f32 0.0, %v6593
      %v6595 = vpop.f32.mrf.mxu0
      %v6596 = vadd.f32 0.0, %v6595
      %6597 = vmatmul.bf16.gmra.mxu0 %v5811
      %v6598 = vpop.f32.mrf.mxu0
      %v6599 = vadd.f32 0.0, %v6598
      %v6600 = vpop.f32.mrf.mxu0
      %v6601 = vadd.f32 0.0, %v6600
      %6602 = vmatmul.bf16.gmra.mxu0 %v6348
      %v6603 = vpop.f32.mrf.mxu0
      %v6604 = vadd.f32 0.0, %v6603
      %v6605 = vpop.f32.mrf.mxu0
      %v6606 = vadd.f32 0.0, %v6605
      %6607 = vmatmul.bf16.gmra.mxu0 %v6350
      %v6608 = vpop.f32.mrf.mxu0
      %v6609 = vadd.f32 0.0, %v6608
      %v6610 = vpop.f32.mrf.mxu0
      %v6611 = vadd.f32 0.0, %v6610
      %6612 = vdwg.mxu0
      %6613 = vmatpush.bf16.msra.mxu0 0
      %6614 = vmatpush.bf16.msra.mxu0 0
      %6615 = vmatpush.bf16.msra.mxu0 %v6423
      %6616 = vmatpush.bf16.msra.mxu0 %v6422
      %6617 = vmatpush.bf16.msra.mxu0 %v6421
      %6618 = vmatpush.bf16.msra.mxu0 %v6420
      %6619 = vmatpush.bf16.msra.mxu0 %v6419
      %6620 = vmatpush.bf16.msra.mxu0 %v6418
      %6621 = vmatmul.bf16.gmra.mxu0 %v4368
      %v6622 = vpop.f32.mrf.mxu0
      %v6623 = vadd.f32 %v6454, %v6622
      %v6624 = vpop.f32.mrf.mxu0
      %v6625 = vadd.f32 %v6456, %v6624
      %6626 = vmatmul.bf16.gmra.mxu0 %v4371
      %v6627 = vpop.f32.mrf.mxu0
      %v6628 = vadd.f32 %v6459, %v6627
      %v6629 = vpop.f32.mrf.mxu0
      %v6630 = vadd.f32 %v6461, %v6629
      %6631 = vmatmul.bf16.gmra.mxu0 %v4374
      %v6632 = vpop.f32.mrf.mxu0
      %v6633 = vadd.f32 %v6464, %v6632
      %v6634 = vpop.f32.mrf.mxu0
      %v6635 = vadd.f32 %v6466, %v6634
      %6636 = vmatmul.bf16.gmra.mxu0 %v4377
      %v6637 = vpop.f32.mrf.mxu0
      %v6638 = vadd.f32 %v6469, %v6637
      %v6639 = vpop.f32.mrf.mxu0
      %v6640 = vadd.f32 %v6471, %v6639
      %6641 = vmatmul.bf16.gmra.mxu0 %v4380
      %v6642 = vpop.f32.mrf.mxu0
      %v6643 = vadd.f32 %v6474, %v6642
      %v6644 = vpop.f32.mrf.mxu0
      %v6645 = vadd.f32 %v6476, %v6644
      %6646 = vmatmul.bf16.gmra.mxu0 %v4383
      %v6647 = vpop.f32.mrf.mxu0
      %v6648 = vadd.f32 %v6479, %v6647
      %v6649 = vpop.f32.mrf.mxu0
      %v6650 = vadd.f32 %v6481, %v6649
      %6651 = vmatmul.bf16.gmra.mxu0 %v4386
      %v6652 = vpop.f32.mrf.mxu0
      %v6653 = vadd.f32 %v6484, %v6652
      %v6654 = vpop.f32.mrf.mxu0
      %v6655 = vadd.f32 %v6486, %v6654
      %6656 = vmatmul.bf16.gmra.mxu0 %v4389
      %v6657 = vpop.f32.mrf.mxu0
      %v6658 = vadd.f32 %v6489, %v6657
      %v6659 = vpop.f32.mrf.mxu0
      %v6660 = vadd.f32 %v6491, %v6659
      %6661 = vmatmul.bf16.gmra.mxu0 %v4392
      %v6662 = vpop.f32.mrf.mxu0
      %v6663 = vadd.f32 %v6494, %v6662
      %v6664 = vpop.f32.mrf.mxu0
      %v6665 = vadd.f32 %v6496, %v6664
      %6666 = vmatmul.bf16.gmra.mxu0 %v4395
      %v6667 = vpop.f32.mrf.mxu0
      %v6668 = vadd.f32 %v6499, %v6667
      %v6669 = vpop.f32.mrf.mxu0
      %v6670 = vadd.f32 %v6501, %v6669
      %6671 = vmatmul.bf16.gmra.mxu0 %v4398
      %v6672 = vpop.f32.mrf.mxu0
      %v6673 = vadd.f32 %v6504, %v6672
      %v6674 = vpop.f32.mrf.mxu0
      %v6675 = vadd.f32 %v6506, %v6674
      %6676 = vmatmul.bf16.gmra.mxu0 %v4401
      %v6677 = vpop.f32.mrf.mxu0
      %v6678 = vadd.f32 %v6509, %v6677
      %v6679 = vpop.f32.mrf.mxu0
      %v6680 = vadd.f32 %v6511, %v6679
      %6681 = vmatmul.bf16.gmra.mxu0 %v4404
      %v6682 = vpop.f32.mrf.mxu0
      %v6683 = vadd.f32 %v6514, %v6682
      %v6684 = vpop.f32.mrf.mxu0
      %v6685 = vadd.f32 %v6516, %v6684
      %6686 = vmatmul.bf16.gmra.mxu0 %v4407
      %v6687 = vpop.f32.mrf.mxu0
      %v6688 = vadd.f32 %v6519, %v6687
      %v6689 = vpop.f32.mrf.mxu0
      %v6690 = vadd.f32 %v6521, %v6689
      %6691 = vmatmul.bf16.gmra.mxu0 %v4410
      %v6692 = vpop.f32.mrf.mxu0
      %v6693 = vadd.f32 %v6524, %v6692
      %v6694 = vpop.f32.mrf.mxu0
      %v6695 = vadd.f32 %v6526, %v6694
      %6696 = vmatmul.bf16.gmra.mxu0 %v4413
      %v6697 = vpop.f32.mrf.mxu0
      %v6698 = vadd.f32 %v6529, %v6697
      %v6699 = vpop.f32.mrf.mxu0
      %v6700 = vadd.f32 %v6531, %v6699
      %6701 = vmatmul.bf16.gmra.mxu0 %v4416
      %v6702 = vpop.f32.mrf.mxu0
      %v6703 = vadd.f32 %v6534, %v6702
      %v6704 = vpop.f32.mrf.mxu0
      %v6705 = vadd.f32 %v6536, %v6704
      %6706 = vmatmul.bf16.gmra.mxu0 %v4419
      %v6707 = vpop.f32.mrf.mxu0
      %v6708 = vadd.f32 %v6539, %v6707
      %v6709 = vpop.f32.mrf.mxu0
      %v6710 = vadd.f32 %v6541, %v6709
      %6711 = vmatmul.bf16.gmra.mxu0 %v4422
      %v6712 = vpop.f32.mrf.mxu0
      %v6713 = vadd.f32 %v6544, %v6712
      %v6714 = vpop.f32.mrf.mxu0
      %v6715 = vadd.f32 %v6546, %v6714
      %6716 = vmatmul.bf16.gmra.mxu0 %v4425
      %v6717 = vpop.f32.mrf.mxu0
      %v6718 = vadd.f32 %v6549, %v6717
      %v6719 = vpop.f32.mrf.mxu0
      %v6720 = vadd.f32 %v6551, %v6719
      %6721 = vmatmul.bf16.gmra.mxu0 %v4428
      %v6722 = vpop.f32.mrf.mxu0
      %v6723 = vadd.f32 %v6554, %v6722
      %v6724 = vpop.f32.mrf.mxu0
      %v6725 = vadd.f32 %v6556, %v6724
      %6726 = vmatmul.bf16.gmra.mxu0 %v4431
      %v6727 = vpop.f32.mrf.mxu0
      %v6728 = vadd.f32 %v6559, %v6727
      %v6729 = vpop.f32.mrf.mxu0
      %v6730 = vadd.f32 %v6561, %v6729
      %6731 = vmatmul.bf16.gmra.mxu0 %v4434
      %v6732 = vpop.f32.mrf.mxu0
      %v6733 = vadd.f32 %v6564, %v6732
      %v6734 = vpop.f32.mrf.mxu0
      %v6735 = vadd.f32 %v6566, %v6734
      %6736 = vmatmul.bf16.gmra.mxu0 %v4437
      %v6737 = vpop.f32.mrf.mxu0
      %v6738 = vadd.f32 %v6569, %v6737
      %v6739 = vpop.f32.mrf.mxu0
      %v6740 = vadd.f32 %v6571, %v6739
      %6741 = vmatmul.bf16.gmra.mxu0 %v4440
      %v6742 = vpop.f32.mrf.mxu0
      %v6743 = vadd.f32 %v6574, %v6742
      %v6744 = vpop.f32.mrf.mxu0
      %v6745 = vadd.f32 %v6576, %v6744
      %6746 = vmatmul.bf16.gmra.mxu0 %v4443
      %v6747 = vpop.f32.mrf.mxu0
      %v6748 = vadd.f32 %v6579, %v6747
      %v6749 = vpop.f32.mrf.mxu0
      %v6750 = vadd.f32 %v6581, %v6749
      %6751 = vmatmul.bf16.gmra.mxu0 %v5361
      %v6752 = vpop.f32.mrf.mxu0
      %v6753 = vadd.f32 %v6584, %v6752
      %v6754 = vpop.f32.mrf.mxu0
      %v6755 = vadd.f32 %v6586, %v6754
      %6756 = vmatmul.bf16.gmra.mxu0 %v5364
      %v6757 = vpop.f32.mrf.mxu0
      %v6758 = vadd.f32 %v6589, %v6757
      %v6759 = vpop.f32.mrf.mxu0
      %v6760 = vadd.f32 %v6591, %v6759
      %6761 = vmatmul.bf16.gmra.mxu0 %v5900
      %v6762 = vpop.f32.mrf.mxu0
      %v6763 = vadd.f32 %v6594, %v6762
      %v6764 = vpop.f32.mrf.mxu0
      %v6765 = vadd.f32 %v6596, %v6764
      %6766 = vmatmul.bf16.gmra.mxu0 %v5903
      %v6767 = vpop.f32.mrf.mxu0
      %v6768 = vadd.f32 %v6599, %v6767
      %v6769 = vpop.f32.mrf.mxu0
      %v6770 = vadd.f32 %v6601, %v6769
      %6771 = vmatmul.bf16.gmra.mxu0 %v6439
      %v6772 = vpop.f32.mrf.mxu0
      %v6773 = vadd.f32 %v6604, %v6772
      %v6774 = vpop.f32.mrf.mxu0
      %v6775 = vadd.f32 %v6606, %v6774
      %6776 = vmatmul.bf16.gmra.mxu0 %v6442
      %v6777 = vpop.f32.mrf.mxu0
      %v6778 = vadd.f32 %v6609, %v6777
      %v6779 = vpop.f32.mrf.mxu0
      %v6780 = vadd.f32 %v6611, %v6779
      %6781 = vdwg.mxu0
      %v6782 = vadd.f32 %v6243, %v6623
      %v6783 = vadd.f32 %v6244, %v6625
      %v6784 = vadd.f32 %v6245, %v6628
      %v6785 = vadd.f32 %v6246, %v6630
      %v6786 = vadd.f32 %v6247, %v6633
      %v6787 = vadd.f32 %v6248, %v6635
      %v6788 = vadd.f32 %v6249, %v6638
      %v6789 = vadd.f32 %v6250, %v6640
      %v6790 = vadd.f32 %v6251, %v6643
      %v6791 = vadd.f32 %v6252, %v6645
      %v6792 = vadd.f32 %v6253, %v6648
      %v6793 = vadd.f32 %v6254, %v6650
      %v6794 = vadd.f32 %v6255, %v6653
      %v6795 = vadd.f32 %v6256, %v6655
      %v6796 = vadd.f32 %v6257, %v6658
      %v6797 = vadd.f32 %v6258, %v6660
      %v6798 = vadd.f32 %v6259, %v6663
      %v6799 = vadd.f32 %v6260, %v6665
      %v6800 = vadd.f32 %v6261, %v6668
      %v6801 = vadd.f32 %v6262, %v6670
      %v6802 = vadd.f32 %v6263, %v6673
      %v6803 = vadd.f32 %v6264, %v6675
      %v6804 = vadd.f32 %v6265, %v6678
      %v6805 = vadd.f32 %v6266, %v6680
      %v6806 = vadd.f32 %v6267, %v6683
      %v6807 = vadd.f32 %v6268, %v6685
      %v6808 = vadd.f32 %v6269, %v6688
      %v6809 = vadd.f32 %v6270, %v6690
      %v6810 = vadd.f32 %v6271, %v6693
      %v6811 = vadd.f32 %v6272, %v6695
      %v6812 = vadd.f32 %v6273, %v6698
      %v6813 = vadd.f32 %v6274, %v6700
      %v6814 = vadd.f32 %v6275, %v6703
      %v6815 = vadd.f32 %v6276, %v6705
      %v6816 = vadd.f32 %v6277, %v6708
      %v6817 = vadd.f32 %v6278, %v6710
      %v6818 = vadd.f32 %v6279, %v6713
      %v6819 = vadd.f32 %v6280, %v6715
      %v6820 = vadd.f32 %v6281, %v6718
      %v6821 = vadd.f32 %v6282, %v6720
      %v6822 = vadd.f32 %v6283, %v6723
      %v6823 = vadd.f32 %v6284, %v6725
      %v6824 = vadd.f32 %v6285, %v6728
      %v6825 = vadd.f32 %v6286, %v6730
      %v6826 = vadd.f32 %v6287, %v6733
      %v6827 = vadd.f32 %v6288, %v6735
      %v6828 = vadd.f32 %v6289, %v6738
      %v6829 = vadd.f32 %v6290, %v6740
      %v6830 = vadd.f32 %v6291, %v6743
      %v6831 = vadd.f32 %v6292, %v6745
      %v6832 = vadd.f32 %v6293, %v6748
      %v6833 = vadd.f32 %v6294, %v6750
      %v6834 = vadd.f32 %v6295, %v6753
      %v6835 = vadd.f32 %v6296, %v6755
      %v6836 = vadd.f32 %v6297, %v6758
      %v6837 = vadd.f32 %v6298, %v6760
      %v6838 = vadd.f32 %v6299, %v6763
      %v6839 = vadd.f32 %v6300, %v6765
      %v6840 = vadd.f32 %v6301, %v6768
      %v6841 = vadd.f32 %v6302, %v6770
      %v6842 = vadd.f32 %v6303, %v6773
      %v6843 = vadd.f32 %v6304, %v6775
      %v6844 = vadd.f32 %v6305, %v6778
      %v6845 = vadd.f32 %v6306, %v6780
      %s6846 = scalar_lea.vmem %s239, 560
      %v6847 = vld [vmem:[%s6846] sm:$0xf]
      %v6848 = vld [vmem:[%s6846 + $0x4] sm:$0xf]
      %v6849 = vld [vmem:[%s6846 + $0x8] sm:$0xf]
      %v6850 = vld [vmem:[%s6846 + $0xc] sm:$0xf]
      %v6851 = vld [vmem:[%s6846 + $0x10] sm:$0xf]
      %v6852 = vld [vmem:[%s6846 + $0x14] sm:$0xf]
      %v6853 = vld [vmem:[%s6846 + $0x18] sm:$0xf]
      %v6854 = vld [vmem:[%s6846 + $0x1c] sm:$0xf]
      %v6855 = vld [vmem:[%s6846 + $0x20] sm:$0xf]
      %v6856 = vld [vmem:[%s6846 + $0x24] sm:$0xf]
      %v6857 = vld [vmem:[%s6846 + $0x28] sm:$0xf]
      %v6858 = vld [vmem:[%s6846 + $0x2c] sm:$0xf]
      %v6859 = vld [vmem:[%s6846 + $0x30] sm:$0xf]
      %v6860 = vld [vmem:[%s6846 + $0x34] sm:$0xf]
      %v6861 = vld [vmem:[%s6846 + $0x38] sm:$0xf]
      %v6862 = vld [vmem:[%s6846 + $0x3c] sm:$0xf]
      %v6863 = vld [vmem:[%s6846 + $0x40] sm:$0xf]
      %v6864 = vld [vmem:[%s6846 + $0x44] sm:$0xf]
      %v6865 = vld [vmem:[%s6846 + $0x48] sm:$0xf]
      %v6866 = vld [vmem:[%s6846 + $0x4c] sm:$0xf]
      %v6867 = vld [vmem:[%s6846 + $0x50] sm:$0xf]
      %v6868 = vld [vmem:[%s6846 + $0x54] sm:$0xf]
      %v6869 = vld [vmem:[%s6846 + $0x58] sm:$0xf]
      %v6870 = vld [vmem:[%s6846 + $0x5c] sm:$0xf]
      %v6871 = vld [vmem:[%s6846 + $0x60] sm:$0xf]
      %v6872 = vld [vmem:[%s6846 + $0x64] sm:$0xf]
      %v6873 = vld [vmem:[%s6846 + $0x68] sm:$0xf]
      %v6874 = vld [vmem:[%s6846 + $0x6c] sm:$0xf]
      %v6879 = vunpack.c.l.b16 %v3912
      %v6880 = vunpack.c.h.b16 %v3912
      %v6881 = vunpack.c.l.b16 %v3913
      %v6882 = vunpack.c.h.b16 %v3913
      %v6883 = vunpack.c.l.b16 %v3914
      %v6884 = vunpack.c.h.b16 %v3914
      %v6885 = vunpack.c.l.b16 %v3915
      %v6886 = vunpack.c.h.b16 %v3915
      %v6887 = vpack.c.b16 %v6881, %v6879
      %v6888 = vpack.c.b16 %v6882, %v6880
      %v6889 = vpack.c.b16 %v6885, %v6883
      %v6890 = vpack.c.b16 %v6886, %v6884
      %v6921 = vunpack.c.l.b16 %v6847
      %v6922 = vunpack.c.l.b16 %v6848
      %v6923 = vunpack.c.l.b16 %v6849
      %v6924 = vunpack.c.l.b16 %v6850
      %v6925 = vunpack.c.l.b16 %v6851
      %v6926 = vunpack.c.l.b16 %v6852
      %v6927 = vunpack.c.l.b16 %v6853
      %v6928 = vunpack.c.l.b16 %v6854
      %v6929 = vunpack.c.l.b16 %v6855
      %v6930 = vunpack.c.l.b16 %v6856
      %v6931 = vunpack.c.l.b16 %v6857
      %v6932 = vunpack.c.l.b16 %v6858
      %v6933 = vunpack.c.l.b16 %v6859
      %v6934 = vunpack.c.l.b16 %v6860
      %v6935 = vunpack.c.l.b16 %v6861
      %v6936 = vunpack.c.l.b16 %v6862
      %v6937 = vunpack.c.l.b16 %v6863
      %v6938 = vunpack.c.l.b16 %v6864
      %v6939 = vunpack.c.l.b16 %v6865
      %v6940 = vunpack.c.l.b16 %v6866
      %v6941 = vunpack.c.l.b16 %v6867
      %v6942 = vunpack.c.l.b16 %v6868
      %v6943 = vunpack.c.l.b16 %v6869
      %v6944 = vunpack.c.l.b16 %v6870
      %v6945 = vunpack.c.l.b16 %v6871
      %v6946 = vunpack.c.l.b16 %v6872
      %v6947 = vunpack.c.l.b16 %v6873
      %v6948 = vunpack.c.l.b16 %v6874
      %v6949 = vpack.c.b16 %v6922, %v6921
      %v6950 = vpack.c.b16 %v6924, %v6923
      %v6951 = vpack.c.b16 %v6926, %v6925
      %v6952 = vpack.c.b16 %v6928, %v6927
      %v6953 = vpack.c.b16 %v6930, %v6929
      %v6954 = vpack.c.b16 %v6932, %v6931
      %v6955 = vpack.c.b16 %v6934, %v6933
      %v6956 = vpack.c.b16 %v6936, %v6935
      %v6957 = vpack.c.b16 %v6938, %v6937
      %v6958 = vpack.c.b16 %v6940, %v6939
      %v6959 = vpack.c.b16 %v6942, %v6941
      %v6960 = vpack.c.b16 %v6944, %v6943
      %v6961 = vpack.c.b16 %v6946, %v6945
      %v6962 = vpack.c.b16 %v6948, %v6947
      %v6978 = vsel %vm3567, %v6888, 0
      %v6981 = vsel %vm3567, %v6890, 0
      %6983 = vmatpush.bf16.msra.mxu0 %v6956
      %6984 = vmatpush.bf16.msra.mxu0 %v6955
      %6985 = vmatpush.bf16.msra.mxu0 %v6954
      %6986 = vmatpush.bf16.msra.mxu0 %v6953
      %6987 = vmatpush.bf16.msra.mxu0 %v6952
      %6988 = vmatpush.bf16.msra.mxu0 %v6951
      %6989 = vmatpush.bf16.msra.mxu0 %v6950
      %6990 = vmatpush.bf16.msra.mxu0 %v6949
      %6991 = vmatmul.bf16.gmra.mxu0 %v4185
      %v6992 = vpop.f32.mrf.mxu0
      %v6993 = vadd.f32 0.0, %v6992
      %v6994 = vpop.f32.mrf.mxu0
      %v6995 = vadd.f32 0.0, %v6994
      %6996 = vmatmul.bf16.gmra.mxu0 %v4187
      %v6997 = vpop.f32.mrf.mxu0
      %v6998 = vadd.f32 0.0, %v6997
      %v6999 = vpop.f32.mrf.mxu0
      %v7000 = vadd.f32 0.0, %v6999
      %7001 = vmatmul.bf16.gmra.mxu0 %v4189
      %v7002 = vpop.f32.mrf.mxu0
      %v7003 = vadd.f32 0.0, %v7002
      %v7004 = vpop.f32.mrf.mxu0
      %v7005 = vadd.f32 0.0, %v7004
      %7006 = vmatmul.bf16.gmra.mxu0 %v4191
      %v7007 = vpop.f32.mrf.mxu0
      %v7008 = vadd.f32 0.0, %v7007
      %v7009 = vpop.f32.mrf.mxu0
      %v7010 = vadd.f32 0.0, %v7009
      %7011 = vmatmul.bf16.gmra.mxu0 %v4193
      %v7012 = vpop.f32.mrf.mxu0
      %v7013 = vadd.f32 0.0, %v7012
      %v7014 = vpop.f32.mrf.mxu0
      %v7015 = vadd.f32 0.0, %v7014
      %7016 = vmatmul.bf16.gmra.mxu0 %v4195
      %v7017 = vpop.f32.mrf.mxu0
      %v7018 = vadd.f32 0.0, %v7017
      %v7019 = vpop.f32.mrf.mxu0
      %v7020 = vadd.f32 0.0, %v7019
      %7021 = vmatmul.bf16.gmra.mxu0 %v4197
      %v7022 = vpop.f32.mrf.mxu0
      %v7023 = vadd.f32 0.0, %v7022
      %v7024 = vpop.f32.mrf.mxu0
      %v7025 = vadd.f32 0.0, %v7024
      %7026 = vmatmul.bf16.gmra.mxu0 %v4199
      %v7027 = vpop.f32.mrf.mxu0
      %v7028 = vadd.f32 0.0, %v7027
      %v7029 = vpop.f32.mrf.mxu0
      %v7030 = vadd.f32 0.0, %v7029
      %7031 = vmatmul.bf16.gmra.mxu0 %v4201
      %v7032 = vpop.f32.mrf.mxu0
      %v7033 = vadd.f32 0.0, %v7032
      %v7034 = vpop.f32.mrf.mxu0
      %v7035 = vadd.f32 0.0, %v7034
      %7036 = vmatmul.bf16.gmra.mxu0 %v4203
      %v7037 = vpop.f32.mrf.mxu0
      %v7038 = vadd.f32 0.0, %v7037
      %v7039 = vpop.f32.mrf.mxu0
      %v7040 = vadd.f32 0.0, %v7039
      %7041 = vmatmul.bf16.gmra.mxu0 %v4205
      %v7042 = vpop.f32.mrf.mxu0
      %v7043 = vadd.f32 0.0, %v7042
      %v7044 = vpop.f32.mrf.mxu0
      %v7045 = vadd.f32 0.0, %v7044
      %7046 = vmatmul.bf16.gmra.mxu0 %v4207
      %v7047 = vpop.f32.mrf.mxu0
      %v7048 = vadd.f32 0.0, %v7047
      %v7049 = vpop.f32.mrf.mxu0
      %v7050 = vadd.f32 0.0, %v7049
      %7051 = vmatmul.bf16.gmra.mxu0 %v4209
      %v7052 = vpop.f32.mrf.mxu0
      %v7053 = vadd.f32 0.0, %v7052
      %v7054 = vpop.f32.mrf.mxu0
      %v7055 = vadd.f32 0.0, %v7054
      %7056 = vmatmul.bf16.gmra.mxu0 %v4211
      %v7057 = vpop.f32.mrf.mxu0
      %v7058 = vadd.f32 0.0, %v7057
      %v7059 = vpop.f32.mrf.mxu0
      %v7060 = vadd.f32 0.0, %v7059
      %7061 = vmatmul.bf16.gmra.mxu0 %v4213
      %v7062 = vpop.f32.mrf.mxu0
      %v7063 = vadd.f32 0.0, %v7062
      %v7064 = vpop.f32.mrf.mxu0
      %v7065 = vadd.f32 0.0, %v7064
      %7066 = vmatmul.bf16.gmra.mxu0 %v4215
      %v7067 = vpop.f32.mrf.mxu0
      %v7068 = vadd.f32 0.0, %v7067
      %v7069 = vpop.f32.mrf.mxu0
      %v7070 = vadd.f32 0.0, %v7069
      %7071 = vmatmul.bf16.gmra.mxu0 %v4217
      %v7072 = vpop.f32.mrf.mxu0
      %v7073 = vadd.f32 0.0, %v7072
      %v7074 = vpop.f32.mrf.mxu0
      %v7075 = vadd.f32 0.0, %v7074
      %7076 = vmatmul.bf16.gmra.mxu0 %v4219
      %v7077 = vpop.f32.mrf.mxu0
      %v7078 = vadd.f32 0.0, %v7077
      %v7079 = vpop.f32.mrf.mxu0
      %v7080 = vadd.f32 0.0, %v7079
      %7081 = vmatmul.bf16.gmra.mxu0 %v4221
      %v7082 = vpop.f32.mrf.mxu0
      %v7083 = vadd.f32 0.0, %v7082
      %v7084 = vpop.f32.mrf.mxu0
      %v7085 = vadd.f32 0.0, %v7084
      %7086 = vmatmul.bf16.gmra.mxu0 %v4223
      %v7087 = vpop.f32.mrf.mxu0
      %v7088 = vadd.f32 0.0, %v7087
      %v7089 = vpop.f32.mrf.mxu0
      %v7090 = vadd.f32 0.0, %v7089
      %7091 = vmatmul.bf16.gmra.mxu0 %v4225
      %v7092 = vpop.f32.mrf.mxu0
      %v7093 = vadd.f32 0.0, %v7092
      %v7094 = vpop.f32.mrf.mxu0
      %v7095 = vadd.f32 0.0, %v7094
      %7096 = vmatmul.bf16.gmra.mxu0 %v4227
      %v7097 = vpop.f32.mrf.mxu0
      %v7098 = vadd.f32 0.0, %v7097
      %v7099 = vpop.f32.mrf.mxu0
      %v7100 = vadd.f32 0.0, %v7099
      %7101 = vmatmul.bf16.gmra.mxu0 %v4229
      %v7102 = vpop.f32.mrf.mxu0
      %v7103 = vadd.f32 0.0, %v7102
      %v7104 = vpop.f32.mrf.mxu0
      %v7105 = vadd.f32 0.0, %v7104
      %7106 = vmatmul.bf16.gmra.mxu0 %v4231
      %v7107 = vpop.f32.mrf.mxu0
      %v7108 = vadd.f32 0.0, %v7107
      %v7109 = vpop.f32.mrf.mxu0
      %v7110 = vadd.f32 0.0, %v7109
      %7111 = vmatmul.bf16.gmra.mxu0 %v5270
      %v7112 = vpop.f32.mrf.mxu0
      %v7113 = vadd.f32 0.0, %v7112
      %v7114 = vpop.f32.mrf.mxu0
      %v7115 = vadd.f32 0.0, %v7114
      %7116 = vmatmul.bf16.gmra.mxu0 %v5272
      %v7117 = vpop.f32.mrf.mxu0
      %v7118 = vadd.f32 0.0, %v7117
      %v7119 = vpop.f32.mrf.mxu0
      %v7120 = vadd.f32 0.0, %v7119
      %7121 = vmatmul.bf16.gmra.mxu0 %v5809
      %v7122 = vpop.f32.mrf.mxu0
      %v7123 = vadd.f32 0.0, %v7122
      %v7124 = vpop.f32.mrf.mxu0
      %v7125 = vadd.f32 0.0, %v7124
      %7126 = vmatmul.bf16.gmra.mxu0 %v5811
      %v7127 = vpop.f32.mrf.mxu0
      %v7128 = vadd.f32 0.0, %v7127
      %v7129 = vpop.f32.mrf.mxu0
      %v7130 = vadd.f32 0.0, %v7129
      %7131 = vmatmul.bf16.gmra.mxu0 %v6348
      %v7132 = vpop.f32.mrf.mxu0
      %v7133 = vadd.f32 0.0, %v7132
      %v7134 = vpop.f32.mrf.mxu0
      %v7135 = vadd.f32 0.0, %v7134
      %7136 = vmatmul.bf16.gmra.mxu0 %v6350
      %v7137 = vpop.f32.mrf.mxu0
      %v7138 = vadd.f32 0.0, %v7137
      %v7139 = vpop.f32.mrf.mxu0
      %v7140 = vadd.f32 0.0, %v7139
      %7141 = vmatmul.bf16.gmra.mxu0 %v6887
      %v7142 = vpop.f32.mrf.mxu0
      %v7143 = vadd.f32 0.0, %v7142
      %v7144 = vpop.f32.mrf.mxu0
      %v7145 = vadd.f32 0.0, %v7144
      %7146 = vmatmul.bf16.gmra.mxu0 %v6889
      %v7147 = vpop.f32.mrf.mxu0
      %v7148 = vadd.f32 0.0, %v7147
      %v7149 = vpop.f32.mrf.mxu0
      %v7150 = vadd.f32 0.0, %v7149
      %7151 = vdwg.mxu0
      %7152 = vmatpush.bf16.msra.mxu0 0
      %7153 = vmatpush.bf16.msra.mxu0 0
      %7154 = vmatpush.bf16.msra.mxu0 %v6962
      %7155 = vmatpush.bf16.msra.mxu0 %v6961
      %7156 = vmatpush.bf16.msra.mxu0 %v6960
      %7157 = vmatpush.bf16.msra.mxu0 %v6959
      %7158 = vmatpush.bf16.msra.mxu0 %v6958
      %7159 = vmatpush.bf16.msra.mxu0 %v6957
      %7160 = vmatmul.bf16.gmra.mxu0 %v4374
      %v7161 = vpop.f32.mrf.mxu0
      %v7162 = vadd.f32 %v6993, %v7161
      %v7163 = vpop.f32.mrf.mxu0
      %v7164 = vadd.f32 %v6995, %v7163
      %7165 = vmatmul.bf16.gmra.mxu0 %v4377
      %v7166 = vpop.f32.mrf.mxu0
      %v7167 = vadd.f32 %v6998, %v7166
      %v7168 = vpop.f32.mrf.mxu0
      %v7169 = vadd.f32 %v7000, %v7168
      %7170 = vmatmul.bf16.gmra.mxu0 %v4380
      %v7171 = vpop.f32.mrf.mxu0
      %v7172 = vadd.f32 %v7003, %v7171
      %v7173 = vpop.f32.mrf.mxu0
      %v7174 = vadd.f32 %v7005, %v7173
      %7175 = vmatmul.bf16.gmra.mxu0 %v4383
      %v7176 = vpop.f32.mrf.mxu0
      %v7177 = vadd.f32 %v7008, %v7176
      %v7178 = vpop.f32.mrf.mxu0
      %v7179 = vadd.f32 %v7010, %v7178
      %7180 = vmatmul.bf16.gmra.mxu0 %v4386
      %v7181 = vpop.f32.mrf.mxu0
      %v7182 = vadd.f32 %v7013, %v7181
      %v7183 = vpop.f32.mrf.mxu0
      %v7184 = vadd.f32 %v7015, %v7183
      %7185 = vmatmul.bf16.gmra.mxu0 %v4389
      %v7186 = vpop.f32.mrf.mxu0
      %v7187 = vadd.f32 %v7018, %v7186
      %v7188 = vpop.f32.mrf.mxu0
      %v7189 = vadd.f32 %v7020, %v7188
      %7190 = vmatmul.bf16.gmra.mxu0 %v4392
      %v7191 = vpop.f32.mrf.mxu0
      %v7192 = vadd.f32 %v7023, %v7191
      %v7193 = vpop.f32.mrf.mxu0
      %v7194 = vadd.f32 %v7025, %v7193
      %7195 = vmatmul.bf16.gmra.mxu0 %v4395
      %v7196 = vpop.f32.mrf.mxu0
      %v7197 = vadd.f32 %v7028, %v7196
      %v7198 = vpop.f32.mrf.mxu0
      %v7199 = vadd.f32 %v7030, %v7198
      %7200 = vmatmul.bf16.gmra.mxu0 %v4398
      %v7201 = vpop.f32.mrf.mxu0
      %v7202 = vadd.f32 %v7033, %v7201
      %v7203 = vpop.f32.mrf.mxu0
      %v7204 = vadd.f32 %v7035, %v7203
      %7205 = vmatmul.bf16.gmra.mxu0 %v4401
      %v7206 = vpop.f32.mrf.mxu0
      %v7207 = vadd.f32 %v7038, %v7206
      %v7208 = vpop.f32.mrf.mxu0
      %v7209 = vadd.f32 %v7040, %v7208
      %7210 = vmatmul.bf16.gmra.mxu0 %v4404
      %v7211 = vpop.f32.mrf.mxu0
      %v7212 = vadd.f32 %v7043, %v7211
      %v7213 = vpop.f32.mrf.mxu0
      %v7214 = vadd.f32 %v7045, %v7213
      %7215 = vmatmul.bf16.gmra.mxu0 %v4407
      %v7216 = vpop.f32.mrf.mxu0
      %v7217 = vadd.f32 %v7048, %v7216
      %v7218 = vpop.f32.mrf.mxu0
      %v7219 = vadd.f32 %v7050, %v7218
      %7220 = vmatmul.bf16.gmra.mxu0 %v4410
      %v7221 = vpop.f32.mrf.mxu0
      %v7222 = vadd.f32 %v7053, %v7221
      %v7223 = vpop.f32.mrf.mxu0
      %v7224 = vadd.f32 %v7055, %v7223
      %7225 = vmatmul.bf16.gmra.mxu0 %v4413
      %v7226 = vpop.f32.mrf.mxu0
      %v7227 = vadd.f32 %v7058, %v7226
      %v7228 = vpop.f32.mrf.mxu0
      %v7229 = vadd.f32 %v7060, %v7228
      %7230 = vmatmul.bf16.gmra.mxu0 %v4416
      %v7231 = vpop.f32.mrf.mxu0
      %v7232 = vadd.f32 %v7063, %v7231
      %v7233 = vpop.f32.mrf.mxu0
      %v7234 = vadd.f32 %v7065, %v7233
      %7235 = vmatmul.bf16.gmra.mxu0 %v4419
      %v7236 = vpop.f32.mrf.mxu0
      %v7237 = vadd.f32 %v7068, %v7236
      %v7238 = vpop.f32.mrf.mxu0
      %v7239 = vadd.f32 %v7070, %v7238
      %7240 = vmatmul.bf16.gmra.mxu0 %v4422
      %v7241 = vpop.f32.mrf.mxu0
      %v7242 = vadd.f32 %v7073, %v7241
      %v7243 = vpop.f32.mrf.mxu0
      %v7244 = vadd.f32 %v7075, %v7243
      %7245 = vmatmul.bf16.gmra.mxu0 %v4425
      %v7246 = vpop.f32.mrf.mxu0
      %v7247 = vadd.f32 %v7078, %v7246
      %v7248 = vpop.f32.mrf.mxu0
      %v7249 = vadd.f32 %v7080, %v7248
      %7250 = vmatmul.bf16.gmra.mxu0 %v4428
      %v7251 = vpop.f32.mrf.mxu0
      %v7252 = vadd.f32 %v7083, %v7251
      %v7253 = vpop.f32.mrf.mxu0
      %v7254 = vadd.f32 %v7085, %v7253
      %7255 = vmatmul.bf16.gmra.mxu0 %v4431
      %v7256 = vpop.f32.mrf.mxu0
      %v7257 = vadd.f32 %v7088, %v7256
      %v7258 = vpop.f32.mrf.mxu0
      %v7259 = vadd.f32 %v7090, %v7258
      %7260 = vmatmul.bf16.gmra.mxu0 %v4434
      %v7261 = vpop.f32.mrf.mxu0
      %v7262 = vadd.f32 %v7093, %v7261
      %v7263 = vpop.f32.mrf.mxu0
      %v7264 = vadd.f32 %v7095, %v7263
      %7265 = vmatmul.bf16.gmra.mxu0 %v4437
      %v7266 = vpop.f32.mrf.mxu0
      %v7267 = vadd.f32 %v7098, %v7266
      %v7268 = vpop.f32.mrf.mxu0
      %v7269 = vadd.f32 %v7100, %v7268
      %7270 = vmatmul.bf16.gmra.mxu0 %v4440
      %v7271 = vpop.f32.mrf.mxu0
      %v7272 = vadd.f32 %v7103, %v7271
      %v7273 = vpop.f32.mrf.mxu0
      %v7274 = vadd.f32 %v7105, %v7273
      %7275 = vmatmul.bf16.gmra.mxu0 %v4443
      %v7276 = vpop.f32.mrf.mxu0
      %v7277 = vadd.f32 %v7108, %v7276
      %v7278 = vpop.f32.mrf.mxu0
      %v7279 = vadd.f32 %v7110, %v7278
      %7280 = vmatmul.bf16.gmra.mxu0 %v5361
      %v7281 = vpop.f32.mrf.mxu0
      %v7282 = vadd.f32 %v7113, %v7281
      %v7283 = vpop.f32.mrf.mxu0
      %v7284 = vadd.f32 %v7115, %v7283
      %7285 = vmatmul.bf16.gmra.mxu0 %v5364
      %v7286 = vpop.f32.mrf.mxu0
      %v7287 = vadd.f32 %v7118, %v7286
      %v7288 = vpop.f32.mrf.mxu0
      %v7289 = vadd.f32 %v7120, %v7288
      %7290 = vmatmul.bf16.gmra.mxu0 %v5900
      %v7291 = vpop.f32.mrf.mxu0
      %v7292 = vadd.f32 %v7123, %v7291
      %v7293 = vpop.f32.mrf.mxu0
      %v7294 = vadd.f32 %v7125, %v7293
      %7295 = vmatmul.bf16.gmra.mxu0 %v5903
      %v7296 = vpop.f32.mrf.mxu0
      %v7297 = vadd.f32 %v7128, %v7296
      %v7298 = vpop.f32.mrf.mxu0
      %v7299 = vadd.f32 %v7130, %v7298
      %7300 = vmatmul.bf16.gmra.mxu0 %v6439
      %v7301 = vpop.f32.mrf.mxu0
      %v7302 = vadd.f32 %v7133, %v7301
      %v7303 = vpop.f32.mrf.mxu0
      %v7304 = vadd.f32 %v7135, %v7303
      %7305 = vmatmul.bf16.gmra.mxu0 %v6442
      %v7306 = vpop.f32.mrf.mxu0
      %v7307 = vadd.f32 %v7138, %v7306
      %v7308 = vpop.f32.mrf.mxu0
      %v7309 = vadd.f32 %v7140, %v7308
      %7310 = vmatmul.bf16.gmra.mxu0 %v6978
      %v7311 = vpop.f32.mrf.mxu0
      %v7312 = vadd.f32 %v7143, %v7311
      %v7313 = vpop.f32.mrf.mxu0
      %v7314 = vadd.f32 %v7145, %v7313
      %7315 = vmatmul.bf16.gmra.mxu0 %v6981
      %v7316 = vpop.f32.mrf.mxu0
      %v7317 = vadd.f32 %v7148, %v7316
      %v7318 = vpop.f32.mrf.mxu0
      %v7319 = vadd.f32 %v7150, %v7318
      %7320 = vdwg.mxu0
      %v7321 = vadd.f32 %v6782, %v7162
      %v7322 = vadd.f32 %v6783, %v7164
      %v7323 = vadd.f32 %v6784, %v7167
      %v7324 = vadd.f32 %v6785, %v7169
      %v7325 = vadd.f32 %v6786, %v7172
      %v7326 = vadd.f32 %v6787, %v7174
      %v7327 = vadd.f32 %v6788, %v7177
      %v7328 = vadd.f32 %v6789, %v7179
      %v7329 = vadd.f32 %v6790, %v7182
      %v7330 = vadd.f32 %v6791, %v7184
      %v7331 = vadd.f32 %v6792, %v7187
      %v7332 = vadd.f32 %v6793, %v7189
      %v7333 = vadd.f32 %v6794, %v7192
      %v7334 = vadd.f32 %v6795, %v7194
      %v7335 = vadd.f32 %v6796, %v7197
      %v7336 = vadd.f32 %v6797, %v7199
      %v7337 = vadd.f32 %v6798, %v7202
      %v7338 = vadd.f32 %v6799, %v7204
      %v7339 = vadd.f32 %v6800, %v7207
      %v7340 = vadd.f32 %v6801, %v7209
      %v7341 = vadd.f32 %v6802, %v7212
      %v7342 = vadd.f32 %v6803, %v7214
      %v7343 = vadd.f32 %v6804, %v7217
      %v7344 = vadd.f32 %v6805, %v7219
      %v7345 = vadd.f32 %v6806, %v7222
      %v7346 = vadd.f32 %v6807, %v7224
      %v7347 = vadd.f32 %v6808, %v7227
      %v7348 = vadd.f32 %v6809, %v7229
      %v7349 = vadd.f32 %v6810, %v7232
      %v7350 = vadd.f32 %v6811, %v7234
      %v7351 = vadd.f32 %v6812, %v7237
      %v7352 = vadd.f32 %v6813, %v7239
      %v7353 = vadd.f32 %v6814, %v7242
      %v7354 = vadd.f32 %v6815, %v7244
      %v7355 = vadd.f32 %v6816, %v7247
      %v7356 = vadd.f32 %v6817, %v7249
      %v7357 = vadd.f32 %v6818, %v7252
      %v7358 = vadd.f32 %v6819, %v7254
      %v7359 = vadd.f32 %v6820, %v7257
      %v7360 = vadd.f32 %v6821, %v7259
      %v7361 = vadd.f32 %v6822, %v7262
      %v7362 = vadd.f32 %v6823, %v7264
      %v7363 = vadd.f32 %v6824, %v7267
      %v7364 = vadd.f32 %v6825, %v7269
      %v7365 = vadd.f32 %v6826, %v7272
      %v7366 = vadd.f32 %v6827, %v7274
      %v7367 = vadd.f32 %v6828, %v7277
      %v7368 = vadd.f32 %v6829, %v7279
      %v7369 = vadd.f32 %v6830, %v7282
      %v7370 = vadd.f32 %v6831, %v7284
      %v7371 = vadd.f32 %v6832, %v7287
      %v7372 = vadd.f32 %v6833, %v7289
      %v7373 = vadd.f32 %v6834, %v7292
      %v7374 = vadd.f32 %v6835, %v7294
      %v7375 = vadd.f32 %v6836, %v7297
      %v7376 = vadd.f32 %v6837, %v7299
      %v7377 = vadd.f32 %v6838, %v7302
      %v7378 = vadd.f32 %v6839, %v7304
      %v7379 = vadd.f32 %v6840, %v7307
      %v7380 = vadd.f32 %v6841, %v7309
      %v7381 = vadd.f32 %v6842, %v7312
      %v7382 = vadd.f32 %v6843, %v7314
      %v7383 = vadd.f32 %v6844, %v7317
      %v7384 = vadd.f32 %v6845, %v7319
      %s7385 = scalar_lea.vmem %s239, 672
      %v7386 = vld [vmem:[%s7385] sm:$0xf]
      %v7387 = vld [vmem:[%s7385 + $0x4] sm:$0xf]
      %v7388 = vld [vmem:[%s7385 + $0x8] sm:$0xf]
      %v7389 = vld [vmem:[%s7385 + $0xc] sm:$0xf]
      %v7390 = vld [vmem:[%s7385 + $0x10] sm:$0xf]
      %v7391 = vld [vmem:[%s7385 + $0x14] sm:$0xf]
      %v7392 = vld [vmem:[%s7385 + $0x18] sm:$0xf]
      %v7393 = vld [vmem:[%s7385 + $0x1c] sm:$0xf]
      %v7394 = vld [vmem:[%s7385 + $0x20] sm:$0xf]
      %v7395 = vld [vmem:[%s7385 + $0x24] sm:$0xf]
      %v7396 = vld [vmem:[%s7385 + $0x28] sm:$0xf]
      %v7397 = vld [vmem:[%s7385 + $0x2c] sm:$0xf]
      %v7398 = vld [vmem:[%s7385 + $0x30] sm:$0xf]
      %v7399 = vld [vmem:[%s7385 + $0x34] sm:$0xf]
      %v7400 = vld [vmem:[%s7385 + $0x38] sm:$0xf]
      %v7401 = vld [vmem:[%s7385 + $0x3c] sm:$0xf]
      %v7402 = vld [vmem:[%s7385 + $0x40] sm:$0xf]
      %v7403 = vld [vmem:[%s7385 + $0x44] sm:$0xf]
      %v7404 = vld [vmem:[%s7385 + $0x48] sm:$0xf]
      %v7405 = vld [vmem:[%s7385 + $0x4c] sm:$0xf]
      %v7406 = vld [vmem:[%s7385 + $0x50] sm:$0xf]
      %v7407 = vld [vmem:[%s7385 + $0x54] sm:$0xf]
      %v7408 = vld [vmem:[%s7385 + $0x58] sm:$0xf]
      %v7409 = vld [vmem:[%s7385 + $0x5c] sm:$0xf]
      %v7410 = vld [vmem:[%s7385 + $0x60] sm:$0xf]
      %v7411 = vld [vmem:[%s7385 + $0x64] sm:$0xf]
      %v7412 = vld [vmem:[%s7385 + $0x68] sm:$0xf]
      %v7413 = vld [vmem:[%s7385 + $0x6c] sm:$0xf]
      %v7418 = vunpack.c.l.b16 %v3916
      %v7419 = vunpack.c.h.b16 %v3916
      %v7420 = vunpack.c.l.b16 %v3917
      %v7421 = vunpack.c.h.b16 %v3917
      %v7422 = vunpack.c.l.b16 %v3918
      %v7423 = vunpack.c.h.b16 %v3918
      %v7424 = vunpack.c.l.b16 %v3919
      %v7425 = vunpack.c.h.b16 %v3919
      %v7426 = vpack.c.b16 %v7420, %v7418
      %v7427 = vpack.c.b16 %v7421, %v7419
      %v7428 = vpack.c.b16 %v7424, %v7422
      %v7429 = vpack.c.b16 %v7425, %v7423
      %v7460 = vunpack.c.l.b16 %v7386
      %v7461 = vunpack.c.l.b16 %v7387
      %v7462 = vunpack.c.l.b16 %v7388
      %v7463 = vunpack.c.l.b16 %v7389
      %v7464 = vunpack.c.l.b16 %v7390
      %v7465 = vunpack.c.l.b16 %v7391
      %v7466 = vunpack.c.l.b16 %v7392
      %v7467 = vunpack.c.l.b16 %v7393
      %v7468 = vunpack.c.l.b16 %v7394
      %v7469 = vunpack.c.l.b16 %v7395
      %v7470 = vunpack.c.l.b16 %v7396
      %v7471 = vunpack.c.l.b16 %v7397
      %v7472 = vunpack.c.l.b16 %v7398
      %v7473 = vunpack.c.l.b16 %v7399
      %v7474 = vunpack.c.l.b16 %v7400
      %v7475 = vunpack.c.l.b16 %v7401
      %v7476 = vunpack.c.l.b16 %v7402
      %v7477 = vunpack.c.l.b16 %v7403
      %v7478 = vunpack.c.l.b16 %v7404
      %v7479 = vunpack.c.l.b16 %v7405
      %v7480 = vunpack.c.l.b16 %v7406
      %v7481 = vunpack.c.l.b16 %v7407
      %v7482 = vunpack.c.l.b16 %v7408
      %v7483 = vunpack.c.l.b16 %v7409
      %v7484 = vunpack.c.l.b16 %v7410
      %v7485 = vunpack.c.l.b16 %v7411
      %v7486 = vunpack.c.l.b16 %v7412
      %v7487 = vunpack.c.l.b16 %v7413
      %v7488 = vpack.c.b16 %v7461, %v7460
      %v7489 = vpack.c.b16 %v7463, %v7462
      %v7490 = vpack.c.b16 %v7465, %v7464
      %v7491 = vpack.c.b16 %v7467, %v7466
      %v7492 = vpack.c.b16 %v7469, %v7468
      %v7493 = vpack.c.b16 %v7471, %v7470
      %v7494 = vpack.c.b16 %v7473, %v7472
      %v7495 = vpack.c.b16 %v7475, %v7474
      %v7496 = vpack.c.b16 %v7477, %v7476
      %v7497 = vpack.c.b16 %v7479, %v7478
      %v7498 = vpack.c.b16 %v7481, %v7480
      %v7499 = vpack.c.b16 %v7483, %v7482
      %v7500 = vpack.c.b16 %v7485, %v7484
      %v7501 = vpack.c.b16 %v7487, %v7486
      %v7517 = vsel %vm3567, %v7427, 0
      %v7520 = vsel %vm3567, %v7429, 0
      %7522 = vmatpush.bf16.msra.mxu0 %v7495
      %7523 = vmatpush.bf16.msra.mxu0 %v7494
      %7524 = vmatpush.bf16.msra.mxu0 %v7493
      %7525 = vmatpush.bf16.msra.mxu0 %v7492
      %7526 = vmatpush.bf16.msra.mxu0 %v7491
      %7527 = vmatpush.bf16.msra.mxu0 %v7490
      %7528 = vmatpush.bf16.msra.mxu0 %v7489
      %7529 = vmatpush.bf16.msra.mxu0 %v7488
      %7530 = vmatmul.bf16.gmra.mxu0 %v4189
      %v7531 = vpop.f32.mrf.mxu0
      %v7532 = vadd.f32 0.0, %v7531
      %v7533 = vpop.f32.mrf.mxu0
      %v7534 = vadd.f32 0.0, %v7533
      %7535 = vmatmul.bf16.gmra.mxu0 %v4191
      %v7536 = vpop.f32.mrf.mxu0
      %v7537 = vadd.f32 0.0, %v7536
      %v7538 = vpop.f32.mrf.mxu0
      %v7539 = vadd.f32 0.0, %v7538
      %7540 = vmatmul.bf16.gmra.mxu0 %v4193
      %v7541 = vpop.f32.mrf.mxu0
      %v7542 = vadd.f32 0.0, %v7541
      %v7543 = vpop.f32.mrf.mxu0
      %v7544 = vadd.f32 0.0, %v7543
      %7545 = vmatmul.bf16.gmra.mxu0 %v4195
      %v7546 = vpop.f32.mrf.mxu0
      %v7547 = vadd.f32 0.0, %v7546
      %v7548 = vpop.f32.mrf.mxu0
      %v7549 = vadd.f32 0.0, %v7548
      %7550 = vmatmul.bf16.gmra.mxu0 %v4197
      %v7551 = vpop.f32.mrf.mxu0
      %v7552 = vadd.f32 0.0, %v7551
      %v7553 = vpop.f32.mrf.mxu0
      %v7554 = vadd.f32 0.0, %v7553
      %7555 = vmatmul.bf16.gmra.mxu0 %v4199
      %v7556 = vpop.f32.mrf.mxu0
      %v7557 = vadd.f32 0.0, %v7556
      %v7558 = vpop.f32.mrf.mxu0
      %v7559 = vadd.f32 0.0, %v7558
      %7560 = vmatmul.bf16.gmra.mxu0 %v4201
      %v7561 = vpop.f32.mrf.mxu0
      %v7562 = vadd.f32 0.0, %v7561
      %v7563 = vpop.f32.mrf.mxu0
      %v7564 = vadd.f32 0.0, %v7563
      %7565 = vmatmul.bf16.gmra.mxu0 %v4203
      %v7566 = vpop.f32.mrf.mxu0
      %v7567 = vadd.f32 0.0, %v7566
      %v7568 = vpop.f32.mrf.mxu0
      %v7569 = vadd.f32 0.0, %v7568
      %7570 = vmatmul.bf16.gmra.mxu0 %v4205
      %v7571 = vpop.f32.mrf.mxu0
      %v7572 = vadd.f32 0.0, %v7571
      %v7573 = vpop.f32.mrf.mxu0
      %v7574 = vadd.f32 0.0, %v7573
      %7575 = vmatmul.bf16.gmra.mxu0 %v4207
      %v7576 = vpop.f32.mrf.mxu0
      %v7577 = vadd.f32 0.0, %v7576
      %v7578 = vpop.f32.mrf.mxu0
      %v7579 = vadd.f32 0.0, %v7578
      %7580 = vmatmul.bf16.gmra.mxu0 %v4209
      %v7581 = vpop.f32.mrf.mxu0
      %v7582 = vadd.f32 0.0, %v7581
      %v7583 = vpop.f32.mrf.mxu0
      %v7584 = vadd.f32 0.0, %v7583
      %7585 = vmatmul.bf16.gmra.mxu0 %v4211
      %v7586 = vpop.f32.mrf.mxu0
      %v7587 = vadd.f32 0.0, %v7586
      %v7588 = vpop.f32.mrf.mxu0
      %v7589 = vadd.f32 0.0, %v7588
      %7590 = vmatmul.bf16.gmra.mxu0 %v4213
      %v7591 = vpop.f32.mrf.mxu0
      %v7592 = vadd.f32 0.0, %v7591
      %v7593 = vpop.f32.mrf.mxu0
      %v7594 = vadd.f32 0.0, %v7593
      %7595 = vmatmul.bf16.gmra.mxu0 %v4215
      %v7596 = vpop.f32.mrf.mxu0
      %v7597 = vadd.f32 0.0, %v7596
      %v7598 = vpop.f32.mrf.mxu0
      %v7599 = vadd.f32 0.0, %v7598
      %7600 = vmatmul.bf16.gmra.mxu0 %v4217
      %v7601 = vpop.f32.mrf.mxu0
      %v7602 = vadd.f32 0.0, %v7601
      %v7603 = vpop.f32.mrf.mxu0
      %v7604 = vadd.f32 0.0, %v7603
      %7605 = vmatmul.bf16.gmra.mxu0 %v4219
      %v7606 = vpop.f32.mrf.mxu0
      %v7607 = vadd.f32 0.0, %v7606
      %v7608 = vpop.f32.mrf.mxu0
      %v7609 = vadd.f32 0.0, %v7608
      %7610 = vmatmul.bf16.gmra.mxu0 %v4221
      %v7611 = vpop.f32.mrf.mxu0
      %v7612 = vadd.f32 0.0, %v7611
      %v7613 = vpop.f32.mrf.mxu0
      %v7614 = vadd.f32 0.0, %v7613
      %7615 = vmatmul.bf16.gmra.mxu0 %v4223
      %v7616 = vpop.f32.mrf.mxu0
      %v7617 = vadd.f32 0.0, %v7616
      %v7618 = vpop.f32.mrf.mxu0
      %v7619 = vadd.f32 0.0, %v7618
      %7620 = vmatmul.bf16.gmra.mxu0 %v4225
      %v7621 = vpop.f32.mrf.mxu0
      %v7622 = vadd.f32 0.0, %v7621
      %v7623 = vpop.f32.mrf.mxu0
      %v7624 = vadd.f32 0.0, %v7623
      %7625 = vmatmul.bf16.gmra.mxu0 %v4227
      %v7626 = vpop.f32.mrf.mxu0
      %v7627 = vadd.f32 0.0, %v7626
      %v7628 = vpop.f32.mrf.mxu0
      %v7629 = vadd.f32 0.0, %v7628
      %7630 = vmatmul.bf16.gmra.mxu0 %v4229
      %v7631 = vpop.f32.mrf.mxu0
      %v7632 = vadd.f32 0.0, %v7631
      %v7633 = vpop.f32.mrf.mxu0
      %v7634 = vadd.f32 0.0, %v7633
      %7635 = vmatmul.bf16.gmra.mxu0 %v4231
      %v7636 = vpop.f32.mrf.mxu0
      %v7637 = vadd.f32 0.0, %v7636
      %v7638 = vpop.f32.mrf.mxu0
      %v7639 = vadd.f32 0.0, %v7638
      %7640 = vmatmul.bf16.gmra.mxu0 %v5270
      %v7641 = vpop.f32.mrf.mxu0
      %v7642 = vadd.f32 0.0, %v7641
      %v7643 = vpop.f32.mrf.mxu0
      %v7644 = vadd.f32 0.0, %v7643
      %7645 = vmatmul.bf16.gmra.mxu0 %v5272
      %v7646 = vpop.f32.mrf.mxu0
      %v7647 = vadd.f32 0.0, %v7646
      %v7648 = vpop.f32.mrf.mxu0
      %v7649 = vadd.f32 0.0, %v7648
      %7650 = vmatmul.bf16.gmra.mxu0 %v5809
      %v7651 = vpop.f32.mrf.mxu0
      %v7652 = vadd.f32 0.0, %v7651
      %v7653 = vpop.f32.mrf.mxu0
      %v7654 = vadd.f32 0.0, %v7653
      %7655 = vmatmul.bf16.gmra.mxu0 %v5811
      %v7656 = vpop.f32.mrf.mxu0
      %v7657 = vadd.f32 0.0, %v7656
      %v7658 = vpop.f32.mrf.mxu0
      %v7659 = vadd.f32 0.0, %v7658
      %7660 = vmatmul.bf16.gmra.mxu0 %v6348
      %v7661 = vpop.f32.mrf.mxu0
      %v7662 = vadd.f32 0.0, %v7661
      %v7663 = vpop.f32.mrf.mxu0
      %v7664 = vadd.f32 0.0, %v7663
      %7665 = vmatmul.bf16.gmra.mxu0 %v6350
      %v7666 = vpop.f32.mrf.mxu0
      %v7667 = vadd.f32 0.0, %v7666
      %v7668 = vpop.f32.mrf.mxu0
      %v7669 = vadd.f32 0.0, %v7668
      %7670 = vmatmul.bf16.gmra.mxu0 %v6887
      %v7671 = vpop.f32.mrf.mxu0
      %v7672 = vadd.f32 0.0, %v7671
      %v7673 = vpop.f32.mrf.mxu0
      %v7674 = vadd.f32 0.0, %v7673
      %7675 = vmatmul.bf16.gmra.mxu0 %v6889
      %v7676 = vpop.f32.mrf.mxu0
      %v7677 = vadd.f32 0.0, %v7676
      %v7678 = vpop.f32.mrf.mxu0
      %v7679 = vadd.f32 0.0, %v7678
      %7680 = vmatmul.bf16.gmra.mxu0 %v7426
      %v7681 = vpop.f32.mrf.mxu0
      %v7682 = vadd.f32 0.0, %v7681
      %v7683 = vpop.f32.mrf.mxu0
      %v7684 = vadd.f32 0.0, %v7683
      %7685 = vmatmul.bf16.gmra.mxu0 %v7428
      %v7686 = vpop.f32.mrf.mxu0
      %v7687 = vadd.f32 0.0, %v7686
      %v7688 = vpop.f32.mrf.mxu0
      %v7689 = vadd.f32 0.0, %v7688
      %7690 = vdwg.mxu0
      %7691 = vmatpush.bf16.msra.mxu0 0
      %7692 = vmatpush.bf16.msra.mxu0 0
      %7693 = vmatpush.bf16.msra.mxu0 %v7501
      %7694 = vmatpush.bf16.msra.mxu0 %v7500
      %7695 = vmatpush.bf16.msra.mxu0 %v7499
      %7696 = vmatpush.bf16.msra.mxu0 %v7498
      %7697 = vmatpush.bf16.msra.mxu0 %v7497
      %7698 = vmatpush.bf16.msra.mxu0 %v7496
      %7699 = vmatmul.bf16.gmra.mxu0 %v4380
      %v7700 = vpop.f32.mrf.mxu0
      %v7701 = vadd.f32 %v7532, %v7700
      %v7702 = vpop.f32.mrf.mxu0
      %v7703 = vadd.f32 %v7534, %v7702
      %7704 = vmatmul.bf16.gmra.mxu0 %v4383
      %v7705 = vpop.f32.mrf.mxu0
      %v7706 = vadd.f32 %v7537, %v7705
      %v7707 = vpop.f32.mrf.mxu0
      %v7708 = vadd.f32 %v7539, %v7707
      %7709 = vmatmul.bf16.gmra.mxu0 %v4386
      %v7710 = vpop.f32.mrf.mxu0
      %v7711 = vadd.f32 %v7542, %v7710
      %v7712 = vpop.f32.mrf.mxu0
      %v7713 = vadd.f32 %v7544, %v7712
      %7714 = vmatmul.bf16.gmra.mxu0 %v4389
      %v7715 = vpop.f32.mrf.mxu0
      %v7716 = vadd.f32 %v7547, %v7715
      %v7717 = vpop.f32.mrf.mxu0
      %v7718 = vadd.f32 %v7549, %v7717
      %7719 = vmatmul.bf16.gmra.mxu0 %v4392
      %v7720 = vpop.f32.mrf.mxu0
      %v7721 = vadd.f32 %v7552, %v7720
      %v7722 = vpop.f32.mrf.mxu0
      %v7723 = vadd.f32 %v7554, %v7722
      %7724 = vmatmul.bf16.gmra.mxu0 %v4395
      %v7725 = vpop.f32.mrf.mxu0
      %v7726 = vadd.f32 %v7557, %v7725
      %v7727 = vpop.f32.mrf.mxu0
      %v7728 = vadd.f32 %v7559, %v7727
      %7729 = vmatmul.bf16.gmra.mxu0 %v4398
      %v7730 = vpop.f32.mrf.mxu0
      %v7731 = vadd.f32 %v7562, %v7730
      %v7732 = vpop.f32.mrf.mxu0
      %v7733 = vadd.f32 %v7564, %v7732
      %7734 = vmatmul.bf16.gmra.mxu0 %v4401
      %v7735 = vpop.f32.mrf.mxu0
      %v7736 = vadd.f32 %v7567, %v7735
      %v7737 = vpop.f32.mrf.mxu0
      %v7738 = vadd.f32 %v7569, %v7737
      %7739 = vmatmul.bf16.gmra.mxu0 %v4404
      %v7740 = vpop.f32.mrf.mxu0
      %v7741 = vadd.f32 %v7572, %v7740
      %v7742 = vpop.f32.mrf.mxu0
      %v7743 = vadd.f32 %v7574, %v7742
      %7744 = vmatmul.bf16.gmra.mxu0 %v4407
      %v7745 = vpop.f32.mrf.mxu0
      %v7746 = vadd.f32 %v7577, %v7745
      %v7747 = vpop.f32.mrf.mxu0
      %v7748 = vadd.f32 %v7579, %v7747
      %7749 = vmatmul.bf16.gmra.mxu0 %v4410
      %v7750 = vpop.f32.mrf.mxu0
      %v7751 = vadd.f32 %v7582, %v7750
      %v7752 = vpop.f32.mrf.mxu0
      %v7753 = vadd.f32 %v7584, %v7752
      %7754 = vmatmul.bf16.gmra.mxu0 %v4413
      %v7755 = vpop.f32.mrf.mxu0
      %v7756 = vadd.f32 %v7587, %v7755
      %v7757 = vpop.f32.mrf.mxu0
      %v7758 = vadd.f32 %v7589, %v7757
      %7759 = vmatmul.bf16.gmra.mxu0 %v4416
      %v7760 = vpop.f32.mrf.mxu0
      %v7761 = vadd.f32 %v7592, %v7760
      %v7762 = vpop.f32.mrf.mxu0
      %v7763 = vadd.f32 %v7594, %v7762
      %7764 = vmatmul.bf16.gmra.mxu0 %v4419
      %v7765 = vpop.f32.mrf.mxu0
      %v7766 = vadd.f32 %v7597, %v7765
      %v7767 = vpop.f32.mrf.mxu0
      %v7768 = vadd.f32 %v7599, %v7767
      %7769 = vmatmul.bf16.gmra.mxu0 %v4422
      %v7770 = vpop.f32.mrf.mxu0
      %v7771 = vadd.f32 %v7602, %v7770
      %v7772 = vpop.f32.mrf.mxu0
      %v7773 = vadd.f32 %v7604, %v7772
      %7774 = vmatmul.bf16.gmra.mxu0 %v4425
      %v7775 = vpop.f32.mrf.mxu0
      %v7776 = vadd.f32 %v7607, %v7775
      %v7777 = vpop.f32.mrf.mxu0
      %v7778 = vadd.f32 %v7609, %v7777
      %7779 = vmatmul.bf16.gmra.mxu0 %v4428
      %v7780 = vpop.f32.mrf.mxu0
      %v7781 = vadd.f32 %v7612, %v7780
      %v7782 = vpop.f32.mrf.mxu0
      %v7783 = vadd.f32 %v7614, %v7782
      %7784 = vmatmul.bf16.gmra.mxu0 %v4431
      %v7785 = vpop.f32.mrf.mxu0
      %v7786 = vadd.f32 %v7617, %v7785
      %v7787 = vpop.f32.mrf.mxu0
      %v7788 = vadd.f32 %v7619, %v7787
      %7789 = vmatmul.bf16.gmra.mxu0 %v4434
      %v7790 = vpop.f32.mrf.mxu0
      %v7791 = vadd.f32 %v7622, %v7790
      %v7792 = vpop.f32.mrf.mxu0
      %v7793 = vadd.f32 %v7624, %v7792
      %7794 = vmatmul.bf16.gmra.mxu0 %v4437
      %v7795 = vpop.f32.mrf.mxu0
      %v7796 = vadd.f32 %v7627, %v7795
      %v7797 = vpop.f32.mrf.mxu0
      %v7798 = vadd.f32 %v7629, %v7797
      %7799 = vmatmul.bf16.gmra.mxu0 %v4440
      %v7800 = vpop.f32.mrf.mxu0
      %v7801 = vadd.f32 %v7632, %v7800
      %v7802 = vpop.f32.mrf.mxu0
      %v7803 = vadd.f32 %v7634, %v7802
      %7804 = vmatmul.bf16.gmra.mxu0 %v4443
      %v7805 = vpop.f32.mrf.mxu0
      %v7806 = vadd.f32 %v7637, %v7805
      %v7807 = vpop.f32.mrf.mxu0
      %v7808 = vadd.f32 %v7639, %v7807
      %7809 = vmatmul.bf16.gmra.mxu0 %v5361
      %v7810 = vpop.f32.mrf.mxu0
      %v7811 = vadd.f32 %v7642, %v7810
      %v7812 = vpop.f32.mrf.mxu0
      %v7813 = vadd.f32 %v7644, %v7812
      %7814 = vmatmul.bf16.gmra.mxu0 %v5364
      %v7815 = vpop.f32.mrf.mxu0
      %v7816 = vadd.f32 %v7647, %v7815
      %v7817 = vpop.f32.mrf.mxu0
      %v7818 = vadd.f32 %v7649, %v7817
      %7819 = vmatmul.bf16.gmra.mxu0 %v5900
      %v7820 = vpop.f32.mrf.mxu0
      %v7821 = vadd.f32 %v7652, %v7820
      %v7822 = vpop.f32.mrf.mxu0
      %v7823 = vadd.f32 %v7654, %v7822
      %7824 = vmatmul.bf16.gmra.mxu0 %v5903
      %v7825 = vpop.f32.mrf.mxu0
      %v7826 = vadd.f32 %v7657, %v7825
      %v7827 = vpop.f32.mrf.mxu0
      %v7828 = vadd.f32 %v7659, %v7827
      %7829 = vmatmul.bf16.gmra.mxu0 %v6439
      %v7830 = vpop.f32.mrf.mxu0
      %v7831 = vadd.f32 %v7662, %v7830
      %v7832 = vpop.f32.mrf.mxu0
      %v7833 = vadd.f32 %v7664, %v7832
      %7834 = vmatmul.bf16.gmra.mxu0 %v6442
      %v7835 = vpop.f32.mrf.mxu0
      %v7836 = vadd.f32 %v7667, %v7835
      %v7837 = vpop.f32.mrf.mxu0
      %v7838 = vadd.f32 %v7669, %v7837
      %7839 = vmatmul.bf16.gmra.mxu0 %v6978
      %v7840 = vpop.f32.mrf.mxu0
      %v7841 = vadd.f32 %v7672, %v7840
      %v7842 = vpop.f32.mrf.mxu0
      %v7843 = vadd.f32 %v7674, %v7842
      %7844 = vmatmul.bf16.gmra.mxu0 %v6981
      %v7845 = vpop.f32.mrf.mxu0
      %v7846 = vadd.f32 %v7677, %v7845
      %v7847 = vpop.f32.mrf.mxu0
      %v7848 = vadd.f32 %v7679, %v7847
      %7849 = vmatmul.bf16.gmra.mxu0 %v7517
      %v7850 = vpop.f32.mrf.mxu0
      %v7851 = vadd.f32 %v7682, %v7850
      %v7852 = vpop.f32.mrf.mxu0
      %v7853 = vadd.f32 %v7684, %v7852
      %7854 = vmatmul.bf16.gmra.mxu0 %v7520
      %v7855 = vpop.f32.mrf.mxu0
      %v7856 = vadd.f32 %v7687, %v7855
      %v7857 = vpop.f32.mrf.mxu0
      %v7858 = vadd.f32 %v7689, %v7857
      %7859 = vdwg.mxu0
      %v7860 = vadd.f32 %v7321, %v7701
      %v7861 = vadd.f32 %v7322, %v7703
      %v7862 = vadd.f32 %v7323, %v7706
      %v7863 = vadd.f32 %v7324, %v7708
      %v7864 = vadd.f32 %v7325, %v7711
      %v7865 = vadd.f32 %v7326, %v7713
      %v7866 = vadd.f32 %v7327, %v7716
      %v7867 = vadd.f32 %v7328, %v7718
      %v7868 = vadd.f32 %v7329, %v7721
      %v7869 = vadd.f32 %v7330, %v7723
      %v7870 = vadd.f32 %v7331, %v7726
      %v7871 = vadd.f32 %v7332, %v7728
      %v7872 = vadd.f32 %v7333, %v7731
      %v7873 = vadd.f32 %v7334, %v7733
      %v7874 = vadd.f32 %v7335, %v7736
      %v7875 = vadd.f32 %v7336, %v7738
      %v7876 = vadd.f32 %v7337, %v7741
      %v7877 = vadd.f32 %v7338, %v7743
      %v7878 = vadd.f32 %v7339, %v7746
      %v7879 = vadd.f32 %v7340, %v7748
      %v7880 = vadd.f32 %v7341, %v7751
      %v7881 = vadd.f32 %v7342, %v7753
      %v7882 = vadd.f32 %v7343, %v7756
      %v7883 = vadd.f32 %v7344, %v7758
      %v7884 = vadd.f32 %v7345, %v7761
      %v7885 = vadd.f32 %v7346, %v7763
      %v7886 = vadd.f32 %v7347, %v7766
      %v7887 = vadd.f32 %v7348, %v7768
      %v7888 = vadd.f32 %v7349, %v7771
      %v7889 = vadd.f32 %v7350, %v7773
      %v7890 = vadd.f32 %v7351, %v7776
      %v7891 = vadd.f32 %v7352, %v7778
      %v7892 = vadd.f32 %v7353, %v7781
      %v7893 = vadd.f32 %v7354, %v7783
      %v7894 = vadd.f32 %v7355, %v7786
      %v7895 = vadd.f32 %v7356, %v7788
      %v7896 = vadd.f32 %v7357, %v7791
      %v7897 = vadd.f32 %v7358, %v7793
      %v7898 = vadd.f32 %v7359, %v7796
      %v7899 = vadd.f32 %v7360, %v7798
      %v7900 = vadd.f32 %v7361, %v7801
      %v7901 = vadd.f32 %v7362, %v7803
      %v7902 = vadd.f32 %v7363, %v7806
      %v7903 = vadd.f32 %v7364, %v7808
      %v7904 = vadd.f32 %v7365, %v7811
      %v7905 = vadd.f32 %v7366, %v7813
      %v7906 = vadd.f32 %v7367, %v7816
      %v7907 = vadd.f32 %v7368, %v7818
      %v7908 = vadd.f32 %v7369, %v7821
      %v7909 = vadd.f32 %v7370, %v7823
      %v7910 = vadd.f32 %v7371, %v7826
      %v7911 = vadd.f32 %v7372, %v7828
      %v7912 = vadd.f32 %v7373, %v7831
      %v7913 = vadd.f32 %v7374, %v7833
      %v7914 = vadd.f32 %v7375, %v7836
      %v7915 = vadd.f32 %v7376, %v7838
      %v7916 = vadd.f32 %v7377, %v7841
      %v7917 = vadd.f32 %v7378, %v7843
      %v7918 = vadd.f32 %v7379, %v7846
      %v7919 = vadd.f32 %v7380, %v7848
      %v7920 = vadd.f32 %v7381, %v7851
      %v7921 = vadd.f32 %v7382, %v7853
      %v7922 = vadd.f32 %v7383, %v7856
      %v7923 = vadd.f32 %v7384, %v7858
      %v7924 = vld [vmem:[%s245] sm:$0x1]
      %v7926 = vperm.slane %v7924, 0
      %v7928 = vadd.f32 %v7860, %v7926
      %v7929 = vadd.f32 %v7861, %v7926
      %v7930 = vadd.f32 %v7862, %v7926
      %v7931 = vadd.f32 %v7863, %v7926
      %v7932 = vadd.f32 %v7864, %v7926
      %v7933 = vadd.f32 %v7865, %v7926
      %v7934 = vadd.f32 %v7866, %v7926
      %v7935 = vadd.f32 %v7867, %v7926
      %v7936 = vadd.f32 %v7868, %v7926
      %v7937 = vadd.f32 %v7869, %v7926
      %v7938 = vadd.f32 %v7870, %v7926
      %v7939 = vadd.f32 %v7871, %v7926
      %v7940 = vadd.f32 %v7872, %v7926
      %v7941 = vadd.f32 %v7873, %v7926
      %v7942 = vadd.f32 %v7874, %v7926
      %v7943 = vadd.f32 %v7875, %v7926
      %v7944 = vadd.f32 %v7876, %v7926
      %v7945 = vadd.f32 %v7877, %v7926
      %v7946 = vadd.f32 %v7878, %v7926
      %v7947 = vadd.f32 %v7879, %v7926
      %v7948 = vadd.f32 %v7880, %v7926
      %v7949 = vadd.f32 %v7881, %v7926
      %v7950 = vadd.f32 %v7882, %v7926
      %v7951 = vadd.f32 %v7883, %v7926
      %v7952 = vadd.f32 %v7884, %v7926
      %v7953 = vadd.f32 %v7885, %v7926
      %v7954 = vadd.f32 %v7886, %v7926
      %v7955 = vadd.f32 %v7887, %v7926
      %v7956 = vadd.f32 %v7888, %v7926
      %v7957 = vadd.f32 %v7889, %v7926
      %v7958 = vadd.f32 %v7890, %v7926
      %v7959 = vadd.f32 %v7891, %v7926
      %v7960 = vadd.f32 %v7892, %v7926
      %v7961 = vadd.f32 %v7893, %v7926
      %v7962 = vadd.f32 %v7894, %v7926
      %v7963 = vadd.f32 %v7895, %v7926
      %v7964 = vadd.f32 %v7896, %v7926
      %v7965 = vadd.f32 %v7897, %v7926
      %v7966 = vadd.f32 %v7898, %v7926
      %v7967 = vadd.f32 %v7899, %v7926
      %v7968 = vadd.f32 %v7900, %v7926
      %v7969 = vadd.f32 %v7901, %v7926
      %v7970 = vadd.f32 %v7902, %v7926
      %v7971 = vadd.f32 %v7903, %v7926
      %v7972 = vadd.f32 %v7904, %v7926
      %v7973 = vadd.f32 %v7905, %v7926
      %v7974 = vadd.f32 %v7906, %v7926
      %v7975 = vadd.f32 %v7907, %v7926
      %v7976 = vadd.f32 %v7908, %v7926
      %v7977 = vadd.f32 %v7909, %v7926
      %v7978 = vadd.f32 %v7910, %v7926
      %v7979 = vadd.f32 %v7911, %v7926
      %v7980 = vadd.f32 %v7912, %v7926
      %v7981 = vadd.f32 %v7913, %v7926
      %v7982 = vadd.f32 %v7914, %v7926
      %v7983 = vadd.f32 %v7915, %v7926
      %v7984 = vadd.f32 %v7916, %v7926
      %v7985 = vadd.f32 %v7917, %v7926
      %v7986 = vadd.f32 %v7918, %v7926
      %v7987 = vadd.f32 %v7919, %v7926
      %v7988 = vadd.f32 %v7920, %v7926
      %v7989 = vadd.f32 %v7921, %v7926
      %v7990 = vadd.f32 %v7922, %v7926
      %v7991 = vadd.f32 %v7923, %v7926
      %p7992 = scmp.eq.s32.totalorder %s21, 0
      // Predicated region
      $region33: #{apply.3} parent=31 // pred_check
        %p7993 = pneg %p7992
      $region34: #{apply.3} parent=31 // pred_check_branch
        %7995 = sbr.rel (%p7993) target = $region36
      $region35: #{apply.3} parent=31 // pred_region
        %7996 = vst [vmem:[#allocation2] sm:$0x1] 0.0
        %7997 = vst [vmem:[#allocation2 + $0x1] sm:$0x1] 0.0
      $region36: #{apply.3} parent=31 // pred_fallthru
        _
      %v7998 = vld [vmem:[#allocation2] sm:$0x1]
      %v7999 = vadd.f32 %v7928, %v7929
      %v8000 = vadd.f32 %v7999, %v7930
      %v8001 = vadd.f32 %v8000, %v7931
      %v8002 = vadd.f32 %v8001, %v7932
      %v8003 = vadd.f32 %v8002, %v7933
      %v8004 = vadd.f32 %v8003, %v7934
      %v8005 = vadd.f32 %v8004, %v7935
      %v8006 = vadd.f32 %v8005, %v7936
      %v8007 = vadd.f32 %v8006, %v7937
      %v8008 = vadd.f32 %v8007, %v7938
      %v8009 = vadd.f32 %v8008, %v7939
      %v8010 = vadd.f32 %v8009, %v7940
      %v8011 = vadd.f32 %v8010, %v7941
      %v8012 = vadd.f32 %v8011, %v7942
      %v8013 = vadd.f32 %v8012, %v7943
      %v8014 = vadd.f32 %v8013, %v7944
      %v8015 = vadd.f32 %v8014, %v7945
      %v8016 = vadd.f32 %v8015, %v7946
      %v8017 = vadd.f32 %v8016, %v7947
      %v8018 = vadd.f32 %v8017, %v7948
      %v8019 = vadd.f32 %v8018, %v7949
      %v8020 = vadd.f32 %v8019, %v7950
      %v8021 = vadd.f32 %v8020, %v7951
      %v8022 = vadd.f32 %v8021, %v7952
      %v8023 = vadd.f32 %v8022, %v7953
      %v8024 = vadd.f32 %v8023, %v7954
      %v8025 = vadd.f32 %v8024, %v7955
      %v8026 = vadd.f32 %v8025, %v7956
      %v8027 = vadd.f32 %v8026, %v7957
      %v8028 = vadd.f32 %v8027, %v7958
      %v8029 = vadd.f32 %v8028, %v7959
      %v8030 = vadd.f32 %v8029, %v7960
      %v8031 = vadd.f32 %v8030, %v7961
      %v8032 = vadd.f32 %v8031, %v7962
      %v8033 = vadd.f32 %v8032, %v7963
      %v8034 = vadd.f32 %v8033, %v7964
      %v8035 = vadd.f32 %v8034, %v7965
      %v8036 = vadd.f32 %v8035, %v7966
      %v8037 = vadd.f32 %v8036, %v7967
      %v8038 = vadd.f32 %v8037, %v7968
      %v8039 = vadd.f32 %v8038, %v7969
      %v8040 = vadd.f32 %v8039, %v7970
      %v8041 = vadd.f32 %v8040, %v7971
      %v8042 = vadd.f32 %v8041, %v7972
      %v8043 = vadd.f32 %v8042, %v7973
      %v8044 = vadd.f32 %v8043, %v7974
      %v8045 = vadd.f32 %v8044, %v7975
      %v8046 = vadd.f32 %v8045, %v7976
      %v8047 = vadd.f32 %v8046, %v7977
      %v8048 = vadd.f32 %v8047, %v7978
      %v8049 = vadd.f32 %v8048, %v7979
      %v8050 = vadd.f32 %v8049, %v7980
      %v8051 = vadd.f32 %v8050, %v7981
      %v8052 = vadd.f32 %v8051, %v7982
      %v8053 = vadd.f32 %v8052, %v7983
      %v8054 = vadd.f32 %v8053, %v7984
      %v8055 = vadd.f32 %v8054, %v7985
      %v8056 = vadd.f32 %v8055, %v7986
      %v8057 = vadd.f32 %v8056, %v7987
      %v8058 = vadd.f32 %v8057, %v7988
      %v8059 = vadd.f32 %v8058, %v7989
      %v8060 = vadd.f32 %v8059, %v7990
      %v8061 = vadd.f32 %v8060, %v7991
      %v8062 = vrot.slane %v8061, 4
      %v8063 = vadd.f32 %v8061, %v8062
      %v8064 = vrot.slane %v8063, 2
      %v8065 = vadd.f32 %v8063, %v8064
      %v8066 = vrot.slane %v8065, 1
      %v8067 = vadd.f32 %v8065, %v8066
      %v8068 = vadd.f32 %v7998, %v8067
      %8069 = vst [vmem:[#allocation2] sm:$0x1] %v8068
      %s8070 = scalar_lea.vmem [#allocation2], 1
      %v8071 = vld [vmem:[%s8070] sm:$0x1]
      %v8072 = vmul.f32 %v7928, %v7928
      %v8073 = vmul.f32 %v7929, %v7929
      %v8074 = vmul.f32 %v7930, %v7930
      %v8075 = vmul.f32 %v7931, %v7931
      %v8076 = vmul.f32 %v7932, %v7932
      %v8077 = vmul.f32 %v7933, %v7933
      %v8078 = vmul.f32 %v7934, %v7934
      %v8079 = vmul.f32 %v7935, %v7935
      %v8080 = vmul.f32 %v7936, %v7936
      %v8081 = vmul.f32 %v7937, %v7937
      %v8082 = vmul.f32 %v7938, %v7938
      %v8083 = vmul.f32 %v7939, %v7939
      %v8084 = vmul.f32 %v7940, %v7940
      %v8085 = vmul.f32 %v7941, %v7941
      %v8086 = vmul.f32 %v7942, %v7942
      %v8087 = vmul.f32 %v7943, %v7943
      %v8088 = vmul.f32 %v7944, %v7944
      %v8089 = vmul.f32 %v7945, %v7945
      %v8090 = vmul.f32 %v7946, %v7946
      %v8091 = vmul.f32 %v7947, %v7947
      %v8092 = vmul.f32 %v7948, %v7948
      %v8093 = vmul.f32 %v7949, %v7949
      %v8094 = vmul.f32 %v7950, %v7950
      %v8095 = vmul.f32 %v7951, %v7951
      %v8096 = vmul.f32 %v7952, %v7952
      %v8097 = vmul.f32 %v7953, %v7953
      %v8098 = vmul.f32 %v7954, %v7954
      %v8099 = vmul.f32 %v7955, %v7955
      %v8100 = vmul.f32 %v7956, %v7956
      %v8101 = vmul.f32 %v7957, %v7957
      %v8102 = vmul.f32 %v7958, %v7958
      %v8103 = vmul.f32 %v7959, %v7959
      %v8104 = vmul.f32 %v7960, %v7960
      %v8105 = vmul.f32 %v7961, %v7961
      %v8106 = vmul.f32 %v7962, %v7962
      %v8107 = vmul.f32 %v7963, %v7963
      %v8108 = vmul.f32 %v7964, %v7964
      %v8109 = vmul.f32 %v7965, %v7965
      %v8110 = vmul.f32 %v7966, %v7966
      %v8111 = vmul.f32 %v7967, %v7967
      %v8112 = vmul.f32 %v7968, %v7968
      %v8113 = vmul.f32 %v7969, %v7969
      %v8114 = vmul.f32 %v7970, %v7970
      %v8115 = vmul.f32 %v7971, %v7971
      %v8116 = vmul.f32 %v7972, %v7972
      %v8117 = vmul.f32 %v7973, %v7973
      %v8118 = vmul.f32 %v7974, %v7974
      %v8119 = vmul.f32 %v7975, %v7975
      %v8120 = vmul.f32 %v7976, %v7976
      %v8121 = vmul.f32 %v7977, %v7977
      %v8122 = vmul.f32 %v7978, %v7978
      %v8123 = vmul.f32 %v7979, %v7979
      %v8124 = vmul.f32 %v7980, %v7980
      %v8125 = vmul.f32 %v7981, %v7981
      %v8126 = vmul.f32 %v7982, %v7982
      %v8127 = vmul.f32 %v7983, %v7983
      %v8128 = vmul.f32 %v7984, %v7984
      %v8129 = vmul.f32 %v7985, %v7985
      %v8130 = vmul.f32 %v7986, %v7986
      %v8131 = vmul.f32 %v7987, %v7987
      %v8132 = vmul.f32 %v7988, %v7988
      %v8133 = vmul.f32 %v7989, %v7989
      %v8134 = vmul.f32 %v7990, %v7990
      %v8135 = vmul.f32 %v7991, %v7991
      %v8136 = vadd.f32 %v8072, %v8073
      %v8137 = vadd.f32 %v8136, %v8074
      %v8138 = vadd.f32 %v8137, %v8075
      %v8139 = vadd.f32 %v8138, %v8076
      %v8140 = vadd.f32 %v8139, %v8077
      %v8141 = vadd.f32 %v8140, %v8078
      %v8142 = vadd.f32 %v8141, %v8079
      %v8143 = vadd.f32 %v8142, %v8080
      %v8144 = vadd.f32 %v8143, %v8081
      %v8145 = vadd.f32 %v8144, %v8082
      %v8146 = vadd.f32 %v8145, %v8083
      %v8147 = vadd.f32 %v8146, %v8084
      %v8148 = vadd.f32 %v8147, %v8085
      %v8149 = vadd.f32 %v8148, %v8086
      %v8150 = vadd.f32 %v8149, %v8087
      %v8151 = vadd.f32 %v8150, %v8088
      %v8152 = vadd.f32 %v8151, %v8089
      %v8153 = vadd.f32 %v8152, %v8090
      %v8154 = vadd.f32 %v8153, %v8091
      %v8155 = vadd.f32 %v8154, %v8092
      %v8156 = vadd.f32 %v8155, %v8093
      %v8157 = vadd.f32 %v8156, %v8094
      %v8158 = vadd.f32 %v8157, %v8095
      %v8159 = vadd.f32 %v8158, %v8096
      %v8160 = vadd.f32 %v8159, %v8097
      %v8161 = vadd.f32 %v8160, %v8098
      %v8162 = vadd.f32 %v8161, %v8099
      %v8163 = vadd.f32 %v8162, %v8100
      %v8164 = vadd.f32 %v8163, %v8101
      %v8165 = vadd.f32 %v8164, %v8102
      %v8166 = vadd.f32 %v8165, %v8103
      %v8167 = vadd.f32 %v8166, %v8104
      %v8168 = vadd.f32 %v8167, %v8105
      %v8169 = vadd.f32 %v8168, %v8106
      %v8170 = vadd.f32 %v8169, %v8107
      %v8171 = vadd.f32 %v8170, %v8108
      %v8172 = vadd.f32 %v8171, %v8109
      %v8173 = vadd.f32 %v8172, %v8110
      %v8174 = vadd.f32 %v8173, %v8111
      %v8175 = vadd.f32 %v8174, %v8112
      %v8176 = vadd.f32 %v8175, %v8113
      %v8177 = vadd.f32 %v8176, %v8114
      %v8178 = vadd.f32 %v8177, %v8115
      %v8179 = vadd.f32 %v8178, %v8116
      %v8180 = vadd.f32 %v8179, %v8117
      %v8181 = vadd.f32 %v8180, %v8118
      %v8182 = vadd.f32 %v8181, %v8119
      %v8183 = vadd.f32 %v8182, %v8120
      %v8184 = vadd.f32 %v8183, %v8121
      %v8185 = vadd.f32 %v8184, %v8122
      %v8186 = vadd.f32 %v8185, %v8123
      %v8187 = vadd.f32 %v8186, %v8124
      %v8188 = vadd.f32 %v8187, %v8125
      %v8189 = vadd.f32 %v8188, %v8126
      %v8190 = vadd.f32 %v8189, %v8127
      %v8191 = vadd.f32 %v8190, %v8128
      %v8192 = vadd.f32 %v8191, %v8129
      %v8193 = vadd.f32 %v8192, %v8130
      %v8194 = vadd.f32 %v8193, %v8131
      %v8195 = vadd.f32 %v8194, %v8132
      %v8196 = vadd.f32 %v8195, %v8133
      %v8197 = vadd.f32 %v8196, %v8134
      %v8198 = vadd.f32 %v8197, %v8135
      %v8199 = vrot.slane %v8198, 4
      %v8200 = vadd.f32 %v8198, %v8199
      %v8201 = vrot.slane %v8200, 2
      %v8202 = vadd.f32 %v8200, %v8201
      %v8203 = vrot.slane %v8202, 1
      %v8204 = vadd.f32 %v8202, %v8203
      %v8205 = vadd.f32 %v8071, %v8204
      %8206 = vst [vmem:[%s8070] sm:$0x1] %v8205
      %v8207 = vpack.c.bf16 %v7928, %v7928
      %v8208 = vpack.c.bf16 %v7929, %v7929
      %v8209 = vpack.c.bf16 %v7930, %v7930
      %v8210 = vpack.c.bf16 %v7931, %v7931
      %v8211 = vpack.c.bf16 %v7932, %v7932
      %v8212 = vpack.c.bf16 %v7933, %v7933
      %v8213 = vpack.c.bf16 %v7934, %v7934
      %v8214 = vpack.c.bf16 %v7935, %v7935
      %v8215 = vpack.c.bf16 %v7936, %v7936
      %v8216 = vpack.c.bf16 %v7937, %v7937
      %v8217 = vpack.c.bf16 %v7938, %v7938
      %v8218 = vpack.c.bf16 %v7939, %v7939
      %v8219 = vpack.c.bf16 %v7940, %v7940
      %v8220 = vpack.c.bf16 %v7941, %v7941
      %v8221 = vpack.c.bf16 %v7942, %v7942
      %v8222 = vpack.c.bf16 %v7943, %v7943
      %v8223 = vpack.c.bf16 %v7944, %v7944
      %v8224 = vpack.c.bf16 %v7945, %v7945
      %v8225 = vpack.c.bf16 %v7946, %v7946
      %v8226 = vpack.c.bf16 %v7947, %v7947
      %v8227 = vpack.c.bf16 %v7948, %v7948
      %v8228 = vpack.c.bf16 %v7949, %v7949
      %v8229 = vpack.c.bf16 %v7950, %v7950
      %v8230 = vpack.c.bf16 %v7951, %v7951
      %v8231 = vpack.c.bf16 %v7952, %v7952
      %v8232 = vpack.c.bf16 %v7953, %v7953
      %v8233 = vpack.c.bf16 %v7954, %v7954
      %v8234 = vpack.c.bf16 %v7955, %v7955
      %v8235 = vpack.c.bf16 %v7956, %v7956
      %v8236 = vpack.c.bf16 %v7957, %v7957
      %v8237 = vpack.c.bf16 %v7958, %v7958
      %v8238 = vpack.c.bf16 %v7959, %v7959
      %v8239 = vpack.c.bf16 %v7960, %v7960
      %v8240 = vpack.c.bf16 %v7961, %v7961
      %v8241 = vpack.c.bf16 %v7962, %v7962
      %v8242 = vpack.c.bf16 %v7963, %v7963
      %v8243 = vpack.c.bf16 %v7964, %v7964
      %v8244 = vpack.c.bf16 %v7965, %v7965
      %v8245 = vpack.c.bf16 %v7966, %v7966
      %v8246 = vpack.c.bf16 %v7967, %v7967
      %v8247 = vpack.c.bf16 %v7968, %v7968
      %v8248 = vpack.c.bf16 %v7969, %v7969
      %v8249 = vpack.c.bf16 %v7970, %v7970
      %v8250 = vpack.c.bf16 %v7971, %v7971
      %v8251 = vpack.c.bf16 %v7972, %v7972
      %v8252 = vpack.c.bf16 %v7973, %v7973
      %v8253 = vpack.c.bf16 %v7974, %v7974
      %v8254 = vpack.c.bf16 %v7975, %v7975
      %v8255 = vpack.c.bf16 %v7976, %v7976
      %v8256 = vpack.c.bf16 %v7977, %v7977
      %v8257 = vpack.c.bf16 %v7978, %v7978
      %v8258 = vpack.c.bf16 %v7979, %v7979
      %v8259 = vpack.c.bf16 %v7980, %v7980
      %v8260 = vpack.c.bf16 %v7981, %v7981
      %v8261 = vpack.c.bf16 %v7982, %v7982
      %v8262 = vpack.c.bf16 %v7983, %v7983
      %v8263 = vpack.c.bf16 %v7984, %v7984
      %v8264 = vpack.c.bf16 %v7985, %v7985
      %v8265 = vpack.c.bf16 %v7986, %v7986
      %v8266 = vpack.c.bf16 %v7987, %v7987
      %v8267 = vpack.c.bf16 %v7988, %v7988
      %v8268 = vpack.c.bf16 %v7989, %v7989
      %v8269 = vpack.c.bf16 %v7990, %v7990
      %v8270 = vpack.c.bf16 %v7991, %v7991
      %s8271 = smul.u32 %s21, 64
      %s8272 = smul.addr %s8271, 4
      %s8273 = scalar_lea.vmem %s253, %s8272
      %8274 = vst [vmem:[%s8273] sm:$0xf] %v8207
      %8275 = vst [vmem:[%s8273 + $0x4] sm:$0xf] %v8208
      %8276 = vst [vmem:[%s8273 + $0x8] sm:$0xf] %v8209
      %8277 = vst [vmem:[%s8273 + $0xc] sm:$0xf] %v8210
      %8278 = vst [vmem:[%s8273 + $0x10] sm:$0xf] %v8211
      %8279 = vst [vmem:[%s8273 + $0x14] sm:$0xf] %v8212
      %8280 = vst [vmem:[%s8273 + $0x18] sm:$0xf] %v8213
      %8281 = vst [vmem:[%s8273 + $0x1c] sm:$0xf] %v8214
      %8282 = vst [vmem:[%s8273 + $0x20] sm:$0xf] %v8215
      %8283 = vst [vmem:[%s8273 + $0x24] sm:$0xf] %v8216
      %8284 = vst [vmem:[%s8273 + $0x28] sm:$0xf] %v8217
      %8285 = vst [vmem:[%s8273 + $0x2c] sm:$0xf] %v8218
      %8286 = vst [vmem:[%s8273 + $0x30] sm:$0xf] %v8219
      %8287 = vst [vmem:[%s8273 + $0x34] sm:$0xf] %v8220
      %8288 = vst [vmem:[%s8273 + $0x38] sm:$0xf] %v8221
      %8289 = vst [vmem:[%s8273 + $0x3c] sm:$0xf] %v8222
      %8290 = vst [vmem:[%s8273 + $0x40] sm:$0xf] %v8223
      %8291 = vst [vmem:[%s8273 + $0x44] sm:$0xf] %v8224
      %8292 = vst [vmem:[%s8273 + $0x48] sm:$0xf] %v8225
      %8293 = vst [vmem:[%s8273 + $0x4c] sm:$0xf] %v8226
      %8294 = vst [vmem:[%s8273 + $0x50] sm:$0xf] %v8227
      %8295 = vst [vmem:[%s8273 + $0x54] sm:$0xf] %v8228
      %8296 = vst [vmem:[%s8273 + $0x58] sm:$0xf] %v8229
      %8297 = vst [vmem:[%s8273 + $0x5c] sm:$0xf] %v8230
      %8298 = vst [vmem:[%s8273 + $0x60] sm:$0xf] %v8231
      %8299 = vst [vmem:[%s8273 + $0x64] sm:$0xf] %v8232
      %8300 = vst [vmem:[%s8273 + $0x68] sm:$0xf] %v8233
      %8301 = vst [vmem:[%s8273 + $0x6c] sm:$0xf] %v8234
      %8302 = vst [vmem:[%s8273 + $0x70] sm:$0xf] %v8235
      %8303 = vst [vmem:[%s8273 + $0x74] sm:$0xf] %v8236
      %8304 = vst [vmem:[%s8273 + $0x78] sm:$0xf] %v8237
      %8305 = vst [vmem:[%s8273 + $0x7c] sm:$0xf] %v8238
      %8306 = vst [vmem:[%s8273 + $0x80] sm:$0xf] %v8239
      %8307 = vst [vmem:[%s8273 + $0x84] sm:$0xf] %v8240
      %8308 = vst [vmem:[%s8273 + $0x88] sm:$0xf] %v8241
      %8309 = vst [vmem:[%s8273 + $0x8c] sm:$0xf] %v8242
      %8310 = vst [vmem:[%s8273 + $0x90] sm:$0xf] %v8243
      %8311 = vst [vmem:[%s8273 + $0x94] sm:$0xf] %v8244
      %8312 = vst [vmem:[%s8273 + $0x98] sm:$0xf] %v8245
      %8313 = vst [vmem:[%s8273 + $0x9c] sm:$0xf] %v8246
      %8314 = vst [vmem:[%s8273 + $0xa0] sm:$0xf] %v8247
      %8315 = vst [vmem:[%s8273 + $0xa4] sm:$0xf] %v8248
      %8316 = vst [vmem:[%s8273 + $0xa8] sm:$0xf] %v8249
      %8317 = vst [vmem:[%s8273 + $0xac] sm:$0xf] %v8250
      %8318 = vst [vmem:[%s8273 + $0xb0] sm:$0xf] %v8251
      %8319 = vst [vmem:[%s8273 + $0xb4] sm:$0xf] %v8252
      %8320 = vst [vmem:[%s8273 + $0xb8] sm:$0xf] %v8253
      %8321 = vst [vmem:[%s8273 + $0xbc] sm:$0xf] %v8254
      %8322 = vst [vmem:[%s8273 + $0xc0] sm:$0xf] %v8255
      %8323 = vst [vmem:[%s8273 + $0xc4] sm:$0xf] %v8256
      %8324 = vst [vmem:[%s8273 + $0xc8] sm:$0xf] %v8257
      %8325 = vst [vmem:[%s8273 + $0xcc] sm:$0xf] %v8258
      %8326 = vst [vmem:[%s8273 + $0xd0] sm:$0xf] %v8259
      %8327 = vst [vmem:[%s8273 + $0xd4] sm:$0xf] %v8260
      %8328 = vst [vmem:[%s8273 + $0xd8] sm:$0xf] %v8261
      %8329 = vst [vmem:[%s8273 + $0xdc] sm:$0xf] %v8262
      %8330 = vst [vmem:[%s8273 + $0xe0] sm:$0xf] %v8263
      %8331 = vst [vmem:[%s8273 + $0xe4] sm:$0xf] %v8264
      %8332 = vst [vmem:[%s8273 + $0xe8] sm:$0xf] %v8265
      %8333 = vst [vmem:[%s8273 + $0xec] sm:$0xf] %v8266
      %8334 = vst [vmem:[%s8273 + $0xf0] sm:$0xf] %v8267
      %8335 = vst [vmem:[%s8273 + $0xf4] sm:$0xf] %v8268
      %8336 = vst [vmem:[%s8273 + $0xf8] sm:$0xf] %v8269
      %8337 = vst [vmem:[%s8273 + $0xfc] sm:$0xf] %v8270
      // Predicated region
      $region37: #{apply.3} parent=31 // pred_check
        %p8338 = pneg %p7992
      $region38: #{apply.3} parent=31 // pred_check_branch
        %8340 = sbr.rel (%p8338) target = $region40
      $region39: #{apply.3} parent=31 // pred_region
        %v8341 = vld [vmem:[#allocation2] sm:$0x1]
        %v8342 = vmul.f32 %v8341, 0.001953125
        %v8343 = vld [vmem:[%s8070] sm:$0x1]
        %v8344 = vmul.f32 %v8343, 0.001953125
        %v8345 = vmul.f32 %v8342, %v8342
        %v8346 = vsub.f32 %v8344, %v8345
        %v8347 = vadd.f32 %v8346, 1e-05
        %v8348 = vrsqrt.pop %v8347
        %v8349 = vmul.f32 %v8348, %v8347
        %v8350 = vmul.f32 %v8349, %v8348
        %v8351 = vmul.f32 0.5, %v8350
        %v8352 = vsub.f32 1.5, %v8351
        %v8353 = vmul.f32 %v8348, %v8352
        %vm8354 = vweird.f32 %v8347
        %vm8355 = vweird.f32 %v8348
        %vm8356 = vmor %vm8354, %vm8355
        %v8357 = vsel %vm8356, %v8348, %v8353
        %v8358 = vld [vmem:[%s253] sm:$0xf]
        %v8359 = vld [vmem:[%s253 + $0x4] sm:$0xf]
        %v8360 = vld [vmem:[%s253 + $0x8] sm:$0xf]
        %v8361 = vld [vmem:[%s253 + $0xc] sm:$0xf]
        %v8362 = vld [vmem:[%s253 + $0x10] sm:$0xf]
        %v8363 = vld [vmem:[%s253 + $0x14] sm:$0xf]
        %v8364 = vld [vmem:[%s253 + $0x18] sm:$0xf]
        %v8365 = vld [vmem:[%s253 + $0x1c] sm:$0xf]
        %v8366 = vld [vmem:[%s253 + $0x20] sm:$0xf]
        %v8367 = vld [vmem:[%s253 + $0x24] sm:$0xf]
        %v8368 = vld [vmem:[%s253 + $0x28] sm:$0xf]
        %v8369 = vld [vmem:[%s253 + $0x2c] sm:$0xf]
        %v8370 = vld [vmem:[%s253 + $0x30] sm:$0xf]
        %v8371 = vld [vmem:[%s253 + $0x34] sm:$0xf]
        %v8372 = vld [vmem:[%s253 + $0x38] sm:$0xf]
        %v8373 = vld [vmem:[%s253 + $0x3c] sm:$0xf]
        %v8374 = vld [vmem:[%s253 + $0x40] sm:$0xf]
        %v8375 = vld [vmem:[%s253 + $0x44] sm:$0xf]
        %v8376 = vld [vmem:[%s253 + $0x48] sm:$0xf]
        %v8377 = vld [vmem:[%s253 + $0x4c] sm:$0xf]
        %v8378 = vld [vmem:[%s253 + $0x50] sm:$0xf]
        %v8379 = vld [vmem:[%s253 + $0x54] sm:$0xf]
        %v8380 = vld [vmem:[%s253 + $0x58] sm:$0xf]
        %v8381 = vld [vmem:[%s253 + $0x5c] sm:$0xf]
        %v8382 = vld [vmem:[%s253 + $0x60] sm:$0xf]
        %v8383 = vld [vmem:[%s253 + $0x64] sm:$0xf]
        %v8384 = vld [vmem:[%s253 + $0x68] sm:$0xf]
        %v8385 = vld [vmem:[%s253 + $0x6c] sm:$0xf]
        %v8386 = vld [vmem:[%s253 + $0x70] sm:$0xf]
        %v8387 = vld [vmem:[%s253 + $0x74] sm:$0xf]
        %v8388 = vld [vmem:[%s253 + $0x78] sm:$0xf]
        %v8389 = vld [vmem:[%s253 + $0x7c] sm:$0xf]
        %v8390 = vld [vmem:[%s253 + $0x80] sm:$0xf]
        %v8391 = vld [vmem:[%s253 + $0x84] sm:$0xf]
        %v8392 = vld [vmem:[%s253 + $0x88] sm:$0xf]
        %v8393 = vld [vmem:[%s253 + $0x8c] sm:$0xf]
        %v8394 = vld [vmem:[%s253 + $0x90] sm:$0xf]
        %v8395 = vld [vmem:[%s253 + $0x94] sm:$0xf]
        %v8396 = vld [vmem:[%s253 + $0x98] sm:$0xf]
        %v8397 = vld [vmem:[%s253 + $0x9c] sm:$0xf]
        %v8398 = vld [vmem:[%s253 + $0xa0] sm:$0xf]
        %v8399 = vld [vmem:[%s253 + $0xa4] sm:$0xf]
        %v8400 = vld [vmem:[%s253 + $0xa8] sm:$0xf]
        %v8401 = vld [vmem:[%s253 + $0xac] sm:$0xf]
        %v8402 = vld [vmem:[%s253 + $0xb0] sm:$0xf]
        %v8403 = vld [vmem:[%s253 + $0xb4] sm:$0xf]
        %v8404 = vld [vmem:[%s253 + $0xb8] sm:$0xf]
        %v8405 = vld [vmem:[%s253 + $0xbc] sm:$0xf]
        %v8406 = vld [vmem:[%s253 + $0xc0] sm:$0xf]
        %v8407 = vld [vmem:[%s253 + $0xc4] sm:$0xf]
        %v8408 = vld [vmem:[%s253 + $0xc8] sm:$0xf]
        %v8409 = vld [vmem:[%s253 + $0xcc] sm:$0xf]
        %v8410 = vld [vmem:[%s253 + $0xd0] sm:$0xf]
        %v8411 = vld [vmem:[%s253 + $0xd4] sm:$0xf]
        %v8412 = vld [vmem:[%s253 + $0xd8] sm:$0xf]
        %v8413 = vld [vmem:[%s253 + $0xdc] sm:$0xf]
        %v8414 = vld [vmem:[%s253 + $0xe0] sm:$0xf]
        %v8415 = vld [vmem:[%s253 + $0xe4] sm:$0xf]
        %v8416 = vld [vmem:[%s253 + $0xe8] sm:$0xf]
        %v8417 = vld [vmem:[%s253 + $0xec] sm:$0xf]
        %v8418 = vld [vmem:[%s253 + $0xf0] sm:$0xf]
        %v8419 = vld [vmem:[%s253 + $0xf4] sm:$0xf]
        %v8420 = vld [vmem:[%s253 + $0xf8] sm:$0xf]
        %v8421 = vld [vmem:[%s253 + $0xfc] sm:$0xf]
        %v8422 = vunpack.c.l.bf16 %v8358
        %v8423 = vunpack.c.l.bf16 %v8359
        %v8424 = vunpack.c.l.bf16 %v8360
        %v8425 = vunpack.c.l.bf16 %v8361
        %v8426 = vunpack.c.l.bf16 %v8362
        %v8427 = vunpack.c.l.bf16 %v8363
        %v8428 = vunpack.c.l.bf16 %v8364
        %v8429 = vunpack.c.l.bf16 %v8365
        %v8430 = vunpack.c.l.bf16 %v8366
        %v8431 = vunpack.c.l.bf16 %v8367
        %v8432 = vunpack.c.l.bf16 %v8368
        %v8433 = vunpack.c.l.bf16 %v8369
        %v8434 = vunpack.c.l.bf16 %v8370
        %v8435 = vunpack.c.l.bf16 %v8371
        %v8436 = vunpack.c.l.bf16 %v8372
        %v8437 = vunpack.c.l.bf16 %v8373
        %v8438 = vunpack.c.l.bf16 %v8374
        %v8439 = vunpack.c.l.bf16 %v8375
        %v8440 = vunpack.c.l.bf16 %v8376
        %v8441 = vunpack.c.l.bf16 %v8377
        %v8442 = vunpack.c.l.bf16 %v8378
        %v8443 = vunpack.c.l.bf16 %v8379
        %v8444 = vunpack.c.l.bf16 %v8380
        %v8445 = vunpack.c.l.bf16 %v8381
        %v8446 = vunpack.c.l.bf16 %v8382
        %v8447 = vunpack.c.l.bf16 %v8383
        %v8448 = vunpack.c.l.bf16 %v8384
        %v8449 = vunpack.c.l.bf16 %v8385
        %v8450 = vunpack.c.l.bf16 %v8386
        %v8451 = vunpack.c.l.bf16 %v8387
        %v8452 = vunpack.c.l.bf16 %v8388
        %v8453 = vunpack.c.l.bf16 %v8389
        %v8454 = vunpack.c.l.bf16 %v8390
        %v8455 = vunpack.c.l.bf16 %v8391
        %v8456 = vunpack.c.l.bf16 %v8392
        %v8457 = vunpack.c.l.bf16 %v8393
        %v8458 = vunpack.c.l.bf16 %v8394
        %v8459 = vunpack.c.l.bf16 %v8395
        %v8460 = vunpack.c.l.bf16 %v8396
        %v8461 = vunpack.c.l.bf16 %v8397
        %v8462 = vunpack.c.l.bf16 %v8398
        %v8463 = vunpack.c.l.bf16 %v8399
        %v8464 = vunpack.c.l.bf16 %v8400
        %v8465 = vunpack.c.l.bf16 %v8401
        %v8466 = vunpack.c.l.bf16 %v8402
        %v8467 = vunpack.c.l.bf16 %v8403
        %v8468 = vunpack.c.l.bf16 %v8404
        %v8469 = vunpack.c.l.bf16 %v8405
        %v8470 = vunpack.c.l.bf16 %v8406
        %v8471 = vunpack.c.l.bf16 %v8407
        %v8472 = vunpack.c.l.bf16 %v8408
        %v8473 = vunpack.c.l.bf16 %v8409
        %v8474 = vunpack.c.l.bf16 %v8410
        %v8475 = vunpack.c.l.bf16 %v8411
        %v8476 = vunpack.c.l.bf16 %v8412
        %v8477 = vunpack.c.l.bf16 %v8413
        %v8478 = vunpack.c.l.bf16 %v8414
        %v8479 = vunpack.c.l.bf16 %v8415
        %v8480 = vunpack.c.l.bf16 %v8416
        %v8481 = vunpack.c.l.bf16 %v8417
        %v8482 = vunpack.c.l.bf16 %v8418
        %v8483 = vunpack.c.l.bf16 %v8419
        %v8484 = vunpack.c.l.bf16 %v8420
        %v8485 = vunpack.c.l.bf16 %v8421
        %v8487 = vperm.slane %v8342, 0
        %v8489 = vsub.f32 %v8422, %v8487
        %v8490 = vsub.f32 %v8423, %v8487
        %v8491 = vsub.f32 %v8424, %v8487
        %v8492 = vsub.f32 %v8425, %v8487
        %v8493 = vsub.f32 %v8426, %v8487
        %v8494 = vsub.f32 %v8427, %v8487
        %v8495 = vsub.f32 %v8428, %v8487
        %v8496 = vsub.f32 %v8429, %v8487
        %v8497 = vsub.f32 %v8430, %v8487
        %v8498 = vsub.f32 %v8431, %v8487
        %v8499 = vsub.f32 %v8432, %v8487
        %v8500 = vsub.f32 %v8433, %v8487
        %v8501 = vsub.f32 %v8434, %v8487
        %v8502 = vsub.f32 %v8435, %v8487
        %v8503 = vsub.f32 %v8436, %v8487
        %v8504 = vsub.f32 %v8437, %v8487
        %v8505 = vsub.f32 %v8438, %v8487
        %v8506 = vsub.f32 %v8439, %v8487
        %v8507 = vsub.f32 %v8440, %v8487
        %v8508 = vsub.f32 %v8441, %v8487
        %v8509 = vsub.f32 %v8442, %v8487
        %v8510 = vsub.f32 %v8443, %v8487
        %v8511 = vsub.f32 %v8444, %v8487
        %v8512 = vsub.f32 %v8445, %v8487
        %v8513 = vsub.f32 %v8446, %v8487
        %v8514 = vsub.f32 %v8447, %v8487
        %v8515 = vsub.f32 %v8448, %v8487
        %v8516 = vsub.f32 %v8449, %v8487
        %v8517 = vsub.f32 %v8450, %v8487
        %v8518 = vsub.f32 %v8451, %v8487
        %v8519 = vsub.f32 %v8452, %v8487
        %v8520 = vsub.f32 %v8453, %v8487
        %v8521 = vsub.f32 %v8454, %v8487
        %v8522 = vsub.f32 %v8455, %v8487
        %v8523 = vsub.f32 %v8456, %v8487
        %v8524 = vsub.f32 %v8457, %v8487
        %v8525 = vsub.f32 %v8458, %v8487
        %v8526 = vsub.f32 %v8459, %v8487
        %v8527 = vsub.f32 %v8460, %v8487
        %v8528 = vsub.f32 %v8461, %v8487
        %v8529 = vsub.f32 %v8462, %v8487
        %v8530 = vsub.f32 %v8463, %v8487
        %v8531 = vsub.f32 %v8464, %v8487
        %v8532 = vsub.f32 %v8465, %v8487
        %v8533 = vsub.f32 %v8466, %v8487
        %v8534 = vsub.f32 %v8467, %v8487
        %v8535 = vsub.f32 %v8468, %v8487
        %v8536 = vsub.f32 %v8469, %v8487
        %v8537 = vsub.f32 %v8470, %v8487
        %v8538 = vsub.f32 %v8471, %v8487
        %v8539 = vsub.f32 %v8472, %v8487
        %v8540 = vsub.f32 %v8473, %v8487
        %v8541 = vsub.f32 %v8474, %v8487
        %v8542 = vsub.f32 %v8475, %v8487
        %v8543 = vsub.f32 %v8476, %v8487
        %v8544 = vsub.f32 %v8477, %v8487
        %v8545 = vsub.f32 %v8478, %v8487
        %v8546 = vsub.f32 %v8479, %v8487
        %v8547 = vsub.f32 %v8480, %v8487
        %v8548 = vsub.f32 %v8481, %v8487
        %v8549 = vsub.f32 %v8482, %v8487
        %v8550 = vsub.f32 %v8483, %v8487
        %v8551 = vsub.f32 %v8484, %v8487
        %v8552 = vsub.f32 %v8485, %v8487
        %v8554 = vperm.slane %v8357, 0
        %v8556 = vmul.f32 %v8489, %v8554
        %v8557 = vmul.f32 %v8490, %v8554
        %v8558 = vmul.f32 %v8491, %v8554
        %v8559 = vmul.f32 %v8492, %v8554
        %v8560 = vmul.f32 %v8493, %v8554
        %v8561 = vmul.f32 %v8494, %v8554
        %v8562 = vmul.f32 %v8495, %v8554
        %v8563 = vmul.f32 %v8496, %v8554
        %v8564 = vmul.f32 %v8497, %v8554
        %v8565 = vmul.f32 %v8498, %v8554
        %v8566 = vmul.f32 %v8499, %v8554
        %v8567 = vmul.f32 %v8500, %v8554
        %v8568 = vmul.f32 %v8501, %v8554
        %v8569 = vmul.f32 %v8502, %v8554
        %v8570 = vmul.f32 %v8503, %v8554
        %v8571 = vmul.f32 %v8504, %v8554
        %v8572 = vmul.f32 %v8505, %v8554
        %v8573 = vmul.f32 %v8506, %v8554
        %v8574 = vmul.f32 %v8507, %v8554
        %v8575 = vmul.f32 %v8508, %v8554
        %v8576 = vmul.f32 %v8509, %v8554
        %v8577 = vmul.f32 %v8510, %v8554
        %v8578 = vmul.f32 %v8511, %v8554
        %v8579 = vmul.f32 %v8512, %v8554
        %v8580 = vmul.f32 %v8513, %v8554
        %v8581 = vmul.f32 %v8514, %v8554
        %v8582 = vmul.f32 %v8515, %v8554
        %v8583 = vmul.f32 %v8516, %v8554
        %v8584 = vmul.f32 %v8517, %v8554
        %v8585 = vmul.f32 %v8518, %v8554
        %v8586 = vmul.f32 %v8519, %v8554
        %v8587 = vmul.f32 %v8520, %v8554
        %v8588 = vmul.f32 %v8521, %v8554
        %v8589 = vmul.f32 %v8522, %v8554
        %v8590 = vmul.f32 %v8523, %v8554
        %v8591 = vmul.f32 %v8524, %v8554
        %v8592 = vmul.f32 %v8525, %v8554
        %v8593 = vmul.f32 %v8526, %v8554
        %v8594 = vmul.f32 %v8527, %v8554
        %v8595 = vmul.f32 %v8528, %v8554
        %v8596 = vmul.f32 %v8529, %v8554
        %v8597 = vmul.f32 %v8530, %v8554
        %v8598 = vmul.f32 %v8531, %v8554
        %v8599 = vmul.f32 %v8532, %v8554
        %v8600 = vmul.f32 %v8533, %v8554
        %v8601 = vmul.f32 %v8534, %v8554
        %v8602 = vmul.f32 %v8535, %v8554
        %v8603 = vmul.f32 %v8536, %v8554
        %v8604 = vmul.f32 %v8537, %v8554
        %v8605 = vmul.f32 %v8538, %v8554
        %v8606 = vmul.f32 %v8539, %v8554
        %v8607 = vmul.f32 %v8540, %v8554
        %v8608 = vmul.f32 %v8541, %v8554
        %v8609 = vmul.f32 %v8542, %v8554
        %v8610 = vmul.f32 %v8543, %v8554
        %v8611 = vmul.f32 %v8544, %v8554
        %v8612 = vmul.f32 %v8545, %v8554
        %v8613 = vmul.f32 %v8546, %v8554
        %v8614 = vmul.f32 %v8547, %v8554
        %v8615 = vmul.f32 %v8548, %v8554
        %v8616 = vmul.f32 %v8549, %v8554
        %v8617 = vmul.f32 %v8550, %v8554
        %v8618 = vmul.f32 %v8551, %v8554
        %v8619 = vmul.f32 %v8552, %v8554
        %v8620 = vmax.f32 %v8556, 0.0
        %v8621 = vmax.f32 %v8557, 0.0
        %v8622 = vmax.f32 %v8558, 0.0
        %v8623 = vmax.f32 %v8559, 0.0
        %v8624 = vmax.f32 %v8560, 0.0
        %v8625 = vmax.f32 %v8561, 0.0
        %v8626 = vmax.f32 %v8562, 0.0
        %v8627 = vmax.f32 %v8563, 0.0
        %v8628 = vmax.f32 %v8564, 0.0
        %v8629 = vmax.f32 %v8565, 0.0
        %v8630 = vmax.f32 %v8566, 0.0
        %v8631 = vmax.f32 %v8567, 0.0
        %v8632 = vmax.f32 %v8568, 0.0
        %v8633 = vmax.f32 %v8569, 0.0
        %v8634 = vmax.f32 %v8570, 0.0
        %v8635 = vmax.f32 %v8571, 0.0
        %v8636 = vmax.f32 %v8572, 0.0
        %v8637 = vmax.f32 %v8573, 0.0
        %v8638 = vmax.f32 %v8574, 0.0
        %v8639 = vmax.f32 %v8575, 0.0
        %v8640 = vmax.f32 %v8576, 0.0
        %v8641 = vmax.f32 %v8577, 0.0
        %v8642 = vmax.f32 %v8578, 0.0
        %v8643 = vmax.f32 %v8579, 0.0
        %v8644 = vmax.f32 %v8580, 0.0
        %v8645 = vmax.f32 %v8581, 0.0
        %v8646 = vmax.f32 %v8582, 0.0
        %v8647 = vmax.f32 %v8583, 0.0
        %v8648 = vmax.f32 %v8584, 0.0
        %v8649 = vmax.f32 %v8585, 0.0
        %v8650 = vmax.f32 %v8586, 0.0
        %v8651 = vmax.f32 %v8587, 0.0
        %v8652 = vmax.f32 %v8588, 0.0
        %v8653 = vmax.f32 %v8589, 0.0
        %v8654 = vmax.f32 %v8590, 0.0
        %v8655 = vmax.f32 %v8591, 0.0
        %v8656 = vmax.f32 %v8592, 0.0
        %v8657 = vmax.f32 %v8593, 0.0
        %v8658 = vmax.f32 %v8594, 0.0
        %v8659 = vmax.f32 %v8595, 0.0
        %v8660 = vmax.f32 %v8596, 0.0
        %v8661 = vmax.f32 %v8597, 0.0
        %v8662 = vmax.f32 %v8598, 0.0
        %v8663 = vmax.f32 %v8599, 0.0
        %v8664 = vmax.f32 %v8600, 0.0
        %v8665 = vmax.f32 %v8601, 0.0
        %v8666 = vmax.f32 %v8602, 0.0
        %v8667 = vmax.f32 %v8603, 0.0
        %v8668 = vmax.f32 %v8604, 0.0
        %v8669 = vmax.f32 %v8605, 0.0
        %v8670 = vmax.f32 %v8606, 0.0
        %v8671 = vmax.f32 %v8607, 0.0
        %v8672 = vmax.f32 %v8608, 0.0
        %v8673 = vmax.f32 %v8609, 0.0
        %v8674 = vmax.f32 %v8610, 0.0
        %v8675 = vmax.f32 %v8611, 0.0
        %v8676 = vmax.f32 %v8612, 0.0
        %v8677 = vmax.f32 %v8613, 0.0
        %v8678 = vmax.f32 %v8614, 0.0
        %v8679 = vmax.f32 %v8615, 0.0
        %v8680 = vmax.f32 %v8616, 0.0
        %v8681 = vmax.f32 %v8617, 0.0
        %v8682 = vmax.f32 %v8618, 0.0
        %v8683 = vmax.f32 %v8619, 0.0
        %v8684 = vpack.c.bf16 %v8620, %v8620
        %v8685 = vpack.c.bf16 %v8621, %v8621
        %v8686 = vpack.c.bf16 %v8622, %v8622
        %v8687 = vpack.c.bf16 %v8623, %v8623
        %v8688 = vpack.c.bf16 %v8624, %v8624
        %v8689 = vpack.c.bf16 %v8625, %v8625
        %v8690 = vpack.c.bf16 %v8626, %v8626
        %v8691 = vpack.c.bf16 %v8627, %v8627
        %v8692 = vpack.c.bf16 %v8628, %v8628
        %v8693 = vpack.c.bf16 %v8629, %v8629
        %v8694 = vpack.c.bf16 %v8630, %v8630
        %v8695 = vpack.c.bf16 %v8631, %v8631
        %v8696 = vpack.c.bf16 %v8632, %v8632
        %v8697 = vpack.c.bf16 %v8633, %v8633
        %v8698 = vpack.c.bf16 %v8634, %v8634
        %v8699 = vpack.c.bf16 %v8635, %v8635
        %v8700 = vpack.c.bf16 %v8636, %v8636
        %v8701 = vpack.c.bf16 %v8637, %v8637
        %v8702 = vpack.c.bf16 %v8638, %v8638
        %v8703 = vpack.c.bf16 %v8639, %v8639
        %v8704 = vpack.c.bf16 %v8640, %v8640
        %v8705 = vpack.c.bf16 %v8641, %v8641
        %v8706 = vpack.c.bf16 %v8642, %v8642
        %v8707 = vpack.c.bf16 %v8643, %v8643
        %v8708 = vpack.c.bf16 %v8644, %v8644
        %v8709 = vpack.c.bf16 %v8645, %v8645
        %v8710 = vpack.c.bf16 %v8646, %v8646
        %v8711 = vpack.c.bf16 %v8647, %v8647
        %v8712 = vpack.c.bf16 %v8648, %v8648
        %v8713 = vpack.c.bf16 %v8649, %v8649
        %v8714 = vpack.c.bf16 %v8650, %v8650
        %v8715 = vpack.c.bf16 %v8651, %v8651
        %v8716 = vpack.c.bf16 %v8652, %v8652
        %v8717 = vpack.c.bf16 %v8653, %v8653
        %v8718 = vpack.c.bf16 %v8654, %v8654
        %v8719 = vpack.c.bf16 %v8655, %v8655
        %v8720 = vpack.c.bf16 %v8656, %v8656
        %v8721 = vpack.c.bf16 %v8657, %v8657
        %v8722 = vpack.c.bf16 %v8658, %v8658
        %v8723 = vpack.c.bf16 %v8659, %v8659
        %v8724 = vpack.c.bf16 %v8660, %v8660
        %v8725 = vpack.c.bf16 %v8661, %v8661
        %v8726 = vpack.c.bf16 %v8662, %v8662
        %v8727 = vpack.c.bf16 %v8663, %v8663
        %v8728 = vpack.c.bf16 %v8664, %v8664
        %v8729 = vpack.c.bf16 %v8665, %v8665
        %v8730 = vpack.c.bf16 %v8666, %v8666
        %v8731 = vpack.c.bf16 %v8667, %v8667
        %v8732 = vpack.c.bf16 %v8668, %v8668
        %v8733 = vpack.c.bf16 %v8669, %v8669
        %v8734 = vpack.c.bf16 %v8670, %v8670
        %v8735 = vpack.c.bf16 %v8671, %v8671
        %v8736 = vpack.c.bf16 %v8672, %v8672
        %v8737 = vpack.c.bf16 %v8673, %v8673
        %v8738 = vpack.c.bf16 %v8674, %v8674
        %v8739 = vpack.c.bf16 %v8675, %v8675
        %v8740 = vpack.c.bf16 %v8676, %v8676
        %v8741 = vpack.c.bf16 %v8677, %v8677
        %v8742 = vpack.c.bf16 %v8678, %v8678
        %v8743 = vpack.c.bf16 %v8679, %v8679
        %v8744 = vpack.c.bf16 %v8680, %v8680
        %v8745 = vpack.c.bf16 %v8681, %v8681
        %v8746 = vpack.c.bf16 %v8682, %v8682
        %v8747 = vpack.c.bf16 %v8683, %v8683
        %8748 = vst [vmem:[%s253] sm:$0xf] %v8684
        %8749 = vst [vmem:[%s253 + $0x4] sm:$0xf] %v8685
        %8750 = vst [vmem:[%s253 + $0x8] sm:$0xf] %v8686
        %8751 = vst [vmem:[%s253 + $0xc] sm:$0xf] %v8687
        %8752 = vst [vmem:[%s253 + $0x10] sm:$0xf] %v8688
        %8753 = vst [vmem:[%s253 + $0x14] sm:$0xf] %v8689
        %8754 = vst [vmem:[%s253 + $0x18] sm:$0xf] %v8690
        %8755 = vst [vmem:[%s253 + $0x1c] sm:$0xf] %v8691
        %8756 = vst [vmem:[%s253 + $0x20] sm:$0xf] %v8692
        %8757 = vst [vmem:[%s253 + $0x24] sm:$0xf] %v8693
        %8758 = vst [vmem:[%s253 + $0x28] sm:$0xf] %v8694
        %8759 = vst [vmem:[%s253 + $0x2c] sm:$0xf] %v8695
        %8760 = vst [vmem:[%s253 + $0x30] sm:$0xf] %v8696
        %8761 = vst [vmem:[%s253 + $0x34] sm:$0xf] %v8697
        %8762 = vst [vmem:[%s253 + $0x38] sm:$0xf] %v8698
        %8763 = vst [vmem:[%s253 + $0x3c] sm:$0xf] %v8699
        %8764 = vst [vmem:[%s253 + $0x40] sm:$0xf] %v8700
        %8765 = vst [vmem:[%s253 + $0x44] sm:$0xf] %v8701
        %8766 = vst [vmem:[%s253 + $0x48] sm:$0xf] %v8702
        %8767 = vst [vmem:[%s253 + $0x4c] sm:$0xf] %v8703
        %8768 = vst [vmem:[%s253 + $0x50] sm:$0xf] %v8704
        %8769 = vst [vmem:[%s253 + $0x54] sm:$0xf] %v8705
        %8770 = vst [vmem:[%s253 + $0x58] sm:$0xf] %v8706
        %8771 = vst [vmem:[%s253 + $0x5c] sm:$0xf] %v8707
        %8772 = vst [vmem:[%s253 + $0x60] sm:$0xf] %v8708
        %8773 = vst [vmem:[%s253 + $0x64] sm:$0xf] %v8709
        %8774 = vst [vmem:[%s253 + $0x68] sm:$0xf] %v8710
        %8775 = vst [vmem:[%s253 + $0x6c] sm:$0xf] %v8711
        %8776 = vst [vmem:[%s253 + $0x70] sm:$0xf] %v8712
        %8777 = vst [vmem:[%s253 + $0x74] sm:$0xf] %v8713
        %8778 = vst [vmem:[%s253 + $0x78] sm:$0xf] %v8714
        %8779 = vst [vmem:[%s253 + $0x7c] sm:$0xf] %v8715
        %8780 = vst [vmem:[%s253 + $0x80] sm:$0xf] %v8716
        %8781 = vst [vmem:[%s253 + $0x84] sm:$0xf] %v8717
        %8782 = vst [vmem:[%s253 + $0x88] sm:$0xf] %v8718
        %8783 = vst [vmem:[%s253 + $0x8c] sm:$0xf] %v8719
        %8784 = vst [vmem:[%s253 + $0x90] sm:$0xf] %v8720
        %8785 = vst [vmem:[%s253 + $0x94] sm:$0xf] %v8721
        %8786 = vst [vmem:[%s253 + $0x98] sm:$0xf] %v8722
        %8787 = vst [vmem:[%s253 + $0x9c] sm:$0xf] %v8723
        %8788 = vst [vmem:[%s253 + $0xa0] sm:$0xf] %v8724
        %8789 = vst [vmem:[%s253 + $0xa4] sm:$0xf] %v8725
        %8790 = vst [vmem:[%s253 + $0xa8] sm:$0xf] %v8726
        %8791 = vst [vmem:[%s253 + $0xac] sm:$0xf] %v8727
        %8792 = vst [vmem:[%s253 + $0xb0] sm:$0xf] %v8728
        %8793 = vst [vmem:[%s253 + $0xb4] sm:$0xf] %v8729
        %8794 = vst [vmem:[%s253 + $0xb8] sm:$0xf] %v8730
        %8795 = vst [vmem:[%s253 + $0xbc] sm:$0xf] %v8731
        %8796 = vst [vmem:[%s253 + $0xc0] sm:$0xf] %v8732
        %8797 = vst [vmem:[%s253 + $0xc4] sm:$0xf] %v8733
        %8798 = vst [vmem:[%s253 + $0xc8] sm:$0xf] %v8734
        %8799 = vst [vmem:[%s253 + $0xcc] sm:$0xf] %v8735
        %8800 = vst [vmem:[%s253 + $0xd0] sm:$0xf] %v8736
        %8801 = vst [vmem:[%s253 + $0xd4] sm:$0xf] %v8737
        %8802 = vst [vmem:[%s253 + $0xd8] sm:$0xf] %v8738
        %8803 = vst [vmem:[%s253 + $0xdc] sm:$0xf] %v8739
        %8804 = vst [vmem:[%s253 + $0xe0] sm:$0xf] %v8740
        %8805 = vst [vmem:[%s253 + $0xe4] sm:$0xf] %v8741
        %8806 = vst [vmem:[%s253 + $0xe8] sm:$0xf] %v8742
        %8807 = vst [vmem:[%s253 + $0xec] sm:$0xf] %v8743
        %8808 = vst [vmem:[%s253 + $0xf0] sm:$0xf] %v8744
        %8809 = vst [vmem:[%s253 + $0xf4] sm:$0xf] %v8745
        %8810 = vst [vmem:[%s253 + $0xf8] sm:$0xf] %v8746
        %8811 = vst [vmem:[%s253 + $0xfc] sm:$0xf] %v8747
      $region40: #{apply.3} parent=31 // pred_fallthru
        _
      %p8812 = scmp.lt.s32.totalorder %s19, 2
      %s8813 = scalar_select %p8812, %s19, 2
      %p8814 = scmp.lt.s32.totalorder %s20, 0
      %s8815 = scalar_select %p8814, %s20, 0
      %s8816 = smul.addr %s8813, 64
      %s8817 = sadd.s32 %s8815, %s8816
      %s8818 = smul.addr %s8817, 4
      %s8819 = scalar_lea.vmem %s3, %s8818
      // Predicated region
      $region41: #{apply.3} parent=31 // pred_check
        %p8820 = pneg %p135
      $region42: #{apply.3} parent=31 // pred_check_branch
        %8822 = sbr.rel (%p8820) target = $region44
      $region43: #{apply.3} parent=31 // pred_region
        _
      $region44: #{apply.3} parent=31 // pred_fallthru
        _
    $region32: #{apply.3} parent=5 // pred_fallthru
      _
    %p8823 = scmp.le.s32.totalorder 2, %s9
    // Predicated region
    $region45: #{apply.3} parent=5 // pred_check
      %p8824 = pneg %p8823
    $region46: #{apply.3} parent=5 // pred_check_branch
      %8826 = sbr.rel (%p8824) target = $region48
    $region47: #{apply.3} parent=5 // pred_region
      %s8827 = ssub.s32 %s9, 2
      // Predicated region
      $region49: #{apply.3} parent=47 // pred_check
        %p8828 = pneg %p141
      $region50: #{apply.3} parent=47 // pred_check_branch
        %8830 = sbr.rel (%p8828) target = $region52
      $region51: #{apply.3} parent=47 // pred_region
        %p8831 = scmp.lt.s32.totalorder %s22, 2
        %s8832 = scalar_select %p8831, %s22, 2
        %p8833 = scmp.lt.s32.totalorder %s23, 0
        %s8834 = scalar_select %p8833, %s23, 0
        %s8835 = smul.addr %s8832, 64
        %s8836 = sadd.s32 %s8834, %s8835
        %s8837 = smul.addr %s8836, 4
        %s8838 = scalar_lea.vmem %s3, %s8837
      $region52: #{apply.3} parent=47 // pred_fallthru
        _
    $region48: #{apply.3} parent=5 // pred_fallthru
      _
  $region6: #{apply.3} parent=0 // loop_footer
    %s13 = sadd.s32 1, %s9
  $region7: #{apply.3} parent=0 // loop_footer_branch
    %8 = sbr.rel target = $region3
  $region8: #{apply.3} parent=0 // loop_exit
    _

</llo_original>
